<compile_context>
chip_gen: v6e
topology: v6e:2x2x1
jax: 0.10.0
libtpu: 0.0.40
codegen_flags: <defaults>
</compile_context>

<pallas_src>
import jax
import jax.numpy as jnp
from jax.experimental import pallas as pl
from jax.experimental.pallas import tpu as pltpu

HIDDEN = 1024  # fixed by nn.Linear(1024, 1)


def _round_up(n, m):
    return ((n + m - 1) // m) * m


def _make_kernel(batch, tile_b, r_rows):
    """Kernel closure over static batch size / tile size (for ragged masking)."""

    def kernel(x_ref, w_ref, b_ref, lab_ref, pred_ref, bce_ref):
        i = pl.program_id(0)

        # MXU mat-vec in the activation's native dtype, f32 accumulation.
        # Contract x's hidden dim against w's hidden dim (w kept in its natural
        # nn.Linear (1, 1024) layout -> this is a trans_b-style matmul).
        z_col = jax.lax.dot_general(
            x_ref[...], w_ref[...],
            dimension_numbers=(((1,), (1,)), ((), ())),
            precision=jax.lax.Precision.HIGHEST,
            preferred_element_type=jnp.float32,
        )                                                     # (TB, 1) f32

        # Lane-dense repack so sigmoid/log/BCE and the stores run on full
        # (8,128) vregs instead of 1-lane columns.
        z = z_col.reshape(r_rows, 128) + b_ref[...]           # (R, 128), (1,1) bcast
        p = jax.nn.sigmoid(z)                                 # (R, 128)
        pred_ref[...] = p                                     # single unmasked store

        # BCELoss with PyTorch's log clamp (log >= -100).
        y = lab_ref[...]                                      # (R, 128) f32
        logp = jnp.maximum(jnp.log(p), -100.0)
        log1mp = jnp.maximum(jnp.log(1.0 - p), -100.0)
        bce = -(y * logp + (1.0 - y) * log1mp)                # (R, 128)

        # Mask rows past the real batch (ragged last tile / padded rows).
        rows = (i * tile_b
                + jax.lax.broadcasted_iota(jnp.int32, (r_rows, 128), 0) * 128
                + jax.lax.broadcasted_iota(jnp.int32, (r_rows, 128), 1))
        bce_ref[...] = jnp.where(rows < batch, bce, 0.0)

    return kernel


def classifier_h_forward(logits, labels, weight, bias, *, tile_b=None):
    """logits: (B, 1024) f32/bf16, labels: (B,) -> (pred (B,) f32, loss scalar f32)."""
    B, H = logits.shape
    assert H == HIDDEN

    itemsize = jnp.dtype(logits.dtype).itemsize
    if tile_b is None:
        tile_b = 4096 if itemsize <= 2 else 2048   # 16 MiB of x double-buffers

    # Tile rows: multiple of 1024 so the lane-dense repack (R = tb//128) keeps
    # R a multiple of 8 (sublane-aligned output blocks); never (much) larger
    # than the batch needs.
    tb = min(_round_up(tile_b, 1024), max(1024, (B // 1024) * 1024))
    r_rows = tb // 128
    num_tiles = pl.cdiv(B, tb)
    total = num_tiles * tb

    # Weight in nn.Linear layout, cast to the activation dtype so the MXU feeds
    # natively (f32 stays f32; bf16 streams bf16 with f32 accumulation).
    w2d = weight.reshape(1, HIDDEN).astype(logits.dtype)
    b2d = bias.reshape(1, 1).astype(jnp.float32)

    # Labels are tiny: pad to the tiled total and pre-pack lane-dense.
    lab2d = jnp.pad(labels.astype(jnp.float32).reshape(B), (0, total - B))
    lab2d = lab2d.reshape(num_tiles * r_rows, 128)

    # x is only padded when the batch is smaller than a single tile (tiny
    # batches, negligible copy). Otherwise it streams unpadded and the last
    # partial block is handled by the in-kernel row mask.
    x = logits if B >= tb else jnp.pad(logits, ((0, tb - B), (0, 0)))

    grid_spec = pltpu.PrefetchScalarGridSpec(
        num_scalar_prefetch=0,
        grid=(num_tiles,),
        in_specs=[
            pl.BlockSpec((tb, HIDDEN), lambda i: (i, 0)),        # x: streamed tiles
            pl.BlockSpec((1, HIDDEN), lambda i: (0, 0)),         # w: VMEM-resident
            pl.BlockSpec((1, 1), lambda i: (0, 0)),              # b: VMEM-resident
            pl.BlockSpec((r_rows, 128), lambda i: (i, 0)),       # labels, lane-dense
        ],
        out_specs=(
            pl.BlockSpec((r_rows, 128), lambda i: (i, 0)),       # pred, lane-dense
            pl.BlockSpec((r_rows, 128), lambda i: (i, 0)),       # per-element BCE
        ),
    )

    pred_dense, bce_dense = pl.pallas_call(
        _make_kernel(B, tb, r_rows),
        out_shape=(
            jax.ShapeDtypeStruct((num_tiles * r_rows, 128), jnp.float32),
            jax.ShapeDtypeStruct((num_tiles * r_rows, 128), jnp.float32),
        ),
        grid_spec=grid_spec,
        compiler_params=pltpu.CompilerParams(
            dimension_semantics=("parallel",),
            vmem_limit_bytes=32 * 1024 * 1024,   # double-buffer headroom, v7x-safe
        ),
    )(x, w2d, b2d, lab2d)

    # PyTorch: squeeze() -> unsqueeze(0) -> [0] leaves a (B,) vector.
    pred = pred_dense.reshape(-1)[:B]
    # Masked rows were written as exact 0.0, so a contiguous sum / B is the mean.
    loss = bce_dense.sum() / B
    return pred, loss


if __name__ == "__main__":
    key = jax.random.PRNGKey(0)
    k_x, k_lab, k_w, k_b = jax.random.split(key, 4)

    # Deterministic synthetic parameters (shapes from nn.Linear(1024, 1)).
    bound = 1.0 / (HIDDEN ** 0.5)
    weight = jax.random.uniform(k_w, (1, HIDDEN), jnp.float32, -bound, bound)
    bias = jax.random.uniform(k_b, (1,), jnp.float32, -bound, bound)

    def reference(logits, labels):
        x = logits.astype(jnp.float32)
        z = jnp.sum(x * weight.reshape(1, HIDDEN), axis=-1) + bias[0]
        p = jax.nn.sigmoid(z)
        logp = jnp.maximum(jnp.log(p), -100.0)          # PyTorch BCELoss clamp
        log1mp = jnp.maximum(jnp.log(1.0 - p), -100.0)
        bce = -(labels * logp + (1.0 - labels) * log1mp)
        return p, jnp.mean(bce)

    # Small single-tile (padded) case and a multi-tile case with a ragged tail.
    for B in (8, 1300):
        kx, kl = jax.random.split(jax.random.fold_in(k_x, B))
        logits = jax.random.normal(kx, (B, HIDDEN), dtype=jnp.float32)
        labels = jax.random.bernoulli(kl, 0.5, (B,)).astype(jnp.float32)

        pred, loss = classifier_h_forward(logits, labels, weight, bias)
        jax.block_until_ready((pred, loss))

        p_ref, l_ref = reference(logits, labels)
        assert pred.shape == (B,)
        assert jnp.allclose(pred, p_ref, atol=1e-4, rtol=1e-4), f"pred mismatch B={B}"
        assert jnp.allclose(loss, l_ref, atol=1e-4, rtol=1e-4), f"loss mismatch B={B}"

    print("KERNEL_OK")
</pallas_src>

<mosaic_0001>
module attributes {stable_mosaic.version = 11 : i64} {
  func.func @kernel(%arg0: i32, %arg1: memref<1024x1024xf32, #tpu.memory_space<vmem>>, %arg2: memref<1x1024xf32, #tpu.memory_space<vmem>>, %arg3: memref<1x1xf32, #tpu.memory_space<vmem>>, %arg4: memref<8x128xf32, #tpu.memory_space<vmem>>, %arg5: memref<8x128xf32, #tpu.memory_space<vmem>>, %arg6: memref<8x128xf32, #tpu.memory_space<vmem>>) attributes {dimension_semantics = [#tpu.dimension_semantics<parallel>], iteration_bounds = array<i64: 1>, scalar_prefetch = 0 : i64, scratch_operands = 0 : i64, tpu.core_type = #tpu.core_type<tc>, window_params = [{transform_indices = @transform_0, window_bounds = array<i64: 1024, 1024>}, {pipeline_mode = #tpu.pipeline_mode<synchronous>, transform_indices = @transform_1, window_bounds = array<i64: 1, 1024>}, {pipeline_mode = #tpu.pipeline_mode<synchronous>, transform_indices = @transform_2, window_bounds = array<i64: 1, 1>}, {transform_indices = @transform_3, window_bounds = array<i64: 8, 128>}, {transform_indices = @transform_4, window_bounds = array<i64: 8, 128>}, {transform_indices = @transform_5, window_bounds = array<i64: 8, 128>}]} {
    %c0 = arith.constant 0 : index
    %c0_0 = arith.constant 0 : index
    %0 = vector.load %arg1[%c0, %c0_0] : memref<1024x1024xf32, #tpu.memory_space<vmem>>, vector<1024x1024xf32>
    %c0_1 = arith.constant 0 : index
    %c0_2 = arith.constant 0 : index
    %1 = vector.load %arg2[%c0_1, %c0_2] : memref<1x1024xf32, #tpu.memory_space<vmem>>, vector<1x1024xf32>
    %cst = arith.constant dense<0.000000e+00> : vector<1024x1xf32>
    %2 = tpu.matmul %0, %1, %cst {dimension_numbers = #tpu.dot_dimension_numbers<[1], [1], [0], [0], [0, 0, 1, 0], [], []>, precision = #tpu.contract_precision<fp32>} : vector<1024x1024xf32>, vector<1x1024xf32>, vector<1024x1xf32> -> vector<1024x1xf32>
    %3 = vector.shape_cast %2 : vector<1024x1xf32> to vector<8x128xf32>
    %c0_3 = arith.constant 0 : index
    %c0_4 = arith.constant 0 : index
    %4 = vector.load %arg3[%c0_3, %c0_4] : memref<1x1xf32, #tpu.memory_space<vmem>>, vector<1x1xf32>
    %5 = vector.broadcast %4 : vector<1x1xf32> to vector<8x128xf32>
    %6 = arith.addf %3, %5 : vector<8x128xf32>
    %7 = arith.negf %6 : vector<8x128xf32>
    %8 = math.exp %7 : vector<8x128xf32>
    %cst_5 = arith.constant 1.000000e+00 : f32
    %9 = vector.broadcast %cst_5 : f32 to vector<8x128xf32>
    %10 = arith.addf %9, %8 : vector<8x128xf32>
    %11 = arith.divf %9, %10 : vector<8x128xf32>
    %c0_6 = arith.constant 0 : index
    %c0_7 = arith.constant 0 : index
    %12 = vector.load %arg5[%c0_6, %c0_7] : memref<8x128xf32, #tpu.memory_space<vmem>>, vector<8x128xf32>
    tpu.vector_store %arg5[%c0_6, %c0_7], %11 {strides = array<i32>} : memref<8x128xf32, #tpu.memory_space<vmem>>, vector<8x128xf32>,
    %c0_8 = arith.constant 0 : index
    %c0_9 = arith.constant 0 : index
    %13 = vector.load %arg4[%c0_8, %c0_9] : memref<8x128xf32, #tpu.memory_space<vmem>>, vector<8x128xf32>
    %14 = math.log %11 : vector<8x128xf32>
    %cst_10 = arith.constant -1.000000e+02 : f32
    %15 = vector.broadcast %cst_10 : f32 to vector<8x128xf32>
    %16 = arith.maximumf %14, %15 : vector<8x128xf32>
    %cst_11 = arith.constant 1.000000e+00 : f32
    %17 = vector.broadcast %cst_11 : f32 to vector<8x128xf32>
    %18 = arith.subf %17, %11 : vector<8x128xf32>
    %19 = math.log %18 : vector<8x128xf32>
    %cst_12 = arith.constant -1.000000e+02 : f32
    %20 = vector.broadcast %cst_12 : f32 to vector<8x128xf32>
    %21 = arith.maximumf %19, %20 : vector<8x128xf32>
    %22 = arith.mulf %13, %16 : vector<8x128xf32>
    %cst_13 = arith.constant 1.000000e+00 : f32
    %23 = vector.broadcast %cst_13 : f32 to vector<8x128xf32>
    %24 = arith.subf %23, %13 : vector<8x128xf32>
    %25 = arith.mulf %24, %21 : vector<8x128xf32>
    %26 = arith.addf %22, %25 : vector<8x128xf32>
    %cst_14 = arith.constant 0.000000e+00 : f32
    %27 = vector.broadcast %cst_14 : f32 to vector<8x128xf32>
    %28 = arith.subf %27, %26 : vector<8x128xf32>
    %c1024_i32 = arith.constant 1024 : i32
    %29 = arith.muli %arg0, %c1024_i32 : i32
    %30 = tpu.iota {dimensions = array<i32: 0>} : vector<8x128xi32>
    %c128_i32 = arith.constant 128 : i32
    %31 = vector.broadcast %c128_i32 : i32 to vector<8x128xi32>
    %32 = arith.muli %30, %31 : vector<8x128xi32>
    %33 = vector.broadcast %29 : i32 to vector<8x128xi32>
    %34 = arith.addi %33, %32 : vector<8x128xi32>
    %35 = tpu.iota {dimensions = array<i32: 1>} : vector<8x128xi32>
    %36 = arith.addi %34, %35 : vector<8x128xi32>
    %c8_i32 = arith.constant 8 : i32
    %37 = vector.broadcast %c8_i32 : i32 to vector<8x128xi32>
    %38 = arith.cmpi slt, %36, %37 : vector<8x128xi32>
    %cst_15 = arith.constant 0.000000e+00 : f32
    %39 = vector.broadcast %cst_15 : f32 to vector<8x128xf32>
    %40 = arith.select %38, %28, %39 : vector<8x128xi1>, vector<8x128xf32>
    %c0_16 = arith.constant 0 : index
    %c0_17 = arith.constant 0 : index
    %41 = vector.load %arg6[%c0_16, %c0_17] : memref<8x128xf32, #tpu.memory_space<vmem>>, vector<8x128xf32>
    tpu.vector_store %arg6[%c0_16, %c0_17], %40 {strides = array<i32>} : memref<8x128xf32, #tpu.memory_space<vmem>>, vector<8x128xf32>,
    return
  }
  func.func @transform_0(%arg0: i32) -> (i32, i32) {
    %c0_i32 = arith.constant 0 : i32
    %c0_i32_0 = arith.constant 0 : i32
    return %arg0, %c0_i32 : i32, i32
  }
  func.func @transform_1(%arg0: i32) -> (i32, i32) {
    %c0_i32 = arith.constant 0 : i32
    %c0_i32_0 = arith.constant 0 : i32
    %c0_i32_1 = arith.constant 0 : i32
    return %c0_i32, %c0_i32_0 : i32, i32
  }
  func.func @transform_2(%arg0: i32) -> (i32, i32) {
    %c0_i32 = arith.constant 0 : i32
    %c0_i32_0 = arith.constant 0 : i32
    %c0_i32_1 = arith.constant 0 : i32
    return %c0_i32, %c0_i32_0 : i32, i32
  }
  func.func @transform_3(%arg0: i32) -> (i32, i32) {
    %c0_i32 = arith.constant 0 : i32
    %c0_i32_0 = arith.constant 0 : i32
    return %arg0, %c0_i32 : i32, i32
  }
  func.func @transform_4(%arg0: i32) -> (i32, i32) {
    %c0_i32 = arith.constant 0 : i32
    %c0_i32_0 = arith.constant 0 : i32
    return %arg0, %c0_i32 : i32, i32
  }
  func.func @transform_5(%arg0: i32) -> (i32, i32) {
    %c0_i32 = arith.constant 0 : i32
    %c0_i32_0 = arith.constant 0 : i32
    return %arg0, %c0_i32 : i32, i32
  }
}

</mosaic_0001>

<llo_original>
// kernel: tpu_custom_call.1
$region0: #{tpu_custom_call.1}
  #allocation0 [shape = 'u32[]', space=smem, size = 0x4, offset = 0x4, fixed_abs, tag = 'smem constant byte address 0x4 - core index']
  #allocation1 [shape = 'u32[144,128]{1,0:T(1,128)}', space=vmem, size = 0x12000, scoped, tag = 'internal scratch']
  #allocation2 [shape = 'f32[1,1]{1,0:T(1,128)S(1)}', space=vmem, size = 0x200, scoped, tag = 'scoped memory for tpu_custom_call.1']
  %s0 = inlined_call_operand.hbm [shape: f32[1024,1024], index: 0, kind: input, shape index: {}]
  %s1 = inlined_call_operand.hbm [shape: f32[1,1024], index: 1, kind: input, shape index: {}]
  %s2 = inlined_call_operand.<no memory space> [shape: f32[1,1], index: 2, kind: input, shape index: {}]
  %s3 = inlined_call_operand.hbm [shape: f32[8,128], index: 3, kind: input, shape index: {}]
  %s4 = inlined_call_operand.hbm [shape: f32[8,128], index: 4, kind: output, shape index: {0}]
  %s5 = inlined_call_operand.hbm [shape: f32[8,128], index: 5, kind: output, shape index: {1}]
  %6 = xla_tuple %s4, %s5
  %s7 = sld [smem:[#allocation0]]
  $region46: #{tpu_custom_call.1} parent=0
    _
  %s9 = ssub.s32 1, %s7
  %s10 = scalar_select 0, %s9, %s7
  %v11 = vstv %s2
  %12 = vst [vmem:[#allocation2] sm:$0x1] %v11
  $region1: #{tpu_custom_call.1} parent=0
    #allocation3 [shape = 'u8[4194304]{0}', space=vmem, size = 0x400000, scoped, tag = 'input window, operand 0, single buffered']
    #allocation4 [shape = 's32[1]{0}', space=sflag, size = 0x4, scoped, tag = 'scoped memory for tpu_custom_call.1']
    #allocation5 [shape = 's32[1]{0}', space=sflag, size = 0x4, scoped, tag = 'scoped memory for tpu_custom_call.1']
    #allocation6 [shape = 'u8[4096]{0}', space=vmem, size = 0x1000, scoped, tag = 'input window, operand 1, single buffered']
    #allocation7 [shape = 's32[1]{0}', space=sflag, size = 0x4, scoped, tag = 'scoped memory for tpu_custom_call.1']
    #allocation8 [shape = 'u8[4096]{0}', space=vmem, size = 0x1000, scoped, tag = 'input window, operand 3, single buffered']
    #allocation9 [shape = 'u8[4096]{0}', space=vmem, size = 0x1000, scoped, tag = 'output window, operand 0, single buffered']
    #allocation10 [shape = 'u8[4096]{0}', space=vmem, size = 0x1000, scoped, tag = 'output window, operand 1, single buffered']
    #allocation11 [shape = 's32[1]{0}', space=sflag, size = 0x4, scoped, tag = 'scoped memory for tpu_custom_call.1']
    %13 = vsyncpa [#allocation4], 0
    %14 = vsyncpa [#allocation7], 0
    %15 = vsyncpa [#allocation5], 0
    %16 = vsyncpa [#allocation11], 0
    // Predicated region
    $region2: #{tpu_custom_call.1} parent=1 // pred_check
      _
    $region3: #{tpu_custom_call.1} parent=1 // pred_check_branch
      %18 = sbr.rel (0) target = $region5
    $region4: #{tpu_custom_call.1} parent=1 // pred_region
      %s20 = ssub.s32 131072, 131072
      %21 = vsyncadd [#allocation4], %s20
      %s22 = sshll.u32 [#allocation3], 4
      %s23 = int_to_ptr.vmem [resolvable:$true] %s22
      %28 = dma.hbm_to_vmem [thread:$0]  %s0, 131072, %s23, [#allocation4], 1024, 1024, 64
    $region5: #{tpu_custom_call.1} parent=1 // pred_fallthru
      _
    // Predicated region
    $region6: #{tpu_custom_call.1} parent=1 // pred_check
      _
    $region7: #{tpu_custom_call.1} parent=1 // pred_check_branch
      %30 = sbr.rel (0) target = $region9
    $region8: #{tpu_custom_call.1} parent=1 // pred_region
      %s32 = ssub.s32 128, 128
      %33 = vsyncadd [#allocation7], %s32
      %s35 = sshll.u32 [#allocation6], 4
      %s36 = int_to_ptr.vmem [resolvable:$true] %s35
      %38 = dma.hbm_to_vmem [thread:$0]  %s1, 128, %s36, [#allocation7]
    $region9: #{tpu_custom_call.1} parent=1 // pred_fallthru
      _
    // Predicated region
    $region10: #{tpu_custom_call.1} parent=1 // pred_check
      _
    $region11: #{tpu_custom_call.1} parent=1 // pred_check_branch
      %40 = sbr.rel (0) target = $region13
    $region12: #{tpu_custom_call.1} parent=1 // pred_region
      _
    $region13: #{tpu_custom_call.1} parent=1 // pred_fallthru
      _
    // Predicated region
    $region14: #{tpu_custom_call.1} parent=1 // pred_check
      _
    $region15: #{tpu_custom_call.1} parent=1 // pred_check_branch
      %42 = sbr.rel (0) target = $region17
    $region16: #{tpu_custom_call.1} parent=1 // pred_region
      %s44 = ssub.s32 128, 128
      %45 = vsyncadd [#allocation7], %s44
      %s47 = sshll.u32 [#allocation8], 4
      %s48 = int_to_ptr.vmem [resolvable:$true] %s47
      %50 = dma.hbm_to_vmem [thread:$0]  %s3, 128, %s48, [#allocation7]
    $region17: #{tpu_custom_call.1} parent=1 // pred_fallthru
      _
    // Predicated region
    $region18: #{tpu_custom_call.1} parent=1 // pred_check
      _
    $region19: #{tpu_custom_call.1} parent=1 // pred_check_branch
      %52 = sbr.rel (0) target = $region21
    $region20: #{tpu_custom_call.1} parent=1 // pred_region
      %53 = dma.done [#allocation4], 131072
    $region21: #{tpu_custom_call.1} parent=1 // pred_fallthru
      _
    // Predicated region
    $region22: #{tpu_custom_call.1} parent=1 // pred_check
      _
    $region23: #{tpu_custom_call.1} parent=1 // pred_check_branch
      %55 = sbr.rel (0) target = $region25
    $region24: #{tpu_custom_call.1} parent=1 // pred_region
      %56 = dma.done [#allocation7], 128
    $region25: #{tpu_custom_call.1} parent=1 // pred_fallthru
      _
    // Predicated region
    $region26: #{tpu_custom_call.1} parent=1 // pred_check
      _
    $region27: #{tpu_custom_call.1} parent=1 // pred_check_branch
      %58 = sbr.rel (0) target = $region29
    $region28: #{tpu_custom_call.1} parent=1 // pred_region
      %59 = dma.done [#allocation7], 128
    $region29: #{tpu_custom_call.1} parent=1 // pred_fallthru
      _
    %v60 = vld [vmem:[#allocation3] sm:$0xff]
    %v61 = vld [vmem:[#allocation3 + $0x8] sm:$0xff]
    %v62 = vld [vmem:[#allocation3 + $0x10] sm:$0xff]
    %v63 = vld [vmem:[#allocation3 + $0x18] sm:$0xff]
    %v64 = vld [vmem:[#allocation3 + $0x20] sm:$0xff]
    %v65 = vld [vmem:[#allocation3 + $0x28] sm:$0xff]
    %v66 = vld [vmem:[#allocation3 + $0x30] sm:$0xff]
    %v67 = vld [vmem:[#allocation3 + $0x38] sm:$0xff]
    %v68 = vld [vmem:[#allocation3 + $0x40] sm:$0xff]
    %v69 = vld [vmem:[#allocation3 + $0x48] sm:$0xff]
    %v70 = vld [vmem:[#allocation3 + $0x50] sm:$0xff]
    %v71 = vld [vmem:[#allocation3 + $0x58] sm:$0xff]
    %v72 = vld [vmem:[#allocation3 + $0x60] sm:$0xff]
    %v73 = vld [vmem:[#allocation3 + $0x68] sm:$0xff]
    %v74 = vld [vmem:[#allocation3 + $0x70] sm:$0xff]
    %v75 = vld [vmem:[#allocation3 + $0x78] sm:$0xff]
    %v76 = vld [vmem:[#allocation3 + $0x80] sm:$0xff]
    %v77 = vld [vmem:[#allocation3 + $0x88] sm:$0xff]
    %v78 = vld [vmem:[#allocation3 + $0x90] sm:$0xff]
    %v79 = vld [vmem:[#allocation3 + $0x98] sm:$0xff]
    %v80 = vld [vmem:[#allocation3 + $0xa0] sm:$0xff]
    %v81 = vld [vmem:[#allocation3 + $0xa8] sm:$0xff]
    %v82 = vld [vmem:[#allocation3 + $0xb0] sm:$0xff]
    %v83 = vld [vmem:[#allocation3 + $0xb8] sm:$0xff]
    %v84 = vld [vmem:[#allocation3 + $0xc0] sm:$0xff]
    %v85 = vld [vmem:[#allocation3 + $0xc8] sm:$0xff]
    %v86 = vld [vmem:[#allocation3 + $0xd0] sm:$0xff]
    %v87 = vld [vmem:[#allocation3 + $0xd8] sm:$0xff]
    %v88 = vld [vmem:[#allocation3 + $0xe0] sm:$0xff]
    %v89 = vld [vmem:[#allocation3 + $0xe8] sm:$0xff]
    %v90 = vld [vmem:[#allocation3 + $0xf0] sm:$0xff]
    %v91 = vld [vmem:[#allocation3 + $0xf8] sm:$0xff]
    %v92 = vld [vmem:[#allocation3 + $0x100] sm:$0xff]
    %v93 = vld [vmem:[#allocation3 + $0x108] sm:$0xff]
    %v94 = vld [vmem:[#allocation3 + $0x110] sm:$0xff]
    %v95 = vld [vmem:[#allocation3 + $0x118] sm:$0xff]
    %v96 = vld [vmem:[#allocation3 + $0x120] sm:$0xff]
    %v97 = vld [vmem:[#allocation3 + $0x128] sm:$0xff]
    %v98 = vld [vmem:[#allocation3 + $0x130] sm:$0xff]
    %v99 = vld [vmem:[#allocation3 + $0x138] sm:$0xff]
    %v100 = vld [vmem:[#allocation3 + $0x140] sm:$0xff]
    %v101 = vld [vmem:[#allocation3 + $0x148] sm:$0xff]
    %v102 = vld [vmem:[#allocation3 + $0x150] sm:$0xff]
    %v103 = vld [vmem:[#allocation3 + $0x158] sm:$0xff]
    %v104 = vld [vmem:[#allocation3 + $0x160] sm:$0xff]
    %v105 = vld [vmem:[#allocation3 + $0x168] sm:$0xff]
    %v106 = vld [vmem:[#allocation3 + $0x170] sm:$0xff]
    %v107 = vld [vmem:[#allocation3 + $0x178] sm:$0xff]
    %v108 = vld [vmem:[#allocation3 + $0x180] sm:$0xff]
    %v109 = vld [vmem:[#allocation3 + $0x188] sm:$0xff]
    %v110 = vld [vmem:[#allocation3 + $0x190] sm:$0xff]
    %v111 = vld [vmem:[#allocation3 + $0x198] sm:$0xff]
    %v112 = vld [vmem:[#allocation3 + $0x1a0] sm:$0xff]
    %v113 = vld [vmem:[#allocation3 + $0x1a8] sm:$0xff]
    %v114 = vld [vmem:[#allocation3 + $0x1b0] sm:$0xff]
    %v115 = vld [vmem:[#allocation3 + $0x1b8] sm:$0xff]
    %v116 = vld [vmem:[#allocation3 + $0x1c0] sm:$0xff]
    %v117 = vld [vmem:[#allocation3 + $0x1c8] sm:$0xff]
    %v118 = vld [vmem:[#allocation3 + $0x1d0] sm:$0xff]
    %v119 = vld [vmem:[#allocation3 + $0x1d8] sm:$0xff]
    %v120 = vld [vmem:[#allocation3 + $0x1e0] sm:$0xff]
    %v121 = vld [vmem:[#allocation3 + $0x1e8] sm:$0xff]
    %v122 = vld [vmem:[#allocation3 + $0x1f0] sm:$0xff]
    %v123 = vld [vmem:[#allocation3 + $0x1f8] sm:$0xff]
    %v124 = vld [vmem:[#allocation3 + $0x200] sm:$0xff]
    %v125 = vld [vmem:[#allocation3 + $0x208] sm:$0xff]
    %v126 = vld [vmem:[#allocation3 + $0x210] sm:$0xff]
    %v127 = vld [vmem:[#allocation3 + $0x218] sm:$0xff]
    %v128 = vld [vmem:[#allocation3 + $0x220] sm:$0xff]
    %v129 = vld [vmem:[#allocation3 + $0x228] sm:$0xff]
    %v130 = vld [vmem:[#allocation3 + $0x230] sm:$0xff]
    %v131 = vld [vmem:[#allocation3 + $0x238] sm:$0xff]
    %v132 = vld [vmem:[#allocation3 + $0x240] sm:$0xff]
    %v133 = vld [vmem:[#allocation3 + $0x248] sm:$0xff]
    %v134 = vld [vmem:[#allocation3 + $0x250] sm:$0xff]
    %v135 = vld [vmem:[#allocation3 + $0x258] sm:$0xff]
    %v136 = vld [vmem:[#allocation3 + $0x260] sm:$0xff]
    %v137 = vld [vmem:[#allocation3 + $0x268] sm:$0xff]
    %v138 = vld [vmem:[#allocation3 + $0x270] sm:$0xff]
    %v139 = vld [vmem:[#allocation3 + $0x278] sm:$0xff]
    %v140 = vld [vmem:[#allocation3 + $0x280] sm:$0xff]
    %v141 = vld [vmem:[#allocation3 + $0x288] sm:$0xff]
    %v142 = vld [vmem:[#allocation3 + $0x290] sm:$0xff]
    %v143 = vld [vmem:[#allocation3 + $0x298] sm:$0xff]
    %v144 = vld [vmem:[#allocation3 + $0x2a0] sm:$0xff]
    %v145 = vld [vmem:[#allocation3 + $0x2a8] sm:$0xff]
    %v146 = vld [vmem:[#allocation3 + $0x2b0] sm:$0xff]
    %v147 = vld [vmem:[#allocation3 + $0x2b8] sm:$0xff]
    %v148 = vld [vmem:[#allocation3 + $0x2c0] sm:$0xff]
    %v149 = vld [vmem:[#allocation3 + $0x2c8] sm:$0xff]
    %v150 = vld [vmem:[#allocation3 + $0x2d0] sm:$0xff]
    %v151 = vld [vmem:[#allocation3 + $0x2d8] sm:$0xff]
    %v152 = vld [vmem:[#allocation3 + $0x2e0] sm:$0xff]
    %v153 = vld [vmem:[#allocation3 + $0x2e8] sm:$0xff]
    %v154 = vld [vmem:[#allocation3 + $0x2f0] sm:$0xff]
    %v155 = vld [vmem:[#allocation3 + $0x2f8] sm:$0xff]
    %v156 = vld [vmem:[#allocation3 + $0x300] sm:$0xff]
    %v157 = vld [vmem:[#allocation3 + $0x308] sm:$0xff]
    %v158 = vld [vmem:[#allocation3 + $0x310] sm:$0xff]
    %v159 = vld [vmem:[#allocation3 + $0x318] sm:$0xff]
    %v160 = vld [vmem:[#allocation3 + $0x320] sm:$0xff]
    %v161 = vld [vmem:[#allocation3 + $0x328] sm:$0xff]
    %v162 = vld [vmem:[#allocation3 + $0x330] sm:$0xff]
    %v163 = vld [vmem:[#allocation3 + $0x338] sm:$0xff]
    %v164 = vld [vmem:[#allocation3 + $0x340] sm:$0xff]
    %v165 = vld [vmem:[#allocation3 + $0x348] sm:$0xff]
    %v166 = vld [vmem:[#allocation3 + $0x350] sm:$0xff]
    %v167 = vld [vmem:[#allocation3 + $0x358] sm:$0xff]
    %v168 = vld [vmem:[#allocation3 + $0x360] sm:$0xff]
    %v169 = vld [vmem:[#allocation3 + $0x368] sm:$0xff]
    %v170 = vld [vmem:[#allocation3 + $0x370] sm:$0xff]
    %v171 = vld [vmem:[#allocation3 + $0x378] sm:$0xff]
    %v172 = vld [vmem:[#allocation3 + $0x380] sm:$0xff]
    %v173 = vld [vmem:[#allocation3 + $0x388] sm:$0xff]
    %v174 = vld [vmem:[#allocation3 + $0x390] sm:$0xff]
    %v175 = vld [vmem:[#allocation3 + $0x398] sm:$0xff]
    %v176 = vld [vmem:[#allocation3 + $0x3a0] sm:$0xff]
    %v177 = vld [vmem:[#allocation3 + $0x3a8] sm:$0xff]
    %v178 = vld [vmem:[#allocation3 + $0x3b0] sm:$0xff]
    %v179 = vld [vmem:[#allocation3 + $0x3b8] sm:$0xff]
    %v180 = vld [vmem:[#allocation3 + $0x3c0] sm:$0xff]
    %v181 = vld [vmem:[#allocation3 + $0x3c8] sm:$0xff]
    %v182 = vld [vmem:[#allocation3 + $0x3d0] sm:$0xff]
    %v183 = vld [vmem:[#allocation3 + $0x3d8] sm:$0xff]
    %v184 = vld [vmem:[#allocation3 + $0x3e0] sm:$0xff]
    %v185 = vld [vmem:[#allocation3 + $0x3e8] sm:$0xff]
    %v186 = vld [vmem:[#allocation3 + $0x3f0] sm:$0xff]
    %v187 = vld [vmem:[#allocation3 + $0x3f8] sm:$0xff]
    %v188 = vld [vmem:[#allocation3 + $0x400] sm:$0xff]
    %v189 = vld [vmem:[#allocation3 + $0x408] sm:$0xff]
    %v190 = vld [vmem:[#allocation3 + $0x410] sm:$0xff]
    %v191 = vld [vmem:[#allocation3 + $0x418] sm:$0xff]
    %v192 = vld [vmem:[#allocation3 + $0x420] sm:$0xff]
    %v193 = vld [vmem:[#allocation3 + $0x428] sm:$0xff]
    %v194 = vld [vmem:[#allocation3 + $0x430] sm:$0xff]
    %v195 = vld [vmem:[#allocation3 + $0x438] sm:$0xff]
    %v196 = vld [vmem:[#allocation3 + $0x440] sm:$0xff]
    %v197 = vld [vmem:[#allocation3 + $0x448] sm:$0xff]
    %v198 = vld [vmem:[#allocation3 + $0x450] sm:$0xff]
    %v199 = vld [vmem:[#allocation3 + $0x458] sm:$0xff]
    %v200 = vld [vmem:[#allocation3 + $0x460] sm:$0xff]
    %v201 = vld [vmem:[#allocation3 + $0x468] sm:$0xff]
    %v202 = vld [vmem:[#allocation3 + $0x470] sm:$0xff]
    %v203 = vld [vmem:[#allocation3 + $0x478] sm:$0xff]
    %v204 = vld [vmem:[#allocation3 + $0x480] sm:$0xff]
    %v205 = vld [vmem:[#allocation3 + $0x488] sm:$0xff]
    %v206 = vld [vmem:[#allocation3 + $0x490] sm:$0xff]
    %v207 = vld [vmem:[#allocation3 + $0x498] sm:$0xff]
    %v208 = vld [vmem:[#allocation3 + $0x4a0] sm:$0xff]
    %v209 = vld [vmem:[#allocation3 + $0x4a8] sm:$0xff]
    %v210 = vld [vmem:[#allocation3 + $0x4b0] sm:$0xff]
    %v211 = vld [vmem:[#allocation3 + $0x4b8] sm:$0xff]
    %v212 = vld [vmem:[#allocation3 + $0x4c0] sm:$0xff]
    %v213 = vld [vmem:[#allocation3 + $0x4c8] sm:$0xff]
    %v214 = vld [vmem:[#allocation3 + $0x4d0] sm:$0xff]
    %v215 = vld [vmem:[#allocation3 + $0x4d8] sm:$0xff]
    %v216 = vld [vmem:[#allocation3 + $0x4e0] sm:$0xff]
    %v217 = vld [vmem:[#allocation3 + $0x4e8] sm:$0xff]
    %v218 = vld [vmem:[#allocation3 + $0x4f0] sm:$0xff]
    %v219 = vld [vmem:[#allocation3 + $0x4f8] sm:$0xff]
    %v220 = vld [vmem:[#allocation3 + $0x500] sm:$0xff]
    %v221 = vld [vmem:[#allocation3 + $0x508] sm:$0xff]
    %v222 = vld [vmem:[#allocation3 + $0x510] sm:$0xff]
    %v223 = vld [vmem:[#allocation3 + $0x518] sm:$0xff]
    %v224 = vld [vmem:[#allocation3 + $0x520] sm:$0xff]
    %v225 = vld [vmem:[#allocation3 + $0x528] sm:$0xff]
    %v226 = vld [vmem:[#allocation3 + $0x530] sm:$0xff]
    %v227 = vld [vmem:[#allocation3 + $0x538] sm:$0xff]
    %v228 = vld [vmem:[#allocation3 + $0x540] sm:$0xff]
    %v229 = vld [vmem:[#allocation3 + $0x548] sm:$0xff]
    %v230 = vld [vmem:[#allocation3 + $0x550] sm:$0xff]
    %v231 = vld [vmem:[#allocation3 + $0x558] sm:$0xff]
    %v232 = vld [vmem:[#allocation3 + $0x560] sm:$0xff]
    %v233 = vld [vmem:[#allocation3 + $0x568] sm:$0xff]
    %v234 = vld [vmem:[#allocation3 + $0x570] sm:$0xff]
    %v235 = vld [vmem:[#allocation3 + $0x578] sm:$0xff]
    %v236 = vld [vmem:[#allocation3 + $0x580] sm:$0xff]
    %v237 = vld [vmem:[#allocation3 + $0x588] sm:$0xff]
    %v238 = vld [vmem:[#allocation3 + $0x590] sm:$0xff]
    %v239 = vld [vmem:[#allocation3 + $0x598] sm:$0xff]
    %v240 = vld [vmem:[#allocation3 + $0x5a0] sm:$0xff]
    %v241 = vld [vmem:[#allocation3 + $0x5a8] sm:$0xff]
    %v242 = vld [vmem:[#allocation3 + $0x5b0] sm:$0xff]
    %v243 = vld [vmem:[#allocation3 + $0x5b8] sm:$0xff]
    %v244 = vld [vmem:[#allocation3 + $0x5c0] sm:$0xff]
    %v245 = vld [vmem:[#allocation3 + $0x5c8] sm:$0xff]
    %v246 = vld [vmem:[#allocation3 + $0x5d0] sm:$0xff]
    %v247 = vld [vmem:[#allocation3 + $0x5d8] sm:$0xff]
    %v248 = vld [vmem:[#allocation3 + $0x5e0] sm:$0xff]
    %v249 = vld [vmem:[#allocation3 + $0x5e8] sm:$0xff]
    %v250 = vld [vmem:[#allocation3 + $0x5f0] sm:$0xff]
    %v251 = vld [vmem:[#allocation3 + $0x5f8] sm:$0xff]
    %v252 = vld [vmem:[#allocation3 + $0x600] sm:$0xff]
    %v253 = vld [vmem:[#allocation3 + $0x608] sm:$0xff]
    %v254 = vld [vmem:[#allocation3 + $0x610] sm:$0xff]
    %v255 = vld [vmem:[#allocation3 + $0x618] sm:$0xff]
    %v256 = vld [vmem:[#allocation3 + $0x620] sm:$0xff]
    %v257 = vld [vmem:[#allocation3 + $0x628] sm:$0xff]
    %v258 = vld [vmem:[#allocation3 + $0x630] sm:$0xff]
    %v259 = vld [vmem:[#allocation3 + $0x638] sm:$0xff]
    %v260 = vld [vmem:[#allocation3 + $0x640] sm:$0xff]
    %v261 = vld [vmem:[#allocation3 + $0x648] sm:$0xff]
    %v262 = vld [vmem:[#allocation3 + $0x650] sm:$0xff]
    %v263 = vld [vmem:[#allocation3 + $0x658] sm:$0xff]
    %v264 = vld [vmem:[#allocation3 + $0x660] sm:$0xff]
    %v265 = vld [vmem:[#allocation3 + $0x668] sm:$0xff]
    %v266 = vld [vmem:[#allocation3 + $0x670] sm:$0xff]
    %v267 = vld [vmem:[#allocation3 + $0x678] sm:$0xff]
    %v268 = vld [vmem:[#allocation3 + $0x680] sm:$0xff]
    %v269 = vld [vmem:[#allocation3 + $0x688] sm:$0xff]
    %v270 = vld [vmem:[#allocation3 + $0x690] sm:$0xff]
    %v271 = vld [vmem:[#allocation3 + $0x698] sm:$0xff]
    %v272 = vld [vmem:[#allocation3 + $0x6a0] sm:$0xff]
    %v273 = vld [vmem:[#allocation3 + $0x6a8] sm:$0xff]
    %v274 = vld [vmem:[#allocation3 + $0x6b0] sm:$0xff]
    %v275 = vld [vmem:[#allocation3 + $0x6b8] sm:$0xff]
    %v276 = vld [vmem:[#allocation3 + $0x6c0] sm:$0xff]
    %v277 = vld [vmem:[#allocation3 + $0x6c8] sm:$0xff]
    %v278 = vld [vmem:[#allocation3 + $0x6d0] sm:$0xff]
    %v279 = vld [vmem:[#allocation3 + $0x6d8] sm:$0xff]
    %v280 = vld [vmem:[#allocation3 + $0x6e0] sm:$0xff]
    %v281 = vld [vmem:[#allocation3 + $0x6e8] sm:$0xff]
    %v282 = vld [vmem:[#allocation3 + $0x6f0] sm:$0xff]
    %v283 = vld [vmem:[#allocation3 + $0x6f8] sm:$0xff]
    %v284 = vld [vmem:[#allocation3 + $0x700] sm:$0xff]
    %v285 = vld [vmem:[#allocation3 + $0x708] sm:$0xff]
    %v286 = vld [vmem:[#allocation3 + $0x710] sm:$0xff]
    %v287 = vld [vmem:[#allocation3 + $0x718] sm:$0xff]
    %v288 = vld [vmem:[#allocation3 + $0x720] sm:$0xff]
    %v289 = vld [vmem:[#allocation3 + $0x728] sm:$0xff]
    %v290 = vld [vmem:[#allocation3 + $0x730] sm:$0xff]
    %v291 = vld [vmem:[#allocation3 + $0x738] sm:$0xff]
    %v292 = vld [vmem:[#allocation3 + $0x740] sm:$0xff]
    %v293 = vld [vmem:[#allocation3 + $0x748] sm:$0xff]
    %v294 = vld [vmem:[#allocation3 + $0x750] sm:$0xff]
    %v295 = vld [vmem:[#allocation3 + $0x758] sm:$0xff]
    %v296 = vld [vmem:[#allocation3 + $0x760] sm:$0xff]
    %v297 = vld [vmem:[#allocation3 + $0x768] sm:$0xff]
    %v298 = vld [vmem:[#allocation3 + $0x770] sm:$0xff]
    %v299 = vld [vmem:[#allocation3 + $0x778] sm:$0xff]
    %v300 = vld [vmem:[#allocation3 + $0x780] sm:$0xff]
    %v301 = vld [vmem:[#allocation3 + $0x788] sm:$0xff]
    %v302 = vld [vmem:[#allocation3 + $0x790] sm:$0xff]
    %v303 = vld [vmem:[#allocation3 + $0x798] sm:$0xff]
    %v304 = vld [vmem:[#allocation3 + $0x7a0] sm:$0xff]
    %v305 = vld [vmem:[#allocation3 + $0x7a8] sm:$0xff]
    %v306 = vld [vmem:[#allocation3 + $0x7b0] sm:$0xff]
    %v307 = vld [vmem:[#allocation3 + $0x7b8] sm:$0xff]
    %v308 = vld [vmem:[#allocation3 + $0x7c0] sm:$0xff]
    %v309 = vld [vmem:[#allocation3 + $0x7c8] sm:$0xff]
    %v310 = vld [vmem:[#allocation3 + $0x7d0] sm:$0xff]
    %v311 = vld [vmem:[#allocation3 + $0x7d8] sm:$0xff]
    %v312 = vld [vmem:[#allocation3 + $0x7e0] sm:$0xff]
    %v313 = vld [vmem:[#allocation3 + $0x7e8] sm:$0xff]
    %v314 = vld [vmem:[#allocation3 + $0x7f0] sm:$0xff]
    %v315 = vld [vmem:[#allocation3 + $0x7f8] sm:$0xff]
    %v316 = vld [vmem:[#allocation3 + $0x800] sm:$0xff]
    %v317 = vld [vmem:[#allocation3 + $0x808] sm:$0xff]
    %v318 = vld [vmem:[#allocation3 + $0x810] sm:$0xff]
    %v319 = vld [vmem:[#allocation3 + $0x818] sm:$0xff]
    %v320 = vld [vmem:[#allocation3 + $0x820] sm:$0xff]
    %v321 = vld [vmem:[#allocation3 + $0x828] sm:$0xff]
    %v322 = vld [vmem:[#allocation3 + $0x830] sm:$0xff]
    %v323 = vld [vmem:[#allocation3 + $0x838] sm:$0xff]
    %v324 = vld [vmem:[#allocation3 + $0x840] sm:$0xff]
    %v325 = vld [vmem:[#allocation3 + $0x848] sm:$0xff]
    %v326 = vld [vmem:[#allocation3 + $0x850] sm:$0xff]
    %v327 = vld [vmem:[#allocation3 + $0x858] sm:$0xff]
    %v328 = vld [vmem:[#allocation3 + $0x860] sm:$0xff]
    %v329 = vld [vmem:[#allocation3 + $0x868] sm:$0xff]
    %v330 = vld [vmem:[#allocation3 + $0x870] sm:$0xff]
    %v331 = vld [vmem:[#allocation3 + $0x878] sm:$0xff]
    %v332 = vld [vmem:[#allocation3 + $0x880] sm:$0xff]
    %v333 = vld [vmem:[#allocation3 + $0x888] sm:$0xff]
    %v334 = vld [vmem:[#allocation3 + $0x890] sm:$0xff]
    %v335 = vld [vmem:[#allocation3 + $0x898] sm:$0xff]
    %v336 = vld [vmem:[#allocation3 + $0x8a0] sm:$0xff]
    %v337 = vld [vmem:[#allocation3 + $0x8a8] sm:$0xff]
    %v338 = vld [vmem:[#allocation3 + $0x8b0] sm:$0xff]
    %v339 = vld [vmem:[#allocation3 + $0x8b8] sm:$0xff]
    %v340 = vld [vmem:[#allocation3 + $0x8c0] sm:$0xff]
    %v341 = vld [vmem:[#allocation3 + $0x8c8] sm:$0xff]
    %v342 = vld [vmem:[#allocation3 + $0x8d0] sm:$0xff]
    %v343 = vld [vmem:[#allocation3 + $0x8d8] sm:$0xff]
    %v344 = vld [vmem:[#allocation3 + $0x8e0] sm:$0xff]
    %v345 = vld [vmem:[#allocation3 + $0x8e8] sm:$0xff]
    %v346 = vld [vmem:[#allocation3 + $0x8f0] sm:$0xff]
    %v347 = vld [vmem:[#allocation3 + $0x8f8] sm:$0xff]
    %v348 = vld [vmem:[#allocation3 + $0x900] sm:$0xff]
    %v349 = vld [vmem:[#allocation3 + $0x908] sm:$0xff]
    %v350 = vld [vmem:[#allocation3 + $0x910] sm:$0xff]
    %v351 = vld [vmem:[#allocation3 + $0x918] sm:$0xff]
    %v352 = vld [vmem:[#allocation3 + $0x920] sm:$0xff]
    %v353 = vld [vmem:[#allocation3 + $0x928] sm:$0xff]
    %v354 = vld [vmem:[#allocation3 + $0x930] sm:$0xff]
    %v355 = vld [vmem:[#allocation3 + $0x938] sm:$0xff]
    %v356 = vld [vmem:[#allocation3 + $0x940] sm:$0xff]
    %v357 = vld [vmem:[#allocation3 + $0x948] sm:$0xff]
    %v358 = vld [vmem:[#allocation3 + $0x950] sm:$0xff]
    %v359 = vld [vmem:[#allocation3 + $0x958] sm:$0xff]
    %v360 = vld [vmem:[#allocation3 + $0x960] sm:$0xff]
    %v361 = vld [vmem:[#allocation3 + $0x968] sm:$0xff]
    %v362 = vld [vmem:[#allocation3 + $0x970] sm:$0xff]
    %v363 = vld [vmem:[#allocation3 + $0x978] sm:$0xff]
    %v364 = vld [vmem:[#allocation3 + $0x980] sm:$0xff]
    %v365 = vld [vmem:[#allocation3 + $0x988] sm:$0xff]
    %v366 = vld [vmem:[#allocation3 + $0x990] sm:$0xff]
    %v367 = vld [vmem:[#allocation3 + $0x998] sm:$0xff]
    %v368 = vld [vmem:[#allocation3 + $0x9a0] sm:$0xff]
    %v369 = vld [vmem:[#allocation3 + $0x9a8] sm:$0xff]
    %v370 = vld [vmem:[#allocation3 + $0x9b0] sm:$0xff]
    %v371 = vld [vmem:[#allocation3 + $0x9b8] sm:$0xff]
    %v372 = vld [vmem:[#allocation3 + $0x9c0] sm:$0xff]
    %v373 = vld [vmem:[#allocation3 + $0x9c8] sm:$0xff]
    %v374 = vld [vmem:[#allocation3 + $0x9d0] sm:$0xff]
    %v375 = vld [vmem:[#allocation3 + $0x9d8] sm:$0xff]
    %v376 = vld [vmem:[#allocation3 + $0x9e0] sm:$0xff]
    %v377 = vld [vmem:[#allocation3 + $0x9e8] sm:$0xff]
    %v378 = vld [vmem:[#allocation3 + $0x9f0] sm:$0xff]
    %v379 = vld [vmem:[#allocation3 + $0x9f8] sm:$0xff]
    %v380 = vld [vmem:[#allocation3 + $0xa00] sm:$0xff]
    %v381 = vld [vmem:[#allocation3 + $0xa08] sm:$0xff]
    %v382 = vld [vmem:[#allocation3 + $0xa10] sm:$0xff]
    %v383 = vld [vmem:[#allocation3 + $0xa18] sm:$0xff]
    %v384 = vld [vmem:[#allocation3 + $0xa20] sm:$0xff]
    %v385 = vld [vmem:[#allocation3 + $0xa28] sm:$0xff]
    %v386 = vld [vmem:[#allocation3 + $0xa30] sm:$0xff]
    %v387 = vld [vmem:[#allocation3 + $0xa38] sm:$0xff]
    %v388 = vld [vmem:[#allocation3 + $0xa40] sm:$0xff]
    %v389 = vld [vmem:[#allocation3 + $0xa48] sm:$0xff]
    %v390 = vld [vmem:[#allocation3 + $0xa50] sm:$0xff]
    %v391 = vld [vmem:[#allocation3 + $0xa58] sm:$0xff]
    %v392 = vld [vmem:[#allocation3 + $0xa60] sm:$0xff]
    %v393 = vld [vmem:[#allocation3 + $0xa68] sm:$0xff]
    %v394 = vld [vmem:[#allocation3 + $0xa70] sm:$0xff]
    %v395 = vld [vmem:[#allocation3 + $0xa78] sm:$0xff]
    %v396 = vld [vmem:[#allocation3 + $0xa80] sm:$0xff]
    %v397 = vld [vmem:[#allocation3 + $0xa88] sm:$0xff]
    %v398 = vld [vmem:[#allocation3 + $0xa90] sm:$0xff]
    %v399 = vld [vmem:[#allocation3 + $0xa98] sm:$0xff]
    %v400 = vld [vmem:[#allocation3 + $0xaa0] sm:$0xff]
    %v401 = vld [vmem:[#allocation3 + $0xaa8] sm:$0xff]
    %v402 = vld [vmem:[#allocation3 + $0xab0] sm:$0xff]
    %v403 = vld [vmem:[#allocation3 + $0xab8] sm:$0xff]
    %v404 = vld [vmem:[#allocation3 + $0xac0] sm:$0xff]
    %v405 = vld [vmem:[#allocation3 + $0xac8] sm:$0xff]
    %v406 = vld [vmem:[#allocation3 + $0xad0] sm:$0xff]
    %v407 = vld [vmem:[#allocation3 + $0xad8] sm:$0xff]
    %v408 = vld [vmem:[#allocation3 + $0xae0] sm:$0xff]
    %v409 = vld [vmem:[#allocation3 + $0xae8] sm:$0xff]
    %v410 = vld [vmem:[#allocation3 + $0xaf0] sm:$0xff]
    %v411 = vld [vmem:[#allocation3 + $0xaf8] sm:$0xff]
    %v412 = vld [vmem:[#allocation3 + $0xb00] sm:$0xff]
    %v413 = vld [vmem:[#allocation3 + $0xb08] sm:$0xff]
    %v414 = vld [vmem:[#allocation3 + $0xb10] sm:$0xff]
    %v415 = vld [vmem:[#allocation3 + $0xb18] sm:$0xff]
    %v416 = vld [vmem:[#allocation3 + $0xb20] sm:$0xff]
    %v417 = vld [vmem:[#allocation3 + $0xb28] sm:$0xff]
    %v418 = vld [vmem:[#allocation3 + $0xb30] sm:$0xff]
    %v419 = vld [vmem:[#allocation3 + $0xb38] sm:$0xff]
    %v420 = vld [vmem:[#allocation3 + $0xb40] sm:$0xff]
    %v421 = vld [vmem:[#allocation3 + $0xb48] sm:$0xff]
    %v422 = vld [vmem:[#allocation3 + $0xb50] sm:$0xff]
    %v423 = vld [vmem:[#allocation3 + $0xb58] sm:$0xff]
    %v424 = vld [vmem:[#allocation3 + $0xb60] sm:$0xff]
    %v425 = vld [vmem:[#allocation3 + $0xb68] sm:$0xff]
    %v426 = vld [vmem:[#allocation3 + $0xb70] sm:$0xff]
    %v427 = vld [vmem:[#allocation3 + $0xb78] sm:$0xff]
    %v428 = vld [vmem:[#allocation3 + $0xb80] sm:$0xff]
    %v429 = vld [vmem:[#allocation3 + $0xb88] sm:$0xff]
    %v430 = vld [vmem:[#allocation3 + $0xb90] sm:$0xff]
    %v431 = vld [vmem:[#allocation3 + $0xb98] sm:$0xff]
    %v432 = vld [vmem:[#allocation3 + $0xba0] sm:$0xff]
    %v433 = vld [vmem:[#allocation3 + $0xba8] sm:$0xff]
    %v434 = vld [vmem:[#allocation3 + $0xbb0] sm:$0xff]
    %v435 = vld [vmem:[#allocation3 + $0xbb8] sm:$0xff]
    %v436 = vld [vmem:[#allocation3 + $0xbc0] sm:$0xff]
    %v437 = vld [vmem:[#allocation3 + $0xbc8] sm:$0xff]
    %v438 = vld [vmem:[#allocation3 + $0xbd0] sm:$0xff]
    %v439 = vld [vmem:[#allocation3 + $0xbd8] sm:$0xff]
    %v440 = vld [vmem:[#allocation3 + $0xbe0] sm:$0xff]
    %v441 = vld [vmem:[#allocation3 + $0xbe8] sm:$0xff]
    %v442 = vld [vmem:[#allocation3 + $0xbf0] sm:$0xff]
    %v443 = vld [vmem:[#allocation3 + $0xbf8] sm:$0xff]
    %v444 = vld [vmem:[#allocation3 + $0xc00] sm:$0xff]
    %v445 = vld [vmem:[#allocation3 + $0xc08] sm:$0xff]
    %v446 = vld [vmem:[#allocation3 + $0xc10] sm:$0xff]
    %v447 = vld [vmem:[#allocation3 + $0xc18] sm:$0xff]
    %v448 = vld [vmem:[#allocation3 + $0xc20] sm:$0xff]
    %v449 = vld [vmem:[#allocation3 + $0xc28] sm:$0xff]
    %v450 = vld [vmem:[#allocation3 + $0xc30] sm:$0xff]
    %v451 = vld [vmem:[#allocation3 + $0xc38] sm:$0xff]
    %v452 = vld [vmem:[#allocation3 + $0xc40] sm:$0xff]
    %v453 = vld [vmem:[#allocation3 + $0xc48] sm:$0xff]
    %v454 = vld [vmem:[#allocation3 + $0xc50] sm:$0xff]
    %v455 = vld [vmem:[#allocation3 + $0xc58] sm:$0xff]
    %v456 = vld [vmem:[#allocation3 + $0xc60] sm:$0xff]
    %v457 = vld [vmem:[#allocation3 + $0xc68] sm:$0xff]
    %v458 = vld [vmem:[#allocation3 + $0xc70] sm:$0xff]
    %v459 = vld [vmem:[#allocation3 + $0xc78] sm:$0xff]
    %v460 = vld [vmem:[#allocation3 + $0xc80] sm:$0xff]
    %v461 = vld [vmem:[#allocation3 + $0xc88] sm:$0xff]
    %v462 = vld [vmem:[#allocation3 + $0xc90] sm:$0xff]
    %v463 = vld [vmem:[#allocation3 + $0xc98] sm:$0xff]
    %v464 = vld [vmem:[#allocation3 + $0xca0] sm:$0xff]
    %v465 = vld [vmem:[#allocation3 + $0xca8] sm:$0xff]
    %v466 = vld [vmem:[#allocation3 + $0xcb0] sm:$0xff]
    %v467 = vld [vmem:[#allocation3 + $0xcb8] sm:$0xff]
    %v468 = vld [vmem:[#allocation3 + $0xcc0] sm:$0xff]
    %v469 = vld [vmem:[#allocation3 + $0xcc8] sm:$0xff]
    %v470 = vld [vmem:[#allocation3 + $0xcd0] sm:$0xff]
    %v471 = vld [vmem:[#allocation3 + $0xcd8] sm:$0xff]
    %v472 = vld [vmem:[#allocation3 + $0xce0] sm:$0xff]
    %v473 = vld [vmem:[#allocation3 + $0xce8] sm:$0xff]
    %v474 = vld [vmem:[#allocation3 + $0xcf0] sm:$0xff]
    %v475 = vld [vmem:[#allocation3 + $0xcf8] sm:$0xff]
    %v476 = vld [vmem:[#allocation3 + $0xd00] sm:$0xff]
    %v477 = vld [vmem:[#allocation3 + $0xd08] sm:$0xff]
    %v478 = vld [vmem:[#allocation3 + $0xd10] sm:$0xff]
    %v479 = vld [vmem:[#allocation3 + $0xd18] sm:$0xff]
    %v480 = vld [vmem:[#allocation3 + $0xd20] sm:$0xff]
    %v481 = vld [vmem:[#allocation3 + $0xd28] sm:$0xff]
    %v482 = vld [vmem:[#allocation3 + $0xd30] sm:$0xff]
    %v483 = vld [vmem:[#allocation3 + $0xd38] sm:$0xff]
    %v484 = vld [vmem:[#allocation3 + $0xd40] sm:$0xff]
    %v485 = vld [vmem:[#allocation3 + $0xd48] sm:$0xff]
    %v486 = vld [vmem:[#allocation3 + $0xd50] sm:$0xff]
    %v487 = vld [vmem:[#allocation3 + $0xd58] sm:$0xff]
    %v488 = vld [vmem:[#allocation3 + $0xd60] sm:$0xff]
    %v489 = vld [vmem:[#allocation3 + $0xd68] sm:$0xff]
    %v490 = vld [vmem:[#allocation3 + $0xd70] sm:$0xff]
    %v491 = vld [vmem:[#allocation3 + $0xd78] sm:$0xff]
    %v492 = vld [vmem:[#allocation3 + $0xd80] sm:$0xff]
    %v493 = vld [vmem:[#allocation3 + $0xd88] sm:$0xff]
    %v494 = vld [vmem:[#allocation3 + $0xd90] sm:$0xff]
    %v495 = vld [vmem:[#allocation3 + $0xd98] sm:$0xff]
    %v496 = vld [vmem:[#allocation3 + $0xda0] sm:$0xff]
    %v497 = vld [vmem:[#allocation3 + $0xda8] sm:$0xff]
    %v498 = vld [vmem:[#allocation3 + $0xdb0] sm:$0xff]
    %v499 = vld [vmem:[#allocation3 + $0xdb8] sm:$0xff]
    %v500 = vld [vmem:[#allocation3 + $0xdc0] sm:$0xff]
    %v501 = vld [vmem:[#allocation3 + $0xdc8] sm:$0xff]
    %v502 = vld [vmem:[#allocation3 + $0xdd0] sm:$0xff]
    %v503 = vld [vmem:[#allocation3 + $0xdd8] sm:$0xff]
    %v504 = vld [vmem:[#allocation3 + $0xde0] sm:$0xff]
    %v505 = vld [vmem:[#allocation3 + $0xde8] sm:$0xff]
    %v506 = vld [vmem:[#allocation3 + $0xdf0] sm:$0xff]
    %v507 = vld [vmem:[#allocation3 + $0xdf8] sm:$0xff]
    %v508 = vld [vmem:[#allocation3 + $0xe00] sm:$0xff]
    %v509 = vld [vmem:[#allocation3 + $0xe08] sm:$0xff]
    %v510 = vld [vmem:[#allocation3 + $0xe10] sm:$0xff]
    %v511 = vld [vmem:[#allocation3 + $0xe18] sm:$0xff]
    %v512 = vld [vmem:[#allocation3 + $0xe20] sm:$0xff]
    %v513 = vld [vmem:[#allocation3 + $0xe28] sm:$0xff]
    %v514 = vld [vmem:[#allocation3 + $0xe30] sm:$0xff]
    %v515 = vld [vmem:[#allocation3 + $0xe38] sm:$0xff]
    %v516 = vld [vmem:[#allocation3 + $0xe40] sm:$0xff]
    %v517 = vld [vmem:[#allocation3 + $0xe48] sm:$0xff]
    %v518 = vld [vmem:[#allocation3 + $0xe50] sm:$0xff]
    %v519 = vld [vmem:[#allocation3 + $0xe58] sm:$0xff]
    %v520 = vld [vmem:[#allocation3 + $0xe60] sm:$0xff]
    %v521 = vld [vmem:[#allocation3 + $0xe68] sm:$0xff]
    %v522 = vld [vmem:[#allocation3 + $0xe70] sm:$0xff]
    %v523 = vld [vmem:[#allocation3 + $0xe78] sm:$0xff]
    %v524 = vld [vmem:[#allocation3 + $0xe80] sm:$0xff]
    %v525 = vld [vmem:[#allocation3 + $0xe88] sm:$0xff]
    %v526 = vld [vmem:[#allocation3 + $0xe90] sm:$0xff]
    %v527 = vld [vmem:[#allocation3 + $0xe98] sm:$0xff]
    %v528 = vld [vmem:[#allocation3 + $0xea0] sm:$0xff]
    %v529 = vld [vmem:[#allocation3 + $0xea8] sm:$0xff]
    %v530 = vld [vmem:[#allocation3 + $0xeb0] sm:$0xff]
    %v531 = vld [vmem:[#allocation3 + $0xeb8] sm:$0xff]
    %v532 = vld [vmem:[#allocation3 + $0xec0] sm:$0xff]
    %v533 = vld [vmem:[#allocation3 + $0xec8] sm:$0xff]
    %v534 = vld [vmem:[#allocation3 + $0xed0] sm:$0xff]
    %v535 = vld [vmem:[#allocation3 + $0xed8] sm:$0xff]
    %v536 = vld [vmem:[#allocation3 + $0xee0] sm:$0xff]
    %v537 = vld [vmem:[#allocation3 + $0xee8] sm:$0xff]
    %v538 = vld [vmem:[#allocation3 + $0xef0] sm:$0xff]
    %v539 = vld [vmem:[#allocation3 + $0xef8] sm:$0xff]
    %v540 = vld [vmem:[#allocation3 + $0xf00] sm:$0xff]
    %v541 = vld [vmem:[#allocation3 + $0xf08] sm:$0xff]
    %v542 = vld [vmem:[#allocation3 + $0xf10] sm:$0xff]
    %v543 = vld [vmem:[#allocation3 + $0xf18] sm:$0xff]
    %v544 = vld [vmem:[#allocation3 + $0xf20] sm:$0xff]
    %v545 = vld [vmem:[#allocation3 + $0xf28] sm:$0xff]
    %v546 = vld [vmem:[#allocation3 + $0xf30] sm:$0xff]
    %v547 = vld [vmem:[#allocation3 + $0xf38] sm:$0xff]
    %v548 = vld [vmem:[#allocation3 + $0xf40] sm:$0xff]
    %v549 = vld [vmem:[#allocation3 + $0xf48] sm:$0xff]
    %v550 = vld [vmem:[#allocation3 + $0xf50] sm:$0xff]
    %v551 = vld [vmem:[#allocation3 + $0xf58] sm:$0xff]
    %v552 = vld [vmem:[#allocation3 + $0xf60] sm:$0xff]
    %v553 = vld [vmem:[#allocation3 + $0xf68] sm:$0xff]
    %v554 = vld [vmem:[#allocation3 + $0xf70] sm:$0xff]
    %v555 = vld [vmem:[#allocation3 + $0xf78] sm:$0xff]
    %v556 = vld [vmem:[#allocation3 + $0xf80] sm:$0xff]
    %v557 = vld [vmem:[#allocation3 + $0xf88] sm:$0xff]
    %v558 = vld [vmem:[#allocation3 + $0xf90] sm:$0xff]
    %v559 = vld [vmem:[#allocation3 + $0xf98] sm:$0xff]
    %v560 = vld [vmem:[#allocation3 + $0xfa0] sm:$0xff]
    %v561 = vld [vmem:[#allocation3 + $0xfa8] sm:$0xff]
    %v562 = vld [vmem:[#allocation3 + $0xfb0] sm:$0xff]
    %v563 = vld [vmem:[#allocation3 + $0xfb8] sm:$0xff]
    %v564 = vld [vmem:[#allocation3 + $0xfc0] sm:$0xff]
    %v565 = vld [vmem:[#allocation3 + $0xfc8] sm:$0xff]
    %v566 = vld [vmem:[#allocation3 + $0xfd0] sm:$0xff]
    %v567 = vld [vmem:[#allocation3 + $0xfd8] sm:$0xff]
    %v568 = vld [vmem:[#allocation3 + $0xfe0] sm:$0xff]
    %v569 = vld [vmem:[#allocation3 + $0xfe8] sm:$0xff]
    %v570 = vld [vmem:[#allocation3 + $0xff0] sm:$0xff]
    %v571 = vld [vmem:[#allocation3 + $0xff8] sm:$0xff]
    %v572 = vld [vmem:[#allocation3 + $0x1000] sm:$0xff]
    %v573 = vld [vmem:[#allocation3 + $0x1008] sm:$0xff]
    %v574 = vld [vmem:[#allocation3 + $0x1010] sm:$0xff]
    %v575 = vld [vmem:[#allocation3 + $0x1018] sm:$0xff]
    %v576 = vld [vmem:[#allocation3 + $0x1020] sm:$0xff]
    %v577 = vld [vmem:[#allocation3 + $0x1028] sm:$0xff]
    %v578 = vld [vmem:[#allocation3 + $0x1030] sm:$0xff]
    %v579 = vld [vmem:[#allocation3 + $0x1038] sm:$0xff]
    %v580 = vld [vmem:[#allocation3 + $0x1040] sm:$0xff]
    %v581 = vld [vmem:[#allocation3 + $0x1048] sm:$0xff]
    %v582 = vld [vmem:[#allocation3 + $0x1050] sm:$0xff]
    %v583 = vld [vmem:[#allocation3 + $0x1058] sm:$0xff]
    %v584 = vld [vmem:[#allocation3 + $0x1060] sm:$0xff]
    %v585 = vld [vmem:[#allocation3 + $0x1068] sm:$0xff]
    %v586 = vld [vmem:[#allocation3 + $0x1070] sm:$0xff]
    %v587 = vld [vmem:[#allocation3 + $0x1078] sm:$0xff]
    %v588 = vld [vmem:[#allocation3 + $0x1080] sm:$0xff]
    %v589 = vld [vmem:[#allocation3 + $0x1088] sm:$0xff]
    %v590 = vld [vmem:[#allocation3 + $0x1090] sm:$0xff]
    %v591 = vld [vmem:[#allocation3 + $0x1098] sm:$0xff]
    %v592 = vld [vmem:[#allocation3 + $0x10a0] sm:$0xff]
    %v593 = vld [vmem:[#allocation3 + $0x10a8] sm:$0xff]
    %v594 = vld [vmem:[#allocation3 + $0x10b0] sm:$0xff]
    %v595 = vld [vmem:[#allocation3 + $0x10b8] sm:$0xff]
    %v596 = vld [vmem:[#allocation3 + $0x10c0] sm:$0xff]
    %v597 = vld [vmem:[#allocation3 + $0x10c8] sm:$0xff]
    %v598 = vld [vmem:[#allocation3 + $0x10d0] sm:$0xff]
    %v599 = vld [vmem:[#allocation3 + $0x10d8] sm:$0xff]
    %v600 = vld [vmem:[#allocation3 + $0x10e0] sm:$0xff]
    %v601 = vld [vmem:[#allocation3 + $0x10e8] sm:$0xff]
    %v602 = vld [vmem:[#allocation3 + $0x10f0] sm:$0xff]
    %v603 = vld [vmem:[#allocation3 + $0x10f8] sm:$0xff]
    %v604 = vld [vmem:[#allocation3 + $0x1100] sm:$0xff]
    %v605 = vld [vmem:[#allocation3 + $0x1108] sm:$0xff]
    %v606 = vld [vmem:[#allocation3 + $0x1110] sm:$0xff]
    %v607 = vld [vmem:[#allocation3 + $0x1118] sm:$0xff]
    %v608 = vld [vmem:[#allocation3 + $0x1120] sm:$0xff]
    %v609 = vld [vmem:[#allocation3 + $0x1128] sm:$0xff]
    %v610 = vld [vmem:[#allocation3 + $0x1130] sm:$0xff]
    %v611 = vld [vmem:[#allocation3 + $0x1138] sm:$0xff]
    %v612 = vld [vmem:[#allocation3 + $0x1140] sm:$0xff]
    %v613 = vld [vmem:[#allocation3 + $0x1148] sm:$0xff]
    %v614 = vld [vmem:[#allocation3 + $0x1150] sm:$0xff]
    %v615 = vld [vmem:[#allocation3 + $0x1158] sm:$0xff]
    %v616 = vld [vmem:[#allocation3 + $0x1160] sm:$0xff]
    %v617 = vld [vmem:[#allocation3 + $0x1168] sm:$0xff]
    %v618 = vld [vmem:[#allocation3 + $0x1170] sm:$0xff]
    %v619 = vld [vmem:[#allocation3 + $0x1178] sm:$0xff]
    %v620 = vld [vmem:[#allocation3 + $0x1180] sm:$0xff]
    %v621 = vld [vmem:[#allocation3 + $0x1188] sm:$0xff]
    %v622 = vld [vmem:[#allocation3 + $0x1190] sm:$0xff]
    %v623 = vld [vmem:[#allocation3 + $0x1198] sm:$0xff]
    %v624 = vld [vmem:[#allocation3 + $0x11a0] sm:$0xff]
    %v625 = vld [vmem:[#allocation3 + $0x11a8] sm:$0xff]
    %v626 = vld [vmem:[#allocation3 + $0x11b0] sm:$0xff]
    %v627 = vld [vmem:[#allocation3 + $0x11b8] sm:$0xff]
    %v628 = vld [vmem:[#allocation3 + $0x11c0] sm:$0xff]
    %v629 = vld [vmem:[#allocation3 + $0x11c8] sm:$0xff]
    %v630 = vld [vmem:[#allocation3 + $0x11d0] sm:$0xff]
    %v631 = vld [vmem:[#allocation3 + $0x11d8] sm:$0xff]
    %v632 = vld [vmem:[#allocation3 + $0x11e0] sm:$0xff]
    %v633 = vld [vmem:[#allocation3 + $0x11e8] sm:$0xff]
    %v634 = vld [vmem:[#allocation3 + $0x11f0] sm:$0xff]
    %v635 = vld [vmem:[#allocation3 + $0x11f8] sm:$0xff]
    %v636 = vld [vmem:[#allocation3 + $0x1200] sm:$0xff]
    %v637 = vld [vmem:[#allocation3 + $0x1208] sm:$0xff]
    %v638 = vld [vmem:[#allocation3 + $0x1210] sm:$0xff]
    %v639 = vld [vmem:[#allocation3 + $0x1218] sm:$0xff]
    %v640 = vld [vmem:[#allocation3 + $0x1220] sm:$0xff]
    %v641 = vld [vmem:[#allocation3 + $0x1228] sm:$0xff]
    %v642 = vld [vmem:[#allocation3 + $0x1230] sm:$0xff]
    %v643 = vld [vmem:[#allocation3 + $0x1238] sm:$0xff]
    %v644 = vld [vmem:[#allocation3 + $0x1240] sm:$0xff]
    %v645 = vld [vmem:[#allocation3 + $0x1248] sm:$0xff]
    %v646 = vld [vmem:[#allocation3 + $0x1250] sm:$0xff]
    %v647 = vld [vmem:[#allocation3 + $0x1258] sm:$0xff]
    %v648 = vld [vmem:[#allocation3 + $0x1260] sm:$0xff]
    %v649 = vld [vmem:[#allocation3 + $0x1268] sm:$0xff]
    %v650 = vld [vmem:[#allocation3 + $0x1270] sm:$0xff]
    %v651 = vld [vmem:[#allocation3 + $0x1278] sm:$0xff]
    %v652 = vld [vmem:[#allocation3 + $0x1280] sm:$0xff]
    %v653 = vld [vmem:[#allocation3 + $0x1288] sm:$0xff]
    %v654 = vld [vmem:[#allocation3 + $0x1290] sm:$0xff]
    %v655 = vld [vmem:[#allocation3 + $0x1298] sm:$0xff]
    %v656 = vld [vmem:[#allocation3 + $0x12a0] sm:$0xff]
    %v657 = vld [vmem:[#allocation3 + $0x12a8] sm:$0xff]
    %v658 = vld [vmem:[#allocation3 + $0x12b0] sm:$0xff]
    %v659 = vld [vmem:[#allocation3 + $0x12b8] sm:$0xff]
    %v660 = vld [vmem:[#allocation3 + $0x12c0] sm:$0xff]
    %v661 = vld [vmem:[#allocation3 + $0x12c8] sm:$0xff]
    %v662 = vld [vmem:[#allocation3 + $0x12d0] sm:$0xff]
    %v663 = vld [vmem:[#allocation3 + $0x12d8] sm:$0xff]
    %v664 = vld [vmem:[#allocation3 + $0x12e0] sm:$0xff]
    %v665 = vld [vmem:[#allocation3 + $0x12e8] sm:$0xff]
    %v666 = vld [vmem:[#allocation3 + $0x12f0] sm:$0xff]
    %v667 = vld [vmem:[#allocation3 + $0x12f8] sm:$0xff]
    %v668 = vld [vmem:[#allocation3 + $0x1300] sm:$0xff]
    %v669 = vld [vmem:[#allocation3 + $0x1308] sm:$0xff]
    %v670 = vld [vmem:[#allocation3 + $0x1310] sm:$0xff]
    %v671 = vld [vmem:[#allocation3 + $0x1318] sm:$0xff]
    %v672 = vld [vmem:[#allocation3 + $0x1320] sm:$0xff]
    %v673 = vld [vmem:[#allocation3 + $0x1328] sm:$0xff]
    %v674 = vld [vmem:[#allocation3 + $0x1330] sm:$0xff]
    %v675 = vld [vmem:[#allocation3 + $0x1338] sm:$0xff]
    %v676 = vld [vmem:[#allocation3 + $0x1340] sm:$0xff]
    %v677 = vld [vmem:[#allocation3 + $0x1348] sm:$0xff]
    %v678 = vld [vmem:[#allocation3 + $0x1350] sm:$0xff]
    %v679 = vld [vmem:[#allocation3 + $0x1358] sm:$0xff]
    %v680 = vld [vmem:[#allocation3 + $0x1360] sm:$0xff]
    %v681 = vld [vmem:[#allocation3 + $0x1368] sm:$0xff]
    %v682 = vld [vmem:[#allocation3 + $0x1370] sm:$0xff]
    %v683 = vld [vmem:[#allocation3 + $0x1378] sm:$0xff]
    %v684 = vld [vmem:[#allocation3 + $0x1380] sm:$0xff]
    %v685 = vld [vmem:[#allocation3 + $0x1388] sm:$0xff]
    %v686 = vld [vmem:[#allocation3 + $0x1390] sm:$0xff]
    %v687 = vld [vmem:[#allocation3 + $0x1398] sm:$0xff]
    %v688 = vld [vmem:[#allocation3 + $0x13a0] sm:$0xff]
    %v689 = vld [vmem:[#allocation3 + $0x13a8] sm:$0xff]
    %v690 = vld [vmem:[#allocation3 + $0x13b0] sm:$0xff]
    %v691 = vld [vmem:[#allocation3 + $0x13b8] sm:$0xff]
    %v692 = vld [vmem:[#allocation3 + $0x13c0] sm:$0xff]
    %v693 = vld [vmem:[#allocation3 + $0x13c8] sm:$0xff]
    %v694 = vld [vmem:[#allocation3 + $0x13d0] sm:$0xff]
    %v695 = vld [vmem:[#allocation3 + $0x13d8] sm:$0xff]
    %v696 = vld [vmem:[#allocation3 + $0x13e0] sm:$0xff]
    %v697 = vld [vmem:[#allocation3 + $0x13e8] sm:$0xff]
    %v698 = vld [vmem:[#allocation3 + $0x13f0] sm:$0xff]
    %v699 = vld [vmem:[#allocation3 + $0x13f8] sm:$0xff]
    %v700 = vld [vmem:[#allocation3 + $0x1400] sm:$0xff]
    %v701 = vld [vmem:[#allocation3 + $0x1408] sm:$0xff]
    %v702 = vld [vmem:[#allocation3 + $0x1410] sm:$0xff]
    %v703 = vld [vmem:[#allocation3 + $0x1418] sm:$0xff]
    %v704 = vld [vmem:[#allocation3 + $0x1420] sm:$0xff]
    %v705 = vld [vmem:[#allocation3 + $0x1428] sm:$0xff]
    %v706 = vld [vmem:[#allocation3 + $0x1430] sm:$0xff]
    %v707 = vld [vmem:[#allocation3 + $0x1438] sm:$0xff]
    %v708 = vld [vmem:[#allocation3 + $0x1440] sm:$0xff]
    %v709 = vld [vmem:[#allocation3 + $0x1448] sm:$0xff]
    %v710 = vld [vmem:[#allocation3 + $0x1450] sm:$0xff]
    %v711 = vld [vmem:[#allocation3 + $0x1458] sm:$0xff]
    %v712 = vld [vmem:[#allocation3 + $0x1460] sm:$0xff]
    %v713 = vld [vmem:[#allocation3 + $0x1468] sm:$0xff]
    %v714 = vld [vmem:[#allocation3 + $0x1470] sm:$0xff]
    %v715 = vld [vmem:[#allocation3 + $0x1478] sm:$0xff]
    %v716 = vld [vmem:[#allocation3 + $0x1480] sm:$0xff]
    %v717 = vld [vmem:[#allocation3 + $0x1488] sm:$0xff]
    %v718 = vld [vmem:[#allocation3 + $0x1490] sm:$0xff]
    %v719 = vld [vmem:[#allocation3 + $0x1498] sm:$0xff]
    %v720 = vld [vmem:[#allocation3 + $0x14a0] sm:$0xff]
    %v721 = vld [vmem:[#allocation3 + $0x14a8] sm:$0xff]
    %v722 = vld [vmem:[#allocation3 + $0x14b0] sm:$0xff]
    %v723 = vld [vmem:[#allocation3 + $0x14b8] sm:$0xff]
    %v724 = vld [vmem:[#allocation3 + $0x14c0] sm:$0xff]
    %v725 = vld [vmem:[#allocation3 + $0x14c8] sm:$0xff]
    %v726 = vld [vmem:[#allocation3 + $0x14d0] sm:$0xff]
    %v727 = vld [vmem:[#allocation3 + $0x14d8] sm:$0xff]
    %v728 = vld [vmem:[#allocation3 + $0x14e0] sm:$0xff]
    %v729 = vld [vmem:[#allocation3 + $0x14e8] sm:$0xff]
    %v730 = vld [vmem:[#allocation3 + $0x14f0] sm:$0xff]
    %v731 = vld [vmem:[#allocation3 + $0x14f8] sm:$0xff]
    %v732 = vld [vmem:[#allocation3 + $0x1500] sm:$0xff]
    %v733 = vld [vmem:[#allocation3 + $0x1508] sm:$0xff]
    %v734 = vld [vmem:[#allocation3 + $0x1510] sm:$0xff]
    %v735 = vld [vmem:[#allocation3 + $0x1518] sm:$0xff]
    %v736 = vld [vmem:[#allocation3 + $0x1520] sm:$0xff]
    %v737 = vld [vmem:[#allocation3 + $0x1528] sm:$0xff]
    %v738 = vld [vmem:[#allocation3 + $0x1530] sm:$0xff]
    %v739 = vld [vmem:[#allocation3 + $0x1538] sm:$0xff]
    %v740 = vld [vmem:[#allocation3 + $0x1540] sm:$0xff]
    %v741 = vld [vmem:[#allocation3 + $0x1548] sm:$0xff]
    %v742 = vld [vmem:[#allocation3 + $0x1550] sm:$0xff]
    %v743 = vld [vmem:[#allocation3 + $0x1558] sm:$0xff]
    %v744 = vld [vmem:[#allocation3 + $0x1560] sm:$0xff]
    %v745 = vld [vmem:[#allocation3 + $0x1568] sm:$0xff]
    %v746 = vld [vmem:[#allocation3 + $0x1570] sm:$0xff]
    %v747 = vld [vmem:[#allocation3 + $0x1578] sm:$0xff]
    %v748 = vld [vmem:[#allocation3 + $0x1580] sm:$0xff]
    %v749 = vld [vmem:[#allocation3 + $0x1588] sm:$0xff]
    %v750 = vld [vmem:[#allocation3 + $0x1590] sm:$0xff]
    %v751 = vld [vmem:[#allocation3 + $0x1598] sm:$0xff]
    %v752 = vld [vmem:[#allocation3 + $0x15a0] sm:$0xff]
    %v753 = vld [vmem:[#allocation3 + $0x15a8] sm:$0xff]
    %v754 = vld [vmem:[#allocation3 + $0x15b0] sm:$0xff]
    %v755 = vld [vmem:[#allocation3 + $0x15b8] sm:$0xff]
    %v756 = vld [vmem:[#allocation3 + $0x15c0] sm:$0xff]
    %v757 = vld [vmem:[#allocation3 + $0x15c8] sm:$0xff]
    %v758 = vld [vmem:[#allocation3 + $0x15d0] sm:$0xff]
    %v759 = vld [vmem:[#allocation3 + $0x15d8] sm:$0xff]
    %v760 = vld [vmem:[#allocation3 + $0x15e0] sm:$0xff]
    %v761 = vld [vmem:[#allocation3 + $0x15e8] sm:$0xff]
    %v762 = vld [vmem:[#allocation3 + $0x15f0] sm:$0xff]
    %v763 = vld [vmem:[#allocation3 + $0x15f8] sm:$0xff]
    %v764 = vld [vmem:[#allocation3 + $0x1600] sm:$0xff]
    %v765 = vld [vmem:[#allocation3 + $0x1608] sm:$0xff]
    %v766 = vld [vmem:[#allocation3 + $0x1610] sm:$0xff]
    %v767 = vld [vmem:[#allocation3 + $0x1618] sm:$0xff]
    %v768 = vld [vmem:[#allocation3 + $0x1620] sm:$0xff]
    %v769 = vld [vmem:[#allocation3 + $0x1628] sm:$0xff]
    %v770 = vld [vmem:[#allocation3 + $0x1630] sm:$0xff]
    %v771 = vld [vmem:[#allocation3 + $0x1638] sm:$0xff]
    %v772 = vld [vmem:[#allocation3 + $0x1640] sm:$0xff]
    %v773 = vld [vmem:[#allocation3 + $0x1648] sm:$0xff]
    %v774 = vld [vmem:[#allocation3 + $0x1650] sm:$0xff]
    %v775 = vld [vmem:[#allocation3 + $0x1658] sm:$0xff]
    %v776 = vld [vmem:[#allocation3 + $0x1660] sm:$0xff]
    %v777 = vld [vmem:[#allocation3 + $0x1668] sm:$0xff]
    %v778 = vld [vmem:[#allocation3 + $0x1670] sm:$0xff]
    %v779 = vld [vmem:[#allocation3 + $0x1678] sm:$0xff]
    %v780 = vld [vmem:[#allocation3 + $0x1680] sm:$0xff]
    %v781 = vld [vmem:[#allocation3 + $0x1688] sm:$0xff]
    %v782 = vld [vmem:[#allocation3 + $0x1690] sm:$0xff]
    %v783 = vld [vmem:[#allocation3 + $0x1698] sm:$0xff]
    %v784 = vld [vmem:[#allocation3 + $0x16a0] sm:$0xff]
    %v785 = vld [vmem:[#allocation3 + $0x16a8] sm:$0xff]
    %v786 = vld [vmem:[#allocation3 + $0x16b0] sm:$0xff]
    %v787 = vld [vmem:[#allocation3 + $0x16b8] sm:$0xff]
    %v788 = vld [vmem:[#allocation3 + $0x16c0] sm:$0xff]
    %v789 = vld [vmem:[#allocation3 + $0x16c8] sm:$0xff]
    %v790 = vld [vmem:[#allocation3 + $0x16d0] sm:$0xff]
    %v791 = vld [vmem:[#allocation3 + $0x16d8] sm:$0xff]
    %v792 = vld [vmem:[#allocation3 + $0x16e0] sm:$0xff]
    %v793 = vld [vmem:[#allocation3 + $0x16e8] sm:$0xff]
    %v794 = vld [vmem:[#allocation3 + $0x16f0] sm:$0xff]
    %v795 = vld [vmem:[#allocation3 + $0x16f8] sm:$0xff]
    %v796 = vld [vmem:[#allocation3 + $0x1700] sm:$0xff]
    %v797 = vld [vmem:[#allocation3 + $0x1708] sm:$0xff]
    %v798 = vld [vmem:[#allocation3 + $0x1710] sm:$0xff]
    %v799 = vld [vmem:[#allocation3 + $0x1718] sm:$0xff]
    %v800 = vld [vmem:[#allocation3 + $0x1720] sm:$0xff]
    %v801 = vld [vmem:[#allocation3 + $0x1728] sm:$0xff]
    %v802 = vld [vmem:[#allocation3 + $0x1730] sm:$0xff]
    %v803 = vld [vmem:[#allocation3 + $0x1738] sm:$0xff]
    %v804 = vld [vmem:[#allocation3 + $0x1740] sm:$0xff]
    %v805 = vld [vmem:[#allocation3 + $0x1748] sm:$0xff]
    %v806 = vld [vmem:[#allocation3 + $0x1750] sm:$0xff]
    %v807 = vld [vmem:[#allocation3 + $0x1758] sm:$0xff]
    %v808 = vld [vmem:[#allocation3 + $0x1760] sm:$0xff]
    %v809 = vld [vmem:[#allocation3 + $0x1768] sm:$0xff]
    %v810 = vld [vmem:[#allocation3 + $0x1770] sm:$0xff]
    %v811 = vld [vmem:[#allocation3 + $0x1778] sm:$0xff]
    %v812 = vld [vmem:[#allocation3 + $0x1780] sm:$0xff]
    %v813 = vld [vmem:[#allocation3 + $0x1788] sm:$0xff]
    %v814 = vld [vmem:[#allocation3 + $0x1790] sm:$0xff]
    %v815 = vld [vmem:[#allocation3 + $0x1798] sm:$0xff]
    %v816 = vld [vmem:[#allocation3 + $0x17a0] sm:$0xff]
    %v817 = vld [vmem:[#allocation3 + $0x17a8] sm:$0xff]
    %v818 = vld [vmem:[#allocation3 + $0x17b0] sm:$0xff]
    %v819 = vld [vmem:[#allocation3 + $0x17b8] sm:$0xff]
    %v820 = vld [vmem:[#allocation3 + $0x17c0] sm:$0xff]
    %v821 = vld [vmem:[#allocation3 + $0x17c8] sm:$0xff]
    %v822 = vld [vmem:[#allocation3 + $0x17d0] sm:$0xff]
    %v823 = vld [vmem:[#allocation3 + $0x17d8] sm:$0xff]
    %v824 = vld [vmem:[#allocation3 + $0x17e0] sm:$0xff]
    %v825 = vld [vmem:[#allocation3 + $0x17e8] sm:$0xff]
    %v826 = vld [vmem:[#allocation3 + $0x17f0] sm:$0xff]
    %v827 = vld [vmem:[#allocation3 + $0x17f8] sm:$0xff]
    %v828 = vld [vmem:[#allocation3 + $0x1800] sm:$0xff]
    %v829 = vld [vmem:[#allocation3 + $0x1808] sm:$0xff]
    %v830 = vld [vmem:[#allocation3 + $0x1810] sm:$0xff]
    %v831 = vld [vmem:[#allocation3 + $0x1818] sm:$0xff]
    %v832 = vld [vmem:[#allocation3 + $0x1820] sm:$0xff]
    %v833 = vld [vmem:[#allocation3 + $0x1828] sm:$0xff]
    %v834 = vld [vmem:[#allocation3 + $0x1830] sm:$0xff]
    %v835 = vld [vmem:[#allocation3 + $0x1838] sm:$0xff]
    %v836 = vld [vmem:[#allocation3 + $0x1840] sm:$0xff]
    %v837 = vld [vmem:[#allocation3 + $0x1848] sm:$0xff]
    %v838 = vld [vmem:[#allocation3 + $0x1850] sm:$0xff]
    %v839 = vld [vmem:[#allocation3 + $0x1858] sm:$0xff]
    %v840 = vld [vmem:[#allocation3 + $0x1860] sm:$0xff]
    %v841 = vld [vmem:[#allocation3 + $0x1868] sm:$0xff]
    %v842 = vld [vmem:[#allocation3 + $0x1870] sm:$0xff]
    %v843 = vld [vmem:[#allocation3 + $0x1878] sm:$0xff]
    %v844 = vld [vmem:[#allocation3 + $0x1880] sm:$0xff]
    %v845 = vld [vmem:[#allocation3 + $0x1888] sm:$0xff]
    %v846 = vld [vmem:[#allocation3 + $0x1890] sm:$0xff]
    %v847 = vld [vmem:[#allocation3 + $0x1898] sm:$0xff]
    %v848 = vld [vmem:[#allocation3 + $0x18a0] sm:$0xff]
    %v849 = vld [vmem:[#allocation3 + $0x18a8] sm:$0xff]
    %v850 = vld [vmem:[#allocation3 + $0x18b0] sm:$0xff]
    %v851 = vld [vmem:[#allocation3 + $0x18b8] sm:$0xff]
    %v852 = vld [vmem:[#allocation3 + $0x18c0] sm:$0xff]
    %v853 = vld [vmem:[#allocation3 + $0x18c8] sm:$0xff]
    %v854 = vld [vmem:[#allocation3 + $0x18d0] sm:$0xff]
    %v855 = vld [vmem:[#allocation3 + $0x18d8] sm:$0xff]
    %v856 = vld [vmem:[#allocation3 + $0x18e0] sm:$0xff]
    %v857 = vld [vmem:[#allocation3 + $0x18e8] sm:$0xff]
    %v858 = vld [vmem:[#allocation3 + $0x18f0] sm:$0xff]
    %v859 = vld [vmem:[#allocation3 + $0x18f8] sm:$0xff]
    %v860 = vld [vmem:[#allocation3 + $0x1900] sm:$0xff]
    %v861 = vld [vmem:[#allocation3 + $0x1908] sm:$0xff]
    %v862 = vld [vmem:[#allocation3 + $0x1910] sm:$0xff]
    %v863 = vld [vmem:[#allocation3 + $0x1918] sm:$0xff]
    %v864 = vld [vmem:[#allocation3 + $0x1920] sm:$0xff]
    %v865 = vld [vmem:[#allocation3 + $0x1928] sm:$0xff]
    %v866 = vld [vmem:[#allocation3 + $0x1930] sm:$0xff]
    %v867 = vld [vmem:[#allocation3 + $0x1938] sm:$0xff]
    %v868 = vld [vmem:[#allocation3 + $0x1940] sm:$0xff]
    %v869 = vld [vmem:[#allocation3 + $0x1948] sm:$0xff]
    %v870 = vld [vmem:[#allocation3 + $0x1950] sm:$0xff]
    %v871 = vld [vmem:[#allocation3 + $0x1958] sm:$0xff]
    %v872 = vld [vmem:[#allocation3 + $0x1960] sm:$0xff]
    %v873 = vld [vmem:[#allocation3 + $0x1968] sm:$0xff]
    %v874 = vld [vmem:[#allocation3 + $0x1970] sm:$0xff]
    %v875 = vld [vmem:[#allocation3 + $0x1978] sm:$0xff]
    %v876 = vld [vmem:[#allocation3 + $0x1980] sm:$0xff]
    %v877 = vld [vmem:[#allocation3 + $0x1988] sm:$0xff]
    %v878 = vld [vmem:[#allocation3 + $0x1990] sm:$0xff]
    %v879 = vld [vmem:[#allocation3 + $0x1998] sm:$0xff]
    %v880 = vld [vmem:[#allocation3 + $0x19a0] sm:$0xff]
    %v881 = vld [vmem:[#allocation3 + $0x19a8] sm:$0xff]
    %v882 = vld [vmem:[#allocation3 + $0x19b0] sm:$0xff]
    %v883 = vld [vmem:[#allocation3 + $0x19b8] sm:$0xff]
    %v884 = vld [vmem:[#allocation3 + $0x19c0] sm:$0xff]
    %v885 = vld [vmem:[#allocation3 + $0x19c8] sm:$0xff]
    %v886 = vld [vmem:[#allocation3 + $0x19d0] sm:$0xff]
    %v887 = vld [vmem:[#allocation3 + $0x19d8] sm:$0xff]
    %v888 = vld [vmem:[#allocation3 + $0x19e0] sm:$0xff]
    %v889 = vld [vmem:[#allocation3 + $0x19e8] sm:$0xff]
    %v890 = vld [vmem:[#allocation3 + $0x19f0] sm:$0xff]
    %v891 = vld [vmem:[#allocation3 + $0x19f8] sm:$0xff]
    %v892 = vld [vmem:[#allocation3 + $0x1a00] sm:$0xff]
    %v893 = vld [vmem:[#allocation3 + $0x1a08] sm:$0xff]
    %v894 = vld [vmem:[#allocation3 + $0x1a10] sm:$0xff]
    %v895 = vld [vmem:[#allocation3 + $0x1a18] sm:$0xff]
    %v896 = vld [vmem:[#allocation3 + $0x1a20] sm:$0xff]
    %v897 = vld [vmem:[#allocation3 + $0x1a28] sm:$0xff]
    %v898 = vld [vmem:[#allocation3 + $0x1a30] sm:$0xff]
    %v899 = vld [vmem:[#allocation3 + $0x1a38] sm:$0xff]
    %v900 = vld [vmem:[#allocation3 + $0x1a40] sm:$0xff]
    %v901 = vld [vmem:[#allocation3 + $0x1a48] sm:$0xff]
    %v902 = vld [vmem:[#allocation3 + $0x1a50] sm:$0xff]
    %v903 = vld [vmem:[#allocation3 + $0x1a58] sm:$0xff]
    %v904 = vld [vmem:[#allocation3 + $0x1a60] sm:$0xff]
    %v905 = vld [vmem:[#allocation3 + $0x1a68] sm:$0xff]
    %v906 = vld [vmem:[#allocation3 + $0x1a70] sm:$0xff]
    %v907 = vld [vmem:[#allocation3 + $0x1a78] sm:$0xff]
    %v908 = vld [vmem:[#allocation3 + $0x1a80] sm:$0xff]
    %v909 = vld [vmem:[#allocation3 + $0x1a88] sm:$0xff]
    %v910 = vld [vmem:[#allocation3 + $0x1a90] sm:$0xff]
    %v911 = vld [vmem:[#allocation3 + $0x1a98] sm:$0xff]
    %v912 = vld [vmem:[#allocation3 + $0x1aa0] sm:$0xff]
    %v913 = vld [vmem:[#allocation3 + $0x1aa8] sm:$0xff]
    %v914 = vld [vmem:[#allocation3 + $0x1ab0] sm:$0xff]
    %v915 = vld [vmem:[#allocation3 + $0x1ab8] sm:$0xff]
    %v916 = vld [vmem:[#allocation3 + $0x1ac0] sm:$0xff]
    %v917 = vld [vmem:[#allocation3 + $0x1ac8] sm:$0xff]
    %v918 = vld [vmem:[#allocation3 + $0x1ad0] sm:$0xff]
    %v919 = vld [vmem:[#allocation3 + $0x1ad8] sm:$0xff]
    %v920 = vld [vmem:[#allocation3 + $0x1ae0] sm:$0xff]
    %v921 = vld [vmem:[#allocation3 + $0x1ae8] sm:$0xff]
    %v922 = vld [vmem:[#allocation3 + $0x1af0] sm:$0xff]
    %v923 = vld [vmem:[#allocation3 + $0x1af8] sm:$0xff]
    %v924 = vld [vmem:[#allocation3 + $0x1b00] sm:$0xff]
    %v925 = vld [vmem:[#allocation3 + $0x1b08] sm:$0xff]
    %v926 = vld [vmem:[#allocation3 + $0x1b10] sm:$0xff]
    %v927 = vld [vmem:[#allocation3 + $0x1b18] sm:$0xff]
    %v928 = vld [vmem:[#allocation3 + $0x1b20] sm:$0xff]
    %v929 = vld [vmem:[#allocation3 + $0x1b28] sm:$0xff]
    %v930 = vld [vmem:[#allocation3 + $0x1b30] sm:$0xff]
    %v931 = vld [vmem:[#allocation3 + $0x1b38] sm:$0xff]
    %v932 = vld [vmem:[#allocation3 + $0x1b40] sm:$0xff]
    %v933 = vld [vmem:[#allocation3 + $0x1b48] sm:$0xff]
    %v934 = vld [vmem:[#allocation3 + $0x1b50] sm:$0xff]
    %v935 = vld [vmem:[#allocation3 + $0x1b58] sm:$0xff]
    %v936 = vld [vmem:[#allocation3 + $0x1b60] sm:$0xff]
    %v937 = vld [vmem:[#allocation3 + $0x1b68] sm:$0xff]
    %v938 = vld [vmem:[#allocation3 + $0x1b70] sm:$0xff]
    %v939 = vld [vmem:[#allocation3 + $0x1b78] sm:$0xff]
    %v940 = vld [vmem:[#allocation3 + $0x1b80] sm:$0xff]
    %v941 = vld [vmem:[#allocation3 + $0x1b88] sm:$0xff]
    %v942 = vld [vmem:[#allocation3 + $0x1b90] sm:$0xff]
    %v943 = vld [vmem:[#allocation3 + $0x1b98] sm:$0xff]
    %v944 = vld [vmem:[#allocation3 + $0x1ba0] sm:$0xff]
    %v945 = vld [vmem:[#allocation3 + $0x1ba8] sm:$0xff]
    %v946 = vld [vmem:[#allocation3 + $0x1bb0] sm:$0xff]
    %v947 = vld [vmem:[#allocation3 + $0x1bb8] sm:$0xff]
    %v948 = vld [vmem:[#allocation3 + $0x1bc0] sm:$0xff]
    %v949 = vld [vmem:[#allocation3 + $0x1bc8] sm:$0xff]
    %v950 = vld [vmem:[#allocation3 + $0x1bd0] sm:$0xff]
    %v951 = vld [vmem:[#allocation3 + $0x1bd8] sm:$0xff]
    %v952 = vld [vmem:[#allocation3 + $0x1be0] sm:$0xff]
    %v953 = vld [vmem:[#allocation3 + $0x1be8] sm:$0xff]
    %v954 = vld [vmem:[#allocation3 + $0x1bf0] sm:$0xff]
    %v955 = vld [vmem:[#allocation3 + $0x1bf8] sm:$0xff]
    %v956 = vld [vmem:[#allocation3 + $0x1c00] sm:$0xff]
    %v957 = vld [vmem:[#allocation3 + $0x1c08] sm:$0xff]
    %v958 = vld [vmem:[#allocation3 + $0x1c10] sm:$0xff]
    %v959 = vld [vmem:[#allocation3 + $0x1c18] sm:$0xff]
    %v960 = vld [vmem:[#allocation3 + $0x1c20] sm:$0xff]
    %v961 = vld [vmem:[#allocation3 + $0x1c28] sm:$0xff]
    %v962 = vld [vmem:[#allocation3 + $0x1c30] sm:$0xff]
    %v963 = vld [vmem:[#allocation3 + $0x1c38] sm:$0xff]
    %v964 = vld [vmem:[#allocation3 + $0x1c40] sm:$0xff]
    %v965 = vld [vmem:[#allocation3 + $0x1c48] sm:$0xff]
    %v966 = vld [vmem:[#allocation3 + $0x1c50] sm:$0xff]
    %v967 = vld [vmem:[#allocation3 + $0x1c58] sm:$0xff]
    %v968 = vld [vmem:[#allocation3 + $0x1c60] sm:$0xff]
    %v969 = vld [vmem:[#allocation3 + $0x1c68] sm:$0xff]
    %v970 = vld [vmem:[#allocation3 + $0x1c70] sm:$0xff]
    %v971 = vld [vmem:[#allocation3 + $0x1c78] sm:$0xff]
    %v972 = vld [vmem:[#allocation3 + $0x1c80] sm:$0xff]
    %v973 = vld [vmem:[#allocation3 + $0x1c88] sm:$0xff]
    %v974 = vld [vmem:[#allocation3 + $0x1c90] sm:$0xff]
    %v975 = vld [vmem:[#allocation3 + $0x1c98] sm:$0xff]
    %v976 = vld [vmem:[#allocation3 + $0x1ca0] sm:$0xff]
    %v977 = vld [vmem:[#allocation3 + $0x1ca8] sm:$0xff]
    %v978 = vld [vmem:[#allocation3 + $0x1cb0] sm:$0xff]
    %v979 = vld [vmem:[#allocation3 + $0x1cb8] sm:$0xff]
    %v980 = vld [vmem:[#allocation3 + $0x1cc0] sm:$0xff]
    %v981 = vld [vmem:[#allocation3 + $0x1cc8] sm:$0xff]
    %v982 = vld [vmem:[#allocation3 + $0x1cd0] sm:$0xff]
    %v983 = vld [vmem:[#allocation3 + $0x1cd8] sm:$0xff]
    %v984 = vld [vmem:[#allocation3 + $0x1ce0] sm:$0xff]
    %v985 = vld [vmem:[#allocation3 + $0x1ce8] sm:$0xff]
    %v986 = vld [vmem:[#allocation3 + $0x1cf0] sm:$0xff]
    %v987 = vld [vmem:[#allocation3 + $0x1cf8] sm:$0xff]
    %v988 = vld [vmem:[#allocation3 + $0x1d00] sm:$0xff]
    %v989 = vld [vmem:[#allocation3 + $0x1d08] sm:$0xff]
    %v990 = vld [vmem:[#allocation3 + $0x1d10] sm:$0xff]
    %v991 = vld [vmem:[#allocation3 + $0x1d18] sm:$0xff]
    %v992 = vld [vmem:[#allocation3 + $0x1d20] sm:$0xff]
    %v993 = vld [vmem:[#allocation3 + $0x1d28] sm:$0xff]
    %v994 = vld [vmem:[#allocation3 + $0x1d30] sm:$0xff]
    %v995 = vld [vmem:[#allocation3 + $0x1d38] sm:$0xff]
    %v996 = vld [vmem:[#allocation3 + $0x1d40] sm:$0xff]
    %v997 = vld [vmem:[#allocation3 + $0x1d48] sm:$0xff]
    %v998 = vld [vmem:[#allocation3 + $0x1d50] sm:$0xff]
    %v999 = vld [vmem:[#allocation3 + $0x1d58] sm:$0xff]
    %v1000 = vld [vmem:[#allocation3 + $0x1d60] sm:$0xff]
    %v1001 = vld [vmem:[#allocation3 + $0x1d68] sm:$0xff]
    %v1002 = vld [vmem:[#allocation3 + $0x1d70] sm:$0xff]
    %v1003 = vld [vmem:[#allocation3 + $0x1d78] sm:$0xff]
    %v1004 = vld [vmem:[#allocation3 + $0x1d80] sm:$0xff]
    %v1005 = vld [vmem:[#allocation3 + $0x1d88] sm:$0xff]
    %v1006 = vld [vmem:[#allocation3 + $0x1d90] sm:$0xff]
    %v1007 = vld [vmem:[#allocation3 + $0x1d98] sm:$0xff]
    %v1008 = vld [vmem:[#allocation3 + $0x1da0] sm:$0xff]
    %v1009 = vld [vmem:[#allocation3 + $0x1da8] sm:$0xff]
    %v1010 = vld [vmem:[#allocation3 + $0x1db0] sm:$0xff]
    %v1011 = vld [vmem:[#allocation3 + $0x1db8] sm:$0xff]
    %v1012 = vld [vmem:[#allocation3 + $0x1dc0] sm:$0xff]
    %v1013 = vld [vmem:[#allocation3 + $0x1dc8] sm:$0xff]
    %v1014 = vld [vmem:[#allocation3 + $0x1dd0] sm:$0xff]
    %v1015 = vld [vmem:[#allocation3 + $0x1dd8] sm:$0xff]
    %v1016 = vld [vmem:[#allocation3 + $0x1de0] sm:$0xff]
    %v1017 = vld [vmem:[#allocation3 + $0x1de8] sm:$0xff]
    %v1018 = vld [vmem:[#allocation3 + $0x1df0] sm:$0xff]
    %v1019 = vld [vmem:[#allocation3 + $0x1df8] sm:$0xff]
    %v1020 = vld [vmem:[#allocation3 + $0x1e00] sm:$0xff]
    %v1021 = vld [vmem:[#allocation3 + $0x1e08] sm:$0xff]
    %v1022 = vld [vmem:[#allocation3 + $0x1e10] sm:$0xff]
    %v1023 = vld [vmem:[#allocation3 + $0x1e18] sm:$0xff]
    %v1024 = vld [vmem:[#allocation3 + $0x1e20] sm:$0xff]
    %v1025 = vld [vmem:[#allocation3 + $0x1e28] sm:$0xff]
    %v1026 = vld [vmem:[#allocation3 + $0x1e30] sm:$0xff]
    %v1027 = vld [vmem:[#allocation3 + $0x1e38] sm:$0xff]
    %v1028 = vld [vmem:[#allocation3 + $0x1e40] sm:$0xff]
    %v1029 = vld [vmem:[#allocation3 + $0x1e48] sm:$0xff]
    %v1030 = vld [vmem:[#allocation3 + $0x1e50] sm:$0xff]
    %v1031 = vld [vmem:[#allocation3 + $0x1e58] sm:$0xff]
    %v1032 = vld [vmem:[#allocation3 + $0x1e60] sm:$0xff]
    %v1033 = vld [vmem:[#allocation3 + $0x1e68] sm:$0xff]
    %v1034 = vld [vmem:[#allocation3 + $0x1e70] sm:$0xff]
    %v1035 = vld [vmem:[#allocation3 + $0x1e78] sm:$0xff]
    %v1036 = vld [vmem:[#allocation3 + $0x1e80] sm:$0xff]
    %v1037 = vld [vmem:[#allocation3 + $0x1e88] sm:$0xff]
    %v1038 = vld [vmem:[#allocation3 + $0x1e90] sm:$0xff]
    %v1039 = vld [vmem:[#allocation3 + $0x1e98] sm:$0xff]
    %v1040 = vld [vmem:[#allocation3 + $0x1ea0] sm:$0xff]
    %v1041 = vld [vmem:[#allocation3 + $0x1ea8] sm:$0xff]
    %v1042 = vld [vmem:[#allocation3 + $0x1eb0] sm:$0xff]
    %v1043 = vld [vmem:[#allocation3 + $0x1eb8] sm:$0xff]
    %v1044 = vld [vmem:[#allocation3 + $0x1ec0] sm:$0xff]
    %v1045 = vld [vmem:[#allocation3 + $0x1ec8] sm:$0xff]
    %v1046 = vld [vmem:[#allocation3 + $0x1ed0] sm:$0xff]
    %v1047 = vld [vmem:[#allocation3 + $0x1ed8] sm:$0xff]
    %v1048 = vld [vmem:[#allocation3 + $0x1ee0] sm:$0xff]
    %v1049 = vld [vmem:[#allocation3 + $0x1ee8] sm:$0xff]
    %v1050 = vld [vmem:[#allocation3 + $0x1ef0] sm:$0xff]
    %v1051 = vld [vmem:[#allocation3 + $0x1ef8] sm:$0xff]
    %v1052 = vld [vmem:[#allocation3 + $0x1f00] sm:$0xff]
    %v1053 = vld [vmem:[#allocation3 + $0x1f08] sm:$0xff]
    %v1054 = vld [vmem:[#allocation3 + $0x1f10] sm:$0xff]
    %v1055 = vld [vmem:[#allocation3 + $0x1f18] sm:$0xff]
    %v1056 = vld [vmem:[#allocation3 + $0x1f20] sm:$0xff]
    %v1057 = vld [vmem:[#allocation3 + $0x1f28] sm:$0xff]
    %v1058 = vld [vmem:[#allocation3 + $0x1f30] sm:$0xff]
    %v1059 = vld [vmem:[#allocation3 + $0x1f38] sm:$0xff]
    %v1060 = vld [vmem:[#allocation3 + $0x1f40] sm:$0xff]
    %v1061 = vld [vmem:[#allocation3 + $0x1f48] sm:$0xff]
    %v1062 = vld [vmem:[#allocation3 + $0x1f50] sm:$0xff]
    %v1063 = vld [vmem:[#allocation3 + $0x1f58] sm:$0xff]
    %v1064 = vld [vmem:[#allocation3 + $0x1f60] sm:$0xff]
    %v1065 = vld [vmem:[#allocation3 + $0x1f68] sm:$0xff]
    %v1066 = vld [vmem:[#allocation3 + $0x1f70] sm:$0xff]
    %v1067 = vld [vmem:[#allocation3 + $0x1f78] sm:$0xff]
    %v1068 = vld [vmem:[#allocation3 + $0x1f80] sm:$0xff]
    %v1069 = vld [vmem:[#allocation3 + $0x1f88] sm:$0xff]
    %v1070 = vld [vmem:[#allocation3 + $0x1f90] sm:$0xff]
    %v1071 = vld [vmem:[#allocation3 + $0x1f98] sm:$0xff]
    %v1072 = vld [vmem:[#allocation3 + $0x1fa0] sm:$0xff]
    %v1073 = vld [vmem:[#allocation3 + $0x1fa8] sm:$0xff]
    %v1074 = vld [vmem:[#allocation3 + $0x1fb0] sm:$0xff]
    %v1075 = vld [vmem:[#allocation3 + $0x1fb8] sm:$0xff]
    %v1076 = vld [vmem:[#allocation3 + $0x1fc0] sm:$0xff]
    %v1077 = vld [vmem:[#allocation3 + $0x1fc8] sm:$0xff]
    %v1078 = vld [vmem:[#allocation3 + $0x1fd0] sm:$0xff]
    %v1079 = vld [vmem:[#allocation3 + $0x1fd8] sm:$0xff]
    %v1080 = vld [vmem:[#allocation3 + $0x1fe0] sm:$0xff]
    %v1081 = vld [vmem:[#allocation3 + $0x1fe8] sm:$0xff]
    %v1082 = vld [vmem:[#allocation3 + $0x1ff0] sm:$0xff]
    %v1083 = vld [vmem:[#allocation3 + $0x1ff8] sm:$0xff]
    %v1084 = vld [vmem:[#allocation6] sm:$0xff]
    %v1086 = vlaneseq
    %v1087 = vshrl.u32 %v1086, 7
    %v1088 = vsub.s32 0, %v1087
    %v1089 = vrot.slane %v1084, %v1088
    %v1090 = vlaneseq
    %v1091 = vshrl.u32 %v1090, 7
    %v1092 = vsub.s32 1, %v1091
    %v1093 = vrot.slane %v1084, %v1092
    %v1094 = vlaneseq
    %v1095 = vshrl.u32 %v1094, 7
    %v1096 = vsub.s32 2, %v1095
    %v1097 = vrot.slane %v1084, %v1096
    %v1098 = vlaneseq
    %v1099 = vshrl.u32 %v1098, 7
    %v1100 = vsub.s32 3, %v1099
    %v1101 = vrot.slane %v1084, %v1100
    %v1102 = vlaneseq
    %v1103 = vshrl.u32 %v1102, 7
    %v1104 = vsub.s32 4, %v1103
    %v1105 = vrot.slane %v1084, %v1104
    %v1106 = vlaneseq
    %v1107 = vshrl.u32 %v1106, 7
    %v1108 = vsub.s32 5, %v1107
    %v1109 = vrot.slane %v1084, %v1108
    %v1110 = vlaneseq
    %v1111 = vshrl.u32 %v1110, 7
    %v1112 = vsub.s32 6, %v1111
    %v1113 = vrot.slane %v1084, %v1112
    %v1114 = vlaneseq
    %v1115 = vshrl.u32 %v1114, 7
    %v1116 = vsub.s32 7, %v1115
    %v1117 = vrot.slane %v1084, %v1116
    %v1126 = vmul.f32 %v60, %v1089
    %v1127 = vmul.f32 %v61, %v1093
    %v1128 = vmul.f32 %v62, %v1097
    %v1129 = vmul.f32 %v63, %v1101
    %v1130 = vmul.f32 %v64, %v1105
    %v1131 = vmul.f32 %v65, %v1109
    %v1132 = vmul.f32 %v66, %v1113
    %v1133 = vmul.f32 %v67, %v1117
    %v1134 = vmul.f32 %v68, %v1089
    %v1135 = vmul.f32 %v69, %v1093
    %v1136 = vmul.f32 %v70, %v1097
    %v1137 = vmul.f32 %v71, %v1101
    %v1138 = vmul.f32 %v72, %v1105
    %v1139 = vmul.f32 %v73, %v1109
    %v1140 = vmul.f32 %v74, %v1113
    %v1141 = vmul.f32 %v75, %v1117
    %v1142 = vmul.f32 %v76, %v1089
    %v1143 = vmul.f32 %v77, %v1093
    %v1144 = vmul.f32 %v78, %v1097
    %v1145 = vmul.f32 %v79, %v1101
    %v1146 = vmul.f32 %v80, %v1105
    %v1147 = vmul.f32 %v81, %v1109
    %v1148 = vmul.f32 %v82, %v1113
    %v1149 = vmul.f32 %v83, %v1117
    %v1150 = vmul.f32 %v84, %v1089
    %v1151 = vmul.f32 %v85, %v1093
    %v1152 = vmul.f32 %v86, %v1097
    %v1153 = vmul.f32 %v87, %v1101
    %v1154 = vmul.f32 %v88, %v1105
    %v1155 = vmul.f32 %v89, %v1109
    %v1156 = vmul.f32 %v90, %v1113
    %v1157 = vmul.f32 %v91, %v1117
    %v1158 = vmul.f32 %v92, %v1089
    %v1159 = vmul.f32 %v93, %v1093
    %v1160 = vmul.f32 %v94, %v1097
    %v1161 = vmul.f32 %v95, %v1101
    %v1162 = vmul.f32 %v96, %v1105
    %v1163 = vmul.f32 %v97, %v1109
    %v1164 = vmul.f32 %v98, %v1113
    %v1165 = vmul.f32 %v99, %v1117
    %v1166 = vmul.f32 %v100, %v1089
    %v1167 = vmul.f32 %v101, %v1093
    %v1168 = vmul.f32 %v102, %v1097
    %v1169 = vmul.f32 %v103, %v1101
    %v1170 = vmul.f32 %v104, %v1105
    %v1171 = vmul.f32 %v105, %v1109
    %v1172 = vmul.f32 %v106, %v1113
    %v1173 = vmul.f32 %v107, %v1117
    %v1174 = vmul.f32 %v108, %v1089
    %v1175 = vmul.f32 %v109, %v1093
    %v1176 = vmul.f32 %v110, %v1097
    %v1177 = vmul.f32 %v111, %v1101
    %v1178 = vmul.f32 %v112, %v1105
    %v1179 = vmul.f32 %v113, %v1109
    %v1180 = vmul.f32 %v114, %v1113
    %v1181 = vmul.f32 %v115, %v1117
    %v1182 = vmul.f32 %v116, %v1089
    %v1183 = vmul.f32 %v117, %v1093
    %v1184 = vmul.f32 %v118, %v1097
    %v1185 = vmul.f32 %v119, %v1101
    %v1186 = vmul.f32 %v120, %v1105
    %v1187 = vmul.f32 %v121, %v1109
    %v1188 = vmul.f32 %v122, %v1113
    %v1189 = vmul.f32 %v123, %v1117
    %v1190 = vmul.f32 %v124, %v1089
    %v1191 = vmul.f32 %v125, %v1093
    %v1192 = vmul.f32 %v126, %v1097
    %v1193 = vmul.f32 %v127, %v1101
    %v1194 = vmul.f32 %v128, %v1105
    %v1195 = vmul.f32 %v129, %v1109
    %v1196 = vmul.f32 %v130, %v1113
    %v1197 = vmul.f32 %v131, %v1117
    %v1198 = vmul.f32 %v132, %v1089
    %v1199 = vmul.f32 %v133, %v1093
    %v1200 = vmul.f32 %v134, %v1097
    %v1201 = vmul.f32 %v135, %v1101
    %v1202 = vmul.f32 %v136, %v1105
    %v1203 = vmul.f32 %v137, %v1109
    %v1204 = vmul.f32 %v138, %v1113
    %v1205 = vmul.f32 %v139, %v1117
    %v1206 = vmul.f32 %v140, %v1089
    %v1207 = vmul.f32 %v141, %v1093
    %v1208 = vmul.f32 %v142, %v1097
    %v1209 = vmul.f32 %v143, %v1101
    %v1210 = vmul.f32 %v144, %v1105
    %v1211 = vmul.f32 %v145, %v1109
    %v1212 = vmul.f32 %v146, %v1113
    %v1213 = vmul.f32 %v147, %v1117
    %v1214 = vmul.f32 %v148, %v1089
    %v1215 = vmul.f32 %v149, %v1093
    %v1216 = vmul.f32 %v150, %v1097
    %v1217 = vmul.f32 %v151, %v1101
    %v1218 = vmul.f32 %v152, %v1105
    %v1219 = vmul.f32 %v153, %v1109
    %v1220 = vmul.f32 %v154, %v1113
    %v1221 = vmul.f32 %v155, %v1117
    %v1222 = vmul.f32 %v156, %v1089
    %v1223 = vmul.f32 %v157, %v1093
    %v1224 = vmul.f32 %v158, %v1097
    %v1225 = vmul.f32 %v159, %v1101
    %v1226 = vmul.f32 %v160, %v1105
    %v1227 = vmul.f32 %v161, %v1109
    %v1228 = vmul.f32 %v162, %v1113
    %v1229 = vmul.f32 %v163, %v1117
    %v1230 = vmul.f32 %v164, %v1089
    %v1231 = vmul.f32 %v165, %v1093
    %v1232 = vmul.f32 %v166, %v1097
    %v1233 = vmul.f32 %v167, %v1101
    %v1234 = vmul.f32 %v168, %v1105
    %v1235 = vmul.f32 %v169, %v1109
    %v1236 = vmul.f32 %v170, %v1113
    %v1237 = vmul.f32 %v171, %v1117
    %v1238 = vmul.f32 %v172, %v1089
    %v1239 = vmul.f32 %v173, %v1093
    %v1240 = vmul.f32 %v174, %v1097
    %v1241 = vmul.f32 %v175, %v1101
    %v1242 = vmul.f32 %v176, %v1105
    %v1243 = vmul.f32 %v177, %v1109
    %v1244 = vmul.f32 %v178, %v1113
    %v1245 = vmul.f32 %v179, %v1117
    %v1246 = vmul.f32 %v180, %v1089
    %v1247 = vmul.f32 %v181, %v1093
    %v1248 = vmul.f32 %v182, %v1097
    %v1249 = vmul.f32 %v183, %v1101
    %v1250 = vmul.f32 %v184, %v1105
    %v1251 = vmul.f32 %v185, %v1109
    %v1252 = vmul.f32 %v186, %v1113
    %v1253 = vmul.f32 %v187, %v1117
    %v1254 = vmul.f32 %v188, %v1089
    %v1255 = vmul.f32 %v189, %v1093
    %v1256 = vmul.f32 %v190, %v1097
    %v1257 = vmul.f32 %v191, %v1101
    %v1258 = vmul.f32 %v192, %v1105
    %v1259 = vmul.f32 %v193, %v1109
    %v1260 = vmul.f32 %v194, %v1113
    %v1261 = vmul.f32 %v195, %v1117
    %v1262 = vmul.f32 %v196, %v1089
    %v1263 = vmul.f32 %v197, %v1093
    %v1264 = vmul.f32 %v198, %v1097
    %v1265 = vmul.f32 %v199, %v1101
    %v1266 = vmul.f32 %v200, %v1105
    %v1267 = vmul.f32 %v201, %v1109
    %v1268 = vmul.f32 %v202, %v1113
    %v1269 = vmul.f32 %v203, %v1117
    %v1270 = vmul.f32 %v204, %v1089
    %v1271 = vmul.f32 %v205, %v1093
    %v1272 = vmul.f32 %v206, %v1097
    %v1273 = vmul.f32 %v207, %v1101
    %v1274 = vmul.f32 %v208, %v1105
    %v1275 = vmul.f32 %v209, %v1109
    %v1276 = vmul.f32 %v210, %v1113
    %v1277 = vmul.f32 %v211, %v1117
    %v1278 = vmul.f32 %v212, %v1089
    %v1279 = vmul.f32 %v213, %v1093
    %v1280 = vmul.f32 %v214, %v1097
    %v1281 = vmul.f32 %v215, %v1101
    %v1282 = vmul.f32 %v216, %v1105
    %v1283 = vmul.f32 %v217, %v1109
    %v1284 = vmul.f32 %v218, %v1113
    %v1285 = vmul.f32 %v219, %v1117
    %v1286 = vmul.f32 %v220, %v1089
    %v1287 = vmul.f32 %v221, %v1093
    %v1288 = vmul.f32 %v222, %v1097
    %v1289 = vmul.f32 %v223, %v1101
    %v1290 = vmul.f32 %v224, %v1105
    %v1291 = vmul.f32 %v225, %v1109
    %v1292 = vmul.f32 %v226, %v1113
    %v1293 = vmul.f32 %v227, %v1117
    %v1294 = vmul.f32 %v228, %v1089
    %v1295 = vmul.f32 %v229, %v1093
    %v1296 = vmul.f32 %v230, %v1097
    %v1297 = vmul.f32 %v231, %v1101
    %v1298 = vmul.f32 %v232, %v1105
    %v1299 = vmul.f32 %v233, %v1109
    %v1300 = vmul.f32 %v234, %v1113
    %v1301 = vmul.f32 %v235, %v1117
    %v1302 = vmul.f32 %v236, %v1089
    %v1303 = vmul.f32 %v237, %v1093
    %v1304 = vmul.f32 %v238, %v1097
    %v1305 = vmul.f32 %v239, %v1101
    %v1306 = vmul.f32 %v240, %v1105
    %v1307 = vmul.f32 %v241, %v1109
    %v1308 = vmul.f32 %v242, %v1113
    %v1309 = vmul.f32 %v243, %v1117
    %v1310 = vmul.f32 %v244, %v1089
    %v1311 = vmul.f32 %v245, %v1093
    %v1312 = vmul.f32 %v246, %v1097
    %v1313 = vmul.f32 %v247, %v1101
    %v1314 = vmul.f32 %v248, %v1105
    %v1315 = vmul.f32 %v249, %v1109
    %v1316 = vmul.f32 %v250, %v1113
    %v1317 = vmul.f32 %v251, %v1117
    %v1318 = vmul.f32 %v252, %v1089
    %v1319 = vmul.f32 %v253, %v1093
    %v1320 = vmul.f32 %v254, %v1097
    %v1321 = vmul.f32 %v255, %v1101
    %v1322 = vmul.f32 %v256, %v1105
    %v1323 = vmul.f32 %v257, %v1109
    %v1324 = vmul.f32 %v258, %v1113
    %v1325 = vmul.f32 %v259, %v1117
    %v1326 = vmul.f32 %v260, %v1089
    %v1327 = vmul.f32 %v261, %v1093
    %v1328 = vmul.f32 %v262, %v1097
    %v1329 = vmul.f32 %v263, %v1101
    %v1330 = vmul.f32 %v264, %v1105
    %v1331 = vmul.f32 %v265, %v1109
    %v1332 = vmul.f32 %v266, %v1113
    %v1333 = vmul.f32 %v267, %v1117
    %v1334 = vmul.f32 %v268, %v1089
    %v1335 = vmul.f32 %v269, %v1093
    %v1336 = vmul.f32 %v270, %v1097
    %v1337 = vmul.f32 %v271, %v1101
    %v1338 = vmul.f32 %v272, %v1105
    %v1339 = vmul.f32 %v273, %v1109
    %v1340 = vmul.f32 %v274, %v1113
    %v1341 = vmul.f32 %v275, %v1117
    %v1342 = vmul.f32 %v276, %v1089
    %v1343 = vmul.f32 %v277, %v1093
    %v1344 = vmul.f32 %v278, %v1097
    %v1345 = vmul.f32 %v279, %v1101
    %v1346 = vmul.f32 %v280, %v1105
    %v1347 = vmul.f32 %v281, %v1109
    %v1348 = vmul.f32 %v282, %v1113
    %v1349 = vmul.f32 %v283, %v1117
    %v1350 = vmul.f32 %v284, %v1089
    %v1351 = vmul.f32 %v285, %v1093
    %v1352 = vmul.f32 %v286, %v1097
    %v1353 = vmul.f32 %v287, %v1101
    %v1354 = vmul.f32 %v288, %v1105
    %v1355 = vmul.f32 %v289, %v1109
    %v1356 = vmul.f32 %v290, %v1113
    %v1357 = vmul.f32 %v291, %v1117
    %v1358 = vmul.f32 %v292, %v1089
    %v1359 = vmul.f32 %v293, %v1093
    %v1360 = vmul.f32 %v294, %v1097
    %v1361 = vmul.f32 %v295, %v1101
    %v1362 = vmul.f32 %v296, %v1105
    %v1363 = vmul.f32 %v297, %v1109
    %v1364 = vmul.f32 %v298, %v1113
    %v1365 = vmul.f32 %v299, %v1117
    %v1366 = vmul.f32 %v300, %v1089
    %v1367 = vmul.f32 %v301, %v1093
    %v1368 = vmul.f32 %v302, %v1097
    %v1369 = vmul.f32 %v303, %v1101
    %v1370 = vmul.f32 %v304, %v1105
    %v1371 = vmul.f32 %v305, %v1109
    %v1372 = vmul.f32 %v306, %v1113
    %v1373 = vmul.f32 %v307, %v1117
    %v1374 = vmul.f32 %v308, %v1089
    %v1375 = vmul.f32 %v309, %v1093
    %v1376 = vmul.f32 %v310, %v1097
    %v1377 = vmul.f32 %v311, %v1101
    %v1378 = vmul.f32 %v312, %v1105
    %v1379 = vmul.f32 %v313, %v1109
    %v1380 = vmul.f32 %v314, %v1113
    %v1381 = vmul.f32 %v315, %v1117
    %v1382 = vmul.f32 %v316, %v1089
    %v1383 = vmul.f32 %v317, %v1093
    %v1384 = vmul.f32 %v318, %v1097
    %v1385 = vmul.f32 %v319, %v1101
    %v1386 = vmul.f32 %v320, %v1105
    %v1387 = vmul.f32 %v321, %v1109
    %v1388 = vmul.f32 %v322, %v1113
    %v1389 = vmul.f32 %v323, %v1117
    %v1390 = vmul.f32 %v324, %v1089
    %v1391 = vmul.f32 %v325, %v1093
    %v1392 = vmul.f32 %v326, %v1097
    %v1393 = vmul.f32 %v327, %v1101
    %v1394 = vmul.f32 %v328, %v1105
    %v1395 = vmul.f32 %v329, %v1109
    %v1396 = vmul.f32 %v330, %v1113
    %v1397 = vmul.f32 %v331, %v1117
    %v1398 = vmul.f32 %v332, %v1089
    %v1399 = vmul.f32 %v333, %v1093
    %v1400 = vmul.f32 %v334, %v1097
    %v1401 = vmul.f32 %v335, %v1101
    %v1402 = vmul.f32 %v336, %v1105
    %v1403 = vmul.f32 %v337, %v1109
    %v1404 = vmul.f32 %v338, %v1113
    %v1405 = vmul.f32 %v339, %v1117
    %v1406 = vmul.f32 %v340, %v1089
    %v1407 = vmul.f32 %v341, %v1093
    %v1408 = vmul.f32 %v342, %v1097
    %v1409 = vmul.f32 %v343, %v1101
    %v1410 = vmul.f32 %v344, %v1105
    %v1411 = vmul.f32 %v345, %v1109
    %v1412 = vmul.f32 %v346, %v1113
    %v1413 = vmul.f32 %v347, %v1117
    %v1414 = vmul.f32 %v348, %v1089
    %v1415 = vmul.f32 %v349, %v1093
    %v1416 = vmul.f32 %v350, %v1097
    %v1417 = vmul.f32 %v351, %v1101
    %v1418 = vmul.f32 %v352, %v1105
    %v1419 = vmul.f32 %v353, %v1109
    %v1420 = vmul.f32 %v354, %v1113
    %v1421 = vmul.f32 %v355, %v1117
    %v1422 = vmul.f32 %v356, %v1089
    %v1423 = vmul.f32 %v357, %v1093
    %v1424 = vmul.f32 %v358, %v1097
    %v1425 = vmul.f32 %v359, %v1101
    %v1426 = vmul.f32 %v360, %v1105
    %v1427 = vmul.f32 %v361, %v1109
    %v1428 = vmul.f32 %v362, %v1113
    %v1429 = vmul.f32 %v363, %v1117
    %v1430 = vmul.f32 %v364, %v1089
    %v1431 = vmul.f32 %v365, %v1093
    %v1432 = vmul.f32 %v366, %v1097
    %v1433 = vmul.f32 %v367, %v1101
    %v1434 = vmul.f32 %v368, %v1105
    %v1435 = vmul.f32 %v369, %v1109
    %v1436 = vmul.f32 %v370, %v1113
    %v1437 = vmul.f32 %v371, %v1117
    %v1438 = vmul.f32 %v372, %v1089
    %v1439 = vmul.f32 %v373, %v1093
    %v1440 = vmul.f32 %v374, %v1097
    %v1441 = vmul.f32 %v375, %v1101
    %v1442 = vmul.f32 %v376, %v1105
    %v1443 = vmul.f32 %v377, %v1109
    %v1444 = vmul.f32 %v378, %v1113
    %v1445 = vmul.f32 %v379, %v1117
    %v1446 = vmul.f32 %v380, %v1089
    %v1447 = vmul.f32 %v381, %v1093
    %v1448 = vmul.f32 %v382, %v1097
    %v1449 = vmul.f32 %v383, %v1101
    %v1450 = vmul.f32 %v384, %v1105
    %v1451 = vmul.f32 %v385, %v1109
    %v1452 = vmul.f32 %v386, %v1113
    %v1453 = vmul.f32 %v387, %v1117
    %v1454 = vmul.f32 %v388, %v1089
    %v1455 = vmul.f32 %v389, %v1093
    %v1456 = vmul.f32 %v390, %v1097
    %v1457 = vmul.f32 %v391, %v1101
    %v1458 = vmul.f32 %v392, %v1105
    %v1459 = vmul.f32 %v393, %v1109
    %v1460 = vmul.f32 %v394, %v1113
    %v1461 = vmul.f32 %v395, %v1117
    %v1462 = vmul.f32 %v396, %v1089
    %v1463 = vmul.f32 %v397, %v1093
    %v1464 = vmul.f32 %v398, %v1097
    %v1465 = vmul.f32 %v399, %v1101
    %v1466 = vmul.f32 %v400, %v1105
    %v1467 = vmul.f32 %v401, %v1109
    %v1468 = vmul.f32 %v402, %v1113
    %v1469 = vmul.f32 %v403, %v1117
    %v1470 = vmul.f32 %v404, %v1089
    %v1471 = vmul.f32 %v405, %v1093
    %v1472 = vmul.f32 %v406, %v1097
    %v1473 = vmul.f32 %v407, %v1101
    %v1474 = vmul.f32 %v408, %v1105
    %v1475 = vmul.f32 %v409, %v1109
    %v1476 = vmul.f32 %v410, %v1113
    %v1477 = vmul.f32 %v411, %v1117
    %v1478 = vmul.f32 %v412, %v1089
    %v1479 = vmul.f32 %v413, %v1093
    %v1480 = vmul.f32 %v414, %v1097
    %v1481 = vmul.f32 %v415, %v1101
    %v1482 = vmul.f32 %v416, %v1105
    %v1483 = vmul.f32 %v417, %v1109
    %v1484 = vmul.f32 %v418, %v1113
    %v1485 = vmul.f32 %v419, %v1117
    %v1486 = vmul.f32 %v420, %v1089
    %v1487 = vmul.f32 %v421, %v1093
    %v1488 = vmul.f32 %v422, %v1097
    %v1489 = vmul.f32 %v423, %v1101
    %v1490 = vmul.f32 %v424, %v1105
    %v1491 = vmul.f32 %v425, %v1109
    %v1492 = vmul.f32 %v426, %v1113
    %v1493 = vmul.f32 %v427, %v1117
    %v1494 = vmul.f32 %v428, %v1089
    %v1495 = vmul.f32 %v429, %v1093
    %v1496 = vmul.f32 %v430, %v1097
    %v1497 = vmul.f32 %v431, %v1101
    %v1498 = vmul.f32 %v432, %v1105
    %v1499 = vmul.f32 %v433, %v1109
    %v1500 = vmul.f32 %v434, %v1113
    %v1501 = vmul.f32 %v435, %v1117
    %v1502 = vmul.f32 %v436, %v1089
    %v1503 = vmul.f32 %v437, %v1093
    %v1504 = vmul.f32 %v438, %v1097
    %v1505 = vmul.f32 %v439, %v1101
    %v1506 = vmul.f32 %v440, %v1105
    %v1507 = vmul.f32 %v441, %v1109
    %v1508 = vmul.f32 %v442, %v1113
    %v1509 = vmul.f32 %v443, %v1117
    %v1510 = vmul.f32 %v444, %v1089
    %v1511 = vmul.f32 %v445, %v1093
    %v1512 = vmul.f32 %v446, %v1097
    %v1513 = vmul.f32 %v447, %v1101
    %v1514 = vmul.f32 %v448, %v1105
    %v1515 = vmul.f32 %v449, %v1109
    %v1516 = vmul.f32 %v450, %v1113
    %v1517 = vmul.f32 %v451, %v1117
    %v1518 = vmul.f32 %v452, %v1089
    %v1519 = vmul.f32 %v453, %v1093
    %v1520 = vmul.f32 %v454, %v1097
    %v1521 = vmul.f32 %v455, %v1101
    %v1522 = vmul.f32 %v456, %v1105
    %v1523 = vmul.f32 %v457, %v1109
    %v1524 = vmul.f32 %v458, %v1113
    %v1525 = vmul.f32 %v459, %v1117
    %v1526 = vmul.f32 %v460, %v1089
    %v1527 = vmul.f32 %v461, %v1093
    %v1528 = vmul.f32 %v462, %v1097
    %v1529 = vmul.f32 %v463, %v1101
    %v1530 = vmul.f32 %v464, %v1105
    %v1531 = vmul.f32 %v465, %v1109
    %v1532 = vmul.f32 %v466, %v1113
    %v1533 = vmul.f32 %v467, %v1117
    %v1534 = vmul.f32 %v468, %v1089
    %v1535 = vmul.f32 %v469, %v1093
    %v1536 = vmul.f32 %v470, %v1097
    %v1537 = vmul.f32 %v471, %v1101
    %v1538 = vmul.f32 %v472, %v1105
    %v1539 = vmul.f32 %v473, %v1109
    %v1540 = vmul.f32 %v474, %v1113
    %v1541 = vmul.f32 %v475, %v1117
    %v1542 = vmul.f32 %v476, %v1089
    %v1543 = vmul.f32 %v477, %v1093
    %v1544 = vmul.f32 %v478, %v1097
    %v1545 = vmul.f32 %v479, %v1101
    %v1546 = vmul.f32 %v480, %v1105
    %v1547 = vmul.f32 %v481, %v1109
    %v1548 = vmul.f32 %v482, %v1113
    %v1549 = vmul.f32 %v483, %v1117
    %v1550 = vmul.f32 %v484, %v1089
    %v1551 = vmul.f32 %v485, %v1093
    %v1552 = vmul.f32 %v486, %v1097
    %v1553 = vmul.f32 %v487, %v1101
    %v1554 = vmul.f32 %v488, %v1105
    %v1555 = vmul.f32 %v489, %v1109
    %v1556 = vmul.f32 %v490, %v1113
    %v1557 = vmul.f32 %v491, %v1117
    %v1558 = vmul.f32 %v492, %v1089
    %v1559 = vmul.f32 %v493, %v1093
    %v1560 = vmul.f32 %v494, %v1097
    %v1561 = vmul.f32 %v495, %v1101
    %v1562 = vmul.f32 %v496, %v1105
    %v1563 = vmul.f32 %v497, %v1109
    %v1564 = vmul.f32 %v498, %v1113
    %v1565 = vmul.f32 %v499, %v1117
    %v1566 = vmul.f32 %v500, %v1089
    %v1567 = vmul.f32 %v501, %v1093
    %v1568 = vmul.f32 %v502, %v1097
    %v1569 = vmul.f32 %v503, %v1101
    %v1570 = vmul.f32 %v504, %v1105
    %v1571 = vmul.f32 %v505, %v1109
    %v1572 = vmul.f32 %v506, %v1113
    %v1573 = vmul.f32 %v507, %v1117
    %v1574 = vmul.f32 %v508, %v1089
    %v1575 = vmul.f32 %v509, %v1093
    %v1576 = vmul.f32 %v510, %v1097
    %v1577 = vmul.f32 %v511, %v1101
    %v1578 = vmul.f32 %v512, %v1105
    %v1579 = vmul.f32 %v513, %v1109
    %v1580 = vmul.f32 %v514, %v1113
    %v1581 = vmul.f32 %v515, %v1117
    %v1582 = vmul.f32 %v516, %v1089
    %v1583 = vmul.f32 %v517, %v1093
    %v1584 = vmul.f32 %v518, %v1097
    %v1585 = vmul.f32 %v519, %v1101
    %v1586 = vmul.f32 %v520, %v1105
    %v1587 = vmul.f32 %v521, %v1109
    %v1588 = vmul.f32 %v522, %v1113
    %v1589 = vmul.f32 %v523, %v1117
    %v1590 = vmul.f32 %v524, %v1089
    %v1591 = vmul.f32 %v525, %v1093
    %v1592 = vmul.f32 %v526, %v1097
    %v1593 = vmul.f32 %v527, %v1101
    %v1594 = vmul.f32 %v528, %v1105
    %v1595 = vmul.f32 %v529, %v1109
    %v1596 = vmul.f32 %v530, %v1113
    %v1597 = vmul.f32 %v531, %v1117
    %v1598 = vmul.f32 %v532, %v1089
    %v1599 = vmul.f32 %v533, %v1093
    %v1600 = vmul.f32 %v534, %v1097
    %v1601 = vmul.f32 %v535, %v1101
    %v1602 = vmul.f32 %v536, %v1105
    %v1603 = vmul.f32 %v537, %v1109
    %v1604 = vmul.f32 %v538, %v1113
    %v1605 = vmul.f32 %v539, %v1117
    %v1606 = vmul.f32 %v540, %v1089
    %v1607 = vmul.f32 %v541, %v1093
    %v1608 = vmul.f32 %v542, %v1097
    %v1609 = vmul.f32 %v543, %v1101
    %v1610 = vmul.f32 %v544, %v1105
    %v1611 = vmul.f32 %v545, %v1109
    %v1612 = vmul.f32 %v546, %v1113
    %v1613 = vmul.f32 %v547, %v1117
    %v1614 = vmul.f32 %v548, %v1089
    %v1615 = vmul.f32 %v549, %v1093
    %v1616 = vmul.f32 %v550, %v1097
    %v1617 = vmul.f32 %v551, %v1101
    %v1618 = vmul.f32 %v552, %v1105
    %v1619 = vmul.f32 %v553, %v1109
    %v1620 = vmul.f32 %v554, %v1113
    %v1621 = vmul.f32 %v555, %v1117
    %v1622 = vmul.f32 %v556, %v1089
    %v1623 = vmul.f32 %v557, %v1093
    %v1624 = vmul.f32 %v558, %v1097
    %v1625 = vmul.f32 %v559, %v1101
    %v1626 = vmul.f32 %v560, %v1105
    %v1627 = vmul.f32 %v561, %v1109
    %v1628 = vmul.f32 %v562, %v1113
    %v1629 = vmul.f32 %v563, %v1117
    %v1630 = vmul.f32 %v564, %v1089
    %v1631 = vmul.f32 %v565, %v1093
    %v1632 = vmul.f32 %v566, %v1097
    %v1633 = vmul.f32 %v567, %v1101
    %v1634 = vmul.f32 %v568, %v1105
    %v1635 = vmul.f32 %v569, %v1109
    %v1636 = vmul.f32 %v570, %v1113
    %v1637 = vmul.f32 %v571, %v1117
    %v1638 = vmul.f32 %v572, %v1089
    %v1639 = vmul.f32 %v573, %v1093
    %v1640 = vmul.f32 %v574, %v1097
    %v1641 = vmul.f32 %v575, %v1101
    %v1642 = vmul.f32 %v576, %v1105
    %v1643 = vmul.f32 %v577, %v1109
    %v1644 = vmul.f32 %v578, %v1113
    %v1645 = vmul.f32 %v579, %v1117
    %v1646 = vmul.f32 %v580, %v1089
    %v1647 = vmul.f32 %v581, %v1093
    %v1648 = vmul.f32 %v582, %v1097
    %v1649 = vmul.f32 %v583, %v1101
    %v1650 = vmul.f32 %v584, %v1105
    %v1651 = vmul.f32 %v585, %v1109
    %v1652 = vmul.f32 %v586, %v1113
    %v1653 = vmul.f32 %v587, %v1117
    %v1654 = vmul.f32 %v588, %v1089
    %v1655 = vmul.f32 %v589, %v1093
    %v1656 = vmul.f32 %v590, %v1097
    %v1657 = vmul.f32 %v591, %v1101
    %v1658 = vmul.f32 %v592, %v1105
    %v1659 = vmul.f32 %v593, %v1109
    %v1660 = vmul.f32 %v594, %v1113
    %v1661 = vmul.f32 %v595, %v1117
    %v1662 = vmul.f32 %v596, %v1089
    %v1663 = vmul.f32 %v597, %v1093
    %v1664 = vmul.f32 %v598, %v1097
    %v1665 = vmul.f32 %v599, %v1101
    %v1666 = vmul.f32 %v600, %v1105
    %v1667 = vmul.f32 %v601, %v1109
    %v1668 = vmul.f32 %v602, %v1113
    %v1669 = vmul.f32 %v603, %v1117
    %v1670 = vmul.f32 %v604, %v1089
    %v1671 = vmul.f32 %v605, %v1093
    %v1672 = vmul.f32 %v606, %v1097
    %v1673 = vmul.f32 %v607, %v1101
    %v1674 = vmul.f32 %v608, %v1105
    %v1675 = vmul.f32 %v609, %v1109
    %v1676 = vmul.f32 %v610, %v1113
    %v1677 = vmul.f32 %v611, %v1117
    %v1678 = vmul.f32 %v612, %v1089
    %v1679 = vmul.f32 %v613, %v1093
    %v1680 = vmul.f32 %v614, %v1097
    %v1681 = vmul.f32 %v615, %v1101
    %v1682 = vmul.f32 %v616, %v1105
    %v1683 = vmul.f32 %v617, %v1109
    %v1684 = vmul.f32 %v618, %v1113
    %v1685 = vmul.f32 %v619, %v1117
    %v1686 = vmul.f32 %v620, %v1089
    %v1687 = vmul.f32 %v621, %v1093
    %v1688 = vmul.f32 %v622, %v1097
    %v1689 = vmul.f32 %v623, %v1101
    %v1690 = vmul.f32 %v624, %v1105
    %v1691 = vmul.f32 %v625, %v1109
    %v1692 = vmul.f32 %v626, %v1113
    %v1693 = vmul.f32 %v627, %v1117
    %v1694 = vmul.f32 %v628, %v1089
    %v1695 = vmul.f32 %v629, %v1093
    %v1696 = vmul.f32 %v630, %v1097
    %v1697 = vmul.f32 %v631, %v1101
    %v1698 = vmul.f32 %v632, %v1105
    %v1699 = vmul.f32 %v633, %v1109
    %v1700 = vmul.f32 %v634, %v1113
    %v1701 = vmul.f32 %v635, %v1117
    %v1702 = vmul.f32 %v636, %v1089
    %v1703 = vmul.f32 %v637, %v1093
    %v1704 = vmul.f32 %v638, %v1097
    %v1705 = vmul.f32 %v639, %v1101
    %v1706 = vmul.f32 %v640, %v1105
    %v1707 = vmul.f32 %v641, %v1109
    %v1708 = vmul.f32 %v642, %v1113
    %v1709 = vmul.f32 %v643, %v1117
    %v1710 = vmul.f32 %v644, %v1089
    %v1711 = vmul.f32 %v645, %v1093
    %v1712 = vmul.f32 %v646, %v1097
    %v1713 = vmul.f32 %v647, %v1101
    %v1714 = vmul.f32 %v648, %v1105
    %v1715 = vmul.f32 %v649, %v1109
    %v1716 = vmul.f32 %v650, %v1113
    %v1717 = vmul.f32 %v651, %v1117
    %v1718 = vmul.f32 %v652, %v1089
    %v1719 = vmul.f32 %v653, %v1093
    %v1720 = vmul.f32 %v654, %v1097
    %v1721 = vmul.f32 %v655, %v1101
    %v1722 = vmul.f32 %v656, %v1105
    %v1723 = vmul.f32 %v657, %v1109
    %v1724 = vmul.f32 %v658, %v1113
    %v1725 = vmul.f32 %v659, %v1117
    %v1726 = vmul.f32 %v660, %v1089
    %v1727 = vmul.f32 %v661, %v1093
    %v1728 = vmul.f32 %v662, %v1097
    %v1729 = vmul.f32 %v663, %v1101
    %v1730 = vmul.f32 %v664, %v1105
    %v1731 = vmul.f32 %v665, %v1109
    %v1732 = vmul.f32 %v666, %v1113
    %v1733 = vmul.f32 %v667, %v1117
    %v1734 = vmul.f32 %v668, %v1089
    %v1735 = vmul.f32 %v669, %v1093
    %v1736 = vmul.f32 %v670, %v1097
    %v1737 = vmul.f32 %v671, %v1101
    %v1738 = vmul.f32 %v672, %v1105
    %v1739 = vmul.f32 %v673, %v1109
    %v1740 = vmul.f32 %v674, %v1113
    %v1741 = vmul.f32 %v675, %v1117
    %v1742 = vmul.f32 %v676, %v1089
    %v1743 = vmul.f32 %v677, %v1093
    %v1744 = vmul.f32 %v678, %v1097
    %v1745 = vmul.f32 %v679, %v1101
    %v1746 = vmul.f32 %v680, %v1105
    %v1747 = vmul.f32 %v681, %v1109
    %v1748 = vmul.f32 %v682, %v1113
    %v1749 = vmul.f32 %v683, %v1117
    %v1750 = vmul.f32 %v684, %v1089
    %v1751 = vmul.f32 %v685, %v1093
    %v1752 = vmul.f32 %v686, %v1097
    %v1753 = vmul.f32 %v687, %v1101
    %v1754 = vmul.f32 %v688, %v1105
    %v1755 = vmul.f32 %v689, %v1109
    %v1756 = vmul.f32 %v690, %v1113
    %v1757 = vmul.f32 %v691, %v1117
    %v1758 = vmul.f32 %v692, %v1089
    %v1759 = vmul.f32 %v693, %v1093
    %v1760 = vmul.f32 %v694, %v1097
    %v1761 = vmul.f32 %v695, %v1101
    %v1762 = vmul.f32 %v696, %v1105
    %v1763 = vmul.f32 %v697, %v1109
    %v1764 = vmul.f32 %v698, %v1113
    %v1765 = vmul.f32 %v699, %v1117
    %v1766 = vmul.f32 %v700, %v1089
    %v1767 = vmul.f32 %v701, %v1093
    %v1768 = vmul.f32 %v702, %v1097
    %v1769 = vmul.f32 %v703, %v1101
    %v1770 = vmul.f32 %v704, %v1105
    %v1771 = vmul.f32 %v705, %v1109
    %v1772 = vmul.f32 %v706, %v1113
    %v1773 = vmul.f32 %v707, %v1117
    %v1774 = vmul.f32 %v708, %v1089
    %v1775 = vmul.f32 %v709, %v1093
    %v1776 = vmul.f32 %v710, %v1097
    %v1777 = vmul.f32 %v711, %v1101
    %v1778 = vmul.f32 %v712, %v1105
    %v1779 = vmul.f32 %v713, %v1109
    %v1780 = vmul.f32 %v714, %v1113
    %v1781 = vmul.f32 %v715, %v1117
    %v1782 = vmul.f32 %v716, %v1089
    %v1783 = vmul.f32 %v717, %v1093
    %v1784 = vmul.f32 %v718, %v1097
    %v1785 = vmul.f32 %v719, %v1101
    %v1786 = vmul.f32 %v720, %v1105
    %v1787 = vmul.f32 %v721, %v1109
    %v1788 = vmul.f32 %v722, %v1113
    %v1789 = vmul.f32 %v723, %v1117
    %v1790 = vmul.f32 %v724, %v1089
    %v1791 = vmul.f32 %v725, %v1093
    %v1792 = vmul.f32 %v726, %v1097
    %v1793 = vmul.f32 %v727, %v1101
    %v1794 = vmul.f32 %v728, %v1105
    %v1795 = vmul.f32 %v729, %v1109
    %v1796 = vmul.f32 %v730, %v1113
    %v1797 = vmul.f32 %v731, %v1117
    %v1798 = vmul.f32 %v732, %v1089
    %v1799 = vmul.f32 %v733, %v1093
    %v1800 = vmul.f32 %v734, %v1097
    %v1801 = vmul.f32 %v735, %v1101
    %v1802 = vmul.f32 %v736, %v1105
    %v1803 = vmul.f32 %v737, %v1109
    %v1804 = vmul.f32 %v738, %v1113
    %v1805 = vmul.f32 %v739, %v1117
    %v1806 = vmul.f32 %v740, %v1089
    %v1807 = vmul.f32 %v741, %v1093
    %v1808 = vmul.f32 %v742, %v1097
    %v1809 = vmul.f32 %v743, %v1101
    %v1810 = vmul.f32 %v744, %v1105
    %v1811 = vmul.f32 %v745, %v1109
    %v1812 = vmul.f32 %v746, %v1113
    %v1813 = vmul.f32 %v747, %v1117
    %v1814 = vmul.f32 %v748, %v1089
    %v1815 = vmul.f32 %v749, %v1093
    %v1816 = vmul.f32 %v750, %v1097
    %v1817 = vmul.f32 %v751, %v1101
    %v1818 = vmul.f32 %v752, %v1105
    %v1819 = vmul.f32 %v753, %v1109
    %v1820 = vmul.f32 %v754, %v1113
    %v1821 = vmul.f32 %v755, %v1117
    %v1822 = vmul.f32 %v756, %v1089
    %v1823 = vmul.f32 %v757, %v1093
    %v1824 = vmul.f32 %v758, %v1097
    %v1825 = vmul.f32 %v759, %v1101
    %v1826 = vmul.f32 %v760, %v1105
    %v1827 = vmul.f32 %v761, %v1109
    %v1828 = vmul.f32 %v762, %v1113
    %v1829 = vmul.f32 %v763, %v1117
    %v1830 = vmul.f32 %v764, %v1089
    %v1831 = vmul.f32 %v765, %v1093
    %v1832 = vmul.f32 %v766, %v1097
    %v1833 = vmul.f32 %v767, %v1101
    %v1834 = vmul.f32 %v768, %v1105
    %v1835 = vmul.f32 %v769, %v1109
    %v1836 = vmul.f32 %v770, %v1113
    %v1837 = vmul.f32 %v771, %v1117
    %v1838 = vmul.f32 %v772, %v1089
    %v1839 = vmul.f32 %v773, %v1093
    %v1840 = vmul.f32 %v774, %v1097
    %v1841 = vmul.f32 %v775, %v1101
    %v1842 = vmul.f32 %v776, %v1105
    %v1843 = vmul.f32 %v777, %v1109
    %v1844 = vmul.f32 %v778, %v1113
    %v1845 = vmul.f32 %v779, %v1117
    %v1846 = vmul.f32 %v780, %v1089
    %v1847 = vmul.f32 %v781, %v1093
    %v1848 = vmul.f32 %v782, %v1097
    %v1849 = vmul.f32 %v783, %v1101
    %v1850 = vmul.f32 %v784, %v1105
    %v1851 = vmul.f32 %v785, %v1109
    %v1852 = vmul.f32 %v786, %v1113
    %v1853 = vmul.f32 %v787, %v1117
    %v1854 = vmul.f32 %v788, %v1089
    %v1855 = vmul.f32 %v789, %v1093
    %v1856 = vmul.f32 %v790, %v1097
    %v1857 = vmul.f32 %v791, %v1101
    %v1858 = vmul.f32 %v792, %v1105
    %v1859 = vmul.f32 %v793, %v1109
    %v1860 = vmul.f32 %v794, %v1113
    %v1861 = vmul.f32 %v795, %v1117
    %v1862 = vmul.f32 %v796, %v1089
    %v1863 = vmul.f32 %v797, %v1093
    %v1864 = vmul.f32 %v798, %v1097
    %v1865 = vmul.f32 %v799, %v1101
    %v1866 = vmul.f32 %v800, %v1105
    %v1867 = vmul.f32 %v801, %v1109
    %v1868 = vmul.f32 %v802, %v1113
    %v1869 = vmul.f32 %v803, %v1117
    %v1870 = vmul.f32 %v804, %v1089
    %v1871 = vmul.f32 %v805, %v1093
    %v1872 = vmul.f32 %v806, %v1097
    %v1873 = vmul.f32 %v807, %v1101
    %v1874 = vmul.f32 %v808, %v1105
    %v1875 = vmul.f32 %v809, %v1109
    %v1876 = vmul.f32 %v810, %v1113
    %v1877 = vmul.f32 %v811, %v1117
    %v1878 = vmul.f32 %v812, %v1089
    %v1879 = vmul.f32 %v813, %v1093
    %v1880 = vmul.f32 %v814, %v1097
    %v1881 = vmul.f32 %v815, %v1101
    %v1882 = vmul.f32 %v816, %v1105
    %v1883 = vmul.f32 %v817, %v1109
    %v1884 = vmul.f32 %v818, %v1113
    %v1885 = vmul.f32 %v819, %v1117
    %v1886 = vmul.f32 %v820, %v1089
    %v1887 = vmul.f32 %v821, %v1093
    %v1888 = vmul.f32 %v822, %v1097
    %v1889 = vmul.f32 %v823, %v1101
    %v1890 = vmul.f32 %v824, %v1105
    %v1891 = vmul.f32 %v825, %v1109
    %v1892 = vmul.f32 %v826, %v1113
    %v1893 = vmul.f32 %v827, %v1117
    %v1894 = vmul.f32 %v828, %v1089
    %v1895 = vmul.f32 %v829, %v1093
    %v1896 = vmul.f32 %v830, %v1097
    %v1897 = vmul.f32 %v831, %v1101
    %v1898 = vmul.f32 %v832, %v1105
    %v1899 = vmul.f32 %v833, %v1109
    %v1900 = vmul.f32 %v834, %v1113
    %v1901 = vmul.f32 %v835, %v1117
    %v1902 = vmul.f32 %v836, %v1089
    %v1903 = vmul.f32 %v837, %v1093
    %v1904 = vmul.f32 %v838, %v1097
    %v1905 = vmul.f32 %v839, %v1101
    %v1906 = vmul.f32 %v840, %v1105
    %v1907 = vmul.f32 %v841, %v1109
    %v1908 = vmul.f32 %v842, %v1113
    %v1909 = vmul.f32 %v843, %v1117
    %v1910 = vmul.f32 %v844, %v1089
    %v1911 = vmul.f32 %v845, %v1093
    %v1912 = vmul.f32 %v846, %v1097
    %v1913 = vmul.f32 %v847, %v1101
    %v1914 = vmul.f32 %v848, %v1105
    %v1915 = vmul.f32 %v849, %v1109
    %v1916 = vmul.f32 %v850, %v1113
    %v1917 = vmul.f32 %v851, %v1117
    %v1918 = vmul.f32 %v852, %v1089
    %v1919 = vmul.f32 %v853, %v1093
    %v1920 = vmul.f32 %v854, %v1097
    %v1921 = vmul.f32 %v855, %v1101
    %v1922 = vmul.f32 %v856, %v1105
    %v1923 = vmul.f32 %v857, %v1109
    %v1924 = vmul.f32 %v858, %v1113
    %v1925 = vmul.f32 %v859, %v1117
    %v1926 = vmul.f32 %v860, %v1089
    %v1927 = vmul.f32 %v861, %v1093
    %v1928 = vmul.f32 %v862, %v1097
    %v1929 = vmul.f32 %v863, %v1101
    %v1930 = vmul.f32 %v864, %v1105
    %v1931 = vmul.f32 %v865, %v1109
    %v1932 = vmul.f32 %v866, %v1113
    %v1933 = vmul.f32 %v867, %v1117
    %v1934 = vmul.f32 %v868, %v1089
    %v1935 = vmul.f32 %v869, %v1093
    %v1936 = vmul.f32 %v870, %v1097
    %v1937 = vmul.f32 %v871, %v1101
    %v1938 = vmul.f32 %v872, %v1105
    %v1939 = vmul.f32 %v873, %v1109
    %v1940 = vmul.f32 %v874, %v1113
    %v1941 = vmul.f32 %v875, %v1117
    %v1942 = vmul.f32 %v876, %v1089
    %v1943 = vmul.f32 %v877, %v1093
    %v1944 = vmul.f32 %v878, %v1097
    %v1945 = vmul.f32 %v879, %v1101
    %v1946 = vmul.f32 %v880, %v1105
    %v1947 = vmul.f32 %v881, %v1109
    %v1948 = vmul.f32 %v882, %v1113
    %v1949 = vmul.f32 %v883, %v1117
    %v1950 = vmul.f32 %v884, %v1089
    %v1951 = vmul.f32 %v885, %v1093
    %v1952 = vmul.f32 %v886, %v1097
    %v1953 = vmul.f32 %v887, %v1101
    %v1954 = vmul.f32 %v888, %v1105
    %v1955 = vmul.f32 %v889, %v1109
    %v1956 = vmul.f32 %v890, %v1113
    %v1957 = vmul.f32 %v891, %v1117
    %v1958 = vmul.f32 %v892, %v1089
    %v1959 = vmul.f32 %v893, %v1093
    %v1960 = vmul.f32 %v894, %v1097
    %v1961 = vmul.f32 %v895, %v1101
    %v1962 = vmul.f32 %v896, %v1105
    %v1963 = vmul.f32 %v897, %v1109
    %v1964 = vmul.f32 %v898, %v1113
    %v1965 = vmul.f32 %v899, %v1117
    %v1966 = vmul.f32 %v900, %v1089
    %v1967 = vmul.f32 %v901, %v1093
    %v1968 = vmul.f32 %v902, %v1097
    %v1969 = vmul.f32 %v903, %v1101
    %v1970 = vmul.f32 %v904, %v1105
    %v1971 = vmul.f32 %v905, %v1109
    %v1972 = vmul.f32 %v906, %v1113
    %v1973 = vmul.f32 %v907, %v1117
    %v1974 = vmul.f32 %v908, %v1089
    %v1975 = vmul.f32 %v909, %v1093
    %v1976 = vmul.f32 %v910, %v1097
    %v1977 = vmul.f32 %v911, %v1101
    %v1978 = vmul.f32 %v912, %v1105
    %v1979 = vmul.f32 %v913, %v1109
    %v1980 = vmul.f32 %v914, %v1113
    %v1981 = vmul.f32 %v915, %v1117
    %v1982 = vmul.f32 %v916, %v1089
    %v1983 = vmul.f32 %v917, %v1093
    %v1984 = vmul.f32 %v918, %v1097
    %v1985 = vmul.f32 %v919, %v1101
    %v1986 = vmul.f32 %v920, %v1105
    %v1987 = vmul.f32 %v921, %v1109
    %v1988 = vmul.f32 %v922, %v1113
    %v1989 = vmul.f32 %v923, %v1117
    %v1990 = vmul.f32 %v924, %v1089
    %v1991 = vmul.f32 %v925, %v1093
    %v1992 = vmul.f32 %v926, %v1097
    %v1993 = vmul.f32 %v927, %v1101
    %v1994 = vmul.f32 %v928, %v1105
    %v1995 = vmul.f32 %v929, %v1109
    %v1996 = vmul.f32 %v930, %v1113
    %v1997 = vmul.f32 %v931, %v1117
    %v1998 = vmul.f32 %v932, %v1089
    %v1999 = vmul.f32 %v933, %v1093
    %v2000 = vmul.f32 %v934, %v1097
    %v2001 = vmul.f32 %v935, %v1101
    %v2002 = vmul.f32 %v936, %v1105
    %v2003 = vmul.f32 %v937, %v1109
    %v2004 = vmul.f32 %v938, %v1113
    %v2005 = vmul.f32 %v939, %v1117
    %v2006 = vmul.f32 %v940, %v1089
    %v2007 = vmul.f32 %v941, %v1093
    %v2008 = vmul.f32 %v942, %v1097
    %v2009 = vmul.f32 %v943, %v1101
    %v2010 = vmul.f32 %v944, %v1105
    %v2011 = vmul.f32 %v945, %v1109
    %v2012 = vmul.f32 %v946, %v1113
    %v2013 = vmul.f32 %v947, %v1117
    %v2014 = vmul.f32 %v948, %v1089
    %v2015 = vmul.f32 %v949, %v1093
    %v2016 = vmul.f32 %v950, %v1097
    %v2017 = vmul.f32 %v951, %v1101
    %v2018 = vmul.f32 %v952, %v1105
    %v2019 = vmul.f32 %v953, %v1109
    %v2020 = vmul.f32 %v954, %v1113
    %v2021 = vmul.f32 %v955, %v1117
    %v2022 = vmul.f32 %v956, %v1089
    %v2023 = vmul.f32 %v957, %v1093
    %v2024 = vmul.f32 %v958, %v1097
    %v2025 = vmul.f32 %v959, %v1101
    %v2026 = vmul.f32 %v960, %v1105
    %v2027 = vmul.f32 %v961, %v1109
    %v2028 = vmul.f32 %v962, %v1113
    %v2029 = vmul.f32 %v963, %v1117
    %v2030 = vmul.f32 %v964, %v1089
    %v2031 = vmul.f32 %v965, %v1093
    %v2032 = vmul.f32 %v966, %v1097
    %v2033 = vmul.f32 %v967, %v1101
    %v2034 = vmul.f32 %v968, %v1105
    %v2035 = vmul.f32 %v969, %v1109
    %v2036 = vmul.f32 %v970, %v1113
    %v2037 = vmul.f32 %v971, %v1117
    %v2038 = vmul.f32 %v972, %v1089
    %v2039 = vmul.f32 %v973, %v1093
    %v2040 = vmul.f32 %v974, %v1097
    %v2041 = vmul.f32 %v975, %v1101
    %v2042 = vmul.f32 %v976, %v1105
    %v2043 = vmul.f32 %v977, %v1109
    %v2044 = vmul.f32 %v978, %v1113
    %v2045 = vmul.f32 %v979, %v1117
    %v2046 = vmul.f32 %v980, %v1089
    %v2047 = vmul.f32 %v981, %v1093
    %v2048 = vmul.f32 %v982, %v1097
    %v2049 = vmul.f32 %v983, %v1101
    %v2050 = vmul.f32 %v984, %v1105
    %v2051 = vmul.f32 %v985, %v1109
    %v2052 = vmul.f32 %v986, %v1113
    %v2053 = vmul.f32 %v987, %v1117
    %v2054 = vmul.f32 %v988, %v1089
    %v2055 = vmul.f32 %v989, %v1093
    %v2056 = vmul.f32 %v990, %v1097
    %v2057 = vmul.f32 %v991, %v1101
    %v2058 = vmul.f32 %v992, %v1105
    %v2059 = vmul.f32 %v993, %v1109
    %v2060 = vmul.f32 %v994, %v1113
    %v2061 = vmul.f32 %v995, %v1117
    %v2062 = vmul.f32 %v996, %v1089
    %v2063 = vmul.f32 %v997, %v1093
    %v2064 = vmul.f32 %v998, %v1097
    %v2065 = vmul.f32 %v999, %v1101
    %v2066 = vmul.f32 %v1000, %v1105
    %v2067 = vmul.f32 %v1001, %v1109
    %v2068 = vmul.f32 %v1002, %v1113
    %v2069 = vmul.f32 %v1003, %v1117
    %v2070 = vmul.f32 %v1004, %v1089
    %v2071 = vmul.f32 %v1005, %v1093
    %v2072 = vmul.f32 %v1006, %v1097
    %v2073 = vmul.f32 %v1007, %v1101
    %v2074 = vmul.f32 %v1008, %v1105
    %v2075 = vmul.f32 %v1009, %v1109
    %v2076 = vmul.f32 %v1010, %v1113
    %v2077 = vmul.f32 %v1011, %v1117
    %v2078 = vmul.f32 %v1012, %v1089
    %v2079 = vmul.f32 %v1013, %v1093
    %v2080 = vmul.f32 %v1014, %v1097
    %v2081 = vmul.f32 %v1015, %v1101
    %v2082 = vmul.f32 %v1016, %v1105
    %v2083 = vmul.f32 %v1017, %v1109
    %v2084 = vmul.f32 %v1018, %v1113
    %v2085 = vmul.f32 %v1019, %v1117
    %v2086 = vmul.f32 %v1020, %v1089
    %v2087 = vmul.f32 %v1021, %v1093
    %v2088 = vmul.f32 %v1022, %v1097
    %v2089 = vmul.f32 %v1023, %v1101
    %v2090 = vmul.f32 %v1024, %v1105
    %v2091 = vmul.f32 %v1025, %v1109
    %v2092 = vmul.f32 %v1026, %v1113
    %v2093 = vmul.f32 %v1027, %v1117
    %v2094 = vmul.f32 %v1028, %v1089
    %v2095 = vmul.f32 %v1029, %v1093
    %v2096 = vmul.f32 %v1030, %v1097
    %v2097 = vmul.f32 %v1031, %v1101
    %v2098 = vmul.f32 %v1032, %v1105
    %v2099 = vmul.f32 %v1033, %v1109
    %v2100 = vmul.f32 %v1034, %v1113
    %v2101 = vmul.f32 %v1035, %v1117
    %v2102 = vmul.f32 %v1036, %v1089
    %v2103 = vmul.f32 %v1037, %v1093
    %v2104 = vmul.f32 %v1038, %v1097
    %v2105 = vmul.f32 %v1039, %v1101
    %v2106 = vmul.f32 %v1040, %v1105
    %v2107 = vmul.f32 %v1041, %v1109
    %v2108 = vmul.f32 %v1042, %v1113
    %v2109 = vmul.f32 %v1043, %v1117
    %v2110 = vmul.f32 %v1044, %v1089
    %v2111 = vmul.f32 %v1045, %v1093
    %v2112 = vmul.f32 %v1046, %v1097
    %v2113 = vmul.f32 %v1047, %v1101
    %v2114 = vmul.f32 %v1048, %v1105
    %v2115 = vmul.f32 %v1049, %v1109
    %v2116 = vmul.f32 %v1050, %v1113
    %v2117 = vmul.f32 %v1051, %v1117
    %v2118 = vmul.f32 %v1052, %v1089
    %v2119 = vmul.f32 %v1053, %v1093
    %v2120 = vmul.f32 %v1054, %v1097
    %v2121 = vmul.f32 %v1055, %v1101
    %v2122 = vmul.f32 %v1056, %v1105
    %v2123 = vmul.f32 %v1057, %v1109
    %v2124 = vmul.f32 %v1058, %v1113
    %v2125 = vmul.f32 %v1059, %v1117
    %v2126 = vmul.f32 %v1060, %v1089
    %v2127 = vmul.f32 %v1061, %v1093
    %v2128 = vmul.f32 %v1062, %v1097
    %v2129 = vmul.f32 %v1063, %v1101
    %v2130 = vmul.f32 %v1064, %v1105
    %v2131 = vmul.f32 %v1065, %v1109
    %v2132 = vmul.f32 %v1066, %v1113
    %v2133 = vmul.f32 %v1067, %v1117
    %v2134 = vmul.f32 %v1068, %v1089
    %v2135 = vmul.f32 %v1069, %v1093
    %v2136 = vmul.f32 %v1070, %v1097
    %v2137 = vmul.f32 %v1071, %v1101
    %v2138 = vmul.f32 %v1072, %v1105
    %v2139 = vmul.f32 %v1073, %v1109
    %v2140 = vmul.f32 %v1074, %v1113
    %v2141 = vmul.f32 %v1075, %v1117
    %v2142 = vmul.f32 %v1076, %v1089
    %v2143 = vmul.f32 %v1077, %v1093
    %v2144 = vmul.f32 %v1078, %v1097
    %v2145 = vmul.f32 %v1079, %v1101
    %v2146 = vmul.f32 %v1080, %v1105
    %v2147 = vmul.f32 %v1081, %v1109
    %v2148 = vmul.f32 %v1082, %v1113
    %v2149 = vmul.f32 %v1083, %v1117
    %v2150 = vadd.f32 %v1126, %v1127
    %v2151 = vadd.f32 %v2150, %v1128
    %v2152 = vadd.f32 %v2151, %v1129
    %v2153 = vadd.f32 %v2152, %v1130
    %v2154 = vadd.f32 %v2153, %v1131
    %v2155 = vadd.f32 %v2154, %v1132
    %v2156 = vadd.f32 %v2155, %v1133
    %2157 = vadd.xlane.f32.xlu0 %v2156
    %v2158 = vpop.xlane.xlu0 %2157
    %v2159 = vadd.f32 %v1134, %v1135
    %v2160 = vadd.f32 %v2159, %v1136
    %v2161 = vadd.f32 %v2160, %v1137
    %v2162 = vadd.f32 %v2161, %v1138
    %v2163 = vadd.f32 %v2162, %v1139
    %v2164 = vadd.f32 %v2163, %v1140
    %v2165 = vadd.f32 %v2164, %v1141
    %2166 = vadd.xlane.f32.xlu0 %v2165
    %v2167 = vpop.xlane.xlu0 %2166
    %v2168 = vadd.f32 %v1142, %v1143
    %v2169 = vadd.f32 %v2168, %v1144
    %v2170 = vadd.f32 %v2169, %v1145
    %v2171 = vadd.f32 %v2170, %v1146
    %v2172 = vadd.f32 %v2171, %v1147
    %v2173 = vadd.f32 %v2172, %v1148
    %v2174 = vadd.f32 %v2173, %v1149
    %2175 = vadd.xlane.f32.xlu0 %v2174
    %v2176 = vpop.xlane.xlu0 %2175
    %v2177 = vadd.f32 %v1150, %v1151
    %v2178 = vadd.f32 %v2177, %v1152
    %v2179 = vadd.f32 %v2178, %v1153
    %v2180 = vadd.f32 %v2179, %v1154
    %v2181 = vadd.f32 %v2180, %v1155
    %v2182 = vadd.f32 %v2181, %v1156
    %v2183 = vadd.f32 %v2182, %v1157
    %2184 = vadd.xlane.f32.xlu0 %v2183
    %v2185 = vpop.xlane.xlu0 %2184
    %v2186 = vadd.f32 %v1158, %v1159
    %v2187 = vadd.f32 %v2186, %v1160
    %v2188 = vadd.f32 %v2187, %v1161
    %v2189 = vadd.f32 %v2188, %v1162
    %v2190 = vadd.f32 %v2189, %v1163
    %v2191 = vadd.f32 %v2190, %v1164
    %v2192 = vadd.f32 %v2191, %v1165
    %2193 = vadd.xlane.f32.xlu0 %v2192
    %v2194 = vpop.xlane.xlu0 %2193
    %v2195 = vadd.f32 %v1166, %v1167
    %v2196 = vadd.f32 %v2195, %v1168
    %v2197 = vadd.f32 %v2196, %v1169
    %v2198 = vadd.f32 %v2197, %v1170
    %v2199 = vadd.f32 %v2198, %v1171
    %v2200 = vadd.f32 %v2199, %v1172
    %v2201 = vadd.f32 %v2200, %v1173
    %2202 = vadd.xlane.f32.xlu0 %v2201
    %v2203 = vpop.xlane.xlu0 %2202
    %v2204 = vadd.f32 %v1174, %v1175
    %v2205 = vadd.f32 %v2204, %v1176
    %v2206 = vadd.f32 %v2205, %v1177
    %v2207 = vadd.f32 %v2206, %v1178
    %v2208 = vadd.f32 %v2207, %v1179
    %v2209 = vadd.f32 %v2208, %v1180
    %v2210 = vadd.f32 %v2209, %v1181
    %2211 = vadd.xlane.f32.xlu0 %v2210
    %v2212 = vpop.xlane.xlu0 %2211
    %v2213 = vadd.f32 %v1182, %v1183
    %v2214 = vadd.f32 %v2213, %v1184
    %v2215 = vadd.f32 %v2214, %v1185
    %v2216 = vadd.f32 %v2215, %v1186
    %v2217 = vadd.f32 %v2216, %v1187
    %v2218 = vadd.f32 %v2217, %v1188
    %v2219 = vadd.f32 %v2218, %v1189
    %2220 = vadd.xlane.f32.xlu0 %v2219
    %v2221 = vpop.xlane.xlu0 %2220
    %v2222 = vadd.f32 %v1190, %v1191
    %v2223 = vadd.f32 %v2222, %v1192
    %v2224 = vadd.f32 %v2223, %v1193
    %v2225 = vadd.f32 %v2224, %v1194
    %v2226 = vadd.f32 %v2225, %v1195
    %v2227 = vadd.f32 %v2226, %v1196
    %v2228 = vadd.f32 %v2227, %v1197
    %2229 = vadd.xlane.f32.xlu0 %v2228
    %v2230 = vpop.xlane.xlu0 %2229
    %v2231 = vadd.f32 %v1198, %v1199
    %v2232 = vadd.f32 %v2231, %v1200
    %v2233 = vadd.f32 %v2232, %v1201
    %v2234 = vadd.f32 %v2233, %v1202
    %v2235 = vadd.f32 %v2234, %v1203
    %v2236 = vadd.f32 %v2235, %v1204
    %v2237 = vadd.f32 %v2236, %v1205
    %2238 = vadd.xlane.f32.xlu0 %v2237
    %v2239 = vpop.xlane.xlu0 %2238
    %v2240 = vadd.f32 %v1206, %v1207
    %v2241 = vadd.f32 %v2240, %v1208
    %v2242 = vadd.f32 %v2241, %v1209
    %v2243 = vadd.f32 %v2242, %v1210
    %v2244 = vadd.f32 %v2243, %v1211
    %v2245 = vadd.f32 %v2244, %v1212
    %v2246 = vadd.f32 %v2245, %v1213
    %2247 = vadd.xlane.f32.xlu0 %v2246
    %v2248 = vpop.xlane.xlu0 %2247
    %v2249 = vadd.f32 %v1214, %v1215
    %v2250 = vadd.f32 %v2249, %v1216
    %v2251 = vadd.f32 %v2250, %v1217
    %v2252 = vadd.f32 %v2251, %v1218
    %v2253 = vadd.f32 %v2252, %v1219
    %v2254 = vadd.f32 %v2253, %v1220
    %v2255 = vadd.f32 %v2254, %v1221
    %2256 = vadd.xlane.f32.xlu0 %v2255
    %v2257 = vpop.xlane.xlu0 %2256
    %v2258 = vadd.f32 %v1222, %v1223
    %v2259 = vadd.f32 %v2258, %v1224
    %v2260 = vadd.f32 %v2259, %v1225
    %v2261 = vadd.f32 %v2260, %v1226
    %v2262 = vadd.f32 %v2261, %v1227
    %v2263 = vadd.f32 %v2262, %v1228
    %v2264 = vadd.f32 %v2263, %v1229
    %2265 = vadd.xlane.f32.xlu0 %v2264
    %v2266 = vpop.xlane.xlu0 %2265
    %v2267 = vadd.f32 %v1230, %v1231
    %v2268 = vadd.f32 %v2267, %v1232
    %v2269 = vadd.f32 %v2268, %v1233
    %v2270 = vadd.f32 %v2269, %v1234
    %v2271 = vadd.f32 %v2270, %v1235
    %v2272 = vadd.f32 %v2271, %v1236
    %v2273 = vadd.f32 %v2272, %v1237
    %2274 = vadd.xlane.f32.xlu0 %v2273
    %v2275 = vpop.xlane.xlu0 %2274
    %v2276 = vadd.f32 %v1238, %v1239
    %v2277 = vadd.f32 %v2276, %v1240
    %v2278 = vadd.f32 %v2277, %v1241
    %v2279 = vadd.f32 %v2278, %v1242
    %v2280 = vadd.f32 %v2279, %v1243
    %v2281 = vadd.f32 %v2280, %v1244
    %v2282 = vadd.f32 %v2281, %v1245
    %2283 = vadd.xlane.f32.xlu0 %v2282
    %v2284 = vpop.xlane.xlu0 %2283
    %v2285 = vadd.f32 %v1246, %v1247
    %v2286 = vadd.f32 %v2285, %v1248
    %v2287 = vadd.f32 %v2286, %v1249
    %v2288 = vadd.f32 %v2287, %v1250
    %v2289 = vadd.f32 %v2288, %v1251
    %v2290 = vadd.f32 %v2289, %v1252
    %v2291 = vadd.f32 %v2290, %v1253
    %2292 = vadd.xlane.f32.xlu0 %v2291
    %v2293 = vpop.xlane.xlu0 %2292
    %v2294 = vadd.f32 %v1254, %v1255
    %v2295 = vadd.f32 %v2294, %v1256
    %v2296 = vadd.f32 %v2295, %v1257
    %v2297 = vadd.f32 %v2296, %v1258
    %v2298 = vadd.f32 %v2297, %v1259
    %v2299 = vadd.f32 %v2298, %v1260
    %v2300 = vadd.f32 %v2299, %v1261
    %2301 = vadd.xlane.f32.xlu0 %v2300
    %v2302 = vpop.xlane.xlu0 %2301
    %v2303 = vadd.f32 %v1262, %v1263
    %v2304 = vadd.f32 %v2303, %v1264
    %v2305 = vadd.f32 %v2304, %v1265
    %v2306 = vadd.f32 %v2305, %v1266
    %v2307 = vadd.f32 %v2306, %v1267
    %v2308 = vadd.f32 %v2307, %v1268
    %v2309 = vadd.f32 %v2308, %v1269
    %2310 = vadd.xlane.f32.xlu0 %v2309
    %v2311 = vpop.xlane.xlu0 %2310
    %v2312 = vadd.f32 %v1270, %v1271
    %v2313 = vadd.f32 %v2312, %v1272
    %v2314 = vadd.f32 %v2313, %v1273
    %v2315 = vadd.f32 %v2314, %v1274
    %v2316 = vadd.f32 %v2315, %v1275
    %v2317 = vadd.f32 %v2316, %v1276
    %v2318 = vadd.f32 %v2317, %v1277
    %2319 = vadd.xlane.f32.xlu0 %v2318
    %v2320 = vpop.xlane.xlu0 %2319
    %v2321 = vadd.f32 %v1278, %v1279
    %v2322 = vadd.f32 %v2321, %v1280
    %v2323 = vadd.f32 %v2322, %v1281
    %v2324 = vadd.f32 %v2323, %v1282
    %v2325 = vadd.f32 %v2324, %v1283
    %v2326 = vadd.f32 %v2325, %v1284
    %v2327 = vadd.f32 %v2326, %v1285
    %2328 = vadd.xlane.f32.xlu0 %v2327
    %v2329 = vpop.xlane.xlu0 %2328
    %v2330 = vadd.f32 %v1286, %v1287
    %v2331 = vadd.f32 %v2330, %v1288
    %v2332 = vadd.f32 %v2331, %v1289
    %v2333 = vadd.f32 %v2332, %v1290
    %v2334 = vadd.f32 %v2333, %v1291
    %v2335 = vadd.f32 %v2334, %v1292
    %v2336 = vadd.f32 %v2335, %v1293
    %2337 = vadd.xlane.f32.xlu0 %v2336
    %v2338 = vpop.xlane.xlu0 %2337
    %v2339 = vadd.f32 %v1294, %v1295
    %v2340 = vadd.f32 %v2339, %v1296
    %v2341 = vadd.f32 %v2340, %v1297
    %v2342 = vadd.f32 %v2341, %v1298
    %v2343 = vadd.f32 %v2342, %v1299
    %v2344 = vadd.f32 %v2343, %v1300
    %v2345 = vadd.f32 %v2344, %v1301
    %2346 = vadd.xlane.f32.xlu0 %v2345
    %v2347 = vpop.xlane.xlu0 %2346
    %v2348 = vadd.f32 %v1302, %v1303
    %v2349 = vadd.f32 %v2348, %v1304
    %v2350 = vadd.f32 %v2349, %v1305
    %v2351 = vadd.f32 %v2350, %v1306
    %v2352 = vadd.f32 %v2351, %v1307
    %v2353 = vadd.f32 %v2352, %v1308
    %v2354 = vadd.f32 %v2353, %v1309
    %2355 = vadd.xlane.f32.xlu0 %v2354
    %v2356 = vpop.xlane.xlu0 %2355
    %v2357 = vadd.f32 %v1310, %v1311
    %v2358 = vadd.f32 %v2357, %v1312
    %v2359 = vadd.f32 %v2358, %v1313
    %v2360 = vadd.f32 %v2359, %v1314
    %v2361 = vadd.f32 %v2360, %v1315
    %v2362 = vadd.f32 %v2361, %v1316
    %v2363 = vadd.f32 %v2362, %v1317
    %2364 = vadd.xlane.f32.xlu0 %v2363
    %v2365 = vpop.xlane.xlu0 %2364
    %v2366 = vadd.f32 %v1318, %v1319
    %v2367 = vadd.f32 %v2366, %v1320
    %v2368 = vadd.f32 %v2367, %v1321
    %v2369 = vadd.f32 %v2368, %v1322
    %v2370 = vadd.f32 %v2369, %v1323
    %v2371 = vadd.f32 %v2370, %v1324
    %v2372 = vadd.f32 %v2371, %v1325
    %2373 = vadd.xlane.f32.xlu0 %v2372
    %v2374 = vpop.xlane.xlu0 %2373
    %v2375 = vadd.f32 %v1326, %v1327
    %v2376 = vadd.f32 %v2375, %v1328
    %v2377 = vadd.f32 %v2376, %v1329
    %v2378 = vadd.f32 %v2377, %v1330
    %v2379 = vadd.f32 %v2378, %v1331
    %v2380 = vadd.f32 %v2379, %v1332
    %v2381 = vadd.f32 %v2380, %v1333
    %2382 = vadd.xlane.f32.xlu0 %v2381
    %v2383 = vpop.xlane.xlu0 %2382
    %v2384 = vadd.f32 %v1334, %v1335
    %v2385 = vadd.f32 %v2384, %v1336
    %v2386 = vadd.f32 %v2385, %v1337
    %v2387 = vadd.f32 %v2386, %v1338
    %v2388 = vadd.f32 %v2387, %v1339
    %v2389 = vadd.f32 %v2388, %v1340
    %v2390 = vadd.f32 %v2389, %v1341
    %2391 = vadd.xlane.f32.xlu0 %v2390
    %v2392 = vpop.xlane.xlu0 %2391
    %v2393 = vadd.f32 %v1342, %v1343
    %v2394 = vadd.f32 %v2393, %v1344
    %v2395 = vadd.f32 %v2394, %v1345
    %v2396 = vadd.f32 %v2395, %v1346
    %v2397 = vadd.f32 %v2396, %v1347
    %v2398 = vadd.f32 %v2397, %v1348
    %v2399 = vadd.f32 %v2398, %v1349
    %2400 = vadd.xlane.f32.xlu0 %v2399
    %v2401 = vpop.xlane.xlu0 %2400
    %v2402 = vadd.f32 %v1350, %v1351
    %v2403 = vadd.f32 %v2402, %v1352
    %v2404 = vadd.f32 %v2403, %v1353
    %v2405 = vadd.f32 %v2404, %v1354
    %v2406 = vadd.f32 %v2405, %v1355
    %v2407 = vadd.f32 %v2406, %v1356
    %v2408 = vadd.f32 %v2407, %v1357
    %2409 = vadd.xlane.f32.xlu0 %v2408
    %v2410 = vpop.xlane.xlu0 %2409
    %v2411 = vadd.f32 %v1358, %v1359
    %v2412 = vadd.f32 %v2411, %v1360
    %v2413 = vadd.f32 %v2412, %v1361
    %v2414 = vadd.f32 %v2413, %v1362
    %v2415 = vadd.f32 %v2414, %v1363
    %v2416 = vadd.f32 %v2415, %v1364
    %v2417 = vadd.f32 %v2416, %v1365
    %2418 = vadd.xlane.f32.xlu0 %v2417
    %v2419 = vpop.xlane.xlu0 %2418
    %v2420 = vadd.f32 %v1366, %v1367
    %v2421 = vadd.f32 %v2420, %v1368
    %v2422 = vadd.f32 %v2421, %v1369
    %v2423 = vadd.f32 %v2422, %v1370
    %v2424 = vadd.f32 %v2423, %v1371
    %v2425 = vadd.f32 %v2424, %v1372
    %v2426 = vadd.f32 %v2425, %v1373
    %2427 = vadd.xlane.f32.xlu0 %v2426
    %v2428 = vpop.xlane.xlu0 %2427
    %v2429 = vadd.f32 %v1374, %v1375
    %v2430 = vadd.f32 %v2429, %v1376
    %v2431 = vadd.f32 %v2430, %v1377
    %v2432 = vadd.f32 %v2431, %v1378
    %v2433 = vadd.f32 %v2432, %v1379
    %v2434 = vadd.f32 %v2433, %v1380
    %v2435 = vadd.f32 %v2434, %v1381
    %2436 = vadd.xlane.f32.xlu0 %v2435
    %v2437 = vpop.xlane.xlu0 %2436
    %v2438 = vadd.f32 %v1382, %v1383
    %v2439 = vadd.f32 %v2438, %v1384
    %v2440 = vadd.f32 %v2439, %v1385
    %v2441 = vadd.f32 %v2440, %v1386
    %v2442 = vadd.f32 %v2441, %v1387
    %v2443 = vadd.f32 %v2442, %v1388
    %v2444 = vadd.f32 %v2443, %v1389
    %2445 = vadd.xlane.f32.xlu0 %v2444
    %v2446 = vpop.xlane.xlu0 %2445
    %v2447 = vadd.f32 %v1390, %v1391
    %v2448 = vadd.f32 %v2447, %v1392
    %v2449 = vadd.f32 %v2448, %v1393
    %v2450 = vadd.f32 %v2449, %v1394
    %v2451 = vadd.f32 %v2450, %v1395
    %v2452 = vadd.f32 %v2451, %v1396
    %v2453 = vadd.f32 %v2452, %v1397
    %2454 = vadd.xlane.f32.xlu0 %v2453
    %v2455 = vpop.xlane.xlu0 %2454
    %v2456 = vadd.f32 %v1398, %v1399
    %v2457 = vadd.f32 %v2456, %v1400
    %v2458 = vadd.f32 %v2457, %v1401
    %v2459 = vadd.f32 %v2458, %v1402
    %v2460 = vadd.f32 %v2459, %v1403
    %v2461 = vadd.f32 %v2460, %v1404
    %v2462 = vadd.f32 %v2461, %v1405
    %2463 = vadd.xlane.f32.xlu0 %v2462
    %v2464 = vpop.xlane.xlu0 %2463
    %v2465 = vadd.f32 %v1406, %v1407
    %v2466 = vadd.f32 %v2465, %v1408
    %v2467 = vadd.f32 %v2466, %v1409
    %v2468 = vadd.f32 %v2467, %v1410
    %v2469 = vadd.f32 %v2468, %v1411
    %v2470 = vadd.f32 %v2469, %v1412
    %v2471 = vadd.f32 %v2470, %v1413
    %2472 = vadd.xlane.f32.xlu0 %v2471
    %v2473 = vpop.xlane.xlu0 %2472
    %v2474 = vadd.f32 %v1414, %v1415
    %v2475 = vadd.f32 %v2474, %v1416
    %v2476 = vadd.f32 %v2475, %v1417
    %v2477 = vadd.f32 %v2476, %v1418
    %v2478 = vadd.f32 %v2477, %v1419
    %v2479 = vadd.f32 %v2478, %v1420
    %v2480 = vadd.f32 %v2479, %v1421
    %2481 = vadd.xlane.f32.xlu0 %v2480
    %v2482 = vpop.xlane.xlu0 %2481
    %v2483 = vadd.f32 %v1422, %v1423
    %v2484 = vadd.f32 %v2483, %v1424
    %v2485 = vadd.f32 %v2484, %v1425
    %v2486 = vadd.f32 %v2485, %v1426
    %v2487 = vadd.f32 %v2486, %v1427
    %v2488 = vadd.f32 %v2487, %v1428
    %v2489 = vadd.f32 %v2488, %v1429
    %2490 = vadd.xlane.f32.xlu0 %v2489
    %v2491 = vpop.xlane.xlu0 %2490
    %v2492 = vadd.f32 %v1430, %v1431
    %v2493 = vadd.f32 %v2492, %v1432
    %v2494 = vadd.f32 %v2493, %v1433
    %v2495 = vadd.f32 %v2494, %v1434
    %v2496 = vadd.f32 %v2495, %v1435
    %v2497 = vadd.f32 %v2496, %v1436
    %v2498 = vadd.f32 %v2497, %v1437
    %2499 = vadd.xlane.f32.xlu0 %v2498
    %v2500 = vpop.xlane.xlu0 %2499
    %v2501 = vadd.f32 %v1438, %v1439
    %v2502 = vadd.f32 %v2501, %v1440
    %v2503 = vadd.f32 %v2502, %v1441
    %v2504 = vadd.f32 %v2503, %v1442
    %v2505 = vadd.f32 %v2504, %v1443
    %v2506 = vadd.f32 %v2505, %v1444
    %v2507 = vadd.f32 %v2506, %v1445
    %2508 = vadd.xlane.f32.xlu0 %v2507
    %v2509 = vpop.xlane.xlu0 %2508
    %v2510 = vadd.f32 %v1446, %v1447
    %v2511 = vadd.f32 %v2510, %v1448
    %v2512 = vadd.f32 %v2511, %v1449
    %v2513 = vadd.f32 %v2512, %v1450
    %v2514 = vadd.f32 %v2513, %v1451
    %v2515 = vadd.f32 %v2514, %v1452
    %v2516 = vadd.f32 %v2515, %v1453
    %2517 = vadd.xlane.f32.xlu0 %v2516
    %v2518 = vpop.xlane.xlu0 %2517
    %v2519 = vadd.f32 %v1454, %v1455
    %v2520 = vadd.f32 %v2519, %v1456
    %v2521 = vadd.f32 %v2520, %v1457
    %v2522 = vadd.f32 %v2521, %v1458
    %v2523 = vadd.f32 %v2522, %v1459
    %v2524 = vadd.f32 %v2523, %v1460
    %v2525 = vadd.f32 %v2524, %v1461
    %2526 = vadd.xlane.f32.xlu0 %v2525
    %v2527 = vpop.xlane.xlu0 %2526
    %v2528 = vadd.f32 %v1462, %v1463
    %v2529 = vadd.f32 %v2528, %v1464
    %v2530 = vadd.f32 %v2529, %v1465
    %v2531 = vadd.f32 %v2530, %v1466
    %v2532 = vadd.f32 %v2531, %v1467
    %v2533 = vadd.f32 %v2532, %v1468
    %v2534 = vadd.f32 %v2533, %v1469
    %2535 = vadd.xlane.f32.xlu0 %v2534
    %v2536 = vpop.xlane.xlu0 %2535
    %v2537 = vadd.f32 %v1470, %v1471
    %v2538 = vadd.f32 %v2537, %v1472
    %v2539 = vadd.f32 %v2538, %v1473
    %v2540 = vadd.f32 %v2539, %v1474
    %v2541 = vadd.f32 %v2540, %v1475
    %v2542 = vadd.f32 %v2541, %v1476
    %v2543 = vadd.f32 %v2542, %v1477
    %2544 = vadd.xlane.f32.xlu0 %v2543
    %v2545 = vpop.xlane.xlu0 %2544
    %v2546 = vadd.f32 %v1478, %v1479
    %v2547 = vadd.f32 %v2546, %v1480
    %v2548 = vadd.f32 %v2547, %v1481
    %v2549 = vadd.f32 %v2548, %v1482
    %v2550 = vadd.f32 %v2549, %v1483
    %v2551 = vadd.f32 %v2550, %v1484
    %v2552 = vadd.f32 %v2551, %v1485
    %2553 = vadd.xlane.f32.xlu0 %v2552
    %v2554 = vpop.xlane.xlu0 %2553
    %v2555 = vadd.f32 %v1486, %v1487
    %v2556 = vadd.f32 %v2555, %v1488
    %v2557 = vadd.f32 %v2556, %v1489
    %v2558 = vadd.f32 %v2557, %v1490
    %v2559 = vadd.f32 %v2558, %v1491
    %v2560 = vadd.f32 %v2559, %v1492
    %v2561 = vadd.f32 %v2560, %v1493
    %2562 = vadd.xlane.f32.xlu0 %v2561
    %v2563 = vpop.xlane.xlu0 %2562
    %v2564 = vadd.f32 %v1494, %v1495
    %v2565 = vadd.f32 %v2564, %v1496
    %v2566 = vadd.f32 %v2565, %v1497
    %v2567 = vadd.f32 %v2566, %v1498
    %v2568 = vadd.f32 %v2567, %v1499
    %v2569 = vadd.f32 %v2568, %v1500
    %v2570 = vadd.f32 %v2569, %v1501
    %2571 = vadd.xlane.f32.xlu0 %v2570
    %v2572 = vpop.xlane.xlu0 %2571
    %v2573 = vadd.f32 %v1502, %v1503
    %v2574 = vadd.f32 %v2573, %v1504
    %v2575 = vadd.f32 %v2574, %v1505
    %v2576 = vadd.f32 %v2575, %v1506
    %v2577 = vadd.f32 %v2576, %v1507
    %v2578 = vadd.f32 %v2577, %v1508
    %v2579 = vadd.f32 %v2578, %v1509
    %2580 = vadd.xlane.f32.xlu0 %v2579
    %v2581 = vpop.xlane.xlu0 %2580
    %v2582 = vadd.f32 %v1510, %v1511
    %v2583 = vadd.f32 %v2582, %v1512
    %v2584 = vadd.f32 %v2583, %v1513
    %v2585 = vadd.f32 %v2584, %v1514
    %v2586 = vadd.f32 %v2585, %v1515
    %v2587 = vadd.f32 %v2586, %v1516
    %v2588 = vadd.f32 %v2587, %v1517
    %2589 = vadd.xlane.f32.xlu0 %v2588
    %v2590 = vpop.xlane.xlu0 %2589
    %v2591 = vadd.f32 %v1518, %v1519
    %v2592 = vadd.f32 %v2591, %v1520
    %v2593 = vadd.f32 %v2592, %v1521
    %v2594 = vadd.f32 %v2593, %v1522
    %v2595 = vadd.f32 %v2594, %v1523
    %v2596 = vadd.f32 %v2595, %v1524
    %v2597 = vadd.f32 %v2596, %v1525
    %2598 = vadd.xlane.f32.xlu0 %v2597
    %v2599 = vpop.xlane.xlu0 %2598
    %v2600 = vadd.f32 %v1526, %v1527
    %v2601 = vadd.f32 %v2600, %v1528
    %v2602 = vadd.f32 %v2601, %v1529
    %v2603 = vadd.f32 %v2602, %v1530
    %v2604 = vadd.f32 %v2603, %v1531
    %v2605 = vadd.f32 %v2604, %v1532
    %v2606 = vadd.f32 %v2605, %v1533
    %2607 = vadd.xlane.f32.xlu0 %v2606
    %v2608 = vpop.xlane.xlu0 %2607
    %v2609 = vadd.f32 %v1534, %v1535
    %v2610 = vadd.f32 %v2609, %v1536
    %v2611 = vadd.f32 %v2610, %v1537
    %v2612 = vadd.f32 %v2611, %v1538
    %v2613 = vadd.f32 %v2612, %v1539
    %v2614 = vadd.f32 %v2613, %v1540
    %v2615 = vadd.f32 %v2614, %v1541
    %2616 = vadd.xlane.f32.xlu0 %v2615
    %v2617 = vpop.xlane.xlu0 %2616
    %v2618 = vadd.f32 %v1542, %v1543
    %v2619 = vadd.f32 %v2618, %v1544
    %v2620 = vadd.f32 %v2619, %v1545
    %v2621 = vadd.f32 %v2620, %v1546
    %v2622 = vadd.f32 %v2621, %v1547
    %v2623 = vadd.f32 %v2622, %v1548
    %v2624 = vadd.f32 %v2623, %v1549
    %2625 = vadd.xlane.f32.xlu0 %v2624
    %v2626 = vpop.xlane.xlu0 %2625
    %v2627 = vadd.f32 %v1550, %v1551
    %v2628 = vadd.f32 %v2627, %v1552
    %v2629 = vadd.f32 %v2628, %v1553
    %v2630 = vadd.f32 %v2629, %v1554
    %v2631 = vadd.f32 %v2630, %v1555
    %v2632 = vadd.f32 %v2631, %v1556
    %v2633 = vadd.f32 %v2632, %v1557
    %2634 = vadd.xlane.f32.xlu0 %v2633
    %v2635 = vpop.xlane.xlu0 %2634
    %v2636 = vadd.f32 %v1558, %v1559
    %v2637 = vadd.f32 %v2636, %v1560
    %v2638 = vadd.f32 %v2637, %v1561
    %v2639 = vadd.f32 %v2638, %v1562
    %v2640 = vadd.f32 %v2639, %v1563
    %v2641 = vadd.f32 %v2640, %v1564
    %v2642 = vadd.f32 %v2641, %v1565
    %2643 = vadd.xlane.f32.xlu0 %v2642
    %v2644 = vpop.xlane.xlu0 %2643
    %v2645 = vadd.f32 %v1566, %v1567
    %v2646 = vadd.f32 %v2645, %v1568
    %v2647 = vadd.f32 %v2646, %v1569
    %v2648 = vadd.f32 %v2647, %v1570
    %v2649 = vadd.f32 %v2648, %v1571
    %v2650 = vadd.f32 %v2649, %v1572
    %v2651 = vadd.f32 %v2650, %v1573
    %2652 = vadd.xlane.f32.xlu0 %v2651
    %v2653 = vpop.xlane.xlu0 %2652
    %v2654 = vadd.f32 %v1574, %v1575
    %v2655 = vadd.f32 %v2654, %v1576
    %v2656 = vadd.f32 %v2655, %v1577
    %v2657 = vadd.f32 %v2656, %v1578
    %v2658 = vadd.f32 %v2657, %v1579
    %v2659 = vadd.f32 %v2658, %v1580
    %v2660 = vadd.f32 %v2659, %v1581
    %2661 = vadd.xlane.f32.xlu0 %v2660
    %v2662 = vpop.xlane.xlu0 %2661
    %v2663 = vadd.f32 %v1582, %v1583
    %v2664 = vadd.f32 %v2663, %v1584
    %v2665 = vadd.f32 %v2664, %v1585
    %v2666 = vadd.f32 %v2665, %v1586
    %v2667 = vadd.f32 %v2666, %v1587
    %v2668 = vadd.f32 %v2667, %v1588
    %v2669 = vadd.f32 %v2668, %v1589
    %2670 = vadd.xlane.f32.xlu0 %v2669
    %v2671 = vpop.xlane.xlu0 %2670
    %v2672 = vadd.f32 %v1590, %v1591
    %v2673 = vadd.f32 %v2672, %v1592
    %v2674 = vadd.f32 %v2673, %v1593
    %v2675 = vadd.f32 %v2674, %v1594
    %v2676 = vadd.f32 %v2675, %v1595
    %v2677 = vadd.f32 %v2676, %v1596
    %v2678 = vadd.f32 %v2677, %v1597
    %2679 = vadd.xlane.f32.xlu0 %v2678
    %v2680 = vpop.xlane.xlu0 %2679
    %v2681 = vadd.f32 %v1598, %v1599
    %v2682 = vadd.f32 %v2681, %v1600
    %v2683 = vadd.f32 %v2682, %v1601
    %v2684 = vadd.f32 %v2683, %v1602
    %v2685 = vadd.f32 %v2684, %v1603
    %v2686 = vadd.f32 %v2685, %v1604
    %v2687 = vadd.f32 %v2686, %v1605
    %2688 = vadd.xlane.f32.xlu0 %v2687
    %v2689 = vpop.xlane.xlu0 %2688
    %v2690 = vadd.f32 %v1606, %v1607
    %v2691 = vadd.f32 %v2690, %v1608
    %v2692 = vadd.f32 %v2691, %v1609
    %v2693 = vadd.f32 %v2692, %v1610
    %v2694 = vadd.f32 %v2693, %v1611
    %v2695 = vadd.f32 %v2694, %v1612
    %v2696 = vadd.f32 %v2695, %v1613
    %2697 = vadd.xlane.f32.xlu0 %v2696
    %v2698 = vpop.xlane.xlu0 %2697
    %v2699 = vadd.f32 %v1614, %v1615
    %v2700 = vadd.f32 %v2699, %v1616
    %v2701 = vadd.f32 %v2700, %v1617
    %v2702 = vadd.f32 %v2701, %v1618
    %v2703 = vadd.f32 %v2702, %v1619
    %v2704 = vadd.f32 %v2703, %v1620
    %v2705 = vadd.f32 %v2704, %v1621
    %2706 = vadd.xlane.f32.xlu0 %v2705
    %v2707 = vpop.xlane.xlu0 %2706
    %v2708 = vadd.f32 %v1622, %v1623
    %v2709 = vadd.f32 %v2708, %v1624
    %v2710 = vadd.f32 %v2709, %v1625
    %v2711 = vadd.f32 %v2710, %v1626
    %v2712 = vadd.f32 %v2711, %v1627
    %v2713 = vadd.f32 %v2712, %v1628
    %v2714 = vadd.f32 %v2713, %v1629
    %2715 = vadd.xlane.f32.xlu0 %v2714
    %v2716 = vpop.xlane.xlu0 %2715
    %v2717 = vadd.f32 %v1630, %v1631
    %v2718 = vadd.f32 %v2717, %v1632
    %v2719 = vadd.f32 %v2718, %v1633
    %v2720 = vadd.f32 %v2719, %v1634
    %v2721 = vadd.f32 %v2720, %v1635
    %v2722 = vadd.f32 %v2721, %v1636
    %v2723 = vadd.f32 %v2722, %v1637
    %2724 = vadd.xlane.f32.xlu0 %v2723
    %v2725 = vpop.xlane.xlu0 %2724
    %v2726 = vadd.f32 %v1638, %v1639
    %v2727 = vadd.f32 %v2726, %v1640
    %v2728 = vadd.f32 %v2727, %v1641
    %v2729 = vadd.f32 %v2728, %v1642
    %v2730 = vadd.f32 %v2729, %v1643
    %v2731 = vadd.f32 %v2730, %v1644
    %v2732 = vadd.f32 %v2731, %v1645
    %2733 = vadd.xlane.f32.xlu0 %v2732
    %v2734 = vpop.xlane.xlu0 %2733
    %v2735 = vadd.f32 %v1646, %v1647
    %v2736 = vadd.f32 %v2735, %v1648
    %v2737 = vadd.f32 %v2736, %v1649
    %v2738 = vadd.f32 %v2737, %v1650
    %v2739 = vadd.f32 %v2738, %v1651
    %v2740 = vadd.f32 %v2739, %v1652
    %v2741 = vadd.f32 %v2740, %v1653
    %2742 = vadd.xlane.f32.xlu0 %v2741
    %v2743 = vpop.xlane.xlu0 %2742
    %v2744 = vadd.f32 %v1654, %v1655
    %v2745 = vadd.f32 %v2744, %v1656
    %v2746 = vadd.f32 %v2745, %v1657
    %v2747 = vadd.f32 %v2746, %v1658
    %v2748 = vadd.f32 %v2747, %v1659
    %v2749 = vadd.f32 %v2748, %v1660
    %v2750 = vadd.f32 %v2749, %v1661
    %2751 = vadd.xlane.f32.xlu0 %v2750
    %v2752 = vpop.xlane.xlu0 %2751
    %v2753 = vadd.f32 %v1662, %v1663
    %v2754 = vadd.f32 %v2753, %v1664
    %v2755 = vadd.f32 %v2754, %v1665
    %v2756 = vadd.f32 %v2755, %v1666
    %v2757 = vadd.f32 %v2756, %v1667
    %v2758 = vadd.f32 %v2757, %v1668
    %v2759 = vadd.f32 %v2758, %v1669
    %2760 = vadd.xlane.f32.xlu0 %v2759
    %v2761 = vpop.xlane.xlu0 %2760
    %v2762 = vadd.f32 %v1670, %v1671
    %v2763 = vadd.f32 %v2762, %v1672
    %v2764 = vadd.f32 %v2763, %v1673
    %v2765 = vadd.f32 %v2764, %v1674
    %v2766 = vadd.f32 %v2765, %v1675
    %v2767 = vadd.f32 %v2766, %v1676
    %v2768 = vadd.f32 %v2767, %v1677
    %2769 = vadd.xlane.f32.xlu0 %v2768
    %v2770 = vpop.xlane.xlu0 %2769
    %v2771 = vadd.f32 %v1678, %v1679
    %v2772 = vadd.f32 %v2771, %v1680
    %v2773 = vadd.f32 %v2772, %v1681
    %v2774 = vadd.f32 %v2773, %v1682
    %v2775 = vadd.f32 %v2774, %v1683
    %v2776 = vadd.f32 %v2775, %v1684
    %v2777 = vadd.f32 %v2776, %v1685
    %2778 = vadd.xlane.f32.xlu0 %v2777
    %v2779 = vpop.xlane.xlu0 %2778
    %v2780 = vadd.f32 %v1686, %v1687
    %v2781 = vadd.f32 %v2780, %v1688
    %v2782 = vadd.f32 %v2781, %v1689
    %v2783 = vadd.f32 %v2782, %v1690
    %v2784 = vadd.f32 %v2783, %v1691
    %v2785 = vadd.f32 %v2784, %v1692
    %v2786 = vadd.f32 %v2785, %v1693
    %2787 = vadd.xlane.f32.xlu0 %v2786
    %v2788 = vpop.xlane.xlu0 %2787
    %v2789 = vadd.f32 %v1694, %v1695
    %v2790 = vadd.f32 %v2789, %v1696
    %v2791 = vadd.f32 %v2790, %v1697
    %v2792 = vadd.f32 %v2791, %v1698
    %v2793 = vadd.f32 %v2792, %v1699
    %v2794 = vadd.f32 %v2793, %v1700
    %v2795 = vadd.f32 %v2794, %v1701
    %2796 = vadd.xlane.f32.xlu0 %v2795
    %v2797 = vpop.xlane.xlu0 %2796
    %v2798 = vadd.f32 %v1702, %v1703
    %v2799 = vadd.f32 %v2798, %v1704
    %v2800 = vadd.f32 %v2799, %v1705
    %v2801 = vadd.f32 %v2800, %v1706
    %v2802 = vadd.f32 %v2801, %v1707
    %v2803 = vadd.f32 %v2802, %v1708
    %v2804 = vadd.f32 %v2803, %v1709
    %2805 = vadd.xlane.f32.xlu0 %v2804
    %v2806 = vpop.xlane.xlu0 %2805
    %v2807 = vadd.f32 %v1710, %v1711
    %v2808 = vadd.f32 %v2807, %v1712
    %v2809 = vadd.f32 %v2808, %v1713
    %v2810 = vadd.f32 %v2809, %v1714
    %v2811 = vadd.f32 %v2810, %v1715
    %v2812 = vadd.f32 %v2811, %v1716
    %v2813 = vadd.f32 %v2812, %v1717
    %2814 = vadd.xlane.f32.xlu0 %v2813
    %v2815 = vpop.xlane.xlu0 %2814
    %v2816 = vadd.f32 %v1718, %v1719
    %v2817 = vadd.f32 %v2816, %v1720
    %v2818 = vadd.f32 %v2817, %v1721
    %v2819 = vadd.f32 %v2818, %v1722
    %v2820 = vadd.f32 %v2819, %v1723
    %v2821 = vadd.f32 %v2820, %v1724
    %v2822 = vadd.f32 %v2821, %v1725
    %2823 = vadd.xlane.f32.xlu0 %v2822
    %v2824 = vpop.xlane.xlu0 %2823
    %v2825 = vadd.f32 %v1726, %v1727
    %v2826 = vadd.f32 %v2825, %v1728
    %v2827 = vadd.f32 %v2826, %v1729
    %v2828 = vadd.f32 %v2827, %v1730
    %v2829 = vadd.f32 %v2828, %v1731
    %v2830 = vadd.f32 %v2829, %v1732
    %v2831 = vadd.f32 %v2830, %v1733
    %2832 = vadd.xlane.f32.xlu0 %v2831
    %v2833 = vpop.xlane.xlu0 %2832
    %v2834 = vadd.f32 %v1734, %v1735
    %v2835 = vadd.f32 %v2834, %v1736
    %v2836 = vadd.f32 %v2835, %v1737
    %v2837 = vadd.f32 %v2836, %v1738
    %v2838 = vadd.f32 %v2837, %v1739
    %v2839 = vadd.f32 %v2838, %v1740
    %v2840 = vadd.f32 %v2839, %v1741
    %2841 = vadd.xlane.f32.xlu0 %v2840
    %v2842 = vpop.xlane.xlu0 %2841
    %v2843 = vadd.f32 %v1742, %v1743
    %v2844 = vadd.f32 %v2843, %v1744
    %v2845 = vadd.f32 %v2844, %v1745
    %v2846 = vadd.f32 %v2845, %v1746
    %v2847 = vadd.f32 %v2846, %v1747
    %v2848 = vadd.f32 %v2847, %v1748
    %v2849 = vadd.f32 %v2848, %v1749
    %2850 = vadd.xlane.f32.xlu0 %v2849
    %v2851 = vpop.xlane.xlu0 %2850
    %v2852 = vadd.f32 %v1750, %v1751
    %v2853 = vadd.f32 %v2852, %v1752
    %v2854 = vadd.f32 %v2853, %v1753
    %v2855 = vadd.f32 %v2854, %v1754
    %v2856 = vadd.f32 %v2855, %v1755
    %v2857 = vadd.f32 %v2856, %v1756
    %v2858 = vadd.f32 %v2857, %v1757
    %2859 = vadd.xlane.f32.xlu0 %v2858
    %v2860 = vpop.xlane.xlu0 %2859
    %v2861 = vadd.f32 %v1758, %v1759
    %v2862 = vadd.f32 %v2861, %v1760
    %v2863 = vadd.f32 %v2862, %v1761
    %v2864 = vadd.f32 %v2863, %v1762
    %v2865 = vadd.f32 %v2864, %v1763
    %v2866 = vadd.f32 %v2865, %v1764
    %v2867 = vadd.f32 %v2866, %v1765
    %2868 = vadd.xlane.f32.xlu0 %v2867
    %v2869 = vpop.xlane.xlu0 %2868
    %v2870 = vadd.f32 %v1766, %v1767
    %v2871 = vadd.f32 %v2870, %v1768
    %v2872 = vadd.f32 %v2871, %v1769
    %v2873 = vadd.f32 %v2872, %v1770
    %v2874 = vadd.f32 %v2873, %v1771
    %v2875 = vadd.f32 %v2874, %v1772
    %v2876 = vadd.f32 %v2875, %v1773
    %2877 = vadd.xlane.f32.xlu0 %v2876
    %v2878 = vpop.xlane.xlu0 %2877
    %v2879 = vadd.f32 %v1774, %v1775
    %v2880 = vadd.f32 %v2879, %v1776
    %v2881 = vadd.f32 %v2880, %v1777
    %v2882 = vadd.f32 %v2881, %v1778
    %v2883 = vadd.f32 %v2882, %v1779
    %v2884 = vadd.f32 %v2883, %v1780
    %v2885 = vadd.f32 %v2884, %v1781
    %2886 = vadd.xlane.f32.xlu0 %v2885
    %v2887 = vpop.xlane.xlu0 %2886
    %v2888 = vadd.f32 %v1782, %v1783
    %v2889 = vadd.f32 %v2888, %v1784
    %v2890 = vadd.f32 %v2889, %v1785
    %v2891 = vadd.f32 %v2890, %v1786
    %v2892 = vadd.f32 %v2891, %v1787
    %v2893 = vadd.f32 %v2892, %v1788
    %v2894 = vadd.f32 %v2893, %v1789
    %2895 = vadd.xlane.f32.xlu0 %v2894
    %v2896 = vpop.xlane.xlu0 %2895
    %v2897 = vadd.f32 %v1790, %v1791
    %v2898 = vadd.f32 %v2897, %v1792
    %v2899 = vadd.f32 %v2898, %v1793
    %v2900 = vadd.f32 %v2899, %v1794
    %v2901 = vadd.f32 %v2900, %v1795
    %v2902 = vadd.f32 %v2901, %v1796
    %v2903 = vadd.f32 %v2902, %v1797
    %2904 = vadd.xlane.f32.xlu0 %v2903
    %v2905 = vpop.xlane.xlu0 %2904
    %v2906 = vadd.f32 %v1798, %v1799
    %v2907 = vadd.f32 %v2906, %v1800
    %v2908 = vadd.f32 %v2907, %v1801
    %v2909 = vadd.f32 %v2908, %v1802
    %v2910 = vadd.f32 %v2909, %v1803
    %v2911 = vadd.f32 %v2910, %v1804
    %v2912 = vadd.f32 %v2911, %v1805
    %2913 = vadd.xlane.f32.xlu0 %v2912
    %v2914 = vpop.xlane.xlu0 %2913
    %v2915 = vadd.f32 %v1806, %v1807
    %v2916 = vadd.f32 %v2915, %v1808
    %v2917 = vadd.f32 %v2916, %v1809
    %v2918 = vadd.f32 %v2917, %v1810
    %v2919 = vadd.f32 %v2918, %v1811
    %v2920 = vadd.f32 %v2919, %v1812
    %v2921 = vadd.f32 %v2920, %v1813
    %2922 = vadd.xlane.f32.xlu0 %v2921
    %v2923 = vpop.xlane.xlu0 %2922
    %v2924 = vadd.f32 %v1814, %v1815
    %v2925 = vadd.f32 %v2924, %v1816
    %v2926 = vadd.f32 %v2925, %v1817
    %v2927 = vadd.f32 %v2926, %v1818
    %v2928 = vadd.f32 %v2927, %v1819
    %v2929 = vadd.f32 %v2928, %v1820
    %v2930 = vadd.f32 %v2929, %v1821
    %2931 = vadd.xlane.f32.xlu0 %v2930
    %v2932 = vpop.xlane.xlu0 %2931
    %v2933 = vadd.f32 %v1822, %v1823
    %v2934 = vadd.f32 %v2933, %v1824
    %v2935 = vadd.f32 %v2934, %v1825
    %v2936 = vadd.f32 %v2935, %v1826
    %v2937 = vadd.f32 %v2936, %v1827
    %v2938 = vadd.f32 %v2937, %v1828
    %v2939 = vadd.f32 %v2938, %v1829
    %2940 = vadd.xlane.f32.xlu0 %v2939
    %v2941 = vpop.xlane.xlu0 %2940
    %v2942 = vadd.f32 %v1830, %v1831
    %v2943 = vadd.f32 %v2942, %v1832
    %v2944 = vadd.f32 %v2943, %v1833
    %v2945 = vadd.f32 %v2944, %v1834
    %v2946 = vadd.f32 %v2945, %v1835
    %v2947 = vadd.f32 %v2946, %v1836
    %v2948 = vadd.f32 %v2947, %v1837
    %2949 = vadd.xlane.f32.xlu0 %v2948
    %v2950 = vpop.xlane.xlu0 %2949
    %v2951 = vadd.f32 %v1838, %v1839
    %v2952 = vadd.f32 %v2951, %v1840
    %v2953 = vadd.f32 %v2952, %v1841
    %v2954 = vadd.f32 %v2953, %v1842
    %v2955 = vadd.f32 %v2954, %v1843
    %v2956 = vadd.f32 %v2955, %v1844
    %v2957 = vadd.f32 %v2956, %v1845
    %2958 = vadd.xlane.f32.xlu0 %v2957
    %v2959 = vpop.xlane.xlu0 %2958
    %v2960 = vadd.f32 %v1846, %v1847
    %v2961 = vadd.f32 %v2960, %v1848
    %v2962 = vadd.f32 %v2961, %v1849
    %v2963 = vadd.f32 %v2962, %v1850
    %v2964 = vadd.f32 %v2963, %v1851
    %v2965 = vadd.f32 %v2964, %v1852
    %v2966 = vadd.f32 %v2965, %v1853
    %2967 = vadd.xlane.f32.xlu0 %v2966
    %v2968 = vpop.xlane.xlu0 %2967
    %v2969 = vadd.f32 %v1854, %v1855
    %v2970 = vadd.f32 %v2969, %v1856
    %v2971 = vadd.f32 %v2970, %v1857
    %v2972 = vadd.f32 %v2971, %v1858
    %v2973 = vadd.f32 %v2972, %v1859
    %v2974 = vadd.f32 %v2973, %v1860
    %v2975 = vadd.f32 %v2974, %v1861
    %2976 = vadd.xlane.f32.xlu0 %v2975
    %v2977 = vpop.xlane.xlu0 %2976
    %v2978 = vadd.f32 %v1862, %v1863
    %v2979 = vadd.f32 %v2978, %v1864
    %v2980 = vadd.f32 %v2979, %v1865
    %v2981 = vadd.f32 %v2980, %v1866
    %v2982 = vadd.f32 %v2981, %v1867
    %v2983 = vadd.f32 %v2982, %v1868
    %v2984 = vadd.f32 %v2983, %v1869
    %2985 = vadd.xlane.f32.xlu0 %v2984
    %v2986 = vpop.xlane.xlu0 %2985
    %v2987 = vadd.f32 %v1870, %v1871
    %v2988 = vadd.f32 %v2987, %v1872
    %v2989 = vadd.f32 %v2988, %v1873
    %v2990 = vadd.f32 %v2989, %v1874
    %v2991 = vadd.f32 %v2990, %v1875
    %v2992 = vadd.f32 %v2991, %v1876
    %v2993 = vadd.f32 %v2992, %v1877
    %2994 = vadd.xlane.f32.xlu0 %v2993
    %v2995 = vpop.xlane.xlu0 %2994
    %v2996 = vadd.f32 %v1878, %v1879
    %v2997 = vadd.f32 %v2996, %v1880
    %v2998 = vadd.f32 %v2997, %v1881
    %v2999 = vadd.f32 %v2998, %v1882
    %v3000 = vadd.f32 %v2999, %v1883
    %v3001 = vadd.f32 %v3000, %v1884
    %v3002 = vadd.f32 %v3001, %v1885
    %3003 = vadd.xlane.f32.xlu0 %v3002
    %v3004 = vpop.xlane.xlu0 %3003
    %v3005 = vadd.f32 %v1886, %v1887
    %v3006 = vadd.f32 %v3005, %v1888
    %v3007 = vadd.f32 %v3006, %v1889
    %v3008 = vadd.f32 %v3007, %v1890
    %v3009 = vadd.f32 %v3008, %v1891
    %v3010 = vadd.f32 %v3009, %v1892
    %v3011 = vadd.f32 %v3010, %v1893
    %3012 = vadd.xlane.f32.xlu0 %v3011
    %v3013 = vpop.xlane.xlu0 %3012
    %v3014 = vadd.f32 %v1894, %v1895
    %v3015 = vadd.f32 %v3014, %v1896
    %v3016 = vadd.f32 %v3015, %v1897
    %v3017 = vadd.f32 %v3016, %v1898
    %v3018 = vadd.f32 %v3017, %v1899
    %v3019 = vadd.f32 %v3018, %v1900
    %v3020 = vadd.f32 %v3019, %v1901
    %3021 = vadd.xlane.f32.xlu0 %v3020
    %v3022 = vpop.xlane.xlu0 %3021
    %v3023 = vadd.f32 %v1902, %v1903
    %v3024 = vadd.f32 %v3023, %v1904
    %v3025 = vadd.f32 %v3024, %v1905
    %v3026 = vadd.f32 %v3025, %v1906
    %v3027 = vadd.f32 %v3026, %v1907
    %v3028 = vadd.f32 %v3027, %v1908
    %v3029 = vadd.f32 %v3028, %v1909
    %3030 = vadd.xlane.f32.xlu0 %v3029
    %v3031 = vpop.xlane.xlu0 %3030
    %v3032 = vadd.f32 %v1910, %v1911
    %v3033 = vadd.f32 %v3032, %v1912
    %v3034 = vadd.f32 %v3033, %v1913
    %v3035 = vadd.f32 %v3034, %v1914
    %v3036 = vadd.f32 %v3035, %v1915
    %v3037 = vadd.f32 %v3036, %v1916
    %v3038 = vadd.f32 %v3037, %v1917
    %3039 = vadd.xlane.f32.xlu0 %v3038
    %v3040 = vpop.xlane.xlu0 %3039
    %v3041 = vadd.f32 %v1918, %v1919
    %v3042 = vadd.f32 %v3041, %v1920
    %v3043 = vadd.f32 %v3042, %v1921
    %v3044 = vadd.f32 %v3043, %v1922
    %v3045 = vadd.f32 %v3044, %v1923
    %v3046 = vadd.f32 %v3045, %v1924
    %v3047 = vadd.f32 %v3046, %v1925
    %3048 = vadd.xlane.f32.xlu0 %v3047
    %v3049 = vpop.xlane.xlu0 %3048
    %v3050 = vadd.f32 %v1926, %v1927
    %v3051 = vadd.f32 %v3050, %v1928
    %v3052 = vadd.f32 %v3051, %v1929
    %v3053 = vadd.f32 %v3052, %v1930
    %v3054 = vadd.f32 %v3053, %v1931
    %v3055 = vadd.f32 %v3054, %v1932
    %v3056 = vadd.f32 %v3055, %v1933
    %3057 = vadd.xlane.f32.xlu0 %v3056
    %v3058 = vpop.xlane.xlu0 %3057
    %v3059 = vadd.f32 %v1934, %v1935
    %v3060 = vadd.f32 %v3059, %v1936
    %v3061 = vadd.f32 %v3060, %v1937
    %v3062 = vadd.f32 %v3061, %v1938
    %v3063 = vadd.f32 %v3062, %v1939
    %v3064 = vadd.f32 %v3063, %v1940
    %v3065 = vadd.f32 %v3064, %v1941
    %3066 = vadd.xlane.f32.xlu0 %v3065
    %v3067 = vpop.xlane.xlu0 %3066
    %v3068 = vadd.f32 %v1942, %v1943
    %v3069 = vadd.f32 %v3068, %v1944
    %v3070 = vadd.f32 %v3069, %v1945
    %v3071 = vadd.f32 %v3070, %v1946
    %v3072 = vadd.f32 %v3071, %v1947
    %v3073 = vadd.f32 %v3072, %v1948
    %v3074 = vadd.f32 %v3073, %v1949
    %3075 = vadd.xlane.f32.xlu0 %v3074
    %v3076 = vpop.xlane.xlu0 %3075
    %v3077 = vadd.f32 %v1950, %v1951
    %v3078 = vadd.f32 %v3077, %v1952
    %v3079 = vadd.f32 %v3078, %v1953
    %v3080 = vadd.f32 %v3079, %v1954
    %v3081 = vadd.f32 %v3080, %v1955
    %v3082 = vadd.f32 %v3081, %v1956
    %v3083 = vadd.f32 %v3082, %v1957
    %3084 = vadd.xlane.f32.xlu0 %v3083
    %v3085 = vpop.xlane.xlu0 %3084
    %v3086 = vadd.f32 %v1958, %v1959
    %v3087 = vadd.f32 %v3086, %v1960
    %v3088 = vadd.f32 %v3087, %v1961
    %v3089 = vadd.f32 %v3088, %v1962
    %v3090 = vadd.f32 %v3089, %v1963
    %v3091 = vadd.f32 %v3090, %v1964
    %v3092 = vadd.f32 %v3091, %v1965
    %3093 = vadd.xlane.f32.xlu0 %v3092
    %v3094 = vpop.xlane.xlu0 %3093
    %v3095 = vadd.f32 %v1966, %v1967
    %v3096 = vadd.f32 %v3095, %v1968
    %v3097 = vadd.f32 %v3096, %v1969
    %v3098 = vadd.f32 %v3097, %v1970
    %v3099 = vadd.f32 %v3098, %v1971
    %v3100 = vadd.f32 %v3099, %v1972
    %v3101 = vadd.f32 %v3100, %v1973
    %3102 = vadd.xlane.f32.xlu0 %v3101
    %v3103 = vpop.xlane.xlu0 %3102
    %v3104 = vadd.f32 %v1974, %v1975
    %v3105 = vadd.f32 %v3104, %v1976
    %v3106 = vadd.f32 %v3105, %v1977
    %v3107 = vadd.f32 %v3106, %v1978
    %v3108 = vadd.f32 %v3107, %v1979
    %v3109 = vadd.f32 %v3108, %v1980
    %v3110 = vadd.f32 %v3109, %v1981
    %3111 = vadd.xlane.f32.xlu0 %v3110
    %v3112 = vpop.xlane.xlu0 %3111
    %v3113 = vadd.f32 %v1982, %v1983
    %v3114 = vadd.f32 %v3113, %v1984
    %v3115 = vadd.f32 %v3114, %v1985
    %v3116 = vadd.f32 %v3115, %v1986
    %v3117 = vadd.f32 %v3116, %v1987
    %v3118 = vadd.f32 %v3117, %v1988
    %v3119 = vadd.f32 %v3118, %v1989
    %3120 = vadd.xlane.f32.xlu0 %v3119
    %v3121 = vpop.xlane.xlu0 %3120
    %v3122 = vadd.f32 %v1990, %v1991
    %v3123 = vadd.f32 %v3122, %v1992
    %v3124 = vadd.f32 %v3123, %v1993
    %v3125 = vadd.f32 %v3124, %v1994
    %v3126 = vadd.f32 %v3125, %v1995
    %v3127 = vadd.f32 %v3126, %v1996
    %v3128 = vadd.f32 %v3127, %v1997
    %3129 = vadd.xlane.f32.xlu0 %v3128
    %v3130 = vpop.xlane.xlu0 %3129
    %v3131 = vadd.f32 %v1998, %v1999
    %v3132 = vadd.f32 %v3131, %v2000
    %v3133 = vadd.f32 %v3132, %v2001
    %v3134 = vadd.f32 %v3133, %v2002
    %v3135 = vadd.f32 %v3134, %v2003
    %v3136 = vadd.f32 %v3135, %v2004
    %v3137 = vadd.f32 %v3136, %v2005
    %3138 = vadd.xlane.f32.xlu0 %v3137
    %v3139 = vpop.xlane.xlu0 %3138
    %v3140 = vadd.f32 %v2006, %v2007
    %v3141 = vadd.f32 %v3140, %v2008
    %v3142 = vadd.f32 %v3141, %v2009
    %v3143 = vadd.f32 %v3142, %v2010
    %v3144 = vadd.f32 %v3143, %v2011
    %v3145 = vadd.f32 %v3144, %v2012
    %v3146 = vadd.f32 %v3145, %v2013
    %3147 = vadd.xlane.f32.xlu0 %v3146
    %v3148 = vpop.xlane.xlu0 %3147
    %v3149 = vadd.f32 %v2014, %v2015
    %v3150 = vadd.f32 %v3149, %v2016
    %v3151 = vadd.f32 %v3150, %v2017
    %v3152 = vadd.f32 %v3151, %v2018
    %v3153 = vadd.f32 %v3152, %v2019
    %v3154 = vadd.f32 %v3153, %v2020
    %v3155 = vadd.f32 %v3154, %v2021
    %3156 = vadd.xlane.f32.xlu0 %v3155
    %v3157 = vpop.xlane.xlu0 %3156
    %v3158 = vadd.f32 %v2022, %v2023
    %v3159 = vadd.f32 %v3158, %v2024
    %v3160 = vadd.f32 %v3159, %v2025
    %v3161 = vadd.f32 %v3160, %v2026
    %v3162 = vadd.f32 %v3161, %v2027
    %v3163 = vadd.f32 %v3162, %v2028
    %v3164 = vadd.f32 %v3163, %v2029
    %3165 = vadd.xlane.f32.xlu0 %v3164
    %v3166 = vpop.xlane.xlu0 %3165
    %v3167 = vadd.f32 %v2030, %v2031
    %v3168 = vadd.f32 %v3167, %v2032
    %v3169 = vadd.f32 %v3168, %v2033
    %v3170 = vadd.f32 %v3169, %v2034
    %v3171 = vadd.f32 %v3170, %v2035
    %v3172 = vadd.f32 %v3171, %v2036
    %v3173 = vadd.f32 %v3172, %v2037
    %3174 = vadd.xlane.f32.xlu0 %v3173
    %v3175 = vpop.xlane.xlu0 %3174
    %v3176 = vadd.f32 %v2038, %v2039
    %v3177 = vadd.f32 %v3176, %v2040
    %v3178 = vadd.f32 %v3177, %v2041
    %v3179 = vadd.f32 %v3178, %v2042
    %v3180 = vadd.f32 %v3179, %v2043
    %v3181 = vadd.f32 %v3180, %v2044
    %v3182 = vadd.f32 %v3181, %v2045
    %3183 = vadd.xlane.f32.xlu0 %v3182
    %v3184 = vpop.xlane.xlu0 %3183
    %v3185 = vadd.f32 %v2046, %v2047
    %v3186 = vadd.f32 %v3185, %v2048
    %v3187 = vadd.f32 %v3186, %v2049
    %v3188 = vadd.f32 %v3187, %v2050
    %v3189 = vadd.f32 %v3188, %v2051
    %v3190 = vadd.f32 %v3189, %v2052
    %v3191 = vadd.f32 %v3190, %v2053
    %3192 = vadd.xlane.f32.xlu0 %v3191
    %v3193 = vpop.xlane.xlu0 %3192
    %v3194 = vadd.f32 %v2054, %v2055
    %v3195 = vadd.f32 %v3194, %v2056
    %v3196 = vadd.f32 %v3195, %v2057
    %v3197 = vadd.f32 %v3196, %v2058
    %v3198 = vadd.f32 %v3197, %v2059
    %v3199 = vadd.f32 %v3198, %v2060
    %v3200 = vadd.f32 %v3199, %v2061
    %3201 = vadd.xlane.f32.xlu0 %v3200
    %v3202 = vpop.xlane.xlu0 %3201
    %v3203 = vadd.f32 %v2062, %v2063
    %v3204 = vadd.f32 %v3203, %v2064
    %v3205 = vadd.f32 %v3204, %v2065
    %v3206 = vadd.f32 %v3205, %v2066
    %v3207 = vadd.f32 %v3206, %v2067
    %v3208 = vadd.f32 %v3207, %v2068
    %v3209 = vadd.f32 %v3208, %v2069
    %3210 = vadd.xlane.f32.xlu0 %v3209
    %v3211 = vpop.xlane.xlu0 %3210
    %v3212 = vadd.f32 %v2070, %v2071
    %v3213 = vadd.f32 %v3212, %v2072
    %v3214 = vadd.f32 %v3213, %v2073
    %v3215 = vadd.f32 %v3214, %v2074
    %v3216 = vadd.f32 %v3215, %v2075
    %v3217 = vadd.f32 %v3216, %v2076
    %v3218 = vadd.f32 %v3217, %v2077
    %3219 = vadd.xlane.f32.xlu0 %v3218
    %v3220 = vpop.xlane.xlu0 %3219
    %v3221 = vadd.f32 %v2078, %v2079
    %v3222 = vadd.f32 %v3221, %v2080
    %v3223 = vadd.f32 %v3222, %v2081
    %v3224 = vadd.f32 %v3223, %v2082
    %v3225 = vadd.f32 %v3224, %v2083
    %v3226 = vadd.f32 %v3225, %v2084
    %v3227 = vadd.f32 %v3226, %v2085
    %3228 = vadd.xlane.f32.xlu0 %v3227
    %v3229 = vpop.xlane.xlu0 %3228
    %v3230 = vadd.f32 %v2086, %v2087
    %v3231 = vadd.f32 %v3230, %v2088
    %v3232 = vadd.f32 %v3231, %v2089
    %v3233 = vadd.f32 %v3232, %v2090
    %v3234 = vadd.f32 %v3233, %v2091
    %v3235 = vadd.f32 %v3234, %v2092
    %v3236 = vadd.f32 %v3235, %v2093
    %3237 = vadd.xlane.f32.xlu0 %v3236
    %v3238 = vpop.xlane.xlu0 %3237
    %v3239 = vadd.f32 %v2094, %v2095
    %v3240 = vadd.f32 %v3239, %v2096
    %v3241 = vadd.f32 %v3240, %v2097
    %v3242 = vadd.f32 %v3241, %v2098
    %v3243 = vadd.f32 %v3242, %v2099
    %v3244 = vadd.f32 %v3243, %v2100
    %v3245 = vadd.f32 %v3244, %v2101
    %3246 = vadd.xlane.f32.xlu0 %v3245
    %v3247 = vpop.xlane.xlu0 %3246
    %v3248 = vadd.f32 %v2102, %v2103
    %v3249 = vadd.f32 %v3248, %v2104
    %v3250 = vadd.f32 %v3249, %v2105
    %v3251 = vadd.f32 %v3250, %v2106
    %v3252 = vadd.f32 %v3251, %v2107
    %v3253 = vadd.f32 %v3252, %v2108
    %v3254 = vadd.f32 %v3253, %v2109
    %3255 = vadd.xlane.f32.xlu0 %v3254
    %v3256 = vpop.xlane.xlu0 %3255
    %v3257 = vadd.f32 %v2110, %v2111
    %v3258 = vadd.f32 %v3257, %v2112
    %v3259 = vadd.f32 %v3258, %v2113
    %v3260 = vadd.f32 %v3259, %v2114
    %v3261 = vadd.f32 %v3260, %v2115
    %v3262 = vadd.f32 %v3261, %v2116
    %v3263 = vadd.f32 %v3262, %v2117
    %3264 = vadd.xlane.f32.xlu0 %v3263
    %v3265 = vpop.xlane.xlu0 %3264
    %v3266 = vadd.f32 %v2118, %v2119
    %v3267 = vadd.f32 %v3266, %v2120
    %v3268 = vadd.f32 %v3267, %v2121
    %v3269 = vadd.f32 %v3268, %v2122
    %v3270 = vadd.f32 %v3269, %v2123
    %v3271 = vadd.f32 %v3270, %v2124
    %v3272 = vadd.f32 %v3271, %v2125
    %3273 = vadd.xlane.f32.xlu0 %v3272
    %v3274 = vpop.xlane.xlu0 %3273
    %v3275 = vadd.f32 %v2126, %v2127
    %v3276 = vadd.f32 %v3275, %v2128
    %v3277 = vadd.f32 %v3276, %v2129
    %v3278 = vadd.f32 %v3277, %v2130
    %v3279 = vadd.f32 %v3278, %v2131
    %v3280 = vadd.f32 %v3279, %v2132
    %v3281 = vadd.f32 %v3280, %v2133
    %3282 = vadd.xlane.f32.xlu0 %v3281
    %v3283 = vpop.xlane.xlu0 %3282
    %v3284 = vadd.f32 %v2134, %v2135
    %v3285 = vadd.f32 %v3284, %v2136
    %v3286 = vadd.f32 %v3285, %v2137
    %v3287 = vadd.f32 %v3286, %v2138
    %v3288 = vadd.f32 %v3287, %v2139
    %v3289 = vadd.f32 %v3288, %v2140
    %v3290 = vadd.f32 %v3289, %v2141
    %3291 = vadd.xlane.f32.xlu0 %v3290
    %v3292 = vpop.xlane.xlu0 %3291
    %v3293 = vadd.f32 %v2142, %v2143
    %v3294 = vadd.f32 %v3293, %v2144
    %v3295 = vadd.f32 %v3294, %v2145
    %v3296 = vadd.f32 %v3295, %v2146
    %v3297 = vadd.f32 %v3296, %v2147
    %v3298 = vadd.f32 %v3297, %v2148
    %v3299 = vadd.f32 %v3298, %v2149
    %3300 = vadd.xlane.f32.xlu0 %v3299
    %v3301 = vpop.xlane.xlu0 %3300
    %v3302 = vld [vmem:[#allocation2] sm:$0x1]
    %v3304 = vlaneseq
    %v3305 = vshrl.u32 %v3304, 7
    %v3306 = vsub.s32 0, %v3305
    %v3307 = vrot.slane %v3302, %v3306
    %3308 = vset.pattern.permute.xlu0 0
    %3309 = vperm.xlu0 %3308, %v3307
    %v3310 = vpop.permute.xlu0 %3309
    %v3312 = vadd.f32 %v2158, %v3310
    %v3313 = vadd.f32 %v2167, %v3310
    %v3314 = vadd.f32 %v2176, %v3310
    %v3315 = vadd.f32 %v2185, %v3310
    %v3316 = vadd.f32 %v2194, %v3310
    %v3317 = vadd.f32 %v2203, %v3310
    %v3318 = vadd.f32 %v2212, %v3310
    %v3319 = vadd.f32 %v2221, %v3310
    %v3320 = vadd.f32 %v2230, %v3310
    %v3321 = vadd.f32 %v2239, %v3310
    %v3322 = vadd.f32 %v2248, %v3310
    %v3323 = vadd.f32 %v2257, %v3310
    %v3324 = vadd.f32 %v2266, %v3310
    %v3325 = vadd.f32 %v2275, %v3310
    %v3326 = vadd.f32 %v2284, %v3310
    %v3327 = vadd.f32 %v2293, %v3310
    %v3328 = vadd.f32 %v2302, %v3310
    %v3329 = vadd.f32 %v2311, %v3310
    %v3330 = vadd.f32 %v2320, %v3310
    %v3331 = vadd.f32 %v2329, %v3310
    %v3332 = vadd.f32 %v2338, %v3310
    %v3333 = vadd.f32 %v2347, %v3310
    %v3334 = vadd.f32 %v2356, %v3310
    %v3335 = vadd.f32 %v2365, %v3310
    %v3336 = vadd.f32 %v2374, %v3310
    %v3337 = vadd.f32 %v2383, %v3310
    %v3338 = vadd.f32 %v2392, %v3310
    %v3339 = vadd.f32 %v2401, %v3310
    %v3340 = vadd.f32 %v2410, %v3310
    %v3341 = vadd.f32 %v2419, %v3310
    %v3342 = vadd.f32 %v2428, %v3310
    %v3343 = vadd.f32 %v2437, %v3310
    %v3344 = vadd.f32 %v2446, %v3310
    %v3345 = vadd.f32 %v2455, %v3310
    %v3346 = vadd.f32 %v2464, %v3310
    %v3347 = vadd.f32 %v2473, %v3310
    %v3348 = vadd.f32 %v2482, %v3310
    %v3349 = vadd.f32 %v2491, %v3310
    %v3350 = vadd.f32 %v2500, %v3310
    %v3351 = vadd.f32 %v2509, %v3310
    %v3352 = vadd.f32 %v2518, %v3310
    %v3353 = vadd.f32 %v2527, %v3310
    %v3354 = vadd.f32 %v2536, %v3310
    %v3355 = vadd.f32 %v2545, %v3310
    %v3356 = vadd.f32 %v2554, %v3310
    %v3357 = vadd.f32 %v2563, %v3310
    %v3358 = vadd.f32 %v2572, %v3310
    %v3359 = vadd.f32 %v2581, %v3310
    %v3360 = vadd.f32 %v2590, %v3310
    %v3361 = vadd.f32 %v2599, %v3310
    %v3362 = vadd.f32 %v2608, %v3310
    %v3363 = vadd.f32 %v2617, %v3310
    %v3364 = vadd.f32 %v2626, %v3310
    %v3365 = vadd.f32 %v2635, %v3310
    %v3366 = vadd.f32 %v2644, %v3310
    %v3367 = vadd.f32 %v2653, %v3310
    %v3368 = vadd.f32 %v2662, %v3310
    %v3369 = vadd.f32 %v2671, %v3310
    %v3370 = vadd.f32 %v2680, %v3310
    %v3371 = vadd.f32 %v2689, %v3310
    %v3372 = vadd.f32 %v2698, %v3310
    %v3373 = vadd.f32 %v2707, %v3310
    %v3374 = vadd.f32 %v2716, %v3310
    %v3375 = vadd.f32 %v2725, %v3310
    %v3376 = vadd.f32 %v2734, %v3310
    %v3377 = vadd.f32 %v2743, %v3310
    %v3378 = vadd.f32 %v2752, %v3310
    %v3379 = vadd.f32 %v2761, %v3310
    %v3380 = vadd.f32 %v2770, %v3310
    %v3381 = vadd.f32 %v2779, %v3310
    %v3382 = vadd.f32 %v2788, %v3310
    %v3383 = vadd.f32 %v2797, %v3310
    %v3384 = vadd.f32 %v2806, %v3310
    %v3385 = vadd.f32 %v2815, %v3310
    %v3386 = vadd.f32 %v2824, %v3310
    %v3387 = vadd.f32 %v2833, %v3310
    %v3388 = vadd.f32 %v2842, %v3310
    %v3389 = vadd.f32 %v2851, %v3310
    %v3390 = vadd.f32 %v2860, %v3310
    %v3391 = vadd.f32 %v2869, %v3310
    %v3392 = vadd.f32 %v2878, %v3310
    %v3393 = vadd.f32 %v2887, %v3310
    %v3394 = vadd.f32 %v2896, %v3310
    %v3395 = vadd.f32 %v2905, %v3310
    %v3396 = vadd.f32 %v2914, %v3310
    %v3397 = vadd.f32 %v2923, %v3310
    %v3398 = vadd.f32 %v2932, %v3310
    %v3399 = vadd.f32 %v2941, %v3310
    %v3400 = vadd.f32 %v2950, %v3310
    %v3401 = vadd.f32 %v2959, %v3310
    %v3402 = vadd.f32 %v2968, %v3310
    %v3403 = vadd.f32 %v2977, %v3310
    %v3404 = vadd.f32 %v2986, %v3310
    %v3405 = vadd.f32 %v2995, %v3310
    %v3406 = vadd.f32 %v3004, %v3310
    %v3407 = vadd.f32 %v3013, %v3310
    %v3408 = vadd.f32 %v3022, %v3310
    %v3409 = vadd.f32 %v3031, %v3310
    %v3410 = vadd.f32 %v3040, %v3310
    %v3411 = vadd.f32 %v3049, %v3310
    %v3412 = vadd.f32 %v3058, %v3310
    %v3413 = vadd.f32 %v3067, %v3310
    %v3414 = vadd.f32 %v3076, %v3310
    %v3415 = vadd.f32 %v3085, %v3310
    %v3416 = vadd.f32 %v3094, %v3310
    %v3417 = vadd.f32 %v3103, %v3310
    %v3418 = vadd.f32 %v3112, %v3310
    %v3419 = vadd.f32 %v3121, %v3310
    %v3420 = vadd.f32 %v3130, %v3310
    %v3421 = vadd.f32 %v3139, %v3310
    %v3422 = vadd.f32 %v3148, %v3310
    %v3423 = vadd.f32 %v3157, %v3310
    %v3424 = vadd.f32 %v3166, %v3310
    %v3425 = vadd.f32 %v3175, %v3310
    %v3426 = vadd.f32 %v3184, %v3310
    %v3427 = vadd.f32 %v3193, %v3310
    %v3428 = vadd.f32 %v3202, %v3310
    %v3429 = vadd.f32 %v3211, %v3310
    %v3430 = vadd.f32 %v3220, %v3310
    %v3431 = vadd.f32 %v3229, %v3310
    %v3432 = vadd.f32 %v3238, %v3310
    %v3433 = vadd.f32 %v3247, %v3310
    %v3434 = vadd.f32 %v3256, %v3310
    %v3435 = vadd.f32 %v3265, %v3310
    %v3436 = vadd.f32 %v3274, %v3310
    %v3437 = vadd.f32 %v3283, %v3310
    %v3438 = vadd.f32 %v3292, %v3310
    %v3439 = vadd.f32 %v3301, %v3310
    %v3440 = vxor.u32 %v3312, 2147483648
    %v3441 = vxor.u32 %v3313, 2147483648
    %v3442 = vxor.u32 %v3314, 2147483648
    %v3443 = vxor.u32 %v3315, 2147483648
    %v3444 = vxor.u32 %v3316, 2147483648
    %v3445 = vxor.u32 %v3317, 2147483648
    %v3446 = vxor.u32 %v3318, 2147483648
    %v3447 = vxor.u32 %v3319, 2147483648
    %v3448 = vxor.u32 %v3320, 2147483648
    %v3449 = vxor.u32 %v3321, 2147483648
    %v3450 = vxor.u32 %v3322, 2147483648
    %v3451 = vxor.u32 %v3323, 2147483648
    %v3452 = vxor.u32 %v3324, 2147483648
    %v3453 = vxor.u32 %v3325, 2147483648
    %v3454 = vxor.u32 %v3326, 2147483648
    %v3455 = vxor.u32 %v3327, 2147483648
    %v3456 = vxor.u32 %v3328, 2147483648
    %v3457 = vxor.u32 %v3329, 2147483648
    %v3458 = vxor.u32 %v3330, 2147483648
    %v3459 = vxor.u32 %v3331, 2147483648
    %v3460 = vxor.u32 %v3332, 2147483648
    %v3461 = vxor.u32 %v3333, 2147483648
    %v3462 = vxor.u32 %v3334, 2147483648
    %v3463 = vxor.u32 %v3335, 2147483648
    %v3464 = vxor.u32 %v3336, 2147483648
    %v3465 = vxor.u32 %v3337, 2147483648
    %v3466 = vxor.u32 %v3338, 2147483648
    %v3467 = vxor.u32 %v3339, 2147483648
    %v3468 = vxor.u32 %v3340, 2147483648
    %v3469 = vxor.u32 %v3341, 2147483648
    %v3470 = vxor.u32 %v3342, 2147483648
    %v3471 = vxor.u32 %v3343, 2147483648
    %v3472 = vxor.u32 %v3344, 2147483648
    %v3473 = vxor.u32 %v3345, 2147483648
    %v3474 = vxor.u32 %v3346, 2147483648
    %v3475 = vxor.u32 %v3347, 2147483648
    %v3476 = vxor.u32 %v3348, 2147483648
    %v3477 = vxor.u32 %v3349, 2147483648
    %v3478 = vxor.u32 %v3350, 2147483648
    %v3479 = vxor.u32 %v3351, 2147483648
    %v3480 = vxor.u32 %v3352, 2147483648
    %v3481 = vxor.u32 %v3353, 2147483648
    %v3482 = vxor.u32 %v3354, 2147483648
    %v3483 = vxor.u32 %v3355, 2147483648
    %v3484 = vxor.u32 %v3356, 2147483648
    %v3485 = vxor.u32 %v3357, 2147483648
    %v3486 = vxor.u32 %v3358, 2147483648
    %v3487 = vxor.u32 %v3359, 2147483648
    %v3488 = vxor.u32 %v3360, 2147483648
    %v3489 = vxor.u32 %v3361, 2147483648
    %v3490 = vxor.u32 %v3362, 2147483648
    %v3491 = vxor.u32 %v3363, 2147483648
    %v3492 = vxor.u32 %v3364, 2147483648
    %v3493 = vxor.u32 %v3365, 2147483648
    %v3494 = vxor.u32 %v3366, 2147483648
    %v3495 = vxor.u32 %v3367, 2147483648
    %v3496 = vxor.u32 %v3368, 2147483648
    %v3497 = vxor.u32 %v3369, 2147483648
    %v3498 = vxor.u32 %v3370, 2147483648
    %v3499 = vxor.u32 %v3371, 2147483648
    %v3500 = vxor.u32 %v3372, 2147483648
    %v3501 = vxor.u32 %v3373, 2147483648
    %v3502 = vxor.u32 %v3374, 2147483648
    %v3503 = vxor.u32 %v3375, 2147483648
    %v3504 = vxor.u32 %v3376, 2147483648
    %v3505 = vxor.u32 %v3377, 2147483648
    %v3506 = vxor.u32 %v3378, 2147483648
    %v3507 = vxor.u32 %v3379, 2147483648
    %v3508 = vxor.u32 %v3380, 2147483648
    %v3509 = vxor.u32 %v3381, 2147483648
    %v3510 = vxor.u32 %v3382, 2147483648
    %v3511 = vxor.u32 %v3383, 2147483648
    %v3512 = vxor.u32 %v3384, 2147483648
    %v3513 = vxor.u32 %v3385, 2147483648
    %v3514 = vxor.u32 %v3386, 2147483648
    %v3515 = vxor.u32 %v3387, 2147483648
    %v3516 = vxor.u32 %v3388, 2147483648
    %v3517 = vxor.u32 %v3389, 2147483648
    %v3518 = vxor.u32 %v3390, 2147483648
    %v3519 = vxor.u32 %v3391, 2147483648
    %v3520 = vxor.u32 %v3392, 2147483648
    %v3521 = vxor.u32 %v3393, 2147483648
    %v3522 = vxor.u32 %v3394, 2147483648
    %v3523 = vxor.u32 %v3395, 2147483648
    %v3524 = vxor.u32 %v3396, 2147483648
    %v3525 = vxor.u32 %v3397, 2147483648
    %v3526 = vxor.u32 %v3398, 2147483648
    %v3527 = vxor.u32 %v3399, 2147483648
    %v3528 = vxor.u32 %v3400, 2147483648
    %v3529 = vxor.u32 %v3401, 2147483648
    %v3530 = vxor.u32 %v3402, 2147483648
    %v3531 = vxor.u32 %v3403, 2147483648
    %v3532 = vxor.u32 %v3404, 2147483648
    %v3533 = vxor.u32 %v3405, 2147483648
    %v3534 = vxor.u32 %v3406, 2147483648
    %v3535 = vxor.u32 %v3407, 2147483648
    %v3536 = vxor.u32 %v3408, 2147483648
    %v3537 = vxor.u32 %v3409, 2147483648
    %v3538 = vxor.u32 %v3410, 2147483648
    %v3539 = vxor.u32 %v3411, 2147483648
    %v3540 = vxor.u32 %v3412, 2147483648
    %v3541 = vxor.u32 %v3413, 2147483648
    %v3542 = vxor.u32 %v3414, 2147483648
    %v3543 = vxor.u32 %v3415, 2147483648
    %v3544 = vxor.u32 %v3416, 2147483648
    %v3545 = vxor.u32 %v3417, 2147483648
    %v3546 = vxor.u32 %v3418, 2147483648
    %v3547 = vxor.u32 %v3419, 2147483648
    %v3548 = vxor.u32 %v3420, 2147483648
    %v3549 = vxor.u32 %v3421, 2147483648
    %v3550 = vxor.u32 %v3422, 2147483648
    %v3551 = vxor.u32 %v3423, 2147483648
    %v3552 = vxor.u32 %v3424, 2147483648
    %v3553 = vxor.u32 %v3425, 2147483648
    %v3554 = vxor.u32 %v3426, 2147483648
    %v3555 = vxor.u32 %v3427, 2147483648
    %v3556 = vxor.u32 %v3428, 2147483648
    %v3557 = vxor.u32 %v3429, 2147483648
    %v3558 = vxor.u32 %v3430, 2147483648
    %v3559 = vxor.u32 %v3431, 2147483648
    %v3560 = vxor.u32 %v3432, 2147483648
    %v3561 = vxor.u32 %v3433, 2147483648
    %v3562 = vxor.u32 %v3434, 2147483648
    %v3563 = vxor.u32 %v3435, 2147483648
    %v3564 = vxor.u32 %v3436, 2147483648
    %v3565 = vxor.u32 %v3437, 2147483648
    %v3566 = vxor.u32 %v3438, 2147483648
    %v3567 = vxor.u32 %v3439, 2147483648
    %v3568 = vmul.f32 %v3440, 1.442695
    %v3569 = vpow.pop %v3568
    %v3570 = vmul.f32 %v3441, 1.442695
    %v3571 = vpow.pop %v3570
    %v3572 = vmul.f32 %v3442, 1.442695
    %v3573 = vpow.pop %v3572
    %v3574 = vmul.f32 %v3443, 1.442695
    %v3575 = vpow.pop %v3574
    %v3576 = vmul.f32 %v3444, 1.442695
    %v3577 = vpow.pop %v3576
    %v3578 = vmul.f32 %v3445, 1.442695
    %v3579 = vpow.pop %v3578
    %v3580 = vmul.f32 %v3446, 1.442695
    %v3581 = vpow.pop %v3580
    %v3582 = vmul.f32 %v3447, 1.442695
    %v3583 = vpow.pop %v3582
    %v3584 = vmul.f32 %v3448, 1.442695
    %v3585 = vpow.pop %v3584
    %v3586 = vmul.f32 %v3449, 1.442695
    %v3587 = vpow.pop %v3586
    %v3588 = vmul.f32 %v3450, 1.442695
    %v3589 = vpow.pop %v3588
    %v3590 = vmul.f32 %v3451, 1.442695
    %v3591 = vpow.pop %v3590
    %v3592 = vmul.f32 %v3452, 1.442695
    %v3593 = vpow.pop %v3592
    %v3594 = vmul.f32 %v3453, 1.442695
    %v3595 = vpow.pop %v3594
    %v3596 = vmul.f32 %v3454, 1.442695
    %v3597 = vpow.pop %v3596
    %v3598 = vmul.f32 %v3455, 1.442695
    %v3599 = vpow.pop %v3598
    %v3600 = vmul.f32 %v3456, 1.442695
    %v3601 = vpow.pop %v3600
    %v3602 = vmul.f32 %v3457, 1.442695
    %v3603 = vpow.pop %v3602
    %v3604 = vmul.f32 %v3458, 1.442695
    %v3605 = vpow.pop %v3604
    %v3606 = vmul.f32 %v3459, 1.442695
    %v3607 = vpow.pop %v3606
    %v3608 = vmul.f32 %v3460, 1.442695
    %v3609 = vpow.pop %v3608
    %v3610 = vmul.f32 %v3461, 1.442695
    %v3611 = vpow.pop %v3610
    %v3612 = vmul.f32 %v3462, 1.442695
    %v3613 = vpow.pop %v3612
    %v3614 = vmul.f32 %v3463, 1.442695
    %v3615 = vpow.pop %v3614
    %v3616 = vmul.f32 %v3464, 1.442695
    %v3617 = vpow.pop %v3616
    %v3618 = vmul.f32 %v3465, 1.442695
    %v3619 = vpow.pop %v3618
    %v3620 = vmul.f32 %v3466, 1.442695
    %v3621 = vpow.pop %v3620
    %v3622 = vmul.f32 %v3467, 1.442695
    %v3623 = vpow.pop %v3622
    %v3624 = vmul.f32 %v3468, 1.442695
    %v3625 = vpow.pop %v3624
    %v3626 = vmul.f32 %v3469, 1.442695
    %v3627 = vpow.pop %v3626
    %v3628 = vmul.f32 %v3470, 1.442695
    %v3629 = vpow.pop %v3628
    %v3630 = vmul.f32 %v3471, 1.442695
    %v3631 = vpow.pop %v3630
    %v3632 = vmul.f32 %v3472, 1.442695
    %v3633 = vpow.pop %v3632
    %v3634 = vmul.f32 %v3473, 1.442695
    %v3635 = vpow.pop %v3634
    %v3636 = vmul.f32 %v3474, 1.442695
    %v3637 = vpow.pop %v3636
    %v3638 = vmul.f32 %v3475, 1.442695
    %v3639 = vpow.pop %v3638
    %v3640 = vmul.f32 %v3476, 1.442695
    %v3641 = vpow.pop %v3640
    %v3642 = vmul.f32 %v3477, 1.442695
    %v3643 = vpow.pop %v3642
    %v3644 = vmul.f32 %v3478, 1.442695
    %v3645 = vpow.pop %v3644
    %v3646 = vmul.f32 %v3479, 1.442695
    %v3647 = vpow.pop %v3646
    %v3648 = vmul.f32 %v3480, 1.442695
    %v3649 = vpow.pop %v3648
    %v3650 = vmul.f32 %v3481, 1.442695
    %v3651 = vpow.pop %v3650
    %v3652 = vmul.f32 %v3482, 1.442695
    %v3653 = vpow.pop %v3652
    %v3654 = vmul.f32 %v3483, 1.442695
    %v3655 = vpow.pop %v3654
    %v3656 = vmul.f32 %v3484, 1.442695
    %v3657 = vpow.pop %v3656
    %v3658 = vmul.f32 %v3485, 1.442695
    %v3659 = vpow.pop %v3658
    %v3660 = vmul.f32 %v3486, 1.442695
    %v3661 = vpow.pop %v3660
    %v3662 = vmul.f32 %v3487, 1.442695
    %v3663 = vpow.pop %v3662
    %v3664 = vmul.f32 %v3488, 1.442695
    %v3665 = vpow.pop %v3664
    %v3666 = vmul.f32 %v3489, 1.442695
    %v3667 = vpow.pop %v3666
    %v3668 = vmul.f32 %v3490, 1.442695
    %v3669 = vpow.pop %v3668
    %v3670 = vmul.f32 %v3491, 1.442695
    %v3671 = vpow.pop %v3670
    %v3672 = vmul.f32 %v3492, 1.442695
    %v3673 = vpow.pop %v3672
    %v3674 = vmul.f32 %v3493, 1.442695
    %v3675 = vpow.pop %v3674
    %v3676 = vmul.f32 %v3494, 1.442695
    %v3677 = vpow.pop %v3676
    %v3678 = vmul.f32 %v3495, 1.442695
    %v3679 = vpow.pop %v3678
    %v3680 = vmul.f32 %v3496, 1.442695
    %v3681 = vpow.pop %v3680
    %v3682 = vmul.f32 %v3497, 1.442695
    %v3683 = vpow.pop %v3682
    %v3684 = vmul.f32 %v3498, 1.442695
    %v3685 = vpow.pop %v3684
    %v3686 = vmul.f32 %v3499, 1.442695
    %v3687 = vpow.pop %v3686
    %v3688 = vmul.f32 %v3500, 1.442695
    %v3689 = vpow.pop %v3688
    %v3690 = vmul.f32 %v3501, 1.442695
    %v3691 = vpow.pop %v3690
    %v3692 = vmul.f32 %v3502, 1.442695
    %v3693 = vpow.pop %v3692
    %v3694 = vmul.f32 %v3503, 1.442695
    %v3695 = vpow.pop %v3694
    %v3696 = vmul.f32 %v3504, 1.442695
    %v3697 = vpow.pop %v3696
    %v3698 = vmul.f32 %v3505, 1.442695
    %v3699 = vpow.pop %v3698
    %v3700 = vmul.f32 %v3506, 1.442695
    %v3701 = vpow.pop %v3700
    %v3702 = vmul.f32 %v3507, 1.442695
    %v3703 = vpow.pop %v3702
    %v3704 = vmul.f32 %v3508, 1.442695
    %v3705 = vpow.pop %v3704
    %v3706 = vmul.f32 %v3509, 1.442695
    %v3707 = vpow.pop %v3706
    %v3708 = vmul.f32 %v3510, 1.442695
    %v3709 = vpow.pop %v3708
    %v3710 = vmul.f32 %v3511, 1.442695
    %v3711 = vpow.pop %v3710
    %v3712 = vmul.f32 %v3512, 1.442695
    %v3713 = vpow.pop %v3712
    %v3714 = vmul.f32 %v3513, 1.442695
    %v3715 = vpow.pop %v3714
    %v3716 = vmul.f32 %v3514, 1.442695
    %v3717 = vpow.pop %v3716
    %v3718 = vmul.f32 %v3515, 1.442695
    %v3719 = vpow.pop %v3718
    %v3720 = vmul.f32 %v3516, 1.442695
    %v3721 = vpow.pop %v3720
    %v3722 = vmul.f32 %v3517, 1.442695
    %v3723 = vpow.pop %v3722
    %v3724 = vmul.f32 %v3518, 1.442695
    %v3725 = vpow.pop %v3724
    %v3726 = vmul.f32 %v3519, 1.442695
    %v3727 = vpow.pop %v3726
    %v3728 = vmul.f32 %v3520, 1.442695
    %v3729 = vpow.pop %v3728
    %v3730 = vmul.f32 %v3521, 1.442695
    %v3731 = vpow.pop %v3730
    %v3732 = vmul.f32 %v3522, 1.442695
    %v3733 = vpow.pop %v3732
    %v3734 = vmul.f32 %v3523, 1.442695
    %v3735 = vpow.pop %v3734
    %v3736 = vmul.f32 %v3524, 1.442695
    %v3737 = vpow.pop %v3736
    %v3738 = vmul.f32 %v3525, 1.442695
    %v3739 = vpow.pop %v3738
    %v3740 = vmul.f32 %v3526, 1.442695
    %v3741 = vpow.pop %v3740
    %v3742 = vmul.f32 %v3527, 1.442695
    %v3743 = vpow.pop %v3742
    %v3744 = vmul.f32 %v3528, 1.442695
    %v3745 = vpow.pop %v3744
    %v3746 = vmul.f32 %v3529, 1.442695
    %v3747 = vpow.pop %v3746
    %v3748 = vmul.f32 %v3530, 1.442695
    %v3749 = vpow.pop %v3748
    %v3750 = vmul.f32 %v3531, 1.442695
    %v3751 = vpow.pop %v3750
    %v3752 = vmul.f32 %v3532, 1.442695
    %v3753 = vpow.pop %v3752
    %v3754 = vmul.f32 %v3533, 1.442695
    %v3755 = vpow.pop %v3754
    %v3756 = vmul.f32 %v3534, 1.442695
    %v3757 = vpow.pop %v3756
    %v3758 = vmul.f32 %v3535, 1.442695
    %v3759 = vpow.pop %v3758
    %v3760 = vmul.f32 %v3536, 1.442695
    %v3761 = vpow.pop %v3760
    %v3762 = vmul.f32 %v3537, 1.442695
    %v3763 = vpow.pop %v3762
    %v3764 = vmul.f32 %v3538, 1.442695
    %v3765 = vpow.pop %v3764
    %v3766 = vmul.f32 %v3539, 1.442695
    %v3767 = vpow.pop %v3766
    %v3768 = vmul.f32 %v3540, 1.442695
    %v3769 = vpow.pop %v3768
    %v3770 = vmul.f32 %v3541, 1.442695
    %v3771 = vpow.pop %v3770
    %v3772 = vmul.f32 %v3542, 1.442695
    %v3773 = vpow.pop %v3772
    %v3774 = vmul.f32 %v3543, 1.442695
    %v3775 = vpow.pop %v3774
    %v3776 = vmul.f32 %v3544, 1.442695
    %v3777 = vpow.pop %v3776
    %v3778 = vmul.f32 %v3545, 1.442695
    %v3779 = vpow.pop %v3778
    %v3780 = vmul.f32 %v3546, 1.442695
    %v3781 = vpow.pop %v3780
    %v3782 = vmul.f32 %v3547, 1.442695
    %v3783 = vpow.pop %v3782
    %v3784 = vmul.f32 %v3548, 1.442695
    %v3785 = vpow.pop %v3784
    %v3786 = vmul.f32 %v3549, 1.442695
    %v3787 = vpow.pop %v3786
    %v3788 = vmul.f32 %v3550, 1.442695
    %v3789 = vpow.pop %v3788
    %v3790 = vmul.f32 %v3551, 1.442695
    %v3791 = vpow.pop %v3790
    %v3792 = vmul.f32 %v3552, 1.442695
    %v3793 = vpow.pop %v3792
    %v3794 = vmul.f32 %v3553, 1.442695
    %v3795 = vpow.pop %v3794
    %v3796 = vmul.f32 %v3554, 1.442695
    %v3797 = vpow.pop %v3796
    %v3798 = vmul.f32 %v3555, 1.442695
    %v3799 = vpow.pop %v3798
    %v3800 = vmul.f32 %v3556, 1.442695
    %v3801 = vpow.pop %v3800
    %v3802 = vmul.f32 %v3557, 1.442695
    %v3803 = vpow.pop %v3802
    %v3804 = vmul.f32 %v3558, 1.442695
    %v3805 = vpow.pop %v3804
    %v3806 = vmul.f32 %v3559, 1.442695
    %v3807 = vpow.pop %v3806
    %v3808 = vmul.f32 %v3560, 1.442695
    %v3809 = vpow.pop %v3808
    %v3810 = vmul.f32 %v3561, 1.442695
    %v3811 = vpow.pop %v3810
    %v3812 = vmul.f32 %v3562, 1.442695
    %v3813 = vpow.pop %v3812
    %v3814 = vmul.f32 %v3563, 1.442695
    %v3815 = vpow.pop %v3814
    %v3816 = vmul.f32 %v3564, 1.442695
    %v3817 = vpow.pop %v3816
    %v3818 = vmul.f32 %v3565, 1.442695
    %v3819 = vpow.pop %v3818
    %v3820 = vmul.f32 %v3566, 1.442695
    %v3821 = vpow.pop %v3820
    %v3822 = vmul.f32 %v3567, 1.442695
    %v3823 = vpow.pop %v3822
    %v3824 = vadd.f32 %v3569, 1.0
    %v3825 = vadd.f32 %v3571, 1.0
    %v3826 = vadd.f32 %v3573, 1.0
    %v3827 = vadd.f32 %v3575, 1.0
    %v3828 = vadd.f32 %v3577, 1.0
    %v3829 = vadd.f32 %v3579, 1.0
    %v3830 = vadd.f32 %v3581, 1.0
    %v3831 = vadd.f32 %v3583, 1.0
    %v3832 = vadd.f32 %v3585, 1.0
    %v3833 = vadd.f32 %v3587, 1.0
    %v3834 = vadd.f32 %v3589, 1.0
    %v3835 = vadd.f32 %v3591, 1.0
    %v3836 = vadd.f32 %v3593, 1.0
    %v3837 = vadd.f32 %v3595, 1.0
    %v3838 = vadd.f32 %v3597, 1.0
    %v3839 = vadd.f32 %v3599, 1.0
    %v3840 = vadd.f32 %v3601, 1.0
    %v3841 = vadd.f32 %v3603, 1.0
    %v3842 = vadd.f32 %v3605, 1.0
    %v3843 = vadd.f32 %v3607, 1.0
    %v3844 = vadd.f32 %v3609, 1.0
    %v3845 = vadd.f32 %v3611, 1.0
    %v3846 = vadd.f32 %v3613, 1.0
    %v3847 = vadd.f32 %v3615, 1.0
    %v3848 = vadd.f32 %v3617, 1.0
    %v3849 = vadd.f32 %v3619, 1.0
    %v3850 = vadd.f32 %v3621, 1.0
    %v3851 = vadd.f32 %v3623, 1.0
    %v3852 = vadd.f32 %v3625, 1.0
    %v3853 = vadd.f32 %v3627, 1.0
    %v3854 = vadd.f32 %v3629, 1.0
    %v3855 = vadd.f32 %v3631, 1.0
    %v3856 = vadd.f32 %v3633, 1.0
    %v3857 = vadd.f32 %v3635, 1.0
    %v3858 = vadd.f32 %v3637, 1.0
    %v3859 = vadd.f32 %v3639, 1.0
    %v3860 = vadd.f32 %v3641, 1.0
    %v3861 = vadd.f32 %v3643, 1.0
    %v3862 = vadd.f32 %v3645, 1.0
    %v3863 = vadd.f32 %v3647, 1.0
    %v3864 = vadd.f32 %v3649, 1.0
    %v3865 = vadd.f32 %v3651, 1.0
    %v3866 = vadd.f32 %v3653, 1.0
    %v3867 = vadd.f32 %v3655, 1.0
    %v3868 = vadd.f32 %v3657, 1.0
    %v3869 = vadd.f32 %v3659, 1.0
    %v3870 = vadd.f32 %v3661, 1.0
    %v3871 = vadd.f32 %v3663, 1.0
    %v3872 = vadd.f32 %v3665, 1.0
    %v3873 = vadd.f32 %v3667, 1.0
    %v3874 = vadd.f32 %v3669, 1.0
    %v3875 = vadd.f32 %v3671, 1.0
    %v3876 = vadd.f32 %v3673, 1.0
    %v3877 = vadd.f32 %v3675, 1.0
    %v3878 = vadd.f32 %v3677, 1.0
    %v3879 = vadd.f32 %v3679, 1.0
    %v3880 = vadd.f32 %v3681, 1.0
    %v3881 = vadd.f32 %v3683, 1.0
    %v3882 = vadd.f32 %v3685, 1.0
    %v3883 = vadd.f32 %v3687, 1.0
    %v3884 = vadd.f32 %v3689, 1.0
    %v3885 = vadd.f32 %v3691, 1.0
    %v3886 = vadd.f32 %v3693, 1.0
    %v3887 = vadd.f32 %v3695, 1.0
    %v3888 = vadd.f32 %v3697, 1.0
    %v3889 = vadd.f32 %v3699, 1.0
    %v3890 = vadd.f32 %v3701, 1.0
    %v3891 = vadd.f32 %v3703, 1.0
    %v3892 = vadd.f32 %v3705, 1.0
    %v3893 = vadd.f32 %v3707, 1.0
    %v3894 = vadd.f32 %v3709, 1.0
    %v3895 = vadd.f32 %v3711, 1.0
    %v3896 = vadd.f32 %v3713, 1.0
    %v3897 = vadd.f32 %v3715, 1.0
    %v3898 = vadd.f32 %v3717, 1.0
    %v3899 = vadd.f32 %v3719, 1.0
    %v3900 = vadd.f32 %v3721, 1.0
    %v3901 = vadd.f32 %v3723, 1.0
    %v3902 = vadd.f32 %v3725, 1.0
    %v3903 = vadd.f32 %v3727, 1.0
    %v3904 = vadd.f32 %v3729, 1.0
    %v3905 = vadd.f32 %v3731, 1.0
    %v3906 = vadd.f32 %v3733, 1.0
    %v3907 = vadd.f32 %v3735, 1.0
    %v3908 = vadd.f32 %v3737, 1.0
    %v3909 = vadd.f32 %v3739, 1.0
    %v3910 = vadd.f32 %v3741, 1.0
    %v3911 = vadd.f32 %v3743, 1.0
    %v3912 = vadd.f32 %v3745, 1.0
    %v3913 = vadd.f32 %v3747, 1.0
    %v3914 = vadd.f32 %v3749, 1.0
    %v3915 = vadd.f32 %v3751, 1.0
    %v3916 = vadd.f32 %v3753, 1.0
    %v3917 = vadd.f32 %v3755, 1.0
    %v3918 = vadd.f32 %v3757, 1.0
    %v3919 = vadd.f32 %v3759, 1.0
    %v3920 = vadd.f32 %v3761, 1.0
    %v3921 = vadd.f32 %v3763, 1.0
    %v3922 = vadd.f32 %v3765, 1.0
    %v3923 = vadd.f32 %v3767, 1.0
    %v3924 = vadd.f32 %v3769, 1.0
    %v3925 = vadd.f32 %v3771, 1.0
    %v3926 = vadd.f32 %v3773, 1.0
    %v3927 = vadd.f32 %v3775, 1.0
    %v3928 = vadd.f32 %v3777, 1.0
    %v3929 = vadd.f32 %v3779, 1.0
    %v3930 = vadd.f32 %v3781, 1.0
    %v3931 = vadd.f32 %v3783, 1.0
    %v3932 = vadd.f32 %v3785, 1.0
    %v3933 = vadd.f32 %v3787, 1.0
    %v3934 = vadd.f32 %v3789, 1.0
    %v3935 = vadd.f32 %v3791, 1.0
    %v3936 = vadd.f32 %v3793, 1.0
    %v3937 = vadd.f32 %v3795, 1.0
    %v3938 = vadd.f32 %v3797, 1.0
    %v3939 = vadd.f32 %v3799, 1.0
    %v3940 = vadd.f32 %v3801, 1.0
    %v3941 = vadd.f32 %v3803, 1.0
    %v3942 = vadd.f32 %v3805, 1.0
    %v3943 = vadd.f32 %v3807, 1.0
    %v3944 = vadd.f32 %v3809, 1.0
    %v3945 = vadd.f32 %v3811, 1.0
    %v3946 = vadd.f32 %v3813, 1.0
    %v3947 = vadd.f32 %v3815, 1.0
    %v3948 = vadd.f32 %v3817, 1.0
    %v3949 = vadd.f32 %v3819, 1.0
    %v3950 = vadd.f32 %v3821, 1.0
    %v3951 = vadd.f32 %v3823, 1.0
    %v3952 = vrcp.pop %v3824
    %v3953 = vmul.f32 1.0, %v3952
    %v3954 = vrcp.pop %v3825
    %v3955 = vmul.f32 1.0, %v3954
    %v3956 = vrcp.pop %v3826
    %v3957 = vmul.f32 1.0, %v3956
    %v3958 = vrcp.pop %v3827
    %v3959 = vmul.f32 1.0, %v3958
    %v3960 = vrcp.pop %v3828
    %v3961 = vmul.f32 1.0, %v3960
    %v3962 = vrcp.pop %v3829
    %v3963 = vmul.f32 1.0, %v3962
    %v3964 = vrcp.pop %v3830
    %v3965 = vmul.f32 1.0, %v3964
    %v3966 = vrcp.pop %v3831
    %v3967 = vmul.f32 1.0, %v3966
    %v3968 = vrcp.pop %v3832
    %v3969 = vmul.f32 1.0, %v3968
    %v3970 = vrcp.pop %v3833
    %v3971 = vmul.f32 1.0, %v3970
    %v3972 = vrcp.pop %v3834
    %v3973 = vmul.f32 1.0, %v3972
    %v3974 = vrcp.pop %v3835
    %v3975 = vmul.f32 1.0, %v3974
    %v3976 = vrcp.pop %v3836
    %v3977 = vmul.f32 1.0, %v3976
    %v3978 = vrcp.pop %v3837
    %v3979 = vmul.f32 1.0, %v3978
    %v3980 = vrcp.pop %v3838
    %v3981 = vmul.f32 1.0, %v3980
    %v3982 = vrcp.pop %v3839
    %v3983 = vmul.f32 1.0, %v3982
    %v3984 = vrcp.pop %v3840
    %v3985 = vmul.f32 1.0, %v3984
    %v3986 = vrcp.pop %v3841
    %v3987 = vmul.f32 1.0, %v3986
    %v3988 = vrcp.pop %v3842
    %v3989 = vmul.f32 1.0, %v3988
    %v3990 = vrcp.pop %v3843
    %v3991 = vmul.f32 1.0, %v3990
    %v3992 = vrcp.pop %v3844
    %v3993 = vmul.f32 1.0, %v3992
    %v3994 = vrcp.pop %v3845
    %v3995 = vmul.f32 1.0, %v3994
    %v3996 = vrcp.pop %v3846
    %v3997 = vmul.f32 1.0, %v3996
    %v3998 = vrcp.pop %v3847
    %v3999 = vmul.f32 1.0, %v3998
    %v4000 = vrcp.pop %v3848
    %v4001 = vmul.f32 1.0, %v4000
    %v4002 = vrcp.pop %v3849
    %v4003 = vmul.f32 1.0, %v4002
    %v4004 = vrcp.pop %v3850
    %v4005 = vmul.f32 1.0, %v4004
    %v4006 = vrcp.pop %v3851
    %v4007 = vmul.f32 1.0, %v4006
    %v4008 = vrcp.pop %v3852
    %v4009 = vmul.f32 1.0, %v4008
    %v4010 = vrcp.pop %v3853
    %v4011 = vmul.f32 1.0, %v4010
    %v4012 = vrcp.pop %v3854
    %v4013 = vmul.f32 1.0, %v4012
    %v4014 = vrcp.pop %v3855
    %v4015 = vmul.f32 1.0, %v4014
    %v4016 = vrcp.pop %v3856
    %v4017 = vmul.f32 1.0, %v4016
    %v4018 = vrcp.pop %v3857
    %v4019 = vmul.f32 1.0, %v4018
    %v4020 = vrcp.pop %v3858
    %v4021 = vmul.f32 1.0, %v4020
    %v4022 = vrcp.pop %v3859
    %v4023 = vmul.f32 1.0, %v4022
    %v4024 = vrcp.pop %v3860
    %v4025 = vmul.f32 1.0, %v4024
    %v4026 = vrcp.pop %v3861
    %v4027 = vmul.f32 1.0, %v4026
    %v4028 = vrcp.pop %v3862
    %v4029 = vmul.f32 1.0, %v4028
    %v4030 = vrcp.pop %v3863
    %v4031 = vmul.f32 1.0, %v4030
    %v4032 = vrcp.pop %v3864
    %v4033 = vmul.f32 1.0, %v4032
    %v4034 = vrcp.pop %v3865
    %v4035 = vmul.f32 1.0, %v4034
    %v4036 = vrcp.pop %v3866
    %v4037 = vmul.f32 1.0, %v4036
    %v4038 = vrcp.pop %v3867
    %v4039 = vmul.f32 1.0, %v4038
    %v4040 = vrcp.pop %v3868
    %v4041 = vmul.f32 1.0, %v4040
    %v4042 = vrcp.pop %v3869
    %v4043 = vmul.f32 1.0, %v4042
    %v4044 = vrcp.pop %v3870
    %v4045 = vmul.f32 1.0, %v4044
    %v4046 = vrcp.pop %v3871
    %v4047 = vmul.f32 1.0, %v4046
    %v4048 = vrcp.pop %v3872
    %v4049 = vmul.f32 1.0, %v4048
    %v4050 = vrcp.pop %v3873
    %v4051 = vmul.f32 1.0, %v4050
    %v4052 = vrcp.pop %v3874
    %v4053 = vmul.f32 1.0, %v4052
    %v4054 = vrcp.pop %v3875
    %v4055 = vmul.f32 1.0, %v4054
    %v4056 = vrcp.pop %v3876
    %v4057 = vmul.f32 1.0, %v4056
    %v4058 = vrcp.pop %v3877
    %v4059 = vmul.f32 1.0, %v4058
    %v4060 = vrcp.pop %v3878
    %v4061 = vmul.f32 1.0, %v4060
    %v4062 = vrcp.pop %v3879
    %v4063 = vmul.f32 1.0, %v4062
    %v4064 = vrcp.pop %v3880
    %v4065 = vmul.f32 1.0, %v4064
    %v4066 = vrcp.pop %v3881
    %v4067 = vmul.f32 1.0, %v4066
    %v4068 = vrcp.pop %v3882
    %v4069 = vmul.f32 1.0, %v4068
    %v4070 = vrcp.pop %v3883
    %v4071 = vmul.f32 1.0, %v4070
    %v4072 = vrcp.pop %v3884
    %v4073 = vmul.f32 1.0, %v4072
    %v4074 = vrcp.pop %v3885
    %v4075 = vmul.f32 1.0, %v4074
    %v4076 = vrcp.pop %v3886
    %v4077 = vmul.f32 1.0, %v4076
    %v4078 = vrcp.pop %v3887
    %v4079 = vmul.f32 1.0, %v4078
    %v4080 = vrcp.pop %v3888
    %v4081 = vmul.f32 1.0, %v4080
    %v4082 = vrcp.pop %v3889
    %v4083 = vmul.f32 1.0, %v4082
    %v4084 = vrcp.pop %v3890
    %v4085 = vmul.f32 1.0, %v4084
    %v4086 = vrcp.pop %v3891
    %v4087 = vmul.f32 1.0, %v4086
    %v4088 = vrcp.pop %v3892
    %v4089 = vmul.f32 1.0, %v4088
    %v4090 = vrcp.pop %v3893
    %v4091 = vmul.f32 1.0, %v4090
    %v4092 = vrcp.pop %v3894
    %v4093 = vmul.f32 1.0, %v4092
    %v4094 = vrcp.pop %v3895
    %v4095 = vmul.f32 1.0, %v4094
    %v4096 = vrcp.pop %v3896
    %v4097 = vmul.f32 1.0, %v4096
    %v4098 = vrcp.pop %v3897
    %v4099 = vmul.f32 1.0, %v4098
    %v4100 = vrcp.pop %v3898
    %v4101 = vmul.f32 1.0, %v4100
    %v4102 = vrcp.pop %v3899
    %v4103 = vmul.f32 1.0, %v4102
    %v4104 = vrcp.pop %v3900
    %v4105 = vmul.f32 1.0, %v4104
    %v4106 = vrcp.pop %v3901
    %v4107 = vmul.f32 1.0, %v4106
    %v4108 = vrcp.pop %v3902
    %v4109 = vmul.f32 1.0, %v4108
    %v4110 = vrcp.pop %v3903
    %v4111 = vmul.f32 1.0, %v4110
    %v4112 = vrcp.pop %v3904
    %v4113 = vmul.f32 1.0, %v4112
    %v4114 = vrcp.pop %v3905
    %v4115 = vmul.f32 1.0, %v4114
    %v4116 = vrcp.pop %v3906
    %v4117 = vmul.f32 1.0, %v4116
    %v4118 = vrcp.pop %v3907
    %v4119 = vmul.f32 1.0, %v4118
    %v4120 = vrcp.pop %v3908
    %v4121 = vmul.f32 1.0, %v4120
    %v4122 = vrcp.pop %v3909
    %v4123 = vmul.f32 1.0, %v4122
    %v4124 = vrcp.pop %v3910
    %v4125 = vmul.f32 1.0, %v4124
    %v4126 = vrcp.pop %v3911
    %v4127 = vmul.f32 1.0, %v4126
    %v4128 = vrcp.pop %v3912
    %v4129 = vmul.f32 1.0, %v4128
    %v4130 = vrcp.pop %v3913
    %v4131 = vmul.f32 1.0, %v4130
    %v4132 = vrcp.pop %v3914
    %v4133 = vmul.f32 1.0, %v4132
    %v4134 = vrcp.pop %v3915
    %v4135 = vmul.f32 1.0, %v4134
    %v4136 = vrcp.pop %v3916
    %v4137 = vmul.f32 1.0, %v4136
    %v4138 = vrcp.pop %v3917
    %v4139 = vmul.f32 1.0, %v4138
    %v4140 = vrcp.pop %v3918
    %v4141 = vmul.f32 1.0, %v4140
    %v4142 = vrcp.pop %v3919
    %v4143 = vmul.f32 1.0, %v4142
    %v4144 = vrcp.pop %v3920
    %v4145 = vmul.f32 1.0, %v4144
    %v4146 = vrcp.pop %v3921
    %v4147 = vmul.f32 1.0, %v4146
    %v4148 = vrcp.pop %v3922
    %v4149 = vmul.f32 1.0, %v4148
    %v4150 = vrcp.pop %v3923
    %v4151 = vmul.f32 1.0, %v4150
    %v4152 = vrcp.pop %v3924
    %v4153 = vmul.f32 1.0, %v4152
    %v4154 = vrcp.pop %v3925
    %v4155 = vmul.f32 1.0, %v4154
    %v4156 = vrcp.pop %v3926
    %v4157 = vmul.f32 1.0, %v4156
    %v4158 = vrcp.pop %v3927
    %v4159 = vmul.f32 1.0, %v4158
    %v4160 = vrcp.pop %v3928
    %v4161 = vmul.f32 1.0, %v4160
    %v4162 = vrcp.pop %v3929
    %v4163 = vmul.f32 1.0, %v4162
    %v4164 = vrcp.pop %v3930
    %v4165 = vmul.f32 1.0, %v4164
    %v4166 = vrcp.pop %v3931
    %v4167 = vmul.f32 1.0, %v4166
    %v4168 = vrcp.pop %v3932
    %v4169 = vmul.f32 1.0, %v4168
    %v4170 = vrcp.pop %v3933
    %v4171 = vmul.f32 1.0, %v4170
    %v4172 = vrcp.pop %v3934
    %v4173 = vmul.f32 1.0, %v4172
    %v4174 = vrcp.pop %v3935
    %v4175 = vmul.f32 1.0, %v4174
    %v4176 = vrcp.pop %v3936
    %v4177 = vmul.f32 1.0, %v4176
    %v4178 = vrcp.pop %v3937
    %v4179 = vmul.f32 1.0, %v4178
    %v4180 = vrcp.pop %v3938
    %v4181 = vmul.f32 1.0, %v4180
    %v4182 = vrcp.pop %v3939
    %v4183 = vmul.f32 1.0, %v4182
    %v4184 = vrcp.pop %v3940
    %v4185 = vmul.f32 1.0, %v4184
    %v4186 = vrcp.pop %v3941
    %v4187 = vmul.f32 1.0, %v4186
    %v4188 = vrcp.pop %v3942
    %v4189 = vmul.f32 1.0, %v4188
    %v4190 = vrcp.pop %v3943
    %v4191 = vmul.f32 1.0, %v4190
    %v4192 = vrcp.pop %v3944
    %v4193 = vmul.f32 1.0, %v4192
    %v4194 = vrcp.pop %v3945
    %v4195 = vmul.f32 1.0, %v4194
    %v4196 = vrcp.pop %v3946
    %v4197 = vmul.f32 1.0, %v4196
    %v4198 = vrcp.pop %v3947
    %v4199 = vmul.f32 1.0, %v4198
    %v4200 = vrcp.pop %v3948
    %v4201 = vmul.f32 1.0, %v4200
    %v4202 = vrcp.pop %v3949
    %v4203 = vmul.f32 1.0, %v4202
    %v4204 = vrcp.pop %v3950
    %v4205 = vmul.f32 1.0, %v4204
    %v4206 = vrcp.pop %v3951
    %v4207 = vmul.f32 1.0, %v4206
    %v4336 = vlaneseq
    %v4337 = vand.u32 %v4336, 127
    %v4338 = vlaneseq
    %v4339 = vshrl.u32 %v4338, 7
    %v4340 = vsub.s32 %v4337, %v4339
    %v4341 = vrot.slane %v3953, %v4340
    %v4342 = vadd.s32 %v4337, 4294967288
    %v4343 = vlaneseq
    %v4344 = vshrl.u32 %v4343, 7
    %v4345 = vsub.s32 %v4342, %v4344
    %v4346 = vrot.slane %v3955, %v4345
    %vm4347 = vcmask 130112
    %v4348 = vsel %vm4347, %v4346, %v4341
    %v4349 = vadd.s32 %v4337, 4294967280
    %v4350 = vlaneseq
    %v4351 = vshrl.u32 %v4350, 7
    %v4352 = vsub.s32 %v4349, %v4351
    %v4353 = vrot.slane %v3957, %v4352
    %vm4354 = vcmask 195712
    %v4355 = vsel %vm4354, %v4353, %v4348
    %v4356 = vadd.s32 %v4337, 4294967272
    %v4357 = vlaneseq
    %v4358 = vshrl.u32 %v4357, 7
    %v4359 = vsub.s32 %v4356, %v4358
    %v4360 = vrot.slane %v3959, %v4359
    %vm4361 = vcmask 261312
    %v4362 = vsel %vm4361, %v4360, %v4355
    %v4363 = vadd.s32 %v4337, 4294967264
    %v4364 = vlaneseq
    %v4365 = vshrl.u32 %v4364, 7
    %v4366 = vsub.s32 %v4363, %v4365
    %v4367 = vrot.slane %v3961, %v4366
    %vm4368 = vcmask 326912
    %v4369 = vsel %vm4368, %v4367, %v4362
    %v4370 = vadd.s32 %v4337, 4294967256
    %v4371 = vlaneseq
    %v4372 = vshrl.u32 %v4371, 7
    %v4373 = vsub.s32 %v4370, %v4372
    %v4374 = vrot.slane %v3963, %v4373
    %vm4375 = vcmask 392512
    %v4376 = vsel %vm4375, %v4374, %v4369
    %v4377 = vadd.s32 %v4337, 4294967248
    %v4378 = vlaneseq
    %v4379 = vshrl.u32 %v4378, 7
    %v4380 = vsub.s32 %v4377, %v4379
    %v4381 = vrot.slane %v3965, %v4380
    %vm4382 = vcmask 458112
    %v4383 = vsel %vm4382, %v4381, %v4376
    %v4384 = vadd.s32 %v4337, 4294967240
    %v4385 = vlaneseq
    %v4386 = vshrl.u32 %v4385, 7
    %v4387 = vsub.s32 %v4384, %v4386
    %v4388 = vrot.slane %v3967, %v4387
    %vm4389 = vcmask 523712
    %v4390 = vsel %vm4389, %v4388, %v4383
    %v4391 = vadd.s32 %v4337, 4294967232
    %v4392 = vlaneseq
    %v4393 = vshrl.u32 %v4392, 7
    %v4394 = vsub.s32 %v4391, %v4393
    %v4395 = vrot.slane %v3969, %v4394
    %vm4396 = vcmask 589312
    %v4397 = vsel %vm4396, %v4395, %v4390
    %v4398 = vadd.s32 %v4337, 4294967224
    %v4399 = vlaneseq
    %v4400 = vshrl.u32 %v4399, 7
    %v4401 = vsub.s32 %v4398, %v4400
    %v4402 = vrot.slane %v3971, %v4401
    %vm4403 = vcmask 654912
    %v4404 = vsel %vm4403, %v4402, %v4397
    %v4405 = vadd.s32 %v4337, 4294967216
    %v4406 = vlaneseq
    %v4407 = vshrl.u32 %v4406, 7
    %v4408 = vsub.s32 %v4405, %v4407
    %v4409 = vrot.slane %v3973, %v4408
    %vm4410 = vcmask 720512
    %v4411 = vsel %vm4410, %v4409, %v4404
    %v4412 = vadd.s32 %v4337, 4294967208
    %v4413 = vlaneseq
    %v4414 = vshrl.u32 %v4413, 7
    %v4415 = vsub.s32 %v4412, %v4414
    %v4416 = vrot.slane %v3975, %v4415
    %vm4417 = vcmask 786112
    %v4418 = vsel %vm4417, %v4416, %v4411
    %v4419 = vadd.s32 %v4337, 4294967200
    %v4420 = vlaneseq
    %v4421 = vshrl.u32 %v4420, 7
    %v4422 = vsub.s32 %v4419, %v4421
    %v4423 = vrot.slane %v3977, %v4422
    %vm4424 = vcmask 851712
    %v4425 = vsel %vm4424, %v4423, %v4418
    %v4426 = vadd.s32 %v4337, 4294967192
    %v4427 = vlaneseq
    %v4428 = vshrl.u32 %v4427, 7
    %v4429 = vsub.s32 %v4426, %v4428
    %v4430 = vrot.slane %v3979, %v4429
    %vm4431 = vcmask 917312
    %v4432 = vsel %vm4431, %v4430, %v4425
    %v4433 = vadd.s32 %v4337, 4294967184
    %v4434 = vlaneseq
    %v4435 = vshrl.u32 %v4434, 7
    %v4436 = vsub.s32 %v4433, %v4435
    %v4437 = vrot.slane %v3981, %v4436
    %vm4438 = vcmask 982912
    %v4439 = vsel %vm4438, %v4437, %v4432
    %v4440 = vadd.s32 %v4337, 4294967176
    %v4441 = vlaneseq
    %v4442 = vshrl.u32 %v4441, 7
    %v4443 = vsub.s32 %v4440, %v4442
    %v4444 = vrot.slane %v3983, %v4443
    %vm4445 = vcmask 1048512
    %v4446 = vsel %vm4445, %v4444, %v4439
    %v4447 = vlaneseq
    %v4448 = vshrl.u32 %v4447, 7
    %v4449 = vsub.s32 %v4337, %v4448
    %v4450 = vrot.slane %v3985, %v4449
    %v4451 = vlaneseq
    %v4452 = vshrl.u32 %v4451, 7
    %v4453 = vsub.s32 %v4342, %v4452
    %v4454 = vrot.slane %v3987, %v4453
    %v4455 = vsel %vm4347, %v4454, %v4450
    %v4456 = vlaneseq
    %v4457 = vshrl.u32 %v4456, 7
    %v4458 = vsub.s32 %v4349, %v4457
    %v4459 = vrot.slane %v3989, %v4458
    %v4460 = vsel %vm4354, %v4459, %v4455
    %v4461 = vlaneseq
    %v4462 = vshrl.u32 %v4461, 7
    %v4463 = vsub.s32 %v4356, %v4462
    %v4464 = vrot.slane %v3991, %v4463
    %v4465 = vsel %vm4361, %v4464, %v4460
    %v4466 = vlaneseq
    %v4467 = vshrl.u32 %v4466, 7
    %v4468 = vsub.s32 %v4363, %v4467
    %v4469 = vrot.slane %v3993, %v4468
    %v4470 = vsel %vm4368, %v4469, %v4465
    %v4471 = vlaneseq
    %v4472 = vshrl.u32 %v4471, 7
    %v4473 = vsub.s32 %v4370, %v4472
    %v4474 = vrot.slane %v3995, %v4473
    %v4475 = vsel %vm4375, %v4474, %v4470
    %v4476 = vlaneseq
    %v4477 = vshrl.u32 %v4476, 7
    %v4478 = vsub.s32 %v4377, %v4477
    %v4479 = vrot.slane %v3997, %v4478
    %v4480 = vsel %vm4382, %v4479, %v4475
    %v4481 = vlaneseq
    %v4482 = vshrl.u32 %v4481, 7
    %v4483 = vsub.s32 %v4384, %v4482
    %v4484 = vrot.slane %v3999, %v4483
    %v4485 = vsel %vm4389, %v4484, %v4480
    %v4486 = vlaneseq
    %v4487 = vshrl.u32 %v4486, 7
    %v4488 = vsub.s32 %v4391, %v4487
    %v4489 = vrot.slane %v4001, %v4488
    %v4490 = vsel %vm4396, %v4489, %v4485
    %v4491 = vlaneseq
    %v4492 = vshrl.u32 %v4491, 7
    %v4493 = vsub.s32 %v4398, %v4492
    %v4494 = vrot.slane %v4003, %v4493
    %v4495 = vsel %vm4403, %v4494, %v4490
    %v4496 = vlaneseq
    %v4497 = vshrl.u32 %v4496, 7
    %v4498 = vsub.s32 %v4405, %v4497
    %v4499 = vrot.slane %v4005, %v4498
    %v4500 = vsel %vm4410, %v4499, %v4495
    %v4501 = vlaneseq
    %v4502 = vshrl.u32 %v4501, 7
    %v4503 = vsub.s32 %v4412, %v4502
    %v4504 = vrot.slane %v4007, %v4503
    %v4505 = vsel %vm4417, %v4504, %v4500
    %v4506 = vlaneseq
    %v4507 = vshrl.u32 %v4506, 7
    %v4508 = vsub.s32 %v4419, %v4507
    %v4509 = vrot.slane %v4009, %v4508
    %v4510 = vsel %vm4424, %v4509, %v4505
    %v4511 = vlaneseq
    %v4512 = vshrl.u32 %v4511, 7
    %v4513 = vsub.s32 %v4426, %v4512
    %v4514 = vrot.slane %v4011, %v4513
    %v4515 = vsel %vm4431, %v4514, %v4510
    %v4516 = vlaneseq
    %v4517 = vshrl.u32 %v4516, 7
    %v4518 = vsub.s32 %v4433, %v4517
    %v4519 = vrot.slane %v4013, %v4518
    %v4520 = vsel %vm4438, %v4519, %v4515
    %v4521 = vlaneseq
    %v4522 = vshrl.u32 %v4521, 7
    %v4523 = vsub.s32 %v4440, %v4522
    %v4524 = vrot.slane %v4015, %v4523
    %v4525 = vsel %vm4445, %v4524, %v4520
    %v4526 = vlaneseq
    %v4527 = vshrl.u32 %v4526, 7
    %v4528 = vsub.s32 %v4337, %v4527
    %v4529 = vrot.slane %v4017, %v4528
    %v4530 = vlaneseq
    %v4531 = vshrl.u32 %v4530, 7
    %v4532 = vsub.s32 %v4342, %v4531
    %v4533 = vrot.slane %v4019, %v4532
    %v4534 = vsel %vm4347, %v4533, %v4529
    %v4535 = vlaneseq
    %v4536 = vshrl.u32 %v4535, 7
    %v4537 = vsub.s32 %v4349, %v4536
    %v4538 = vrot.slane %v4021, %v4537
    %v4539 = vsel %vm4354, %v4538, %v4534
    %v4540 = vlaneseq
    %v4541 = vshrl.u32 %v4540, 7
    %v4542 = vsub.s32 %v4356, %v4541
    %v4543 = vrot.slane %v4023, %v4542
    %v4544 = vsel %vm4361, %v4543, %v4539
    %v4545 = vlaneseq
    %v4546 = vshrl.u32 %v4545, 7
    %v4547 = vsub.s32 %v4363, %v4546
    %v4548 = vrot.slane %v4025, %v4547
    %v4549 = vsel %vm4368, %v4548, %v4544
    %v4550 = vlaneseq
    %v4551 = vshrl.u32 %v4550, 7
    %v4552 = vsub.s32 %v4370, %v4551
    %v4553 = vrot.slane %v4027, %v4552
    %v4554 = vsel %vm4375, %v4553, %v4549
    %v4555 = vlaneseq
    %v4556 = vshrl.u32 %v4555, 7
    %v4557 = vsub.s32 %v4377, %v4556
    %v4558 = vrot.slane %v4029, %v4557
    %v4559 = vsel %vm4382, %v4558, %v4554
    %v4560 = vlaneseq
    %v4561 = vshrl.u32 %v4560, 7
    %v4562 = vsub.s32 %v4384, %v4561
    %v4563 = vrot.slane %v4031, %v4562
    %v4564 = vsel %vm4389, %v4563, %v4559
    %v4565 = vlaneseq
    %v4566 = vshrl.u32 %v4565, 7
    %v4567 = vsub.s32 %v4391, %v4566
    %v4568 = vrot.slane %v4033, %v4567
    %v4569 = vsel %vm4396, %v4568, %v4564
    %v4570 = vlaneseq
    %v4571 = vshrl.u32 %v4570, 7
    %v4572 = vsub.s32 %v4398, %v4571
    %v4573 = vrot.slane %v4035, %v4572
    %v4574 = vsel %vm4403, %v4573, %v4569
    %v4575 = vlaneseq
    %v4576 = vshrl.u32 %v4575, 7
    %v4577 = vsub.s32 %v4405, %v4576
    %v4578 = vrot.slane %v4037, %v4577
    %v4579 = vsel %vm4410, %v4578, %v4574
    %v4580 = vlaneseq
    %v4581 = vshrl.u32 %v4580, 7
    %v4582 = vsub.s32 %v4412, %v4581
    %v4583 = vrot.slane %v4039, %v4582
    %v4584 = vsel %vm4417, %v4583, %v4579
    %v4585 = vlaneseq
    %v4586 = vshrl.u32 %v4585, 7
    %v4587 = vsub.s32 %v4419, %v4586
    %v4588 = vrot.slane %v4041, %v4587
    %v4589 = vsel %vm4424, %v4588, %v4584
    %v4590 = vlaneseq
    %v4591 = vshrl.u32 %v4590, 7
    %v4592 = vsub.s32 %v4426, %v4591
    %v4593 = vrot.slane %v4043, %v4592
    %v4594 = vsel %vm4431, %v4593, %v4589
    %v4595 = vlaneseq
    %v4596 = vshrl.u32 %v4595, 7
    %v4597 = vsub.s32 %v4433, %v4596
    %v4598 = vrot.slane %v4045, %v4597
    %v4599 = vsel %vm4438, %v4598, %v4594
    %v4600 = vlaneseq
    %v4601 = vshrl.u32 %v4600, 7
    %v4602 = vsub.s32 %v4440, %v4601
    %v4603 = vrot.slane %v4047, %v4602
    %v4604 = vsel %vm4445, %v4603, %v4599
    %v4605 = vlaneseq
    %v4606 = vshrl.u32 %v4605, 7
    %v4607 = vsub.s32 %v4337, %v4606
    %v4608 = vrot.slane %v4049, %v4607
    %v4609 = vlaneseq
    %v4610 = vshrl.u32 %v4609, 7
    %v4611 = vsub.s32 %v4342, %v4610
    %v4612 = vrot.slane %v4051, %v4611
    %v4613 = vsel %vm4347, %v4612, %v4608
    %v4614 = vlaneseq
    %v4615 = vshrl.u32 %v4614, 7
    %v4616 = vsub.s32 %v4349, %v4615
    %v4617 = vrot.slane %v4053, %v4616
    %v4618 = vsel %vm4354, %v4617, %v4613
    %v4619 = vlaneseq
    %v4620 = vshrl.u32 %v4619, 7
    %v4621 = vsub.s32 %v4356, %v4620
    %v4622 = vrot.slane %v4055, %v4621
    %v4623 = vsel %vm4361, %v4622, %v4618
    %v4624 = vlaneseq
    %v4625 = vshrl.u32 %v4624, 7
    %v4626 = vsub.s32 %v4363, %v4625
    %v4627 = vrot.slane %v4057, %v4626
    %v4628 = vsel %vm4368, %v4627, %v4623
    %v4629 = vlaneseq
    %v4630 = vshrl.u32 %v4629, 7
    %v4631 = vsub.s32 %v4370, %v4630
    %v4632 = vrot.slane %v4059, %v4631
    %v4633 = vsel %vm4375, %v4632, %v4628
    %v4634 = vlaneseq
    %v4635 = vshrl.u32 %v4634, 7
    %v4636 = vsub.s32 %v4377, %v4635
    %v4637 = vrot.slane %v4061, %v4636
    %v4638 = vsel %vm4382, %v4637, %v4633
    %v4639 = vlaneseq
    %v4640 = vshrl.u32 %v4639, 7
    %v4641 = vsub.s32 %v4384, %v4640
    %v4642 = vrot.slane %v4063, %v4641
    %v4643 = vsel %vm4389, %v4642, %v4638
    %v4644 = vlaneseq
    %v4645 = vshrl.u32 %v4644, 7
    %v4646 = vsub.s32 %v4391, %v4645
    %v4647 = vrot.slane %v4065, %v4646
    %v4648 = vsel %vm4396, %v4647, %v4643
    %v4649 = vlaneseq
    %v4650 = vshrl.u32 %v4649, 7
    %v4651 = vsub.s32 %v4398, %v4650
    %v4652 = vrot.slane %v4067, %v4651
    %v4653 = vsel %vm4403, %v4652, %v4648
    %v4654 = vlaneseq
    %v4655 = vshrl.u32 %v4654, 7
    %v4656 = vsub.s32 %v4405, %v4655
    %v4657 = vrot.slane %v4069, %v4656
    %v4658 = vsel %vm4410, %v4657, %v4653
    %v4659 = vlaneseq
    %v4660 = vshrl.u32 %v4659, 7
    %v4661 = vsub.s32 %v4412, %v4660
    %v4662 = vrot.slane %v4071, %v4661
    %v4663 = vsel %vm4417, %v4662, %v4658
    %v4664 = vlaneseq
    %v4665 = vshrl.u32 %v4664, 7
    %v4666 = vsub.s32 %v4419, %v4665
    %v4667 = vrot.slane %v4073, %v4666
    %v4668 = vsel %vm4424, %v4667, %v4663
    %v4669 = vlaneseq
    %v4670 = vshrl.u32 %v4669, 7
    %v4671 = vsub.s32 %v4426, %v4670
    %v4672 = vrot.slane %v4075, %v4671
    %v4673 = vsel %vm4431, %v4672, %v4668
    %v4674 = vlaneseq
    %v4675 = vshrl.u32 %v4674, 7
    %v4676 = vsub.s32 %v4433, %v4675
    %v4677 = vrot.slane %v4077, %v4676
    %v4678 = vsel %vm4438, %v4677, %v4673
    %v4679 = vlaneseq
    %v4680 = vshrl.u32 %v4679, 7
    %v4681 = vsub.s32 %v4440, %v4680
    %v4682 = vrot.slane %v4079, %v4681
    %v4683 = vsel %vm4445, %v4682, %v4678
    %v4684 = vlaneseq
    %v4685 = vshrl.u32 %v4684, 7
    %v4686 = vsub.s32 %v4337, %v4685
    %v4687 = vrot.slane %v4081, %v4686
    %v4688 = vlaneseq
    %v4689 = vshrl.u32 %v4688, 7
    %v4690 = vsub.s32 %v4342, %v4689
    %v4691 = vrot.slane %v4083, %v4690
    %v4692 = vsel %vm4347, %v4691, %v4687
    %v4693 = vlaneseq
    %v4694 = vshrl.u32 %v4693, 7
    %v4695 = vsub.s32 %v4349, %v4694
    %v4696 = vrot.slane %v4085, %v4695
    %v4697 = vsel %vm4354, %v4696, %v4692
    %v4698 = vlaneseq
    %v4699 = vshrl.u32 %v4698, 7
    %v4700 = vsub.s32 %v4356, %v4699
    %v4701 = vrot.slane %v4087, %v4700
    %v4702 = vsel %vm4361, %v4701, %v4697
    %v4703 = vlaneseq
    %v4704 = vshrl.u32 %v4703, 7
    %v4705 = vsub.s32 %v4363, %v4704
    %v4706 = vrot.slane %v4089, %v4705
    %v4707 = vsel %vm4368, %v4706, %v4702
    %v4708 = vlaneseq
    %v4709 = vshrl.u32 %v4708, 7
    %v4710 = vsub.s32 %v4370, %v4709
    %v4711 = vrot.slane %v4091, %v4710
    %v4712 = vsel %vm4375, %v4711, %v4707
    %v4713 = vlaneseq
    %v4714 = vshrl.u32 %v4713, 7
    %v4715 = vsub.s32 %v4377, %v4714
    %v4716 = vrot.slane %v4093, %v4715
    %v4717 = vsel %vm4382, %v4716, %v4712
    %v4718 = vlaneseq
    %v4719 = vshrl.u32 %v4718, 7
    %v4720 = vsub.s32 %v4384, %v4719
    %v4721 = vrot.slane %v4095, %v4720
    %v4722 = vsel %vm4389, %v4721, %v4717
    %v4723 = vlaneseq
    %v4724 = vshrl.u32 %v4723, 7
    %v4725 = vsub.s32 %v4391, %v4724
    %v4726 = vrot.slane %v4097, %v4725
    %v4727 = vsel %vm4396, %v4726, %v4722
    %v4728 = vlaneseq
    %v4729 = vshrl.u32 %v4728, 7
    %v4730 = vsub.s32 %v4398, %v4729
    %v4731 = vrot.slane %v4099, %v4730
    %v4732 = vsel %vm4403, %v4731, %v4727
    %v4733 = vlaneseq
    %v4734 = vshrl.u32 %v4733, 7
    %v4735 = vsub.s32 %v4405, %v4734
    %v4736 = vrot.slane %v4101, %v4735
    %v4737 = vsel %vm4410, %v4736, %v4732
    %v4738 = vlaneseq
    %v4739 = vshrl.u32 %v4738, 7
    %v4740 = vsub.s32 %v4412, %v4739
    %v4741 = vrot.slane %v4103, %v4740
    %v4742 = vsel %vm4417, %v4741, %v4737
    %v4743 = vlaneseq
    %v4744 = vshrl.u32 %v4743, 7
    %v4745 = vsub.s32 %v4419, %v4744
    %v4746 = vrot.slane %v4105, %v4745
    %v4747 = vsel %vm4424, %v4746, %v4742
    %v4748 = vlaneseq
    %v4749 = vshrl.u32 %v4748, 7
    %v4750 = vsub.s32 %v4426, %v4749
    %v4751 = vrot.slane %v4107, %v4750
    %v4752 = vsel %vm4431, %v4751, %v4747
    %v4753 = vlaneseq
    %v4754 = vshrl.u32 %v4753, 7
    %v4755 = vsub.s32 %v4433, %v4754
    %v4756 = vrot.slane %v4109, %v4755
    %v4757 = vsel %vm4438, %v4756, %v4752
    %v4758 = vlaneseq
    %v4759 = vshrl.u32 %v4758, 7
    %v4760 = vsub.s32 %v4440, %v4759
    %v4761 = vrot.slane %v4111, %v4760
    %v4762 = vsel %vm4445, %v4761, %v4757
    %v4763 = vlaneseq
    %v4764 = vshrl.u32 %v4763, 7
    %v4765 = vsub.s32 %v4337, %v4764
    %v4766 = vrot.slane %v4113, %v4765
    %v4767 = vlaneseq
    %v4768 = vshrl.u32 %v4767, 7
    %v4769 = vsub.s32 %v4342, %v4768
    %v4770 = vrot.slane %v4115, %v4769
    %v4771 = vsel %vm4347, %v4770, %v4766
    %v4772 = vlaneseq
    %v4773 = vshrl.u32 %v4772, 7
    %v4774 = vsub.s32 %v4349, %v4773
    %v4775 = vrot.slane %v4117, %v4774
    %v4776 = vsel %vm4354, %v4775, %v4771
    %v4777 = vlaneseq
    %v4778 = vshrl.u32 %v4777, 7
    %v4779 = vsub.s32 %v4356, %v4778
    %v4780 = vrot.slane %v4119, %v4779
    %v4781 = vsel %vm4361, %v4780, %v4776
    %v4782 = vlaneseq
    %v4783 = vshrl.u32 %v4782, 7
    %v4784 = vsub.s32 %v4363, %v4783
    %v4785 = vrot.slane %v4121, %v4784
    %v4786 = vsel %vm4368, %v4785, %v4781
    %v4787 = vlaneseq
    %v4788 = vshrl.u32 %v4787, 7
    %v4789 = vsub.s32 %v4370, %v4788
    %v4790 = vrot.slane %v4123, %v4789
    %v4791 = vsel %vm4375, %v4790, %v4786
    %v4792 = vlaneseq
    %v4793 = vshrl.u32 %v4792, 7
    %v4794 = vsub.s32 %v4377, %v4793
    %v4795 = vrot.slane %v4125, %v4794
    %v4796 = vsel %vm4382, %v4795, %v4791
    %v4797 = vlaneseq
    %v4798 = vshrl.u32 %v4797, 7
    %v4799 = vsub.s32 %v4384, %v4798
    %v4800 = vrot.slane %v4127, %v4799
    %v4801 = vsel %vm4389, %v4800, %v4796
    %v4802 = vlaneseq
    %v4803 = vshrl.u32 %v4802, 7
    %v4804 = vsub.s32 %v4391, %v4803
    %v4805 = vrot.slane %v4129, %v4804
    %v4806 = vsel %vm4396, %v4805, %v4801
    %v4807 = vlaneseq
    %v4808 = vshrl.u32 %v4807, 7
    %v4809 = vsub.s32 %v4398, %v4808
    %v4810 = vrot.slane %v4131, %v4809
    %v4811 = vsel %vm4403, %v4810, %v4806
    %v4812 = vlaneseq
    %v4813 = vshrl.u32 %v4812, 7
    %v4814 = vsub.s32 %v4405, %v4813
    %v4815 = vrot.slane %v4133, %v4814
    %v4816 = vsel %vm4410, %v4815, %v4811
    %v4817 = vlaneseq
    %v4818 = vshrl.u32 %v4817, 7
    %v4819 = vsub.s32 %v4412, %v4818
    %v4820 = vrot.slane %v4135, %v4819
    %v4821 = vsel %vm4417, %v4820, %v4816
    %v4822 = vlaneseq
    %v4823 = vshrl.u32 %v4822, 7
    %v4824 = vsub.s32 %v4419, %v4823
    %v4825 = vrot.slane %v4137, %v4824
    %v4826 = vsel %vm4424, %v4825, %v4821
    %v4827 = vlaneseq
    %v4828 = vshrl.u32 %v4827, 7
    %v4829 = vsub.s32 %v4426, %v4828
    %v4830 = vrot.slane %v4139, %v4829
    %v4831 = vsel %vm4431, %v4830, %v4826
    %v4832 = vlaneseq
    %v4833 = vshrl.u32 %v4832, 7
    %v4834 = vsub.s32 %v4433, %v4833
    %v4835 = vrot.slane %v4141, %v4834
    %v4836 = vsel %vm4438, %v4835, %v4831
    %v4837 = vlaneseq
    %v4838 = vshrl.u32 %v4837, 7
    %v4839 = vsub.s32 %v4440, %v4838
    %v4840 = vrot.slane %v4143, %v4839
    %v4841 = vsel %vm4445, %v4840, %v4836
    %v4842 = vlaneseq
    %v4843 = vshrl.u32 %v4842, 7
    %v4844 = vsub.s32 %v4337, %v4843
    %v4845 = vrot.slane %v4145, %v4844
    %v4846 = vlaneseq
    %v4847 = vshrl.u32 %v4846, 7
    %v4848 = vsub.s32 %v4342, %v4847
    %v4849 = vrot.slane %v4147, %v4848
    %v4850 = vsel %vm4347, %v4849, %v4845
    %v4851 = vlaneseq
    %v4852 = vshrl.u32 %v4851, 7
    %v4853 = vsub.s32 %v4349, %v4852
    %v4854 = vrot.slane %v4149, %v4853
    %v4855 = vsel %vm4354, %v4854, %v4850
    %v4856 = vlaneseq
    %v4857 = vshrl.u32 %v4856, 7
    %v4858 = vsub.s32 %v4356, %v4857
    %v4859 = vrot.slane %v4151, %v4858
    %v4860 = vsel %vm4361, %v4859, %v4855
    %v4861 = vlaneseq
    %v4862 = vshrl.u32 %v4861, 7
    %v4863 = vsub.s32 %v4363, %v4862
    %v4864 = vrot.slane %v4153, %v4863
    %v4865 = vsel %vm4368, %v4864, %v4860
    %v4866 = vlaneseq
    %v4867 = vshrl.u32 %v4866, 7
    %v4868 = vsub.s32 %v4370, %v4867
    %v4869 = vrot.slane %v4155, %v4868
    %v4870 = vsel %vm4375, %v4869, %v4865
    %v4871 = vlaneseq
    %v4872 = vshrl.u32 %v4871, 7
    %v4873 = vsub.s32 %v4377, %v4872
    %v4874 = vrot.slane %v4157, %v4873
    %v4875 = vsel %vm4382, %v4874, %v4870
    %v4876 = vlaneseq
    %v4877 = vshrl.u32 %v4876, 7
    %v4878 = vsub.s32 %v4384, %v4877
    %v4879 = vrot.slane %v4159, %v4878
    %v4880 = vsel %vm4389, %v4879, %v4875
    %v4881 = vlaneseq
    %v4882 = vshrl.u32 %v4881, 7
    %v4883 = vsub.s32 %v4391, %v4882
    %v4884 = vrot.slane %v4161, %v4883
    %v4885 = vsel %vm4396, %v4884, %v4880
    %v4886 = vlaneseq
    %v4887 = vshrl.u32 %v4886, 7
    %v4888 = vsub.s32 %v4398, %v4887
    %v4889 = vrot.slane %v4163, %v4888
    %v4890 = vsel %vm4403, %v4889, %v4885
    %v4891 = vlaneseq
    %v4892 = vshrl.u32 %v4891, 7
    %v4893 = vsub.s32 %v4405, %v4892
    %v4894 = vrot.slane %v4165, %v4893
    %v4895 = vsel %vm4410, %v4894, %v4890
    %v4896 = vlaneseq
    %v4897 = vshrl.u32 %v4896, 7
    %v4898 = vsub.s32 %v4412, %v4897
    %v4899 = vrot.slane %v4167, %v4898
    %v4900 = vsel %vm4417, %v4899, %v4895
    %v4901 = vlaneseq
    %v4902 = vshrl.u32 %v4901, 7
    %v4903 = vsub.s32 %v4419, %v4902
    %v4904 = vrot.slane %v4169, %v4903
    %v4905 = vsel %vm4424, %v4904, %v4900
    %v4906 = vlaneseq
    %v4907 = vshrl.u32 %v4906, 7
    %v4908 = vsub.s32 %v4426, %v4907
    %v4909 = vrot.slane %v4171, %v4908
    %v4910 = vsel %vm4431, %v4909, %v4905
    %v4911 = vlaneseq
    %v4912 = vshrl.u32 %v4911, 7
    %v4913 = vsub.s32 %v4433, %v4912
    %v4914 = vrot.slane %v4173, %v4913
    %v4915 = vsel %vm4438, %v4914, %v4910
    %v4916 = vlaneseq
    %v4917 = vshrl.u32 %v4916, 7
    %v4918 = vsub.s32 %v4440, %v4917
    %v4919 = vrot.slane %v4175, %v4918
    %v4920 = vsel %vm4445, %v4919, %v4915
    %v4921 = vlaneseq
    %v4922 = vshrl.u32 %v4921, 7
    %v4923 = vsub.s32 %v4337, %v4922
    %v4924 = vrot.slane %v4177, %v4923
    %v4925 = vlaneseq
    %v4926 = vshrl.u32 %v4925, 7
    %v4927 = vsub.s32 %v4342, %v4926
    %v4928 = vrot.slane %v4179, %v4927
    %v4929 = vsel %vm4347, %v4928, %v4924
    %v4930 = vlaneseq
    %v4931 = vshrl.u32 %v4930, 7
    %v4932 = vsub.s32 %v4349, %v4931
    %v4933 = vrot.slane %v4181, %v4932
    %v4934 = vsel %vm4354, %v4933, %v4929
    %v4935 = vlaneseq
    %v4936 = vshrl.u32 %v4935, 7
    %v4937 = vsub.s32 %v4356, %v4936
    %v4938 = vrot.slane %v4183, %v4937
    %v4939 = vsel %vm4361, %v4938, %v4934
    %v4940 = vlaneseq
    %v4941 = vshrl.u32 %v4940, 7
    %v4942 = vsub.s32 %v4363, %v4941
    %v4943 = vrot.slane %v4185, %v4942
    %v4944 = vsel %vm4368, %v4943, %v4939
    %v4945 = vlaneseq
    %v4946 = vshrl.u32 %v4945, 7
    %v4947 = vsub.s32 %v4370, %v4946
    %v4948 = vrot.slane %v4187, %v4947
    %v4949 = vsel %vm4375, %v4948, %v4944
    %v4950 = vlaneseq
    %v4951 = vshrl.u32 %v4950, 7
    %v4952 = vsub.s32 %v4377, %v4951
    %v4953 = vrot.slane %v4189, %v4952
    %v4954 = vsel %vm4382, %v4953, %v4949
    %v4955 = vlaneseq
    %v4956 = vshrl.u32 %v4955, 7
    %v4957 = vsub.s32 %v4384, %v4956
    %v4958 = vrot.slane %v4191, %v4957
    %v4959 = vsel %vm4389, %v4958, %v4954
    %v4960 = vlaneseq
    %v4961 = vshrl.u32 %v4960, 7
    %v4962 = vsub.s32 %v4391, %v4961
    %v4963 = vrot.slane %v4193, %v4962
    %v4964 = vsel %vm4396, %v4963, %v4959
    %v4965 = vlaneseq
    %v4966 = vshrl.u32 %v4965, 7
    %v4967 = vsub.s32 %v4398, %v4966
    %v4968 = vrot.slane %v4195, %v4967
    %v4969 = vsel %vm4403, %v4968, %v4964
    %v4970 = vlaneseq
    %v4971 = vshrl.u32 %v4970, 7
    %v4972 = vsub.s32 %v4405, %v4971
    %v4973 = vrot.slane %v4197, %v4972
    %v4974 = vsel %vm4410, %v4973, %v4969
    %v4975 = vlaneseq
    %v4976 = vshrl.u32 %v4975, 7
    %v4977 = vsub.s32 %v4412, %v4976
    %v4978 = vrot.slane %v4199, %v4977
    %v4979 = vsel %vm4417, %v4978, %v4974
    %v4980 = vlaneseq
    %v4981 = vshrl.u32 %v4980, 7
    %v4982 = vsub.s32 %v4419, %v4981
    %v4983 = vrot.slane %v4201, %v4982
    %v4984 = vsel %vm4424, %v4983, %v4979
    %v4985 = vlaneseq
    %v4986 = vshrl.u32 %v4985, 7
    %v4987 = vsub.s32 %v4426, %v4986
    %v4988 = vrot.slane %v4203, %v4987
    %v4989 = vsel %vm4431, %v4988, %v4984
    %v4990 = vlaneseq
    %v4991 = vshrl.u32 %v4990, 7
    %v4992 = vsub.s32 %v4433, %v4991
    %v4993 = vrot.slane %v4205, %v4992
    %v4994 = vsel %vm4438, %v4993, %v4989
    %v4995 = vlaneseq
    %v4996 = vshrl.u32 %v4995, 7
    %v4997 = vsub.s32 %v4440, %v4996
    %v4998 = vrot.slane %v4207, %v4997
    %v4999 = vsel %vm4445, %v4998, %v4994
    %vm5000 = vcmask 1041409
    %v5001 = vsel %vm5000, %v4525, %v4446
    %vm5002 = vcmask 1042434
    %v5003 = vsel %vm5002, %v4604, %v5001
    %vm5004 = vcmask 1043459
    %v5005 = vsel %vm5004, %v4683, %v5003
    %vm5006 = vcmask 1044484
    %v5007 = vsel %vm5006, %v4762, %v5005
    %vm5008 = vcmask 1045509
    %v5009 = vsel %vm5008, %v4841, %v5007
    %vm5010 = vcmask 1046534
    %v5011 = vsel %vm5010, %v4920, %v5009
    %vm5012 = vcmask 1047559
    %v5013 = vsel %vm5012, %v4999, %v5011
    %5015 = vst [vmem:[#allocation9] sm:$0xff] %v5013
    %v5016 = vld [vmem:[#allocation8] sm:$0xff]
    %v5017 = vlog2.pop %v3953
    %v5018 = vmul.f32 %v5017, 0.6931472
    %v5019 = vlog2.pop %v3955
    %v5020 = vmul.f32 %v5019, 0.6931472
    %v5021 = vlog2.pop %v3957
    %v5022 = vmul.f32 %v5021, 0.6931472
    %v5023 = vlog2.pop %v3959
    %v5024 = vmul.f32 %v5023, 0.6931472
    %v5025 = vlog2.pop %v3961
    %v5026 = vmul.f32 %v5025, 0.6931472
    %v5027 = vlog2.pop %v3963
    %v5028 = vmul.f32 %v5027, 0.6931472
    %v5029 = vlog2.pop %v3965
    %v5030 = vmul.f32 %v5029, 0.6931472
    %v5031 = vlog2.pop %v3967
    %v5032 = vmul.f32 %v5031, 0.6931472
    %v5033 = vlog2.pop %v3969
    %v5034 = vmul.f32 %v5033, 0.6931472
    %v5035 = vlog2.pop %v3971
    %v5036 = vmul.f32 %v5035, 0.6931472
    %v5037 = vlog2.pop %v3973
    %v5038 = vmul.f32 %v5037, 0.6931472
    %v5039 = vlog2.pop %v3975
    %v5040 = vmul.f32 %v5039, 0.6931472
    %v5041 = vlog2.pop %v3977
    %v5042 = vmul.f32 %v5041, 0.6931472
    %v5043 = vlog2.pop %v3979
    %v5044 = vmul.f32 %v5043, 0.6931472
    %v5045 = vlog2.pop %v3981
    %v5046 = vmul.f32 %v5045, 0.6931472
    %v5047 = vlog2.pop %v3983
    %v5048 = vmul.f32 %v5047, 0.6931472
    %v5049 = vlog2.pop %v3985
    %v5050 = vmul.f32 %v5049, 0.6931472
    %v5051 = vlog2.pop %v3987
    %v5052 = vmul.f32 %v5051, 0.6931472
    %v5053 = vlog2.pop %v3989
    %v5054 = vmul.f32 %v5053, 0.6931472
    %v5055 = vlog2.pop %v3991
    %v5056 = vmul.f32 %v5055, 0.6931472
    %v5057 = vlog2.pop %v3993
    %v5058 = vmul.f32 %v5057, 0.6931472
    %v5059 = vlog2.pop %v3995
    %v5060 = vmul.f32 %v5059, 0.6931472
    %v5061 = vlog2.pop %v3997
    %v5062 = vmul.f32 %v5061, 0.6931472
    %v5063 = vlog2.pop %v3999
    %v5064 = vmul.f32 %v5063, 0.6931472
    %v5065 = vlog2.pop %v4001
    %v5066 = vmul.f32 %v5065, 0.6931472
    %v5067 = vlog2.pop %v4003
    %v5068 = vmul.f32 %v5067, 0.6931472
    %v5069 = vlog2.pop %v4005
    %v5070 = vmul.f32 %v5069, 0.6931472
    %v5071 = vlog2.pop %v4007
    %v5072 = vmul.f32 %v5071, 0.6931472
    %v5073 = vlog2.pop %v4009
    %v5074 = vmul.f32 %v5073, 0.6931472
    %v5075 = vlog2.pop %v4011
    %v5076 = vmul.f32 %v5075, 0.6931472
    %v5077 = vlog2.pop %v4013
    %v5078 = vmul.f32 %v5077, 0.6931472
    %v5079 = vlog2.pop %v4015
    %v5080 = vmul.f32 %v5079, 0.6931472
    %v5081 = vlog2.pop %v4017
    %v5082 = vmul.f32 %v5081, 0.6931472
    %v5083 = vlog2.pop %v4019
    %v5084 = vmul.f32 %v5083, 0.6931472
    %v5085 = vlog2.pop %v4021
    %v5086 = vmul.f32 %v5085, 0.6931472
    %v5087 = vlog2.pop %v4023
    %v5088 = vmul.f32 %v5087, 0.6931472
    %v5089 = vlog2.pop %v4025
    %v5090 = vmul.f32 %v5089, 0.6931472
    %v5091 = vlog2.pop %v4027
    %v5092 = vmul.f32 %v5091, 0.6931472
    %v5093 = vlog2.pop %v4029
    %v5094 = vmul.f32 %v5093, 0.6931472
    %v5095 = vlog2.pop %v4031
    %v5096 = vmul.f32 %v5095, 0.6931472
    %v5097 = vlog2.pop %v4033
    %v5098 = vmul.f32 %v5097, 0.6931472
    %v5099 = vlog2.pop %v4035
    %v5100 = vmul.f32 %v5099, 0.6931472
    %v5101 = vlog2.pop %v4037
    %v5102 = vmul.f32 %v5101, 0.6931472
    %v5103 = vlog2.pop %v4039
    %v5104 = vmul.f32 %v5103, 0.6931472
    %v5105 = vlog2.pop %v4041
    %v5106 = vmul.f32 %v5105, 0.6931472
    %v5107 = vlog2.pop %v4043
    %v5108 = vmul.f32 %v5107, 0.6931472
    %v5109 = vlog2.pop %v4045
    %v5110 = vmul.f32 %v5109, 0.6931472
    %v5111 = vlog2.pop %v4047
    %v5112 = vmul.f32 %v5111, 0.6931472
    %v5113 = vlog2.pop %v4049
    %v5114 = vmul.f32 %v5113, 0.6931472
    %v5115 = vlog2.pop %v4051
    %v5116 = vmul.f32 %v5115, 0.6931472
    %v5117 = vlog2.pop %v4053
    %v5118 = vmul.f32 %v5117, 0.6931472
    %v5119 = vlog2.pop %v4055
    %v5120 = vmul.f32 %v5119, 0.6931472
    %v5121 = vlog2.pop %v4057
    %v5122 = vmul.f32 %v5121, 0.6931472
    %v5123 = vlog2.pop %v4059
    %v5124 = vmul.f32 %v5123, 0.6931472
    %v5125 = vlog2.pop %v4061
    %v5126 = vmul.f32 %v5125, 0.6931472
    %v5127 = vlog2.pop %v4063
    %v5128 = vmul.f32 %v5127, 0.6931472
    %v5129 = vlog2.pop %v4065
    %v5130 = vmul.f32 %v5129, 0.6931472
    %v5131 = vlog2.pop %v4067
    %v5132 = vmul.f32 %v5131, 0.6931472
    %v5133 = vlog2.pop %v4069
    %v5134 = vmul.f32 %v5133, 0.6931472
    %v5135 = vlog2.pop %v4071
    %v5136 = vmul.f32 %v5135, 0.6931472
    %v5137 = vlog2.pop %v4073
    %v5138 = vmul.f32 %v5137, 0.6931472
    %v5139 = vlog2.pop %v4075
    %v5140 = vmul.f32 %v5139, 0.6931472
    %v5141 = vlog2.pop %v4077
    %v5142 = vmul.f32 %v5141, 0.6931472
    %v5143 = vlog2.pop %v4079
    %v5144 = vmul.f32 %v5143, 0.6931472
    %v5145 = vlog2.pop %v4081
    %v5146 = vmul.f32 %v5145, 0.6931472
    %v5147 = vlog2.pop %v4083
    %v5148 = vmul.f32 %v5147, 0.6931472
    %v5149 = vlog2.pop %v4085
    %v5150 = vmul.f32 %v5149, 0.6931472
    %v5151 = vlog2.pop %v4087
    %v5152 = vmul.f32 %v5151, 0.6931472
    %v5153 = vlog2.pop %v4089
    %v5154 = vmul.f32 %v5153, 0.6931472
    %v5155 = vlog2.pop %v4091
    %v5156 = vmul.f32 %v5155, 0.6931472
    %v5157 = vlog2.pop %v4093
    %v5158 = vmul.f32 %v5157, 0.6931472
    %v5159 = vlog2.pop %v4095
    %v5160 = vmul.f32 %v5159, 0.6931472
    %v5161 = vlog2.pop %v4097
    %v5162 = vmul.f32 %v5161, 0.6931472
    %v5163 = vlog2.pop %v4099
    %v5164 = vmul.f32 %v5163, 0.6931472
    %v5165 = vlog2.pop %v4101
    %v5166 = vmul.f32 %v5165, 0.6931472
    %v5167 = vlog2.pop %v4103
    %v5168 = vmul.f32 %v5167, 0.6931472
    %v5169 = vlog2.pop %v4105
    %v5170 = vmul.f32 %v5169, 0.6931472
    %v5171 = vlog2.pop %v4107
    %v5172 = vmul.f32 %v5171, 0.6931472
    %v5173 = vlog2.pop %v4109
    %v5174 = vmul.f32 %v5173, 0.6931472
    %v5175 = vlog2.pop %v4111
    %v5176 = vmul.f32 %v5175, 0.6931472
    %v5177 = vlog2.pop %v4113
    %v5178 = vmul.f32 %v5177, 0.6931472
    %v5179 = vlog2.pop %v4115
    %v5180 = vmul.f32 %v5179, 0.6931472
    %v5181 = vlog2.pop %v4117
    %v5182 = vmul.f32 %v5181, 0.6931472
    %v5183 = vlog2.pop %v4119
    %v5184 = vmul.f32 %v5183, 0.6931472
    %v5185 = vlog2.pop %v4121
    %v5186 = vmul.f32 %v5185, 0.6931472
    %v5187 = vlog2.pop %v4123
    %v5188 = vmul.f32 %v5187, 0.6931472
    %v5189 = vlog2.pop %v4125
    %v5190 = vmul.f32 %v5189, 0.6931472
    %v5191 = vlog2.pop %v4127
    %v5192 = vmul.f32 %v5191, 0.6931472
    %v5193 = vlog2.pop %v4129
    %v5194 = vmul.f32 %v5193, 0.6931472
    %v5195 = vlog2.pop %v4131
    %v5196 = vmul.f32 %v5195, 0.6931472
    %v5197 = vlog2.pop %v4133
    %v5198 = vmul.f32 %v5197, 0.6931472
    %v5199 = vlog2.pop %v4135
    %v5200 = vmul.f32 %v5199, 0.6931472
    %v5201 = vlog2.pop %v4137
    %v5202 = vmul.f32 %v5201, 0.6931472
    %v5203 = vlog2.pop %v4139
    %v5204 = vmul.f32 %v5203, 0.6931472
    %v5205 = vlog2.pop %v4141
    %v5206 = vmul.f32 %v5205, 0.6931472
    %v5207 = vlog2.pop %v4143
    %v5208 = vmul.f32 %v5207, 0.6931472
    %v5209 = vlog2.pop %v4145
    %v5210 = vmul.f32 %v5209, 0.6931472
    %v5211 = vlog2.pop %v4147
    %v5212 = vmul.f32 %v5211, 0.6931472
    %v5213 = vlog2.pop %v4149
    %v5214 = vmul.f32 %v5213, 0.6931472
    %v5215 = vlog2.pop %v4151
    %v5216 = vmul.f32 %v5215, 0.6931472
    %v5217 = vlog2.pop %v4153
    %v5218 = vmul.f32 %v5217, 0.6931472
    %v5219 = vlog2.pop %v4155
    %v5220 = vmul.f32 %v5219, 0.6931472
    %v5221 = vlog2.pop %v4157
    %v5222 = vmul.f32 %v5221, 0.6931472
    %v5223 = vlog2.pop %v4159
    %v5224 = vmul.f32 %v5223, 0.6931472
    %v5225 = vlog2.pop %v4161
    %v5226 = vmul.f32 %v5225, 0.6931472
    %v5227 = vlog2.pop %v4163
    %v5228 = vmul.f32 %v5227, 0.6931472
    %v5229 = vlog2.pop %v4165
    %v5230 = vmul.f32 %v5229, 0.6931472
    %v5231 = vlog2.pop %v4167
    %v5232 = vmul.f32 %v5231, 0.6931472
    %v5233 = vlog2.pop %v4169
    %v5234 = vmul.f32 %v5233, 0.6931472
    %v5235 = vlog2.pop %v4171
    %v5236 = vmul.f32 %v5235, 0.6931472
    %v5237 = vlog2.pop %v4173
    %v5238 = vmul.f32 %v5237, 0.6931472
    %v5239 = vlog2.pop %v4175
    %v5240 = vmul.f32 %v5239, 0.6931472
    %v5241 = vlog2.pop %v4177
    %v5242 = vmul.f32 %v5241, 0.6931472
    %v5243 = vlog2.pop %v4179
    %v5244 = vmul.f32 %v5243, 0.6931472
    %v5245 = vlog2.pop %v4181
    %v5246 = vmul.f32 %v5245, 0.6931472
    %v5247 = vlog2.pop %v4183
    %v5248 = vmul.f32 %v5247, 0.6931472
    %v5249 = vlog2.pop %v4185
    %v5250 = vmul.f32 %v5249, 0.6931472
    %v5251 = vlog2.pop %v4187
    %v5252 = vmul.f32 %v5251, 0.6931472
    %v5253 = vlog2.pop %v4189
    %v5254 = vmul.f32 %v5253, 0.6931472
    %v5255 = vlog2.pop %v4191
    %v5256 = vmul.f32 %v5255, 0.6931472
    %v5257 = vlog2.pop %v4193
    %v5258 = vmul.f32 %v5257, 0.6931472
    %v5259 = vlog2.pop %v4195
    %v5260 = vmul.f32 %v5259, 0.6931472
    %v5261 = vlog2.pop %v4197
    %v5262 = vmul.f32 %v5261, 0.6931472
    %v5263 = vlog2.pop %v4199
    %v5264 = vmul.f32 %v5263, 0.6931472
    %v5265 = vlog2.pop %v4201
    %v5266 = vmul.f32 %v5265, 0.6931472
    %v5267 = vlog2.pop %v4203
    %v5268 = vmul.f32 %v5267, 0.6931472
    %v5269 = vlog2.pop %v4205
    %v5270 = vmul.f32 %v5269, 0.6931472
    %v5271 = vlog2.pop %v4207
    %v5272 = vmul.f32 %v5271, 0.6931472
    %v5273 = vmax.f32 %v5018, -100.0
    %v5274 = vmax.f32 %v5020, -100.0
    %v5275 = vmax.f32 %v5022, -100.0
    %v5276 = vmax.f32 %v5024, -100.0
    %v5277 = vmax.f32 %v5026, -100.0
    %v5278 = vmax.f32 %v5028, -100.0
    %v5279 = vmax.f32 %v5030, -100.0
    %v5280 = vmax.f32 %v5032, -100.0
    %v5281 = vmax.f32 %v5034, -100.0
    %v5282 = vmax.f32 %v5036, -100.0
    %v5283 = vmax.f32 %v5038, -100.0
    %v5284 = vmax.f32 %v5040, -100.0
    %v5285 = vmax.f32 %v5042, -100.0
    %v5286 = vmax.f32 %v5044, -100.0
    %v5287 = vmax.f32 %v5046, -100.0
    %v5288 = vmax.f32 %v5048, -100.0
    %v5289 = vmax.f32 %v5050, -100.0
    %v5290 = vmax.f32 %v5052, -100.0
    %v5291 = vmax.f32 %v5054, -100.0
    %v5292 = vmax.f32 %v5056, -100.0
    %v5293 = vmax.f32 %v5058, -100.0
    %v5294 = vmax.f32 %v5060, -100.0
    %v5295 = vmax.f32 %v5062, -100.0
    %v5296 = vmax.f32 %v5064, -100.0
    %v5297 = vmax.f32 %v5066, -100.0
    %v5298 = vmax.f32 %v5068, -100.0
    %v5299 = vmax.f32 %v5070, -100.0
    %v5300 = vmax.f32 %v5072, -100.0
    %v5301 = vmax.f32 %v5074, -100.0
    %v5302 = vmax.f32 %v5076, -100.0
    %v5303 = vmax.f32 %v5078, -100.0
    %v5304 = vmax.f32 %v5080, -100.0
    %v5305 = vmax.f32 %v5082, -100.0
    %v5306 = vmax.f32 %v5084, -100.0
    %v5307 = vmax.f32 %v5086, -100.0
    %v5308 = vmax.f32 %v5088, -100.0
    %v5309 = vmax.f32 %v5090, -100.0
    %v5310 = vmax.f32 %v5092, -100.0
    %v5311 = vmax.f32 %v5094, -100.0
    %v5312 = vmax.f32 %v5096, -100.0
    %v5313 = vmax.f32 %v5098, -100.0
    %v5314 = vmax.f32 %v5100, -100.0
    %v5315 = vmax.f32 %v5102, -100.0
    %v5316 = vmax.f32 %v5104, -100.0
    %v5317 = vmax.f32 %v5106, -100.0
    %v5318 = vmax.f32 %v5108, -100.0
    %v5319 = vmax.f32 %v5110, -100.0
    %v5320 = vmax.f32 %v5112, -100.0
    %v5321 = vmax.f32 %v5114, -100.0
    %v5322 = vmax.f32 %v5116, -100.0
    %v5323 = vmax.f32 %v5118, -100.0
    %v5324 = vmax.f32 %v5120, -100.0
    %v5325 = vmax.f32 %v5122, -100.0
    %v5326 = vmax.f32 %v5124, -100.0
    %v5327 = vmax.f32 %v5126, -100.0
    %v5328 = vmax.f32 %v5128, -100.0
    %v5329 = vmax.f32 %v5130, -100.0
    %v5330 = vmax.f32 %v5132, -100.0
    %v5331 = vmax.f32 %v5134, -100.0
    %v5332 = vmax.f32 %v5136, -100.0
    %v5333 = vmax.f32 %v5138, -100.0
    %v5334 = vmax.f32 %v5140, -100.0
    %v5335 = vmax.f32 %v5142, -100.0
    %v5336 = vmax.f32 %v5144, -100.0
    %v5337 = vmax.f32 %v5146, -100.0
    %v5338 = vmax.f32 %v5148, -100.0
    %v5339 = vmax.f32 %v5150, -100.0
    %v5340 = vmax.f32 %v5152, -100.0
    %v5341 = vmax.f32 %v5154, -100.0
    %v5342 = vmax.f32 %v5156, -100.0
    %v5343 = vmax.f32 %v5158, -100.0
    %v5344 = vmax.f32 %v5160, -100.0
    %v5345 = vmax.f32 %v5162, -100.0
    %v5346 = vmax.f32 %v5164, -100.0
    %v5347 = vmax.f32 %v5166, -100.0
    %v5348 = vmax.f32 %v5168, -100.0
    %v5349 = vmax.f32 %v5170, -100.0
    %v5350 = vmax.f32 %v5172, -100.0
    %v5351 = vmax.f32 %v5174, -100.0
    %v5352 = vmax.f32 %v5176, -100.0
    %v5353 = vmax.f32 %v5178, -100.0
    %v5354 = vmax.f32 %v5180, -100.0
    %v5355 = vmax.f32 %v5182, -100.0
    %v5356 = vmax.f32 %v5184, -100.0
    %v5357 = vmax.f32 %v5186, -100.0
    %v5358 = vmax.f32 %v5188, -100.0
    %v5359 = vmax.f32 %v5190, -100.0
    %v5360 = vmax.f32 %v5192, -100.0
    %v5361 = vmax.f32 %v5194, -100.0
    %v5362 = vmax.f32 %v5196, -100.0
    %v5363 = vmax.f32 %v5198, -100.0
    %v5364 = vmax.f32 %v5200, -100.0
    %v5365 = vmax.f32 %v5202, -100.0
    %v5366 = vmax.f32 %v5204, -100.0
    %v5367 = vmax.f32 %v5206, -100.0
    %v5368 = vmax.f32 %v5208, -100.0
    %v5369 = vmax.f32 %v5210, -100.0
    %v5370 = vmax.f32 %v5212, -100.0
    %v5371 = vmax.f32 %v5214, -100.0
    %v5372 = vmax.f32 %v5216, -100.0
    %v5373 = vmax.f32 %v5218, -100.0
    %v5374 = vmax.f32 %v5220, -100.0
    %v5375 = vmax.f32 %v5222, -100.0
    %v5376 = vmax.f32 %v5224, -100.0
    %v5377 = vmax.f32 %v5226, -100.0
    %v5378 = vmax.f32 %v5228, -100.0
    %v5379 = vmax.f32 %v5230, -100.0
    %v5380 = vmax.f32 %v5232, -100.0
    %v5381 = vmax.f32 %v5234, -100.0
    %v5382 = vmax.f32 %v5236, -100.0
    %v5383 = vmax.f32 %v5238, -100.0
    %v5384 = vmax.f32 %v5240, -100.0
    %v5385 = vmax.f32 %v5242, -100.0
    %v5386 = vmax.f32 %v5244, -100.0
    %v5387 = vmax.f32 %v5246, -100.0
    %v5388 = vmax.f32 %v5248, -100.0
    %v5389 = vmax.f32 %v5250, -100.0
    %v5390 = vmax.f32 %v5252, -100.0
    %v5391 = vmax.f32 %v5254, -100.0
    %v5392 = vmax.f32 %v5256, -100.0
    %v5393 = vmax.f32 %v5258, -100.0
    %v5394 = vmax.f32 %v5260, -100.0
    %v5395 = vmax.f32 %v5262, -100.0
    %v5396 = vmax.f32 %v5264, -100.0
    %v5397 = vmax.f32 %v5266, -100.0
    %v5398 = vmax.f32 %v5268, -100.0
    %v5399 = vmax.f32 %v5270, -100.0
    %v5400 = vmax.f32 %v5272, -100.0
    %v5401 = vsub.f32 1.0, %v3953
    %v5402 = vsub.f32 1.0, %v3955
    %v5403 = vsub.f32 1.0, %v3957
    %v5404 = vsub.f32 1.0, %v3959
    %v5405 = vsub.f32 1.0, %v3961
    %v5406 = vsub.f32 1.0, %v3963
    %v5407 = vsub.f32 1.0, %v3965
    %v5408 = vsub.f32 1.0, %v3967
    %v5409 = vsub.f32 1.0, %v3969
    %v5410 = vsub.f32 1.0, %v3971
    %v5411 = vsub.f32 1.0, %v3973
    %v5412 = vsub.f32 1.0, %v3975
    %v5413 = vsub.f32 1.0, %v3977
    %v5414 = vsub.f32 1.0, %v3979
    %v5415 = vsub.f32 1.0, %v3981
    %v5416 = vsub.f32 1.0, %v3983
    %v5417 = vsub.f32 1.0, %v3985
    %v5418 = vsub.f32 1.0, %v3987
    %v5419 = vsub.f32 1.0, %v3989
    %v5420 = vsub.f32 1.0, %v3991
    %v5421 = vsub.f32 1.0, %v3993
    %v5422 = vsub.f32 1.0, %v3995
    %v5423 = vsub.f32 1.0, %v3997
    %v5424 = vsub.f32 1.0, %v3999
    %v5425 = vsub.f32 1.0, %v4001
    %v5426 = vsub.f32 1.0, %v4003
    %v5427 = vsub.f32 1.0, %v4005
    %v5428 = vsub.f32 1.0, %v4007
    %v5429 = vsub.f32 1.0, %v4009
    %v5430 = vsub.f32 1.0, %v4011
    %v5431 = vsub.f32 1.0, %v4013
    %v5432 = vsub.f32 1.0, %v4015
    %v5433 = vsub.f32 1.0, %v4017
    %v5434 = vsub.f32 1.0, %v4019
    %v5435 = vsub.f32 1.0, %v4021
    %v5436 = vsub.f32 1.0, %v4023
    %v5437 = vsub.f32 1.0, %v4025
    %v5438 = vsub.f32 1.0, %v4027
    %v5439 = vsub.f32 1.0, %v4029
    %v5440 = vsub.f32 1.0, %v4031
    %v5441 = vsub.f32 1.0, %v4033
    %v5442 = vsub.f32 1.0, %v4035
    %v5443 = vsub.f32 1.0, %v4037
    %v5444 = vsub.f32 1.0, %v4039
    %v5445 = vsub.f32 1.0, %v4041
    %v5446 = vsub.f32 1.0, %v4043
    %v5447 = vsub.f32 1.0, %v4045
    %v5448 = vsub.f32 1.0, %v4047
    %v5449 = vsub.f32 1.0, %v4049
    %v5450 = vsub.f32 1.0, %v4051
    %v5451 = vsub.f32 1.0, %v4053
    %v5452 = vsub.f32 1.0, %v4055
    %v5453 = vsub.f32 1.0, %v4057
    %v5454 = vsub.f32 1.0, %v4059
    %v5455 = vsub.f32 1.0, %v4061
    %v5456 = vsub.f32 1.0, %v4063
    %v5457 = vsub.f32 1.0, %v4065
    %v5458 = vsub.f32 1.0, %v4067
    %v5459 = vsub.f32 1.0, %v4069
    %v5460 = vsub.f32 1.0, %v4071
    %v5461 = vsub.f32 1.0, %v4073
    %v5462 = vsub.f32 1.0, %v4075
    %v5463 = vsub.f32 1.0, %v4077
    %v5464 = vsub.f32 1.0, %v4079
    %v5465 = vsub.f32 1.0, %v4081
    %v5466 = vsub.f32 1.0, %v4083
    %v5467 = vsub.f32 1.0, %v4085
    %v5468 = vsub.f32 1.0, %v4087
    %v5469 = vsub.f32 1.0, %v4089
    %v5470 = vsub.f32 1.0, %v4091
    %v5471 = vsub.f32 1.0, %v4093
    %v5472 = vsub.f32 1.0, %v4095
    %v5473 = vsub.f32 1.0, %v4097
    %v5474 = vsub.f32 1.0, %v4099
    %v5475 = vsub.f32 1.0, %v4101
    %v5476 = vsub.f32 1.0, %v4103
    %v5477 = vsub.f32 1.0, %v4105
    %v5478 = vsub.f32 1.0, %v4107
    %v5479 = vsub.f32 1.0, %v4109
    %v5480 = vsub.f32 1.0, %v4111
    %v5481 = vsub.f32 1.0, %v4113
    %v5482 = vsub.f32 1.0, %v4115
    %v5483 = vsub.f32 1.0, %v4117
    %v5484 = vsub.f32 1.0, %v4119
    %v5485 = vsub.f32 1.0, %v4121
    %v5486 = vsub.f32 1.0, %v4123
    %v5487 = vsub.f32 1.0, %v4125
    %v5488 = vsub.f32 1.0, %v4127
    %v5489 = vsub.f32 1.0, %v4129
    %v5490 = vsub.f32 1.0, %v4131
    %v5491 = vsub.f32 1.0, %v4133
    %v5492 = vsub.f32 1.0, %v4135
    %v5493 = vsub.f32 1.0, %v4137
    %v5494 = vsub.f32 1.0, %v4139
    %v5495 = vsub.f32 1.0, %v4141
    %v5496 = vsub.f32 1.0, %v4143
    %v5497 = vsub.f32 1.0, %v4145
    %v5498 = vsub.f32 1.0, %v4147
    %v5499 = vsub.f32 1.0, %v4149
    %v5500 = vsub.f32 1.0, %v4151
    %v5501 = vsub.f32 1.0, %v4153
    %v5502 = vsub.f32 1.0, %v4155
    %v5503 = vsub.f32 1.0, %v4157
    %v5504 = vsub.f32 1.0, %v4159
    %v5505 = vsub.f32 1.0, %v4161
    %v5506 = vsub.f32 1.0, %v4163
    %v5507 = vsub.f32 1.0, %v4165
    %v5508 = vsub.f32 1.0, %v4167
    %v5509 = vsub.f32 1.0, %v4169
    %v5510 = vsub.f32 1.0, %v4171
    %v5511 = vsub.f32 1.0, %v4173
    %v5512 = vsub.f32 1.0, %v4175
    %v5513 = vsub.f32 1.0, %v4177
    %v5514 = vsub.f32 1.0, %v4179
    %v5515 = vsub.f32 1.0, %v4181
    %v5516 = vsub.f32 1.0, %v4183
    %v5517 = vsub.f32 1.0, %v4185
    %v5518 = vsub.f32 1.0, %v4187
    %v5519 = vsub.f32 1.0, %v4189
    %v5520 = vsub.f32 1.0, %v4191
    %v5521 = vsub.f32 1.0, %v4193
    %v5522 = vsub.f32 1.0, %v4195
    %v5523 = vsub.f32 1.0, %v4197
    %v5524 = vsub.f32 1.0, %v4199
    %v5525 = vsub.f32 1.0, %v4201
    %v5526 = vsub.f32 1.0, %v4203
    %v5527 = vsub.f32 1.0, %v4205
    %v5528 = vsub.f32 1.0, %v4207
    %v5529 = vlog2.pop %v5401
    %v5530 = vmul.f32 %v5529, 0.6931472
    %v5531 = vlog2.pop %v5402
    %v5532 = vmul.f32 %v5531, 0.6931472
    %v5533 = vlog2.pop %v5403
    %v5534 = vmul.f32 %v5533, 0.6931472
    %v5535 = vlog2.pop %v5404
    %v5536 = vmul.f32 %v5535, 0.6931472
    %v5537 = vlog2.pop %v5405
    %v5538 = vmul.f32 %v5537, 0.6931472
    %v5539 = vlog2.pop %v5406
    %v5540 = vmul.f32 %v5539, 0.6931472
    %v5541 = vlog2.pop %v5407
    %v5542 = vmul.f32 %v5541, 0.6931472
    %v5543 = vlog2.pop %v5408
    %v5544 = vmul.f32 %v5543, 0.6931472
    %v5545 = vlog2.pop %v5409
    %v5546 = vmul.f32 %v5545, 0.6931472
    %v5547 = vlog2.pop %v5410
    %v5548 = vmul.f32 %v5547, 0.6931472
    %v5549 = vlog2.pop %v5411
    %v5550 = vmul.f32 %v5549, 0.6931472
    %v5551 = vlog2.pop %v5412
    %v5552 = vmul.f32 %v5551, 0.6931472
    %v5553 = vlog2.pop %v5413
    %v5554 = vmul.f32 %v5553, 0.6931472
    %v5555 = vlog2.pop %v5414
    %v5556 = vmul.f32 %v5555, 0.6931472
    %v5557 = vlog2.pop %v5415
    %v5558 = vmul.f32 %v5557, 0.6931472
    %v5559 = vlog2.pop %v5416
    %v5560 = vmul.f32 %v5559, 0.6931472
    %v5561 = vlog2.pop %v5417
    %v5562 = vmul.f32 %v5561, 0.6931472
    %v5563 = vlog2.pop %v5418
    %v5564 = vmul.f32 %v5563, 0.6931472
    %v5565 = vlog2.pop %v5419
    %v5566 = vmul.f32 %v5565, 0.6931472
    %v5567 = vlog2.pop %v5420
    %v5568 = vmul.f32 %v5567, 0.6931472
    %v5569 = vlog2.pop %v5421
    %v5570 = vmul.f32 %v5569, 0.6931472
    %v5571 = vlog2.pop %v5422
    %v5572 = vmul.f32 %v5571, 0.6931472
    %v5573 = vlog2.pop %v5423
    %v5574 = vmul.f32 %v5573, 0.6931472
    %v5575 = vlog2.pop %v5424
    %v5576 = vmul.f32 %v5575, 0.6931472
    %v5577 = vlog2.pop %v5425
    %v5578 = vmul.f32 %v5577, 0.6931472
    %v5579 = vlog2.pop %v5426
    %v5580 = vmul.f32 %v5579, 0.6931472
    %v5581 = vlog2.pop %v5427
    %v5582 = vmul.f32 %v5581, 0.6931472
    %v5583 = vlog2.pop %v5428
    %v5584 = vmul.f32 %v5583, 0.6931472
    %v5585 = vlog2.pop %v5429
    %v5586 = vmul.f32 %v5585, 0.6931472
    %v5587 = vlog2.pop %v5430
    %v5588 = vmul.f32 %v5587, 0.6931472
    %v5589 = vlog2.pop %v5431
    %v5590 = vmul.f32 %v5589, 0.6931472
    %v5591 = vlog2.pop %v5432
    %v5592 = vmul.f32 %v5591, 0.6931472
    %v5593 = vlog2.pop %v5433
    %v5594 = vmul.f32 %v5593, 0.6931472
    %v5595 = vlog2.pop %v5434
    %v5596 = vmul.f32 %v5595, 0.6931472
    %v5597 = vlog2.pop %v5435
    %v5598 = vmul.f32 %v5597, 0.6931472
    %v5599 = vlog2.pop %v5436
    %v5600 = vmul.f32 %v5599, 0.6931472
    %v5601 = vlog2.pop %v5437
    %v5602 = vmul.f32 %v5601, 0.6931472
    %v5603 = vlog2.pop %v5438
    %v5604 = vmul.f32 %v5603, 0.6931472
    %v5605 = vlog2.pop %v5439
    %v5606 = vmul.f32 %v5605, 0.6931472
    %v5607 = vlog2.pop %v5440
    %v5608 = vmul.f32 %v5607, 0.6931472
    %v5609 = vlog2.pop %v5441
    %v5610 = vmul.f32 %v5609, 0.6931472
    %v5611 = vlog2.pop %v5442
    %v5612 = vmul.f32 %v5611, 0.6931472
    %v5613 = vlog2.pop %v5443
    %v5614 = vmul.f32 %v5613, 0.6931472
    %v5615 = vlog2.pop %v5444
    %v5616 = vmul.f32 %v5615, 0.6931472
    %v5617 = vlog2.pop %v5445
    %v5618 = vmul.f32 %v5617, 0.6931472
    %v5619 = vlog2.pop %v5446
    %v5620 = vmul.f32 %v5619, 0.6931472
    %v5621 = vlog2.pop %v5447
    %v5622 = vmul.f32 %v5621, 0.6931472
    %v5623 = vlog2.pop %v5448
    %v5624 = vmul.f32 %v5623, 0.6931472
    %v5625 = vlog2.pop %v5449
    %v5626 = vmul.f32 %v5625, 0.6931472
    %v5627 = vlog2.pop %v5450
    %v5628 = vmul.f32 %v5627, 0.6931472
    %v5629 = vlog2.pop %v5451
    %v5630 = vmul.f32 %v5629, 0.6931472
    %v5631 = vlog2.pop %v5452
    %v5632 = vmul.f32 %v5631, 0.6931472
    %v5633 = vlog2.pop %v5453
    %v5634 = vmul.f32 %v5633, 0.6931472
    %v5635 = vlog2.pop %v5454
    %v5636 = vmul.f32 %v5635, 0.6931472
    %v5637 = vlog2.pop %v5455
    %v5638 = vmul.f32 %v5637, 0.6931472
    %v5639 = vlog2.pop %v5456
    %v5640 = vmul.f32 %v5639, 0.6931472
    %v5641 = vlog2.pop %v5457
    %v5642 = vmul.f32 %v5641, 0.6931472
    %v5643 = vlog2.pop %v5458
    %v5644 = vmul.f32 %v5643, 0.6931472
    %v5645 = vlog2.pop %v5459
    %v5646 = vmul.f32 %v5645, 0.6931472
    %v5647 = vlog2.pop %v5460
    %v5648 = vmul.f32 %v5647, 0.6931472
    %v5649 = vlog2.pop %v5461
    %v5650 = vmul.f32 %v5649, 0.6931472
    %v5651 = vlog2.pop %v5462
    %v5652 = vmul.f32 %v5651, 0.6931472
    %v5653 = vlog2.pop %v5463
    %v5654 = vmul.f32 %v5653, 0.6931472
    %v5655 = vlog2.pop %v5464
    %v5656 = vmul.f32 %v5655, 0.6931472
    %v5657 = vlog2.pop %v5465
    %v5658 = vmul.f32 %v5657, 0.6931472
    %v5659 = vlog2.pop %v5466
    %v5660 = vmul.f32 %v5659, 0.6931472
    %v5661 = vlog2.pop %v5467
    %v5662 = vmul.f32 %v5661, 0.6931472
    %v5663 = vlog2.pop %v5468
    %v5664 = vmul.f32 %v5663, 0.6931472
    %v5665 = vlog2.pop %v5469
    %v5666 = vmul.f32 %v5665, 0.6931472
    %v5667 = vlog2.pop %v5470
    %v5668 = vmul.f32 %v5667, 0.6931472
    %v5669 = vlog2.pop %v5471
    %v5670 = vmul.f32 %v5669, 0.6931472
    %v5671 = vlog2.pop %v5472
    %v5672 = vmul.f32 %v5671, 0.6931472
    %v5673 = vlog2.pop %v5473
    %v5674 = vmul.f32 %v5673, 0.6931472
    %v5675 = vlog2.pop %v5474
    %v5676 = vmul.f32 %v5675, 0.6931472
    %v5677 = vlog2.pop %v5475
    %v5678 = vmul.f32 %v5677, 0.6931472
    %v5679 = vlog2.pop %v5476
    %v5680 = vmul.f32 %v5679, 0.6931472
    %v5681 = vlog2.pop %v5477
    %v5682 = vmul.f32 %v5681, 0.6931472
    %v5683 = vlog2.pop %v5478
    %v5684 = vmul.f32 %v5683, 0.6931472
    %v5685 = vlog2.pop %v5479
    %v5686 = vmul.f32 %v5685, 0.6931472
    %v5687 = vlog2.pop %v5480
    %v5688 = vmul.f32 %v5687, 0.6931472
    %v5689 = vlog2.pop %v5481
    %v5690 = vmul.f32 %v5689, 0.6931472
    %v5691 = vlog2.pop %v5482
    %v5692 = vmul.f32 %v5691, 0.6931472
    %v5693 = vlog2.pop %v5483
    %v5694 = vmul.f32 %v5693, 0.6931472
    %v5695 = vlog2.pop %v5484
    %v5696 = vmul.f32 %v5695, 0.6931472
    %v5697 = vlog2.pop %v5485
    %v5698 = vmul.f32 %v5697, 0.6931472
    %v5699 = vlog2.pop %v5486
    %v5700 = vmul.f32 %v5699, 0.6931472
    %v5701 = vlog2.pop %v5487
    %v5702 = vmul.f32 %v5701, 0.6931472
    %v5703 = vlog2.pop %v5488
    %v5704 = vmul.f32 %v5703, 0.6931472
    %v5705 = vlog2.pop %v5489
    %v5706 = vmul.f32 %v5705, 0.6931472
    %v5707 = vlog2.pop %v5490
    %v5708 = vmul.f32 %v5707, 0.6931472
    %v5709 = vlog2.pop %v5491
    %v5710 = vmul.f32 %v5709, 0.6931472
    %v5711 = vlog2.pop %v5492
    %v5712 = vmul.f32 %v5711, 0.6931472
    %v5713 = vlog2.pop %v5493
    %v5714 = vmul.f32 %v5713, 0.6931472
    %v5715 = vlog2.pop %v5494
    %v5716 = vmul.f32 %v5715, 0.6931472
    %v5717 = vlog2.pop %v5495
    %v5718 = vmul.f32 %v5717, 0.6931472
    %v5719 = vlog2.pop %v5496
    %v5720 = vmul.f32 %v5719, 0.6931472
    %v5721 = vlog2.pop %v5497
    %v5722 = vmul.f32 %v5721, 0.6931472
    %v5723 = vlog2.pop %v5498
    %v5724 = vmul.f32 %v5723, 0.6931472
    %v5725 = vlog2.pop %v5499
    %v5726 = vmul.f32 %v5725, 0.6931472
    %v5727 = vlog2.pop %v5500
    %v5728 = vmul.f32 %v5727, 0.6931472
    %v5729 = vlog2.pop %v5501
    %v5730 = vmul.f32 %v5729, 0.6931472
    %v5731 = vlog2.pop %v5502
    %v5732 = vmul.f32 %v5731, 0.6931472
    %v5733 = vlog2.pop %v5503
    %v5734 = vmul.f32 %v5733, 0.6931472
    %v5735 = vlog2.pop %v5504
    %v5736 = vmul.f32 %v5735, 0.6931472
    %v5737 = vlog2.pop %v5505
    %v5738 = vmul.f32 %v5737, 0.6931472
    %v5739 = vlog2.pop %v5506
    %v5740 = vmul.f32 %v5739, 0.6931472
    %v5741 = vlog2.pop %v5507
    %v5742 = vmul.f32 %v5741, 0.6931472
    %v5743 = vlog2.pop %v5508
    %v5744 = vmul.f32 %v5743, 0.6931472
    %v5745 = vlog2.pop %v5509
    %v5746 = vmul.f32 %v5745, 0.6931472
    %v5747 = vlog2.pop %v5510
    %v5748 = vmul.f32 %v5747, 0.6931472
    %v5749 = vlog2.pop %v5511
    %v5750 = vmul.f32 %v5749, 0.6931472
    %v5751 = vlog2.pop %v5512
    %v5752 = vmul.f32 %v5751, 0.6931472
    %v5753 = vlog2.pop %v5513
    %v5754 = vmul.f32 %v5753, 0.6931472
    %v5755 = vlog2.pop %v5514
    %v5756 = vmul.f32 %v5755, 0.6931472
    %v5757 = vlog2.pop %v5515
    %v5758 = vmul.f32 %v5757, 0.6931472
    %v5759 = vlog2.pop %v5516
    %v5760 = vmul.f32 %v5759, 0.6931472
    %v5761 = vlog2.pop %v5517
    %v5762 = vmul.f32 %v5761, 0.6931472
    %v5763 = vlog2.pop %v5518
    %v5764 = vmul.f32 %v5763, 0.6931472
    %v5765 = vlog2.pop %v5519
    %v5766 = vmul.f32 %v5765, 0.6931472
    %v5767 = vlog2.pop %v5520
    %v5768 = vmul.f32 %v5767, 0.6931472
    %v5769 = vlog2.pop %v5521
    %v5770 = vmul.f32 %v5769, 0.6931472
    %v5771 = vlog2.pop %v5522
    %v5772 = vmul.f32 %v5771, 0.6931472
    %v5773 = vlog2.pop %v5523
    %v5774 = vmul.f32 %v5773, 0.6931472
    %v5775 = vlog2.pop %v5524
    %v5776 = vmul.f32 %v5775, 0.6931472
    %v5777 = vlog2.pop %v5525
    %v5778 = vmul.f32 %v5777, 0.6931472
    %v5779 = vlog2.pop %v5526
    %v5780 = vmul.f32 %v5779, 0.6931472
    %v5781 = vlog2.pop %v5527
    %v5782 = vmul.f32 %v5781, 0.6931472
    %v5783 = vlog2.pop %v5528
    %v5784 = vmul.f32 %v5783, 0.6931472
    %v5785 = vmax.f32 %v5530, -100.0
    %v5786 = vmax.f32 %v5532, -100.0
    %v5787 = vmax.f32 %v5534, -100.0
    %v5788 = vmax.f32 %v5536, -100.0
    %v5789 = vmax.f32 %v5538, -100.0
    %v5790 = vmax.f32 %v5540, -100.0
    %v5791 = vmax.f32 %v5542, -100.0
    %v5792 = vmax.f32 %v5544, -100.0
    %v5793 = vmax.f32 %v5546, -100.0
    %v5794 = vmax.f32 %v5548, -100.0
    %v5795 = vmax.f32 %v5550, -100.0
    %v5796 = vmax.f32 %v5552, -100.0
    %v5797 = vmax.f32 %v5554, -100.0
    %v5798 = vmax.f32 %v5556, -100.0
    %v5799 = vmax.f32 %v5558, -100.0
    %v5800 = vmax.f32 %v5560, -100.0
    %v5801 = vmax.f32 %v5562, -100.0
    %v5802 = vmax.f32 %v5564, -100.0
    %v5803 = vmax.f32 %v5566, -100.0
    %v5804 = vmax.f32 %v5568, -100.0
    %v5805 = vmax.f32 %v5570, -100.0
    %v5806 = vmax.f32 %v5572, -100.0
    %v5807 = vmax.f32 %v5574, -100.0
    %v5808 = vmax.f32 %v5576, -100.0
    %v5809 = vmax.f32 %v5578, -100.0
    %v5810 = vmax.f32 %v5580, -100.0
    %v5811 = vmax.f32 %v5582, -100.0
    %v5812 = vmax.f32 %v5584, -100.0
    %v5813 = vmax.f32 %v5586, -100.0
    %v5814 = vmax.f32 %v5588, -100.0
    %v5815 = vmax.f32 %v5590, -100.0
    %v5816 = vmax.f32 %v5592, -100.0
    %v5817 = vmax.f32 %v5594, -100.0
    %v5818 = vmax.f32 %v5596, -100.0
    %v5819 = vmax.f32 %v5598, -100.0
    %v5820 = vmax.f32 %v5600, -100.0
    %v5821 = vmax.f32 %v5602, -100.0
    %v5822 = vmax.f32 %v5604, -100.0
    %v5823 = vmax.f32 %v5606, -100.0
    %v5824 = vmax.f32 %v5608, -100.0
    %v5825 = vmax.f32 %v5610, -100.0
    %v5826 = vmax.f32 %v5612, -100.0
    %v5827 = vmax.f32 %v5614, -100.0
    %v5828 = vmax.f32 %v5616, -100.0
    %v5829 = vmax.f32 %v5618, -100.0
    %v5830 = vmax.f32 %v5620, -100.0
    %v5831 = vmax.f32 %v5622, -100.0
    %v5832 = vmax.f32 %v5624, -100.0
    %v5833 = vmax.f32 %v5626, -100.0
    %v5834 = vmax.f32 %v5628, -100.0
    %v5835 = vmax.f32 %v5630, -100.0
    %v5836 = vmax.f32 %v5632, -100.0
    %v5837 = vmax.f32 %v5634, -100.0
    %v5838 = vmax.f32 %v5636, -100.0
    %v5839 = vmax.f32 %v5638, -100.0
    %v5840 = vmax.f32 %v5640, -100.0
    %v5841 = vmax.f32 %v5642, -100.0
    %v5842 = vmax.f32 %v5644, -100.0
    %v5843 = vmax.f32 %v5646, -100.0
    %v5844 = vmax.f32 %v5648, -100.0
    %v5845 = vmax.f32 %v5650, -100.0
    %v5846 = vmax.f32 %v5652, -100.0
    %v5847 = vmax.f32 %v5654, -100.0
    %v5848 = vmax.f32 %v5656, -100.0
    %v5849 = vmax.f32 %v5658, -100.0
    %v5850 = vmax.f32 %v5660, -100.0
    %v5851 = vmax.f32 %v5662, -100.0
    %v5852 = vmax.f32 %v5664, -100.0
    %v5853 = vmax.f32 %v5666, -100.0
    %v5854 = vmax.f32 %v5668, -100.0
    %v5855 = vmax.f32 %v5670, -100.0
    %v5856 = vmax.f32 %v5672, -100.0
    %v5857 = vmax.f32 %v5674, -100.0
    %v5858 = vmax.f32 %v5676, -100.0
    %v5859 = vmax.f32 %v5678, -100.0
    %v5860 = vmax.f32 %v5680, -100.0
    %v5861 = vmax.f32 %v5682, -100.0
    %v5862 = vmax.f32 %v5684, -100.0
    %v5863 = vmax.f32 %v5686, -100.0
    %v5864 = vmax.f32 %v5688, -100.0
    %v5865 = vmax.f32 %v5690, -100.0
    %v5866 = vmax.f32 %v5692, -100.0
    %v5867 = vmax.f32 %v5694, -100.0
    %v5868 = vmax.f32 %v5696, -100.0
    %v5869 = vmax.f32 %v5698, -100.0
    %v5870 = vmax.f32 %v5700, -100.0
    %v5871 = vmax.f32 %v5702, -100.0
    %v5872 = vmax.f32 %v5704, -100.0
    %v5873 = vmax.f32 %v5706, -100.0
    %v5874 = vmax.f32 %v5708, -100.0
    %v5875 = vmax.f32 %v5710, -100.0
    %v5876 = vmax.f32 %v5712, -100.0
    %v5877 = vmax.f32 %v5714, -100.0
    %v5878 = vmax.f32 %v5716, -100.0
    %v5879 = vmax.f32 %v5718, -100.0
    %v5880 = vmax.f32 %v5720, -100.0
    %v5881 = vmax.f32 %v5722, -100.0
    %v5882 = vmax.f32 %v5724, -100.0
    %v5883 = vmax.f32 %v5726, -100.0
    %v5884 = vmax.f32 %v5728, -100.0
    %v5885 = vmax.f32 %v5730, -100.0
    %v5886 = vmax.f32 %v5732, -100.0
    %v5887 = vmax.f32 %v5734, -100.0
    %v5888 = vmax.f32 %v5736, -100.0
    %v5889 = vmax.f32 %v5738, -100.0
    %v5890 = vmax.f32 %v5740, -100.0
    %v5891 = vmax.f32 %v5742, -100.0
    %v5892 = vmax.f32 %v5744, -100.0
    %v5893 = vmax.f32 %v5746, -100.0
    %v5894 = vmax.f32 %v5748, -100.0
    %v5895 = vmax.f32 %v5750, -100.0
    %v5896 = vmax.f32 %v5752, -100.0
    %v5897 = vmax.f32 %v5754, -100.0
    %v5898 = vmax.f32 %v5756, -100.0
    %v5899 = vmax.f32 %v5758, -100.0
    %v5900 = vmax.f32 %v5760, -100.0
    %v5901 = vmax.f32 %v5762, -100.0
    %v5902 = vmax.f32 %v5764, -100.0
    %v5903 = vmax.f32 %v5766, -100.0
    %v5904 = vmax.f32 %v5768, -100.0
    %v5905 = vmax.f32 %v5770, -100.0
    %v5906 = vmax.f32 %v5772, -100.0
    %v5907 = vmax.f32 %v5774, -100.0
    %v5908 = vmax.f32 %v5776, -100.0
    %v5909 = vmax.f32 %v5778, -100.0
    %v5910 = vmax.f32 %v5780, -100.0
    %v5911 = vmax.f32 %v5782, -100.0
    %v5912 = vmax.f32 %v5784, -100.0
    %v6041 = vlaneseq
    %v6042 = vshrl.u32 %v6041, 7
    %v6043 = vsub.s32 %v4337, %v6042
    %v6044 = vrot.slane %v5273, %v6043
    %v6045 = vlaneseq
    %v6046 = vshrl.u32 %v6045, 7
    %v6047 = vsub.s32 %v4342, %v6046
    %v6048 = vrot.slane %v5274, %v6047
    %v6049 = vsel %vm4347, %v6048, %v6044
    %v6050 = vlaneseq
    %v6051 = vshrl.u32 %v6050, 7
    %v6052 = vsub.s32 %v4349, %v6051
    %v6053 = vrot.slane %v5275, %v6052
    %v6054 = vsel %vm4354, %v6053, %v6049
    %v6055 = vlaneseq
    %v6056 = vshrl.u32 %v6055, 7
    %v6057 = vsub.s32 %v4356, %v6056
    %v6058 = vrot.slane %v5276, %v6057
    %v6059 = vsel %vm4361, %v6058, %v6054
    %v6060 = vlaneseq
    %v6061 = vshrl.u32 %v6060, 7
    %v6062 = vsub.s32 %v4363, %v6061
    %v6063 = vrot.slane %v5277, %v6062
    %v6064 = vsel %vm4368, %v6063, %v6059
    %v6065 = vlaneseq
    %v6066 = vshrl.u32 %v6065, 7
    %v6067 = vsub.s32 %v4370, %v6066
    %v6068 = vrot.slane %v5278, %v6067
    %v6069 = vsel %vm4375, %v6068, %v6064
    %v6070 = vlaneseq
    %v6071 = vshrl.u32 %v6070, 7
    %v6072 = vsub.s32 %v4377, %v6071
    %v6073 = vrot.slane %v5279, %v6072
    %v6074 = vsel %vm4382, %v6073, %v6069
    %v6075 = vlaneseq
    %v6076 = vshrl.u32 %v6075, 7
    %v6077 = vsub.s32 %v4384, %v6076
    %v6078 = vrot.slane %v5280, %v6077
    %v6079 = vsel %vm4389, %v6078, %v6074
    %v6080 = vlaneseq
    %v6081 = vshrl.u32 %v6080, 7
    %v6082 = vsub.s32 %v4391, %v6081
    %v6083 = vrot.slane %v5281, %v6082
    %v6084 = vsel %vm4396, %v6083, %v6079
    %v6085 = vlaneseq
    %v6086 = vshrl.u32 %v6085, 7
    %v6087 = vsub.s32 %v4398, %v6086
    %v6088 = vrot.slane %v5282, %v6087
    %v6089 = vsel %vm4403, %v6088, %v6084
    %v6090 = vlaneseq
    %v6091 = vshrl.u32 %v6090, 7
    %v6092 = vsub.s32 %v4405, %v6091
    %v6093 = vrot.slane %v5283, %v6092
    %v6094 = vsel %vm4410, %v6093, %v6089
    %v6095 = vlaneseq
    %v6096 = vshrl.u32 %v6095, 7
    %v6097 = vsub.s32 %v4412, %v6096
    %v6098 = vrot.slane %v5284, %v6097
    %v6099 = vsel %vm4417, %v6098, %v6094
    %v6100 = vlaneseq
    %v6101 = vshrl.u32 %v6100, 7
    %v6102 = vsub.s32 %v4419, %v6101
    %v6103 = vrot.slane %v5285, %v6102
    %v6104 = vsel %vm4424, %v6103, %v6099
    %v6105 = vlaneseq
    %v6106 = vshrl.u32 %v6105, 7
    %v6107 = vsub.s32 %v4426, %v6106
    %v6108 = vrot.slane %v5286, %v6107
    %v6109 = vsel %vm4431, %v6108, %v6104
    %v6110 = vlaneseq
    %v6111 = vshrl.u32 %v6110, 7
    %v6112 = vsub.s32 %v4433, %v6111
    %v6113 = vrot.slane %v5287, %v6112
    %v6114 = vsel %vm4438, %v6113, %v6109
    %v6115 = vlaneseq
    %v6116 = vshrl.u32 %v6115, 7
    %v6117 = vsub.s32 %v4440, %v6116
    %v6118 = vrot.slane %v5288, %v6117
    %v6119 = vsel %vm4445, %v6118, %v6114
    %v6120 = vlaneseq
    %v6121 = vshrl.u32 %v6120, 7
    %v6122 = vsub.s32 %v4337, %v6121
    %v6123 = vrot.slane %v5289, %v6122
    %v6124 = vlaneseq
    %v6125 = vshrl.u32 %v6124, 7
    %v6126 = vsub.s32 %v4342, %v6125
    %v6127 = vrot.slane %v5290, %v6126
    %v6128 = vsel %vm4347, %v6127, %v6123
    %v6129 = vlaneseq
    %v6130 = vshrl.u32 %v6129, 7
    %v6131 = vsub.s32 %v4349, %v6130
    %v6132 = vrot.slane %v5291, %v6131
    %v6133 = vsel %vm4354, %v6132, %v6128
    %v6134 = vlaneseq
    %v6135 = vshrl.u32 %v6134, 7
    %v6136 = vsub.s32 %v4356, %v6135
    %v6137 = vrot.slane %v5292, %v6136
    %v6138 = vsel %vm4361, %v6137, %v6133
    %v6139 = vlaneseq
    %v6140 = vshrl.u32 %v6139, 7
    %v6141 = vsub.s32 %v4363, %v6140
    %v6142 = vrot.slane %v5293, %v6141
    %v6143 = vsel %vm4368, %v6142, %v6138
    %v6144 = vlaneseq
    %v6145 = vshrl.u32 %v6144, 7
    %v6146 = vsub.s32 %v4370, %v6145
    %v6147 = vrot.slane %v5294, %v6146
    %v6148 = vsel %vm4375, %v6147, %v6143
    %v6149 = vlaneseq
    %v6150 = vshrl.u32 %v6149, 7
    %v6151 = vsub.s32 %v4377, %v6150
    %v6152 = vrot.slane %v5295, %v6151
    %v6153 = vsel %vm4382, %v6152, %v6148
    %v6154 = vlaneseq
    %v6155 = vshrl.u32 %v6154, 7
    %v6156 = vsub.s32 %v4384, %v6155
    %v6157 = vrot.slane %v5296, %v6156
    %v6158 = vsel %vm4389, %v6157, %v6153
    %v6159 = vlaneseq
    %v6160 = vshrl.u32 %v6159, 7
    %v6161 = vsub.s32 %v4391, %v6160
    %v6162 = vrot.slane %v5297, %v6161
    %v6163 = vsel %vm4396, %v6162, %v6158
    %v6164 = vlaneseq
    %v6165 = vshrl.u32 %v6164, 7
    %v6166 = vsub.s32 %v4398, %v6165
    %v6167 = vrot.slane %v5298, %v6166
    %v6168 = vsel %vm4403, %v6167, %v6163
    %v6169 = vlaneseq
    %v6170 = vshrl.u32 %v6169, 7
    %v6171 = vsub.s32 %v4405, %v6170
    %v6172 = vrot.slane %v5299, %v6171
    %v6173 = vsel %vm4410, %v6172, %v6168
    %v6174 = vlaneseq
    %v6175 = vshrl.u32 %v6174, 7
    %v6176 = vsub.s32 %v4412, %v6175
    %v6177 = vrot.slane %v5300, %v6176
    %v6178 = vsel %vm4417, %v6177, %v6173
    %v6179 = vlaneseq
    %v6180 = vshrl.u32 %v6179, 7
    %v6181 = vsub.s32 %v4419, %v6180
    %v6182 = vrot.slane %v5301, %v6181
    %v6183 = vsel %vm4424, %v6182, %v6178
    %v6184 = vlaneseq
    %v6185 = vshrl.u32 %v6184, 7
    %v6186 = vsub.s32 %v4426, %v6185
    %v6187 = vrot.slane %v5302, %v6186
    %v6188 = vsel %vm4431, %v6187, %v6183
    %v6189 = vlaneseq
    %v6190 = vshrl.u32 %v6189, 7
    %v6191 = vsub.s32 %v4433, %v6190
    %v6192 = vrot.slane %v5303, %v6191
    %v6193 = vsel %vm4438, %v6192, %v6188
    %v6194 = vlaneseq
    %v6195 = vshrl.u32 %v6194, 7
    %v6196 = vsub.s32 %v4440, %v6195
    %v6197 = vrot.slane %v5304, %v6196
    %v6198 = vsel %vm4445, %v6197, %v6193
    %v6199 = vlaneseq
    %v6200 = vshrl.u32 %v6199, 7
    %v6201 = vsub.s32 %v4337, %v6200
    %v6202 = vrot.slane %v5305, %v6201
    %v6203 = vlaneseq
    %v6204 = vshrl.u32 %v6203, 7
    %v6205 = vsub.s32 %v4342, %v6204
    %v6206 = vrot.slane %v5306, %v6205
    %v6207 = vsel %vm4347, %v6206, %v6202
    %v6208 = vlaneseq
    %v6209 = vshrl.u32 %v6208, 7
    %v6210 = vsub.s32 %v4349, %v6209
    %v6211 = vrot.slane %v5307, %v6210
    %v6212 = vsel %vm4354, %v6211, %v6207
    %v6213 = vlaneseq
    %v6214 = vshrl.u32 %v6213, 7
    %v6215 = vsub.s32 %v4356, %v6214
    %v6216 = vrot.slane %v5308, %v6215
    %v6217 = vsel %vm4361, %v6216, %v6212
    %v6218 = vlaneseq
    %v6219 = vshrl.u32 %v6218, 7
    %v6220 = vsub.s32 %v4363, %v6219
    %v6221 = vrot.slane %v5309, %v6220
    %v6222 = vsel %vm4368, %v6221, %v6217
    %v6223 = vlaneseq
    %v6224 = vshrl.u32 %v6223, 7
    %v6225 = vsub.s32 %v4370, %v6224
    %v6226 = vrot.slane %v5310, %v6225
    %v6227 = vsel %vm4375, %v6226, %v6222
    %v6228 = vlaneseq
    %v6229 = vshrl.u32 %v6228, 7
    %v6230 = vsub.s32 %v4377, %v6229
    %v6231 = vrot.slane %v5311, %v6230
    %v6232 = vsel %vm4382, %v6231, %v6227
    %v6233 = vlaneseq
    %v6234 = vshrl.u32 %v6233, 7
    %v6235 = vsub.s32 %v4384, %v6234
    %v6236 = vrot.slane %v5312, %v6235
    %v6237 = vsel %vm4389, %v6236, %v6232
    %v6238 = vlaneseq
    %v6239 = vshrl.u32 %v6238, 7
    %v6240 = vsub.s32 %v4391, %v6239
    %v6241 = vrot.slane %v5313, %v6240
    %v6242 = vsel %vm4396, %v6241, %v6237
    %v6243 = vlaneseq
    %v6244 = vshrl.u32 %v6243, 7
    %v6245 = vsub.s32 %v4398, %v6244
    %v6246 = vrot.slane %v5314, %v6245
    %v6247 = vsel %vm4403, %v6246, %v6242
    %v6248 = vlaneseq
    %v6249 = vshrl.u32 %v6248, 7
    %v6250 = vsub.s32 %v4405, %v6249
    %v6251 = vrot.slane %v5315, %v6250
    %v6252 = vsel %vm4410, %v6251, %v6247
    %v6253 = vlaneseq
    %v6254 = vshrl.u32 %v6253, 7
    %v6255 = vsub.s32 %v4412, %v6254
    %v6256 = vrot.slane %v5316, %v6255
    %v6257 = vsel %vm4417, %v6256, %v6252
    %v6258 = vlaneseq
    %v6259 = vshrl.u32 %v6258, 7
    %v6260 = vsub.s32 %v4419, %v6259
    %v6261 = vrot.slane %v5317, %v6260
    %v6262 = vsel %vm4424, %v6261, %v6257
    %v6263 = vlaneseq
    %v6264 = vshrl.u32 %v6263, 7
    %v6265 = vsub.s32 %v4426, %v6264
    %v6266 = vrot.slane %v5318, %v6265
    %v6267 = vsel %vm4431, %v6266, %v6262
    %v6268 = vlaneseq
    %v6269 = vshrl.u32 %v6268, 7
    %v6270 = vsub.s32 %v4433, %v6269
    %v6271 = vrot.slane %v5319, %v6270
    %v6272 = vsel %vm4438, %v6271, %v6267
    %v6273 = vlaneseq
    %v6274 = vshrl.u32 %v6273, 7
    %v6275 = vsub.s32 %v4440, %v6274
    %v6276 = vrot.slane %v5320, %v6275
    %v6277 = vsel %vm4445, %v6276, %v6272
    %v6278 = vlaneseq
    %v6279 = vshrl.u32 %v6278, 7
    %v6280 = vsub.s32 %v4337, %v6279
    %v6281 = vrot.slane %v5321, %v6280
    %v6282 = vlaneseq
    %v6283 = vshrl.u32 %v6282, 7
    %v6284 = vsub.s32 %v4342, %v6283
    %v6285 = vrot.slane %v5322, %v6284
    %v6286 = vsel %vm4347, %v6285, %v6281
    %v6287 = vlaneseq
    %v6288 = vshrl.u32 %v6287, 7
    %v6289 = vsub.s32 %v4349, %v6288
    %v6290 = vrot.slane %v5323, %v6289
    %v6291 = vsel %vm4354, %v6290, %v6286
    %v6292 = vlaneseq
    %v6293 = vshrl.u32 %v6292, 7
    %v6294 = vsub.s32 %v4356, %v6293
    %v6295 = vrot.slane %v5324, %v6294
    %v6296 = vsel %vm4361, %v6295, %v6291
    %v6297 = vlaneseq
    %v6298 = vshrl.u32 %v6297, 7
    %v6299 = vsub.s32 %v4363, %v6298
    %v6300 = vrot.slane %v5325, %v6299
    %v6301 = vsel %vm4368, %v6300, %v6296
    %v6302 = vlaneseq
    %v6303 = vshrl.u32 %v6302, 7
    %v6304 = vsub.s32 %v4370, %v6303
    %v6305 = vrot.slane %v5326, %v6304
    %v6306 = vsel %vm4375, %v6305, %v6301
    %v6307 = vlaneseq
    %v6308 = vshrl.u32 %v6307, 7
    %v6309 = vsub.s32 %v4377, %v6308
    %v6310 = vrot.slane %v5327, %v6309
    %v6311 = vsel %vm4382, %v6310, %v6306
    %v6312 = vlaneseq
    %v6313 = vshrl.u32 %v6312, 7
    %v6314 = vsub.s32 %v4384, %v6313
    %v6315 = vrot.slane %v5328, %v6314
    %v6316 = vsel %vm4389, %v6315, %v6311
    %v6317 = vlaneseq
    %v6318 = vshrl.u32 %v6317, 7
    %v6319 = vsub.s32 %v4391, %v6318
    %v6320 = vrot.slane %v5329, %v6319
    %v6321 = vsel %vm4396, %v6320, %v6316
    %v6322 = vlaneseq
    %v6323 = vshrl.u32 %v6322, 7
    %v6324 = vsub.s32 %v4398, %v6323
    %v6325 = vrot.slane %v5330, %v6324
    %v6326 = vsel %vm4403, %v6325, %v6321
    %v6327 = vlaneseq
    %v6328 = vshrl.u32 %v6327, 7
    %v6329 = vsub.s32 %v4405, %v6328
    %v6330 = vrot.slane %v5331, %v6329
    %v6331 = vsel %vm4410, %v6330, %v6326
    %v6332 = vlaneseq
    %v6333 = vshrl.u32 %v6332, 7
    %v6334 = vsub.s32 %v4412, %v6333
    %v6335 = vrot.slane %v5332, %v6334
    %v6336 = vsel %vm4417, %v6335, %v6331
    %v6337 = vlaneseq
    %v6338 = vshrl.u32 %v6337, 7
    %v6339 = vsub.s32 %v4419, %v6338
    %v6340 = vrot.slane %v5333, %v6339
    %v6341 = vsel %vm4424, %v6340, %v6336
    %v6342 = vlaneseq
    %v6343 = vshrl.u32 %v6342, 7
    %v6344 = vsub.s32 %v4426, %v6343
    %v6345 = vrot.slane %v5334, %v6344
    %v6346 = vsel %vm4431, %v6345, %v6341
    %v6347 = vlaneseq
    %v6348 = vshrl.u32 %v6347, 7
    %v6349 = vsub.s32 %v4433, %v6348
    %v6350 = vrot.slane %v5335, %v6349
    %v6351 = vsel %vm4438, %v6350, %v6346
    %v6352 = vlaneseq
    %v6353 = vshrl.u32 %v6352, 7
    %v6354 = vsub.s32 %v4440, %v6353
    %v6355 = vrot.slane %v5336, %v6354
    %v6356 = vsel %vm4445, %v6355, %v6351
    %v6357 = vlaneseq
    %v6358 = vshrl.u32 %v6357, 7
    %v6359 = vsub.s32 %v4337, %v6358
    %v6360 = vrot.slane %v5337, %v6359
    %v6361 = vlaneseq
    %v6362 = vshrl.u32 %v6361, 7
    %v6363 = vsub.s32 %v4342, %v6362
    %v6364 = vrot.slane %v5338, %v6363
    %v6365 = vsel %vm4347, %v6364, %v6360
    %v6366 = vlaneseq
    %v6367 = vshrl.u32 %v6366, 7
    %v6368 = vsub.s32 %v4349, %v6367
    %v6369 = vrot.slane %v5339, %v6368
    %v6370 = vsel %vm4354, %v6369, %v6365
    %v6371 = vlaneseq
    %v6372 = vshrl.u32 %v6371, 7
    %v6373 = vsub.s32 %v4356, %v6372
    %v6374 = vrot.slane %v5340, %v6373
    %v6375 = vsel %vm4361, %v6374, %v6370
    %v6376 = vlaneseq
    %v6377 = vshrl.u32 %v6376, 7
    %v6378 = vsub.s32 %v4363, %v6377
    %v6379 = vrot.slane %v5341, %v6378
    %v6380 = vsel %vm4368, %v6379, %v6375
    %v6381 = vlaneseq
    %v6382 = vshrl.u32 %v6381, 7
    %v6383 = vsub.s32 %v4370, %v6382
    %v6384 = vrot.slane %v5342, %v6383
    %v6385 = vsel %vm4375, %v6384, %v6380
    %v6386 = vlaneseq
    %v6387 = vshrl.u32 %v6386, 7
    %v6388 = vsub.s32 %v4377, %v6387
    %v6389 = vrot.slane %v5343, %v6388
    %v6390 = vsel %vm4382, %v6389, %v6385
    %v6391 = vlaneseq
    %v6392 = vshrl.u32 %v6391, 7
    %v6393 = vsub.s32 %v4384, %v6392
    %v6394 = vrot.slane %v5344, %v6393
    %v6395 = vsel %vm4389, %v6394, %v6390
    %v6396 = vlaneseq
    %v6397 = vshrl.u32 %v6396, 7
    %v6398 = vsub.s32 %v4391, %v6397
    %v6399 = vrot.slane %v5345, %v6398
    %v6400 = vsel %vm4396, %v6399, %v6395
    %v6401 = vlaneseq
    %v6402 = vshrl.u32 %v6401, 7
    %v6403 = vsub.s32 %v4398, %v6402
    %v6404 = vrot.slane %v5346, %v6403
    %v6405 = vsel %vm4403, %v6404, %v6400
    %v6406 = vlaneseq
    %v6407 = vshrl.u32 %v6406, 7
    %v6408 = vsub.s32 %v4405, %v6407
    %v6409 = vrot.slane %v5347, %v6408
    %v6410 = vsel %vm4410, %v6409, %v6405
    %v6411 = vlaneseq
    %v6412 = vshrl.u32 %v6411, 7
    %v6413 = vsub.s32 %v4412, %v6412
    %v6414 = vrot.slane %v5348, %v6413
    %v6415 = vsel %vm4417, %v6414, %v6410
    %v6416 = vlaneseq
    %v6417 = vshrl.u32 %v6416, 7
    %v6418 = vsub.s32 %v4419, %v6417
    %v6419 = vrot.slane %v5349, %v6418
    %v6420 = vsel %vm4424, %v6419, %v6415
    %v6421 = vlaneseq
    %v6422 = vshrl.u32 %v6421, 7
    %v6423 = vsub.s32 %v4426, %v6422
    %v6424 = vrot.slane %v5350, %v6423
    %v6425 = vsel %vm4431, %v6424, %v6420
    %v6426 = vlaneseq
    %v6427 = vshrl.u32 %v6426, 7
    %v6428 = vsub.s32 %v4433, %v6427
    %v6429 = vrot.slane %v5351, %v6428
    %v6430 = vsel %vm4438, %v6429, %v6425
    %v6431 = vlaneseq
    %v6432 = vshrl.u32 %v6431, 7
    %v6433 = vsub.s32 %v4440, %v6432
    %v6434 = vrot.slane %v5352, %v6433
    %v6435 = vsel %vm4445, %v6434, %v6430
    %v6436 = vlaneseq
    %v6437 = vshrl.u32 %v6436, 7
    %v6438 = vsub.s32 %v4337, %v6437
    %v6439 = vrot.slane %v5353, %v6438
    %v6440 = vlaneseq
    %v6441 = vshrl.u32 %v6440, 7
    %v6442 = vsub.s32 %v4342, %v6441
    %v6443 = vrot.slane %v5354, %v6442
    %v6444 = vsel %vm4347, %v6443, %v6439
    %v6445 = vlaneseq
    %v6446 = vshrl.u32 %v6445, 7
    %v6447 = vsub.s32 %v4349, %v6446
    %v6448 = vrot.slane %v5355, %v6447
    %v6449 = vsel %vm4354, %v6448, %v6444
    %v6450 = vlaneseq
    %v6451 = vshrl.u32 %v6450, 7
    %v6452 = vsub.s32 %v4356, %v6451
    %v6453 = vrot.slane %v5356, %v6452
    %v6454 = vsel %vm4361, %v6453, %v6449
    %v6455 = vlaneseq
    %v6456 = vshrl.u32 %v6455, 7
    %v6457 = vsub.s32 %v4363, %v6456
    %v6458 = vrot.slane %v5357, %v6457
    %v6459 = vsel %vm4368, %v6458, %v6454
    %v6460 = vlaneseq
    %v6461 = vshrl.u32 %v6460, 7
    %v6462 = vsub.s32 %v4370, %v6461
    %v6463 = vrot.slane %v5358, %v6462
    %v6464 = vsel %vm4375, %v6463, %v6459
    %v6465 = vlaneseq
    %v6466 = vshrl.u32 %v6465, 7
    %v6467 = vsub.s32 %v4377, %v6466
    %v6468 = vrot.slane %v5359, %v6467
    %v6469 = vsel %vm4382, %v6468, %v6464
    %v6470 = vlaneseq
    %v6471 = vshrl.u32 %v6470, 7
    %v6472 = vsub.s32 %v4384, %v6471
    %v6473 = vrot.slane %v5360, %v6472
    %v6474 = vsel %vm4389, %v6473, %v6469
    %v6475 = vlaneseq
    %v6476 = vshrl.u32 %v6475, 7
    %v6477 = vsub.s32 %v4391, %v6476
    %v6478 = vrot.slane %v5361, %v6477
    %v6479 = vsel %vm4396, %v6478, %v6474
    %v6480 = vlaneseq
    %v6481 = vshrl.u32 %v6480, 7
    %v6482 = vsub.s32 %v4398, %v6481
    %v6483 = vrot.slane %v5362, %v6482
    %v6484 = vsel %vm4403, %v6483, %v6479
    %v6485 = vlaneseq
    %v6486 = vshrl.u32 %v6485, 7
    %v6487 = vsub.s32 %v4405, %v6486
    %v6488 = vrot.slane %v5363, %v6487
    %v6489 = vsel %vm4410, %v6488, %v6484
    %v6490 = vlaneseq
    %v6491 = vshrl.u32 %v6490, 7
    %v6492 = vsub.s32 %v4412, %v6491
    %v6493 = vrot.slane %v5364, %v6492
    %v6494 = vsel %vm4417, %v6493, %v6489
    %v6495 = vlaneseq
    %v6496 = vshrl.u32 %v6495, 7
    %v6497 = vsub.s32 %v4419, %v6496
    %v6498 = vrot.slane %v5365, %v6497
    %v6499 = vsel %vm4424, %v6498, %v6494
    %v6500 = vlaneseq
    %v6501 = vshrl.u32 %v6500, 7
    %v6502 = vsub.s32 %v4426, %v6501
    %v6503 = vrot.slane %v5366, %v6502
    %v6504 = vsel %vm4431, %v6503, %v6499
    %v6505 = vlaneseq
    %v6506 = vshrl.u32 %v6505, 7
    %v6507 = vsub.s32 %v4433, %v6506
    %v6508 = vrot.slane %v5367, %v6507
    %v6509 = vsel %vm4438, %v6508, %v6504
    %v6510 = vlaneseq
    %v6511 = vshrl.u32 %v6510, 7
    %v6512 = vsub.s32 %v4440, %v6511
    %v6513 = vrot.slane %v5368, %v6512
    %v6514 = vsel %vm4445, %v6513, %v6509
    %v6515 = vlaneseq
    %v6516 = vshrl.u32 %v6515, 7
    %v6517 = vsub.s32 %v4337, %v6516
    %v6518 = vrot.slane %v5369, %v6517
    %v6519 = vlaneseq
    %v6520 = vshrl.u32 %v6519, 7
    %v6521 = vsub.s32 %v4342, %v6520
    %v6522 = vrot.slane %v5370, %v6521
    %v6523 = vsel %vm4347, %v6522, %v6518
    %v6524 = vlaneseq
    %v6525 = vshrl.u32 %v6524, 7
    %v6526 = vsub.s32 %v4349, %v6525
    %v6527 = vrot.slane %v5371, %v6526
    %v6528 = vsel %vm4354, %v6527, %v6523
    %v6529 = vlaneseq
    %v6530 = vshrl.u32 %v6529, 7
    %v6531 = vsub.s32 %v4356, %v6530
    %v6532 = vrot.slane %v5372, %v6531
    %v6533 = vsel %vm4361, %v6532, %v6528
    %v6534 = vlaneseq
    %v6535 = vshrl.u32 %v6534, 7
    %v6536 = vsub.s32 %v4363, %v6535
    %v6537 = vrot.slane %v5373, %v6536
    %v6538 = vsel %vm4368, %v6537, %v6533
    %v6539 = vlaneseq
    %v6540 = vshrl.u32 %v6539, 7
    %v6541 = vsub.s32 %v4370, %v6540
    %v6542 = vrot.slane %v5374, %v6541
    %v6543 = vsel %vm4375, %v6542, %v6538
    %v6544 = vlaneseq
    %v6545 = vshrl.u32 %v6544, 7
    %v6546 = vsub.s32 %v4377, %v6545
    %v6547 = vrot.slane %v5375, %v6546
    %v6548 = vsel %vm4382, %v6547, %v6543
    %v6549 = vlaneseq
    %v6550 = vshrl.u32 %v6549, 7
    %v6551 = vsub.s32 %v4384, %v6550
    %v6552 = vrot.slane %v5376, %v6551
    %v6553 = vsel %vm4389, %v6552, %v6548
    %v6554 = vlaneseq
    %v6555 = vshrl.u32 %v6554, 7
    %v6556 = vsub.s32 %v4391, %v6555
    %v6557 = vrot.slane %v5377, %v6556
    %v6558 = vsel %vm4396, %v6557, %v6553
    %v6559 = vlaneseq
    %v6560 = vshrl.u32 %v6559, 7
    %v6561 = vsub.s32 %v4398, %v6560
    %v6562 = vrot.slane %v5378, %v6561
    %v6563 = vsel %vm4403, %v6562, %v6558
    %v6564 = vlaneseq
    %v6565 = vshrl.u32 %v6564, 7
    %v6566 = vsub.s32 %v4405, %v6565
    %v6567 = vrot.slane %v5379, %v6566
    %v6568 = vsel %vm4410, %v6567, %v6563
    %v6569 = vlaneseq
    %v6570 = vshrl.u32 %v6569, 7
    %v6571 = vsub.s32 %v4412, %v6570
    %v6572 = vrot.slane %v5380, %v6571
    %v6573 = vsel %vm4417, %v6572, %v6568
    %v6574 = vlaneseq
    %v6575 = vshrl.u32 %v6574, 7
    %v6576 = vsub.s32 %v4419, %v6575
    %v6577 = vrot.slane %v5381, %v6576
    %v6578 = vsel %vm4424, %v6577, %v6573
    %v6579 = vlaneseq
    %v6580 = vshrl.u32 %v6579, 7
    %v6581 = vsub.s32 %v4426, %v6580
    %v6582 = vrot.slane %v5382, %v6581
    %v6583 = vsel %vm4431, %v6582, %v6578
    %v6584 = vlaneseq
    %v6585 = vshrl.u32 %v6584, 7
    %v6586 = vsub.s32 %v4433, %v6585
    %v6587 = vrot.slane %v5383, %v6586
    %v6588 = vsel %vm4438, %v6587, %v6583
    %v6589 = vlaneseq
    %v6590 = vshrl.u32 %v6589, 7
    %v6591 = vsub.s32 %v4440, %v6590
    %v6592 = vrot.slane %v5384, %v6591
    %v6593 = vsel %vm4445, %v6592, %v6588
    %v6594 = vlaneseq
    %v6595 = vshrl.u32 %v6594, 7
    %v6596 = vsub.s32 %v4337, %v6595
    %v6597 = vrot.slane %v5385, %v6596
    %v6598 = vlaneseq
    %v6599 = vshrl.u32 %v6598, 7
    %v6600 = vsub.s32 %v4342, %v6599
    %v6601 = vrot.slane %v5386, %v6600
    %v6602 = vsel %vm4347, %v6601, %v6597
    %v6603 = vlaneseq
    %v6604 = vshrl.u32 %v6603, 7
    %v6605 = vsub.s32 %v4349, %v6604
    %v6606 = vrot.slane %v5387, %v6605
    %v6607 = vsel %vm4354, %v6606, %v6602
    %v6608 = vlaneseq
    %v6609 = vshrl.u32 %v6608, 7
    %v6610 = vsub.s32 %v4356, %v6609
    %v6611 = vrot.slane %v5388, %v6610
    %v6612 = vsel %vm4361, %v6611, %v6607
    %v6613 = vlaneseq
    %v6614 = vshrl.u32 %v6613, 7
    %v6615 = vsub.s32 %v4363, %v6614
    %v6616 = vrot.slane %v5389, %v6615
    %v6617 = vsel %vm4368, %v6616, %v6612
    %v6618 = vlaneseq
    %v6619 = vshrl.u32 %v6618, 7
    %v6620 = vsub.s32 %v4370, %v6619
    %v6621 = vrot.slane %v5390, %v6620
    %v6622 = vsel %vm4375, %v6621, %v6617
    %v6623 = vlaneseq
    %v6624 = vshrl.u32 %v6623, 7
    %v6625 = vsub.s32 %v4377, %v6624
    %v6626 = vrot.slane %v5391, %v6625
    %v6627 = vsel %vm4382, %v6626, %v6622
    %v6628 = vlaneseq
    %v6629 = vshrl.u32 %v6628, 7
    %v6630 = vsub.s32 %v4384, %v6629
    %v6631 = vrot.slane %v5392, %v6630
    %v6632 = vsel %vm4389, %v6631, %v6627
    %v6633 = vlaneseq
    %v6634 = vshrl.u32 %v6633, 7
    %v6635 = vsub.s32 %v4391, %v6634
    %v6636 = vrot.slane %v5393, %v6635
    %v6637 = vsel %vm4396, %v6636, %v6632
    %v6638 = vlaneseq
    %v6639 = vshrl.u32 %v6638, 7
    %v6640 = vsub.s32 %v4398, %v6639
    %v6641 = vrot.slane %v5394, %v6640
    %v6642 = vsel %vm4403, %v6641, %v6637
    %v6643 = vlaneseq
    %v6644 = vshrl.u32 %v6643, 7
    %v6645 = vsub.s32 %v4405, %v6644
    %v6646 = vrot.slane %v5395, %v6645
    %v6647 = vsel %vm4410, %v6646, %v6642
    %v6648 = vlaneseq
    %v6649 = vshrl.u32 %v6648, 7
    %v6650 = vsub.s32 %v4412, %v6649
    %v6651 = vrot.slane %v5396, %v6650
    %v6652 = vsel %vm4417, %v6651, %v6647
    %v6653 = vlaneseq
    %v6654 = vshrl.u32 %v6653, 7
    %v6655 = vsub.s32 %v4419, %v6654
    %v6656 = vrot.slane %v5397, %v6655
    %v6657 = vsel %vm4424, %v6656, %v6652
    %v6658 = vlaneseq
    %v6659 = vshrl.u32 %v6658, 7
    %v6660 = vsub.s32 %v4426, %v6659
    %v6661 = vrot.slane %v5398, %v6660
    %v6662 = vsel %vm4431, %v6661, %v6657
    %v6663 = vlaneseq
    %v6664 = vshrl.u32 %v6663, 7
    %v6665 = vsub.s32 %v4433, %v6664
    %v6666 = vrot.slane %v5399, %v6665
    %v6667 = vsel %vm4438, %v6666, %v6662
    %v6668 = vlaneseq
    %v6669 = vshrl.u32 %v6668, 7
    %v6670 = vsub.s32 %v4440, %v6669
    %v6671 = vrot.slane %v5400, %v6670
    %v6672 = vsel %vm4445, %v6671, %v6667
    %v6673 = vsel %vm5000, %v6198, %v6119
    %v6674 = vsel %vm5002, %v6277, %v6673
    %v6675 = vsel %vm5004, %v6356, %v6674
    %v6676 = vsel %vm5006, %v6435, %v6675
    %v6677 = vsel %vm5008, %v6514, %v6676
    %v6678 = vsel %vm5010, %v6593, %v6677
    %v6679 = vsel %vm5012, %v6672, %v6678
    %v6681 = vmul.f32 %v5016, %v6679
    %v6682 = vsub.f32 1.0, %v5016
    %v6811 = vlaneseq
    %v6812 = vshrl.u32 %v6811, 7
    %v6813 = vsub.s32 %v4337, %v6812
    %v6814 = vrot.slane %v5785, %v6813
    %v6815 = vlaneseq
    %v6816 = vshrl.u32 %v6815, 7
    %v6817 = vsub.s32 %v4342, %v6816
    %v6818 = vrot.slane %v5786, %v6817
    %v6819 = vsel %vm4347, %v6818, %v6814
    %v6820 = vlaneseq
    %v6821 = vshrl.u32 %v6820, 7
    %v6822 = vsub.s32 %v4349, %v6821
    %v6823 = vrot.slane %v5787, %v6822
    %v6824 = vsel %vm4354, %v6823, %v6819
    %v6825 = vlaneseq
    %v6826 = vshrl.u32 %v6825, 7
    %v6827 = vsub.s32 %v4356, %v6826
    %v6828 = vrot.slane %v5788, %v6827
    %v6829 = vsel %vm4361, %v6828, %v6824
    %v6830 = vlaneseq
    %v6831 = vshrl.u32 %v6830, 7
    %v6832 = vsub.s32 %v4363, %v6831
    %v6833 = vrot.slane %v5789, %v6832
    %v6834 = vsel %vm4368, %v6833, %v6829
    %v6835 = vlaneseq
    %v6836 = vshrl.u32 %v6835, 7
    %v6837 = vsub.s32 %v4370, %v6836
    %v6838 = vrot.slane %v5790, %v6837
    %v6839 = vsel %vm4375, %v6838, %v6834
    %v6840 = vlaneseq
    %v6841 = vshrl.u32 %v6840, 7
    %v6842 = vsub.s32 %v4377, %v6841
    %v6843 = vrot.slane %v5791, %v6842
    %v6844 = vsel %vm4382, %v6843, %v6839
    %v6845 = vlaneseq
    %v6846 = vshrl.u32 %v6845, 7
    %v6847 = vsub.s32 %v4384, %v6846
    %v6848 = vrot.slane %v5792, %v6847
    %v6849 = vsel %vm4389, %v6848, %v6844
    %v6850 = vlaneseq
    %v6851 = vshrl.u32 %v6850, 7
    %v6852 = vsub.s32 %v4391, %v6851
    %v6853 = vrot.slane %v5793, %v6852
    %v6854 = vsel %vm4396, %v6853, %v6849
    %v6855 = vlaneseq
    %v6856 = vshrl.u32 %v6855, 7
    %v6857 = vsub.s32 %v4398, %v6856
    %v6858 = vrot.slane %v5794, %v6857
    %v6859 = vsel %vm4403, %v6858, %v6854
    %v6860 = vlaneseq
    %v6861 = vshrl.u32 %v6860, 7
    %v6862 = vsub.s32 %v4405, %v6861
    %v6863 = vrot.slane %v5795, %v6862
    %v6864 = vsel %vm4410, %v6863, %v6859
    %v6865 = vlaneseq
    %v6866 = vshrl.u32 %v6865, 7
    %v6867 = vsub.s32 %v4412, %v6866
    %v6868 = vrot.slane %v5796, %v6867
    %v6869 = vsel %vm4417, %v6868, %v6864
    %v6870 = vlaneseq
    %v6871 = vshrl.u32 %v6870, 7
    %v6872 = vsub.s32 %v4419, %v6871
    %v6873 = vrot.slane %v5797, %v6872
    %v6874 = vsel %vm4424, %v6873, %v6869
    %v6875 = vlaneseq
    %v6876 = vshrl.u32 %v6875, 7
    %v6877 = vsub.s32 %v4426, %v6876
    %v6878 = vrot.slane %v5798, %v6877
    %v6879 = vsel %vm4431, %v6878, %v6874
    %v6880 = vlaneseq
    %v6881 = vshrl.u32 %v6880, 7
    %v6882 = vsub.s32 %v4433, %v6881
    %v6883 = vrot.slane %v5799, %v6882
    %v6884 = vsel %vm4438, %v6883, %v6879
    %v6885 = vlaneseq
    %v6886 = vshrl.u32 %v6885, 7
    %v6887 = vsub.s32 %v4440, %v6886
    %v6888 = vrot.slane %v5800, %v6887
    %v6889 = vsel %vm4445, %v6888, %v6884
    %v6890 = vlaneseq
    %v6891 = vshrl.u32 %v6890, 7
    %v6892 = vsub.s32 %v4337, %v6891
    %v6893 = vrot.slane %v5801, %v6892
    %v6894 = vlaneseq
    %v6895 = vshrl.u32 %v6894, 7
    %v6896 = vsub.s32 %v4342, %v6895
    %v6897 = vrot.slane %v5802, %v6896
    %v6898 = vsel %vm4347, %v6897, %v6893
    %v6899 = vlaneseq
    %v6900 = vshrl.u32 %v6899, 7
    %v6901 = vsub.s32 %v4349, %v6900
    %v6902 = vrot.slane %v5803, %v6901
    %v6903 = vsel %vm4354, %v6902, %v6898
    %v6904 = vlaneseq
    %v6905 = vshrl.u32 %v6904, 7
    %v6906 = vsub.s32 %v4356, %v6905
    %v6907 = vrot.slane %v5804, %v6906
    %v6908 = vsel %vm4361, %v6907, %v6903
    %v6909 = vlaneseq
    %v6910 = vshrl.u32 %v6909, 7
    %v6911 = vsub.s32 %v4363, %v6910
    %v6912 = vrot.slane %v5805, %v6911
    %v6913 = vsel %vm4368, %v6912, %v6908
    %v6914 = vlaneseq
    %v6915 = vshrl.u32 %v6914, 7
    %v6916 = vsub.s32 %v4370, %v6915
    %v6917 = vrot.slane %v5806, %v6916
    %v6918 = vsel %vm4375, %v6917, %v6913
    %v6919 = vlaneseq
    %v6920 = vshrl.u32 %v6919, 7
    %v6921 = vsub.s32 %v4377, %v6920
    %v6922 = vrot.slane %v5807, %v6921
    %v6923 = vsel %vm4382, %v6922, %v6918
    %v6924 = vlaneseq
    %v6925 = vshrl.u32 %v6924, 7
    %v6926 = vsub.s32 %v4384, %v6925
    %v6927 = vrot.slane %v5808, %v6926
    %v6928 = vsel %vm4389, %v6927, %v6923
    %v6929 = vlaneseq
    %v6930 = vshrl.u32 %v6929, 7
    %v6931 = vsub.s32 %v4391, %v6930
    %v6932 = vrot.slane %v5809, %v6931
    %v6933 = vsel %vm4396, %v6932, %v6928
    %v6934 = vlaneseq
    %v6935 = vshrl.u32 %v6934, 7
    %v6936 = vsub.s32 %v4398, %v6935
    %v6937 = vrot.slane %v5810, %v6936
    %v6938 = vsel %vm4403, %v6937, %v6933
    %v6939 = vlaneseq
    %v6940 = vshrl.u32 %v6939, 7
    %v6941 = vsub.s32 %v4405, %v6940
    %v6942 = vrot.slane %v5811, %v6941
    %v6943 = vsel %vm4410, %v6942, %v6938
    %v6944 = vlaneseq
    %v6945 = vshrl.u32 %v6944, 7
    %v6946 = vsub.s32 %v4412, %v6945
    %v6947 = vrot.slane %v5812, %v6946
    %v6948 = vsel %vm4417, %v6947, %v6943
    %v6949 = vlaneseq
    %v6950 = vshrl.u32 %v6949, 7
    %v6951 = vsub.s32 %v4419, %v6950
    %v6952 = vrot.slane %v5813, %v6951
    %v6953 = vsel %vm4424, %v6952, %v6948
    %v6954 = vlaneseq
    %v6955 = vshrl.u32 %v6954, 7
    %v6956 = vsub.s32 %v4426, %v6955
    %v6957 = vrot.slane %v5814, %v6956
    %v6958 = vsel %vm4431, %v6957, %v6953
    %v6959 = vlaneseq
    %v6960 = vshrl.u32 %v6959, 7
    %v6961 = vsub.s32 %v4433, %v6960
    %v6962 = vrot.slane %v5815, %v6961
    %v6963 = vsel %vm4438, %v6962, %v6958
    %v6964 = vlaneseq
    %v6965 = vshrl.u32 %v6964, 7
    %v6966 = vsub.s32 %v4440, %v6965
    %v6967 = vrot.slane %v5816, %v6966
    %v6968 = vsel %vm4445, %v6967, %v6963
    %v6969 = vlaneseq
    %v6970 = vshrl.u32 %v6969, 7
    %v6971 = vsub.s32 %v4337, %v6970
    %v6972 = vrot.slane %v5817, %v6971
    %v6973 = vlaneseq
    %v6974 = vshrl.u32 %v6973, 7
    %v6975 = vsub.s32 %v4342, %v6974
    %v6976 = vrot.slane %v5818, %v6975
    %v6977 = vsel %vm4347, %v6976, %v6972
    %v6978 = vlaneseq
    %v6979 = vshrl.u32 %v6978, 7
    %v6980 = vsub.s32 %v4349, %v6979
    %v6981 = vrot.slane %v5819, %v6980
    %v6982 = vsel %vm4354, %v6981, %v6977
    %v6983 = vlaneseq
    %v6984 = vshrl.u32 %v6983, 7
    %v6985 = vsub.s32 %v4356, %v6984
    %v6986 = vrot.slane %v5820, %v6985
    %v6987 = vsel %vm4361, %v6986, %v6982
    %v6988 = vlaneseq
    %v6989 = vshrl.u32 %v6988, 7
    %v6990 = vsub.s32 %v4363, %v6989
    %v6991 = vrot.slane %v5821, %v6990
    %v6992 = vsel %vm4368, %v6991, %v6987
    %v6993 = vlaneseq
    %v6994 = vshrl.u32 %v6993, 7
    %v6995 = vsub.s32 %v4370, %v6994
    %v6996 = vrot.slane %v5822, %v6995
    %v6997 = vsel %vm4375, %v6996, %v6992
    %v6998 = vlaneseq
    %v6999 = vshrl.u32 %v6998, 7
    %v7000 = vsub.s32 %v4377, %v6999
    %v7001 = vrot.slane %v5823, %v7000
    %v7002 = vsel %vm4382, %v7001, %v6997
    %v7003 = vlaneseq
    %v7004 = vshrl.u32 %v7003, 7
    %v7005 = vsub.s32 %v4384, %v7004
    %v7006 = vrot.slane %v5824, %v7005
    %v7007 = vsel %vm4389, %v7006, %v7002
    %v7008 = vlaneseq
    %v7009 = vshrl.u32 %v7008, 7
    %v7010 = vsub.s32 %v4391, %v7009
    %v7011 = vrot.slane %v5825, %v7010
    %v7012 = vsel %vm4396, %v7011, %v7007
    %v7013 = vlaneseq
    %v7014 = vshrl.u32 %v7013, 7
    %v7015 = vsub.s32 %v4398, %v7014
    %v7016 = vrot.slane %v5826, %v7015
    %v7017 = vsel %vm4403, %v7016, %v7012
    %v7018 = vlaneseq
    %v7019 = vshrl.u32 %v7018, 7
    %v7020 = vsub.s32 %v4405, %v7019
    %v7021 = vrot.slane %v5827, %v7020
    %v7022 = vsel %vm4410, %v7021, %v7017
    %v7023 = vlaneseq
    %v7024 = vshrl.u32 %v7023, 7
    %v7025 = vsub.s32 %v4412, %v7024
    %v7026 = vrot.slane %v5828, %v7025
    %v7027 = vsel %vm4417, %v7026, %v7022
    %v7028 = vlaneseq
    %v7029 = vshrl.u32 %v7028, 7
    %v7030 = vsub.s32 %v4419, %v7029
    %v7031 = vrot.slane %v5829, %v7030
    %v7032 = vsel %vm4424, %v7031, %v7027
    %v7033 = vlaneseq
    %v7034 = vshrl.u32 %v7033, 7
    %v7035 = vsub.s32 %v4426, %v7034
    %v7036 = vrot.slane %v5830, %v7035
    %v7037 = vsel %vm4431, %v7036, %v7032
    %v7038 = vlaneseq
    %v7039 = vshrl.u32 %v7038, 7
    %v7040 = vsub.s32 %v4433, %v7039
    %v7041 = vrot.slane %v5831, %v7040
    %v7042 = vsel %vm4438, %v7041, %v7037
    %v7043 = vlaneseq
    %v7044 = vshrl.u32 %v7043, 7
    %v7045 = vsub.s32 %v4440, %v7044
    %v7046 = vrot.slane %v5832, %v7045
    %v7047 = vsel %vm4445, %v7046, %v7042
    %v7048 = vlaneseq
    %v7049 = vshrl.u32 %v7048, 7
    %v7050 = vsub.s32 %v4337, %v7049
    %v7051 = vrot.slane %v5833, %v7050
    %v7052 = vlaneseq
    %v7053 = vshrl.u32 %v7052, 7
    %v7054 = vsub.s32 %v4342, %v7053
    %v7055 = vrot.slane %v5834, %v7054
    %v7056 = vsel %vm4347, %v7055, %v7051
    %v7057 = vlaneseq
    %v7058 = vshrl.u32 %v7057, 7
    %v7059 = vsub.s32 %v4349, %v7058
    %v7060 = vrot.slane %v5835, %v7059
    %v7061 = vsel %vm4354, %v7060, %v7056
    %v7062 = vlaneseq
    %v7063 = vshrl.u32 %v7062, 7
    %v7064 = vsub.s32 %v4356, %v7063
    %v7065 = vrot.slane %v5836, %v7064
    %v7066 = vsel %vm4361, %v7065, %v7061
    %v7067 = vlaneseq
    %v7068 = vshrl.u32 %v7067, 7
    %v7069 = vsub.s32 %v4363, %v7068
    %v7070 = vrot.slane %v5837, %v7069
    %v7071 = vsel %vm4368, %v7070, %v7066
    %v7072 = vlaneseq
    %v7073 = vshrl.u32 %v7072, 7
    %v7074 = vsub.s32 %v4370, %v7073
    %v7075 = vrot.slane %v5838, %v7074
    %v7076 = vsel %vm4375, %v7075, %v7071
    %v7077 = vlaneseq
    %v7078 = vshrl.u32 %v7077, 7
    %v7079 = vsub.s32 %v4377, %v7078
    %v7080 = vrot.slane %v5839, %v7079
    %v7081 = vsel %vm4382, %v7080, %v7076
    %v7082 = vlaneseq
    %v7083 = vshrl.u32 %v7082, 7
    %v7084 = vsub.s32 %v4384, %v7083
    %v7085 = vrot.slane %v5840, %v7084
    %v7086 = vsel %vm4389, %v7085, %v7081
    %v7087 = vlaneseq
    %v7088 = vshrl.u32 %v7087, 7
    %v7089 = vsub.s32 %v4391, %v7088
    %v7090 = vrot.slane %v5841, %v7089
    %v7091 = vsel %vm4396, %v7090, %v7086
    %v7092 = vlaneseq
    %v7093 = vshrl.u32 %v7092, 7
    %v7094 = vsub.s32 %v4398, %v7093
    %v7095 = vrot.slane %v5842, %v7094
    %v7096 = vsel %vm4403, %v7095, %v7091
    %v7097 = vlaneseq
    %v7098 = vshrl.u32 %v7097, 7
    %v7099 = vsub.s32 %v4405, %v7098
    %v7100 = vrot.slane %v5843, %v7099
    %v7101 = vsel %vm4410, %v7100, %v7096
    %v7102 = vlaneseq
    %v7103 = vshrl.u32 %v7102, 7
    %v7104 = vsub.s32 %v4412, %v7103
    %v7105 = vrot.slane %v5844, %v7104
    %v7106 = vsel %vm4417, %v7105, %v7101
    %v7107 = vlaneseq
    %v7108 = vshrl.u32 %v7107, 7
    %v7109 = vsub.s32 %v4419, %v7108
    %v7110 = vrot.slane %v5845, %v7109
    %v7111 = vsel %vm4424, %v7110, %v7106
    %v7112 = vlaneseq
    %v7113 = vshrl.u32 %v7112, 7
    %v7114 = vsub.s32 %v4426, %v7113
    %v7115 = vrot.slane %v5846, %v7114
    %v7116 = vsel %vm4431, %v7115, %v7111
    %v7117 = vlaneseq
    %v7118 = vshrl.u32 %v7117, 7
    %v7119 = vsub.s32 %v4433, %v7118
    %v7120 = vrot.slane %v5847, %v7119
    %v7121 = vsel %vm4438, %v7120, %v7116
    %v7122 = vlaneseq
    %v7123 = vshrl.u32 %v7122, 7
    %v7124 = vsub.s32 %v4440, %v7123
    %v7125 = vrot.slane %v5848, %v7124
    %v7126 = vsel %vm4445, %v7125, %v7121
    %v7127 = vlaneseq
    %v7128 = vshrl.u32 %v7127, 7
    %v7129 = vsub.s32 %v4337, %v7128
    %v7130 = vrot.slane %v5849, %v7129
    %v7131 = vlaneseq
    %v7132 = vshrl.u32 %v7131, 7
    %v7133 = vsub.s32 %v4342, %v7132
    %v7134 = vrot.slane %v5850, %v7133
    %v7135 = vsel %vm4347, %v7134, %v7130
    %v7136 = vlaneseq
    %v7137 = vshrl.u32 %v7136, 7
    %v7138 = vsub.s32 %v4349, %v7137
    %v7139 = vrot.slane %v5851, %v7138
    %v7140 = vsel %vm4354, %v7139, %v7135
    %v7141 = vlaneseq
    %v7142 = vshrl.u32 %v7141, 7
    %v7143 = vsub.s32 %v4356, %v7142
    %v7144 = vrot.slane %v5852, %v7143
    %v7145 = vsel %vm4361, %v7144, %v7140
    %v7146 = vlaneseq
    %v7147 = vshrl.u32 %v7146, 7
    %v7148 = vsub.s32 %v4363, %v7147
    %v7149 = vrot.slane %v5853, %v7148
    %v7150 = vsel %vm4368, %v7149, %v7145
    %v7151 = vlaneseq
    %v7152 = vshrl.u32 %v7151, 7
    %v7153 = vsub.s32 %v4370, %v7152
    %v7154 = vrot.slane %v5854, %v7153
    %v7155 = vsel %vm4375, %v7154, %v7150
    %v7156 = vlaneseq
    %v7157 = vshrl.u32 %v7156, 7
    %v7158 = vsub.s32 %v4377, %v7157
    %v7159 = vrot.slane %v5855, %v7158
    %v7160 = vsel %vm4382, %v7159, %v7155
    %v7161 = vlaneseq
    %v7162 = vshrl.u32 %v7161, 7
    %v7163 = vsub.s32 %v4384, %v7162
    %v7164 = vrot.slane %v5856, %v7163
    %v7165 = vsel %vm4389, %v7164, %v7160
    %v7166 = vlaneseq
    %v7167 = vshrl.u32 %v7166, 7
    %v7168 = vsub.s32 %v4391, %v7167
    %v7169 = vrot.slane %v5857, %v7168
    %v7170 = vsel %vm4396, %v7169, %v7165
    %v7171 = vlaneseq
    %v7172 = vshrl.u32 %v7171, 7
    %v7173 = vsub.s32 %v4398, %v7172
    %v7174 = vrot.slane %v5858, %v7173
    %v7175 = vsel %vm4403, %v7174, %v7170
    %v7176 = vlaneseq
    %v7177 = vshrl.u32 %v7176, 7
    %v7178 = vsub.s32 %v4405, %v7177
    %v7179 = vrot.slane %v5859, %v7178
    %v7180 = vsel %vm4410, %v7179, %v7175
    %v7181 = vlaneseq
    %v7182 = vshrl.u32 %v7181, 7
    %v7183 = vsub.s32 %v4412, %v7182
    %v7184 = vrot.slane %v5860, %v7183
    %v7185 = vsel %vm4417, %v7184, %v7180
    %v7186 = vlaneseq
    %v7187 = vshrl.u32 %v7186, 7
    %v7188 = vsub.s32 %v4419, %v7187
    %v7189 = vrot.slane %v5861, %v7188
    %v7190 = vsel %vm4424, %v7189, %v7185
    %v7191 = vlaneseq
    %v7192 = vshrl.u32 %v7191, 7
    %v7193 = vsub.s32 %v4426, %v7192
    %v7194 = vrot.slane %v5862, %v7193
    %v7195 = vsel %vm4431, %v7194, %v7190
    %v7196 = vlaneseq
    %v7197 = vshrl.u32 %v7196, 7
    %v7198 = vsub.s32 %v4433, %v7197
    %v7199 = vrot.slane %v5863, %v7198
    %v7200 = vsel %vm4438, %v7199, %v7195
    %v7201 = vlaneseq
    %v7202 = vshrl.u32 %v7201, 7
    %v7203 = vsub.s32 %v4440, %v7202
    %v7204 = vrot.slane %v5864, %v7203
    %v7205 = vsel %vm4445, %v7204, %v7200
    %v7206 = vlaneseq
    %v7207 = vshrl.u32 %v7206, 7
    %v7208 = vsub.s32 %v4337, %v7207
    %v7209 = vrot.slane %v5865, %v7208
    %v7210 = vlaneseq
    %v7211 = vshrl.u32 %v7210, 7
    %v7212 = vsub.s32 %v4342, %v7211
    %v7213 = vrot.slane %v5866, %v7212
    %v7214 = vsel %vm4347, %v7213, %v7209
    %v7215 = vlaneseq
    %v7216 = vshrl.u32 %v7215, 7
    %v7217 = vsub.s32 %v4349, %v7216
    %v7218 = vrot.slane %v5867, %v7217
    %v7219 = vsel %vm4354, %v7218, %v7214
    %v7220 = vlaneseq
    %v7221 = vshrl.u32 %v7220, 7
    %v7222 = vsub.s32 %v4356, %v7221
    %v7223 = vrot.slane %v5868, %v7222
    %v7224 = vsel %vm4361, %v7223, %v7219
    %v7225 = vlaneseq
    %v7226 = vshrl.u32 %v7225, 7
    %v7227 = vsub.s32 %v4363, %v7226
    %v7228 = vrot.slane %v5869, %v7227
    %v7229 = vsel %vm4368, %v7228, %v7224
    %v7230 = vlaneseq
    %v7231 = vshrl.u32 %v7230, 7
    %v7232 = vsub.s32 %v4370, %v7231
    %v7233 = vrot.slane %v5870, %v7232
    %v7234 = vsel %vm4375, %v7233, %v7229
    %v7235 = vlaneseq
    %v7236 = vshrl.u32 %v7235, 7
    %v7237 = vsub.s32 %v4377, %v7236
    %v7238 = vrot.slane %v5871, %v7237
    %v7239 = vsel %vm4382, %v7238, %v7234
    %v7240 = vlaneseq
    %v7241 = vshrl.u32 %v7240, 7
    %v7242 = vsub.s32 %v4384, %v7241
    %v7243 = vrot.slane %v5872, %v7242
    %v7244 = vsel %vm4389, %v7243, %v7239
    %v7245 = vlaneseq
    %v7246 = vshrl.u32 %v7245, 7
    %v7247 = vsub.s32 %v4391, %v7246
    %v7248 = vrot.slane %v5873, %v7247
    %v7249 = vsel %vm4396, %v7248, %v7244
    %v7250 = vlaneseq
    %v7251 = vshrl.u32 %v7250, 7
    %v7252 = vsub.s32 %v4398, %v7251
    %v7253 = vrot.slane %v5874, %v7252
    %v7254 = vsel %vm4403, %v7253, %v7249
    %v7255 = vlaneseq
    %v7256 = vshrl.u32 %v7255, 7
    %v7257 = vsub.s32 %v4405, %v7256
    %v7258 = vrot.slane %v5875, %v7257
    %v7259 = vsel %vm4410, %v7258, %v7254
    %v7260 = vlaneseq
    %v7261 = vshrl.u32 %v7260, 7
    %v7262 = vsub.s32 %v4412, %v7261
    %v7263 = vrot.slane %v5876, %v7262
    %v7264 = vsel %vm4417, %v7263, %v7259
    %v7265 = vlaneseq
    %v7266 = vshrl.u32 %v7265, 7
    %v7267 = vsub.s32 %v4419, %v7266
    %v7268 = vrot.slane %v5877, %v7267
    %v7269 = vsel %vm4424, %v7268, %v7264
    %v7270 = vlaneseq
    %v7271 = vshrl.u32 %v7270, 7
    %v7272 = vsub.s32 %v4426, %v7271
    %v7273 = vrot.slane %v5878, %v7272
    %v7274 = vsel %vm4431, %v7273, %v7269
    %v7275 = vlaneseq
    %v7276 = vshrl.u32 %v7275, 7
    %v7277 = vsub.s32 %v4433, %v7276
    %v7278 = vrot.slane %v5879, %v7277
    %v7279 = vsel %vm4438, %v7278, %v7274
    %v7280 = vlaneseq
    %v7281 = vshrl.u32 %v7280, 7
    %v7282 = vsub.s32 %v4440, %v7281
    %v7283 = vrot.slane %v5880, %v7282
    %v7284 = vsel %vm4445, %v7283, %v7279
    %v7285 = vlaneseq
    %v7286 = vshrl.u32 %v7285, 7
    %v7287 = vsub.s32 %v4337, %v7286
    %v7288 = vrot.slane %v5881, %v7287
    %v7289 = vlaneseq
    %v7290 = vshrl.u32 %v7289, 7
    %v7291 = vsub.s32 %v4342, %v7290
    %v7292 = vrot.slane %v5882, %v7291
    %v7293 = vsel %vm4347, %v7292, %v7288
    %v7294 = vlaneseq
    %v7295 = vshrl.u32 %v7294, 7
    %v7296 = vsub.s32 %v4349, %v7295
    %v7297 = vrot.slane %v5883, %v7296
    %v7298 = vsel %vm4354, %v7297, %v7293
    %v7299 = vlaneseq
    %v7300 = vshrl.u32 %v7299, 7
    %v7301 = vsub.s32 %v4356, %v7300
    %v7302 = vrot.slane %v5884, %v7301
    %v7303 = vsel %vm4361, %v7302, %v7298
    %v7304 = vlaneseq
    %v7305 = vshrl.u32 %v7304, 7
    %v7306 = vsub.s32 %v4363, %v7305
    %v7307 = vrot.slane %v5885, %v7306
    %v7308 = vsel %vm4368, %v7307, %v7303
    %v7309 = vlaneseq
    %v7310 = vshrl.u32 %v7309, 7
    %v7311 = vsub.s32 %v4370, %v7310
    %v7312 = vrot.slane %v5886, %v7311
    %v7313 = vsel %vm4375, %v7312, %v7308
    %v7314 = vlaneseq
    %v7315 = vshrl.u32 %v7314, 7
    %v7316 = vsub.s32 %v4377, %v7315
    %v7317 = vrot.slane %v5887, %v7316
    %v7318 = vsel %vm4382, %v7317, %v7313
    %v7319 = vlaneseq
    %v7320 = vshrl.u32 %v7319, 7
    %v7321 = vsub.s32 %v4384, %v7320
    %v7322 = vrot.slane %v5888, %v7321
    %v7323 = vsel %vm4389, %v7322, %v7318
    %v7324 = vlaneseq
    %v7325 = vshrl.u32 %v7324, 7
    %v7326 = vsub.s32 %v4391, %v7325
    %v7327 = vrot.slane %v5889, %v7326
    %v7328 = vsel %vm4396, %v7327, %v7323
    %v7329 = vlaneseq
    %v7330 = vshrl.u32 %v7329, 7
    %v7331 = vsub.s32 %v4398, %v7330
    %v7332 = vrot.slane %v5890, %v7331
    %v7333 = vsel %vm4403, %v7332, %v7328
    %v7334 = vlaneseq
    %v7335 = vshrl.u32 %v7334, 7
    %v7336 = vsub.s32 %v4405, %v7335
    %v7337 = vrot.slane %v5891, %v7336
    %v7338 = vsel %vm4410, %v7337, %v7333
    %v7339 = vlaneseq
    %v7340 = vshrl.u32 %v7339, 7
    %v7341 = vsub.s32 %v4412, %v7340
    %v7342 = vrot.slane %v5892, %v7341
    %v7343 = vsel %vm4417, %v7342, %v7338
    %v7344 = vlaneseq
    %v7345 = vshrl.u32 %v7344, 7
    %v7346 = vsub.s32 %v4419, %v7345
    %v7347 = vrot.slane %v5893, %v7346
    %v7348 = vsel %vm4424, %v7347, %v7343
    %v7349 = vlaneseq
    %v7350 = vshrl.u32 %v7349, 7
    %v7351 = vsub.s32 %v4426, %v7350
    %v7352 = vrot.slane %v5894, %v7351
    %v7353 = vsel %vm4431, %v7352, %v7348
    %v7354 = vlaneseq
    %v7355 = vshrl.u32 %v7354, 7
    %v7356 = vsub.s32 %v4433, %v7355
    %v7357 = vrot.slane %v5895, %v7356
    %v7358 = vsel %vm4438, %v7357, %v7353
    %v7359 = vlaneseq
    %v7360 = vshrl.u32 %v7359, 7
    %v7361 = vsub.s32 %v4440, %v7360
    %v7362 = vrot.slane %v5896, %v7361
    %v7363 = vsel %vm4445, %v7362, %v7358
    %v7364 = vlaneseq
    %v7365 = vshrl.u32 %v7364, 7
    %v7366 = vsub.s32 %v4337, %v7365
    %v7367 = vrot.slane %v5897, %v7366
    %v7368 = vlaneseq
    %v7369 = vshrl.u32 %v7368, 7
    %v7370 = vsub.s32 %v4342, %v7369
    %v7371 = vrot.slane %v5898, %v7370
    %v7372 = vsel %vm4347, %v7371, %v7367
    %v7373 = vlaneseq
    %v7374 = vshrl.u32 %v7373, 7
    %v7375 = vsub.s32 %v4349, %v7374
    %v7376 = vrot.slane %v5899, %v7375
    %v7377 = vsel %vm4354, %v7376, %v7372
    %v7378 = vlaneseq
    %v7379 = vshrl.u32 %v7378, 7
    %v7380 = vsub.s32 %v4356, %v7379
    %v7381 = vrot.slane %v5900, %v7380
    %v7382 = vsel %vm4361, %v7381, %v7377
    %v7383 = vlaneseq
    %v7384 = vshrl.u32 %v7383, 7
    %v7385 = vsub.s32 %v4363, %v7384
    %v7386 = vrot.slane %v5901, %v7385
    %v7387 = vsel %vm4368, %v7386, %v7382
    %v7388 = vlaneseq
    %v7389 = vshrl.u32 %v7388, 7
    %v7390 = vsub.s32 %v4370, %v7389
    %v7391 = vrot.slane %v5902, %v7390
    %v7392 = vsel %vm4375, %v7391, %v7387
    %v7393 = vlaneseq
    %v7394 = vshrl.u32 %v7393, 7
    %v7395 = vsub.s32 %v4377, %v7394
    %v7396 = vrot.slane %v5903, %v7395
    %v7397 = vsel %vm4382, %v7396, %v7392
    %v7398 = vlaneseq
    %v7399 = vshrl.u32 %v7398, 7
    %v7400 = vsub.s32 %v4384, %v7399
    %v7401 = vrot.slane %v5904, %v7400
    %v7402 = vsel %vm4389, %v7401, %v7397
    %v7403 = vlaneseq
    %v7404 = vshrl.u32 %v7403, 7
    %v7405 = vsub.s32 %v4391, %v7404
    %v7406 = vrot.slane %v5905, %v7405
    %v7407 = vsel %vm4396, %v7406, %v7402
    %v7408 = vlaneseq
    %v7409 = vshrl.u32 %v7408, 7
    %v7410 = vsub.s32 %v4398, %v7409
    %v7411 = vrot.slane %v5906, %v7410
    %v7412 = vsel %vm4403, %v7411, %v7407
    %v7413 = vlaneseq
    %v7414 = vshrl.u32 %v7413, 7
    %v7415 = vsub.s32 %v4405, %v7414
    %v7416 = vrot.slane %v5907, %v7415
    %v7417 = vsel %vm4410, %v7416, %v7412
    %v7418 = vlaneseq
    %v7419 = vshrl.u32 %v7418, 7
    %v7420 = vsub.s32 %v4412, %v7419
    %v7421 = vrot.slane %v5908, %v7420
    %v7422 = vsel %vm4417, %v7421, %v7417
    %v7423 = vlaneseq
    %v7424 = vshrl.u32 %v7423, 7
    %v7425 = vsub.s32 %v4419, %v7424
    %v7426 = vrot.slane %v5909, %v7425
    %v7427 = vsel %vm4424, %v7426, %v7422
    %v7428 = vlaneseq
    %v7429 = vshrl.u32 %v7428, 7
    %v7430 = vsub.s32 %v4426, %v7429
    %v7431 = vrot.slane %v5910, %v7430
    %v7432 = vsel %vm4431, %v7431, %v7427
    %v7433 = vlaneseq
    %v7434 = vshrl.u32 %v7433, 7
    %v7435 = vsub.s32 %v4433, %v7434
    %v7436 = vrot.slane %v5911, %v7435
    %v7437 = vsel %vm4438, %v7436, %v7432
    %v7438 = vlaneseq
    %v7439 = vshrl.u32 %v7438, 7
    %v7440 = vsub.s32 %v4440, %v7439
    %v7441 = vrot.slane %v5912, %v7440
    %v7442 = vsel %vm4445, %v7441, %v7437
    %v7443 = vsel %vm5000, %v6968, %v6889
    %v7444 = vsel %vm5002, %v7047, %v7443
    %v7445 = vsel %vm5004, %v7126, %v7444
    %v7446 = vsel %vm5006, %v7205, %v7445
    %v7447 = vsel %vm5008, %v7284, %v7446
    %v7448 = vsel %vm5010, %v7363, %v7447
    %v7449 = vsel %vm5012, %v7442, %v7448
    %v7451 = vmul.f32 %v6682, %v7449
    %v7452 = vadd.f32 %v6681, %v7451
    %v7453 = vsub.f32 0.0, %v7452
    %s7454 = smul.u32 0, 1024
    %v7455 = vlaneseq
    %v7456 = vshrl.u32 %v7455, 7
    %v7457 = vmul.u32 %v7456, 128
    %v7458 = vstv %s7454
    %v7459 = vadd.s32 %v7458, %v7457
    %v7460 = vadd.s32 %v7459, %v4337
    %vm7461 = vcmp.lt.s32.totalorder %v7460, 8
    %v7462 = vsel %vm7461, %v7453, 0.0
    %7463 = vst [vmem:[#allocation10] sm:$0xff] %v7462
    // Predicated region
    $region30: #{tpu_custom_call.1} parent=1 // pred_check
      _
    $region31: #{tpu_custom_call.1} parent=1 // pred_check_branch
      %7465 = sbr.rel (0) target = $region33
    $region32: #{tpu_custom_call.1} parent=1 // pred_region
      %s7467 = ssub.s32 128, 128
      %7468 = vsyncadd [#allocation5], %s7467
      %s7470 = sshll.u32 [#allocation9], 4
      %s7471 = int_to_ptr.vmem [resolvable:$true] %s7470
      %7473 = dma.vmem_to_hbm [thread:$0]  %s7471, 128, %s4, [#allocation5]
    $region33: #{tpu_custom_call.1} parent=1 // pred_fallthru
      _
    // Predicated region
    $region34: #{tpu_custom_call.1} parent=1 // pred_check
      _
    $region35: #{tpu_custom_call.1} parent=1 // pred_check_branch
      %7475 = sbr.rel (0) target = $region37
    $region36: #{tpu_custom_call.1} parent=1 // pred_region
      %s7477 = ssub.s32 128, 128
      %7478 = vsyncadd [#allocation11], %s7477
      %s7480 = sshll.u32 [#allocation10], 4
      %s7481 = int_to_ptr.vmem [resolvable:$true] %s7480
      %7483 = dma.vmem_to_hbm [thread:$0]  %s7481, 128, %s5, [#allocation11]
    $region37: #{tpu_custom_call.1} parent=1 // pred_fallthru
      _
    // Predicated region
    $region38: #{tpu_custom_call.1} parent=1 // pred_check
      _
    $region39: #{tpu_custom_call.1} parent=1 // pred_check_branch
      %7485 = sbr.rel (0) target = $region41
    $region40: #{tpu_custom_call.1} parent=1 // pred_region
      %7486 = dma.done [#allocation5], 128
    $region41: #{tpu_custom_call.1} parent=1 // pred_fallthru
      _
    // Predicated region
    $region42: #{tpu_custom_call.1} parent=1 // pred_check
      _
    $region43: #{tpu_custom_call.1} parent=1 // pred_check_branch
      %7488 = sbr.rel (0) target = $region45
    $region44: #{tpu_custom_call.1} parent=1 // pred_region
      %7489 = dma.done [#allocation11], 128
    $region45: #{tpu_custom_call.1} parent=1 // pred_fallthru
      _
    %7490 = vsyncpa [#allocation4], 1
    %7491 = vsyncpa [#allocation7], 1
    %7492 = vsyncpa [#allocation5], 1
    %7493 = vsyncpa [#allocation11], 1

</llo_original>
